<compile_context>
chip_gen: v7x
topology: tpu7x:2x2x1
jax: 0.10.0
libtpu: 0.0.40
codegen_flags: <defaults>
</compile_context>

<pallas_src>
import functools

import jax
import jax.numpy as jnp
from jax.experimental import pallas as pl
from jax.experimental.pallas import tpu as pltpu


def _round_up(x, m):
    return (x + m - 1) // m * m


# ----------------------------------------------------------------------------
# Pallas kernels
# ----------------------------------------------------------------------------

def conv_relu_pool_kernel(x_ref, w_ref, b_ref, o_ref, acc_ref, row_ref, *,
                          H, W, tap_offsets):
    """Fused 3x3 conv (pad=1) + bias + ReLU + 2x2/2 max-pool for one image.

    x_ref : (1, R_in, K)   zero-padded input, rows flattened (row r = a*(W+2)+b
                           <-> padded pixel (a, b)).  K = Cin, or 9*Cin when the
                           taps were pre-folded into the contraction dim (conv1).
    w_ref : (T, K, Cout)   per-tap weight slabs, T == len(tap_offsets).
    b_ref : (1, Cout)      bias (f32).
    o_ref : (1, H//2, W//2, Cout)   pooled output.
    acc_ref: VMEM (H*(W+2), Cout) f32   conv accumulator.
    row_ref: VMEM (W, Cout) f32         pooling scratch.
    """
    P = W + 2
    M = H * P
    H2, W2 = H // 2, W // 2

    # --- conv as a sum of shifted matmuls.  Tap (kh, kw) of the padded image is
    #     the contiguous row slice [kh*P+kw, kh*P+kw + M) of the flattened input,
    #     so no im2col copy is needed.  Rows whose column index >= W pick up
    #     wrap-around garbage; they are never read by the pooling below. ---
    for t, off in enumerate(tap_offsets):
        lhs = x_ref[0, pl.ds(off, M), :]                      # (M, K) bf16
        contrib = jnp.dot(lhs, w_ref[t], preferred_element_type=jnp.float32)
        if t == 0:
            acc_ref[...] = contrib
        else:
            acc_ref[...] += contrib

    bias = b_ref[...]                                         # (1, Cout) f32

    def pool_row(j, carry):
        base = 2 * j * P
        # max over the two conv rows feeding pooled row j (valid W columns only)
        row_ref[...] = jnp.maximum(acc_ref[pl.ds(base, W), :],
                                   acc_ref[pl.ds(base + P, W), :])
        # max over even/odd columns (2x2 window complete)
        pooled = jnp.maximum(row_ref[pl.ds(0, W2, 2), :],
                             row_ref[pl.ds(1, W2, 2), :])     # (W2, Cout) f32
        # bias + ReLU commute with max -> apply on the 4x smaller pooled tile
        y = jnp.maximum(pooled + bias, 0.0)
        o_ref[0, pl.ds(j, 1), :, :] = y[None].astype(o_ref.dtype)
        return carry

    jax.lax.fori_loop(0, H2, pool_row, 0)


def fc_kernel(x_ref, w_ref, b_ref, o_ref, acc_ref, *, relu):
    """K-tiled fully connected layer: y = x @ W + b (+ optional ReLU)."""
    k = pl.program_id(0)

    @pl.when(k == 0)
    def _init():
        acc_ref[...] = jnp.zeros_like(acc_ref)

    acc_ref[...] += jnp.dot(x_ref[...], w_ref[...],
                            preferred_element_type=jnp.float32)

    @pl.when(k == pl.num_programs(0) - 1)
    def _finalize():
        y = acc_ref[...] + b_ref[...]
        if relu:
            y = jnp.maximum(y, 0.0)
        o_ref[...] = y.astype(o_ref.dtype)


# ----------------------------------------------------------------------------
# Thin JAX wrappers
# ----------------------------------------------------------------------------

def _pad_flatten_nhwc(x_nhwc):
    """Zero-pad H/W by 1 (conv pad=1) and flatten the rows.  One extra padded
    row at the bottom provides the slack needed by the last (kh=2,kw=2) tap."""
    n, h, w, c = x_nhwc.shape
    xp = jnp.pad(x_nhwc, ((0, 0), (1, 2), (1, 1), (0, 0)))
    return xp.reshape(n, (h + 3) * (w + 2), c)


def conv_relu_pool(x_flat, w_taps, b, *, H, W):
    """Fused Conv2d(k=3, pad=1) + ReLU + MaxPool2d(2, 2) on flattened-padded input."""
    n, r_in, k = x_flat.shape
    t, k2, cout = w_taps.shape
    assert k2 == k and H % 2 == 0 and W % 2 == 0
    P = W + 2
    offs = (0,) if t == 1 else tuple(kh * P + kw for kh in range(3) for kw in range(3))
    assert max(offs) + H * P <= r_in
    H2, W2 = H // 2, W // 2

    kern = functools.partial(conv_relu_pool_kernel, H=H, W=W, tap_offsets=offs)
    return pl.pallas_call(
        kern,
        out_shape=jax.ShapeDtypeStruct((n, H2, W2, cout), jnp.bfloat16),
        grid=(n,),
        in_specs=[
            pl.BlockSpec((1, r_in, k), lambda i: (i, 0, 0)),
            pl.BlockSpec((t, k, cout), lambda i: (0, 0, 0)),
            pl.BlockSpec((1, cout), lambda i: (0, 0)),
        ],
        out_specs=pl.BlockSpec((1, H2, W2, cout), lambda i: (i, 0, 0, 0)),
        scratch_shapes=[
            pltpu.VMEM((H * P, cout), jnp.float32),   # conv accumulator
            pltpu.VMEM((W, cout), jnp.float32),       # pooling row scratch
        ],
        compiler_params=pltpu.CompilerParams(
            dimension_semantics=("parallel",),
            vmem_limit_bytes=48 * 1024 * 1024,        # headroom, < v7x 64 MiB
        ),
    )(x_flat, w_taps, b.reshape(1, cout))


def linear(x, w_in_out, b, *, relu, tk=512):
    """nn.Linear with the weight pre-stored as (Fin, Fout); K-tiled accumulation."""
    n, fin = x.shape
    fout = w_in_out.shape[1]
    if fin % tk != 0:
        tk = fin
    kt = fin // tk
    return pl.pallas_call(
        functools.partial(fc_kernel, relu=relu),
        out_shape=jax.ShapeDtypeStruct((n, fout), jnp.float32),
        grid=(kt,),
        in_specs=[
            pl.BlockSpec((n, tk), lambda kk: (0, kk)),
            pl.BlockSpec((tk, fout), lambda kk: (kk, 0)),
            pl.BlockSpec((1, fout), lambda kk: (0, 0)),
        ],
        out_specs=pl.BlockSpec((n, fout), lambda kk: (0, 0)),
        scratch_shapes=[pltpu.VMEM((n, fout), jnp.float32)],
        compiler_params=pltpu.CompilerParams(dimension_semantics=("arbitrary",)),
    )(x, w_in_out, b.reshape(1, fout))


# ----------------------------------------------------------------------------
# Parameters
# ----------------------------------------------------------------------------

def init_params(spatial, num_classes=2, dtype=jnp.float32):
    """PyTorch-layout parameters (OIHW conv weights, (out, in) fc weights)."""
    key = jax.random.PRNGKey(0)
    ks = jax.random.split(key, 10)

    def conv_w(k, cout, cin):
        return jax.random.normal(k, (cout, cin, 3, 3), dtype) / jnp.sqrt(cin * 9.0)

    def fc_w(k, fout, fin):
        return jax.random.normal(k, (fout, fin), dtype) / jnp.sqrt(float(fin))

    fc1_in = 128 * (spatial // 8) ** 2     # 128*28*28 when spatial == 224
    return {
        "w1": conv_w(ks[0], 32, 3),   "b1": jax.random.normal(ks[1], (32,), dtype) * 0.01,
        "w2": conv_w(ks[2], 64, 32),  "b2": jax.random.normal(ks[3], (64,), dtype) * 0.01,
        "w3": conv_w(ks[4], 128, 64), "b3": jax.random.normal(ks[5], (128,), dtype) * 0.01,
        "fw1": fc_w(ks[6], 512, fc1_in), "fb1": jax.random.normal(ks[7], (512,), dtype) * 0.01,
        "fw2": fc_w(ks[8], num_classes, 512),
        "fb2": jax.random.normal(ks[9], (num_classes,), dtype) * 0.01,
    }


def prepare_kernel_params(p, spatial):
    """One-time re-layout for the TPU kernels: per-tap conv slabs (taps folded
    into K for conv1), bf16 matmul operands, fc1 rows permuted to NHWC-flatten
    order and pre-transposed, fc2 pre-transposed."""
    def conv_taps(w):                                  # (Cout,Cin,3,3) -> (9,Cin,Cout)
        cout, cin = w.shape[0], w.shape[1]
        return jnp.transpose(w, (2, 3, 1, 0)).reshape(9, cin, cout)

    h3 = w3 = spatial // 8
    w1t = conv_taps(p["w1"]).reshape(1, 27, 32)        # 9 taps folded into K=27
    # fw1 rows indexed (c, h, w) in PyTorch flatten order -> reorder to (h, w, c)
    fw1k = (p["fw1"].reshape(512, 128, h3, w3)
            .transpose(2, 3, 1, 0).reshape(h3 * w3 * 128, 512))
    return {
        "w1t": w1t.astype(jnp.bfloat16), "b1": p["b1"],
        "w2t": conv_taps(p["w2"]).astype(jnp.bfloat16), "b2": p["b2"],
        "w3t": conv_taps(p["w3"]).astype(jnp.bfloat16), "b3": p["b3"],
        "fw1k": fw1k.astype(jnp.bfloat16), "fb1": p["fb1"],
        "fw2k": jnp.transpose(p["fw2"]), "fb2": p["fb2"],
    }


# ----------------------------------------------------------------------------
# Model forward
# ----------------------------------------------------------------------------

def custom_cnn_forward(x_nchw, kp):
    """Forward pass of CustomCNN. Input: NCHW float32. Output: (N, num_classes) f32."""
    n, cin, hh, ww = x_nchw.shape
    x = jnp.transpose(x_nchw, (0, 2, 3, 1))            # NCHW -> NHWC (channels on lanes)

    # conv1: fold the 9 taps into the contraction dim (K = 27).  The 3-channel
    # input is tiny, so this im2col costs about one 27-channel image in HBM.
    P = ww + 2
    xf = _pad_flatten_nhwc(x)                           # (N, (H+3)*(W+2), 3)
    patches = jnp.concatenate(
        [xf[:, kh * P + kw: kh * P + kw + hh * P, :]
         for kh in range(3) for kw in range(3)], axis=-1).astype(jnp.bfloat16)

    y = conv_relu_pool(patches, kp["w1t"], kp["b1"], H=hh, W=ww)
    y = conv_relu_pool(_pad_flatten_nhwc(y), kp["w2t"], kp["b2"], H=hh // 2, W=ww // 2)
    y = conv_relu_pool(_pad_flatten_nhwc(y), kp["w3t"], kp["b3"], H=hh // 4, W=ww // 4)

    # flatten in NHWC order (no runtime transpose); fc1 rows were pre-permuted
    # at init so this matches x.view(-1, 128*H*W) in the PyTorch module.
    x_flat = y.reshape(n, -1)                           # (N, 128*(H/8)*(W/8)) bf16

    z = linear(x_flat, kp["fw1k"], kp["fb1"], relu=True)
    # TODO(synk): nn.Dropout(0.5) is identity at inference; training-mode mask not implemented.
    out = linear(z, kp["fw2k"], kp["fb2"], relu=False)
    return out


# ----------------------------------------------------------------------------
# Pure-JAX reference (f32, PyTorch-layout params) for the correctness check
# ----------------------------------------------------------------------------

def reference_forward(x, p):
    def conv(x, w, b):
        y = jax.lax.conv_general_dilated(
            x, w, window_strides=(1, 1), padding=((1, 1), (1, 1)),
            dimension_numbers=("NCHW", "OIHW", "NCHW"))
        return jax.nn.relu(y + b[None, :, None, None])

    def pool(x):
        return jax.lax.reduce_window(x, -jnp.inf, jax.lax.max,
                                     (1, 1, 2, 2), (1, 1, 2, 2), "VALID")

    x = pool(conv(x, p["w1"], p["b1"]))
    x = pool(conv(x, p["w2"], p["b2"]))
    x = pool(conv(x, p["w3"], p["b3"]))
    x = x.reshape(x.shape[0], -1)
    x = jax.nn.relu(x @ p["fw1"].T + p["fb1"])
    x = x @ p["fw2"].T + p["fb2"]
    return x


# ----------------------------------------------------------------------------
# Main
# ----------------------------------------------------------------------------

if __name__ == "__main__":
    batch, in_ch, spatial, num_classes = 2, 3, 32, 2

    base_params = init_params(spatial, num_classes=num_classes)
    kparams = prepare_kernel_params(base_params, spatial)
    x = jax.random.normal(jax.random.PRNGKey(0), (batch, in_ch, spatial, spatial),
                          dtype=jnp.float32)

    fwd = jax.jit(custom_cnn_forward)
    out = jax.block_until_ready(fwd(x, kparams))

    ref = reference_forward(x, base_params)
    assert out.shape == (batch, num_classes), out.shape
    # bf16 matmul operands vs. f32 reference -> loose tolerance; a real layout
    # or indexing bug would produce O(1) errors and still be caught.
    assert jnp.allclose(out, ref, atol=1e-1, rtol=1e-1), (out, ref)

    print("KERNEL_OK")
</pallas_src>

<mosaic_0001>
module attributes {stable_mosaic.version = 11 : i64} {
  func.func @conv_relu_pool_kernel(%arg0: i32, %arg1: memref<1x1088x27xbf16, #tpu.memory_space<vmem>>, %arg2: memref<1x27x32xbf16, #tpu.memory_space<vmem>>, %arg3: memref<1x32xf32, #tpu.memory_space<vmem>>, %arg4: memref<1x16x16x32xbf16, #tpu.memory_space<vmem>>, %arg5: memref<1088x32xf32, #tpu.memory_space<vmem>>, %arg6: memref<32x32xf32, #tpu.memory_space<vmem>>) attributes {dimension_semantics = [#tpu.dimension_semantics<parallel>], iteration_bounds = array<i64: 2>, scalar_prefetch = 0 : i64, scratch_operands = 2 : i64, tpu.core_type = #tpu.core_type<tc>, window_params = [{transform_indices = @transform_0, window_bounds = array<i64: 1, 1088, 27>}, {pipeline_mode = #tpu.pipeline_mode<synchronous>, transform_indices = @transform_1, window_bounds = array<i64: 1, 27, 32>}, {pipeline_mode = #tpu.pipeline_mode<synchronous>, transform_indices = @transform_2, window_bounds = array<i64: 1, 32>}, {transform_indices = @transform_3, window_bounds = array<i64: 1, 16, 16, 32>}]} {
    %c0 = arith.constant 0 : index
    %c0_0 = arith.constant 0 : index
    %c0_1 = arith.constant 0 : index
    %0 = vector.load %arg1[%c0, %c0_0, %c0_1] : memref<1x1088x27xbf16, #tpu.memory_space<vmem>>, vector<1x1088x27xbf16>
    %1 = vector.shape_cast %0 : vector<1x1088x27xbf16> to vector<1088x27xbf16>
    %c0_2 = arith.constant 0 : index
    %c0_3 = arith.constant 0 : index
    %c0_4 = arith.constant 0 : index
    %2 = vector.load %arg2[%c0_2, %c0_3, %c0_4] : memref<1x27x32xbf16, #tpu.memory_space<vmem>>, vector<1x27x32xbf16>
    %3 = vector.shape_cast %2 : vector<1x27x32xbf16> to vector<27x32xbf16>
    %cst = arith.constant dense<0.000000e+00> : vector<1088x32xf32>
    %4 = tpu.matmul %1, %3, %cst {dimension_numbers = #tpu.dot_dimension_numbers<[1], [0], [0], [1], [0, 0, 1, 1], [], []>} : vector<1088x27xbf16>, vector<27x32xbf16>, vector<1088x32xf32> -> vector<1088x32xf32>
    %c0_5 = arith.constant 0 : index
    %c0_6 = arith.constant 0 : index
    %5 = vector.load %arg5[%c0_5, %c0_6] : memref<1088x32xf32, #tpu.memory_space<vmem>>, vector<1088x32xf32>
    tpu.vector_store %arg5[%c0_5, %c0_6], %4 {strides = array<i32>} : memref<1088x32xf32, #tpu.memory_space<vmem>>, vector<1088x32xf32>,
    %c0_7 = arith.constant 0 : index
    %c0_8 = arith.constant 0 : index
    %6 = vector.load %arg3[%c0_7, %c0_8] : memref<1x32xf32, #tpu.memory_space<vmem>>, vector<1x32xf32>
    %c0_i32 = arith.constant 0 : i32
    %c16_i32 = arith.constant 16 : i32
    %7 = arith.addi %c0_i32, %c16_i32 : i32
    %c1_i32 = arith.constant 1 : i32
    scf.for %arg7 = %c0_i32 to %7 step %c1_i32  : i32 {
      %c2_i32 = arith.constant 2 : i32
      %8 = arith.muli %c2_i32, %arg7 : i32
      %c34_i32 = arith.constant 34 : i32
      %9 = arith.muli %8, %c34_i32 : i32
      %10 = arith.index_cast %9 : i32 to index
      %c0_10 = arith.constant 0 : index
      %11 = vector.load %arg5[%10, %c0_10] : memref<1088x32xf32, #tpu.memory_space<vmem>>, vector<32x32xf32>
      %c34_i32_11 = arith.constant 34 : i32
      %12 = arith.addi %9, %c34_i32_11 : i32
      %13 = arith.index_cast %12 : i32 to index
      %c0_12 = arith.constant 0 : index
      %14 = vector.load %arg5[%13, %c0_12] : memref<1088x32xf32, #tpu.memory_space<vmem>>, vector<32x32xf32>
      %15 = arith.maximumf %11, %14 : vector<32x32xf32>
      %c0_13 = arith.constant 0 : index
      %c0_14 = arith.constant 0 : index
      %16 = vector.load %arg6[%c0_13, %c0_14] : memref<32x32xf32, #tpu.memory_space<vmem>>, vector<32x32xf32>
      tpu.vector_store %arg6[%c0_13, %c0_14], %15 {strides = array<i32>} : memref<32x32xf32, #tpu.memory_space<vmem>>, vector<32x32xf32>,
      %c0_15 = arith.constant 0 : index
      %c0_16 = arith.constant 0 : index
      %17 = tpu.strided_load %arg6[%c0_15, %c0_16] {strides = array<i32: 2, 1>} : memref<32x32xf32, #tpu.memory_space<vmem>>, vector<16x32xf32>
      %c1 = arith.constant 1 : index
      %c0_17 = arith.constant 0 : index
      %18 = tpu.strided_load %arg6[%c1, %c0_17] {strides = array<i32: 2, 1>} : memref<32x32xf32, #tpu.memory_space<vmem>>, vector<16x32xf32>
      %19 = arith.maximumf %17, %18 : vector<16x32xf32>
      %20 = vector.broadcast %6 : vector<1x32xf32> to vector<16x32xf32>
      %21 = arith.addf %19, %20 : vector<16x32xf32>
      %cst_18 = arith.constant 0.000000e+00 : f32
      %22 = vector.broadcast %cst_18 : f32 to vector<16x32xf32>
      %23 = arith.maximumf %21, %22 : vector<16x32xf32>
      %24 = vector.shape_cast %23 : vector<16x32xf32> to vector<1x16x32xf32>
      %25 = arith.truncf %24 : vector<1x16x32xf32> to vector<1x16x32xbf16>
      %c0_19 = arith.constant 0 : index
      %26 = arith.index_cast %arg7 : i32 to index
      %c0_20 = arith.constant 0 : index
      %c0_21 = arith.constant 0 : index
      %27 = vector.load %arg4[%c0_19, %26, %c0_20, %c0_21] : memref<1x16x16x32xbf16, #tpu.memory_space<vmem>>, vector<1x1x16x32xbf16>
      %28 = vector.shape_cast %27 : vector<1x1x16x32xbf16> to vector<1x16x32xbf16>
      %29 = vector.shape_cast %25 : vector<1x16x32xbf16> to vector<1x1x16x32xbf16>
      tpu.vector_store %arg4[%c0_19, %26, %c0_20, %c0_21], %29 {strides = array<i32>} : memref<1x16x16x32xbf16, #tpu.memory_space<vmem>>, vector<1x1x16x32xbf16>,
    }
    %c16_i32_9 = arith.constant 16 : i32
    return
  }
  func.func @transform_0(%arg0: i32) -> (i32, i32, i32) {
    %c0_i32 = arith.constant 0 : i32
    %c0_i32_0 = arith.constant 0 : i32
    %c0_i32_1 = arith.constant 0 : i32
    return %arg0, %c0_i32, %c0_i32_0 : i32, i32, i32
  }
  func.func @transform_1(%arg0: i32) -> (i32, i32, i32) {
    %c0_i32 = arith.constant 0 : i32
    %c0_i32_0 = arith.constant 0 : i32
    %c0_i32_1 = arith.constant 0 : i32
    %c0_i32_2 = arith.constant 0 : i32
    return %c0_i32, %c0_i32_0, %c0_i32_1 : i32, i32, i32
  }
  func.func @transform_2(%arg0: i32) -> (i32, i32) {
    %c0_i32 = arith.constant 0 : i32
    %c0_i32_0 = arith.constant 0 : i32
    %c0_i32_1 = arith.constant 0 : i32
    return %c0_i32, %c0_i32_0 : i32, i32
  }
  func.func @transform_3(%arg0: i32) -> (i32, i32, i32, i32) {
    %c0_i32 = arith.constant 0 : i32
    %c0_i32_0 = arith.constant 0 : i32
    %c0_i32_1 = arith.constant 0 : i32
    %c0_i32_2 = arith.constant 0 : i32
    return %arg0, %c0_i32, %c0_i32_0, %c0_i32_1 : i32, i32, i32, i32
  }
}

module attributes {stable_mosaic.version = 11 : i64} {
  func.func @conv_relu_pool_kernel(%arg0: i32, %arg1: memref<1x342x32xbf16, #tpu.memory_space<vmem>>, %arg2: memref<9x32x64xbf16, #tpu.memory_space<vmem>>, %arg3: memref<1x64xf32, #tpu.memory_space<vmem>>, %arg4: memref<1x8x8x64xbf16, #tpu.memory_space<vmem>>, %arg5: memref<288x64xf32, #tpu.memory_space<vmem>>, %arg6: memref<16x64xf32, #tpu.memory_space<vmem>>) attributes {dimension_semantics = [#tpu.dimension_semantics<parallel>], iteration_bounds = array<i64: 2>, scalar_prefetch = 0 : i64, scratch_operands = 2 : i64, tpu.core_type = #tpu.core_type<tc>, window_params = [{transform_indices = @transform_0, window_bounds = array<i64: 1, 342, 32>}, {pipeline_mode = #tpu.pipeline_mode<synchronous>, transform_indices = @transform_1, window_bounds = array<i64: 9, 32, 64>}, {pipeline_mode = #tpu.pipeline_mode<synchronous>, transform_indices = @transform_2, window_bounds = array<i64: 1, 64>}, {transform_indices = @transform_3, window_bounds = array<i64: 1, 8, 8, 64>}]} {
    %c0 = arith.constant 0 : index
    %c0_0 = arith.constant 0 : index
    %c0_1 = arith.constant 0 : index
    %0 = vector.load %arg1[%c0, %c0_0, %c0_1] : memref<1x342x32xbf16, #tpu.memory_space<vmem>>, vector<1x288x32xbf16>
    %1 = vector.shape_cast %0 : vector<1x288x32xbf16> to vector<288x32xbf16>
    %c0_2 = arith.constant 0 : index
    %c0_3 = arith.constant 0 : index
    %c0_4 = arith.constant 0 : index
    %2 = vector.load %arg2[%c0_2, %c0_3, %c0_4] : memref<9x32x64xbf16, #tpu.memory_space<vmem>>, vector<1x32x64xbf16>
    %3 = vector.shape_cast %2 : vector<1x32x64xbf16> to vector<32x64xbf16>
    %cst = arith.constant dense<0.000000e+00> : vector<288x64xf32>
    %4 = tpu.matmul %1, %3, %cst {dimension_numbers = #tpu.dot_dimension_numbers<[1], [0], [0], [1], [0, 0, 1, 1], [], []>} : vector<288x32xbf16>, vector<32x64xbf16>, vector<288x64xf32> -> vector<288x64xf32>
    %c0_5 = arith.constant 0 : index
    %c0_6 = arith.constant 0 : index
    %5 = vector.load %arg5[%c0_5, %c0_6] : memref<288x64xf32, #tpu.memory_space<vmem>>, vector<288x64xf32>
    tpu.vector_store %arg5[%c0_5, %c0_6], %4 {strides = array<i32>} : memref<288x64xf32, #tpu.memory_space<vmem>>, vector<288x64xf32>,
    %c0_7 = arith.constant 0 : index
    %c1 = arith.constant 1 : index
    %c0_8 = arith.constant 0 : index
    %6 = vector.load %arg1[%c0_7, %c1, %c0_8] : memref<1x342x32xbf16, #tpu.memory_space<vmem>>, vector<1x288x32xbf16>
    %7 = vector.shape_cast %6 : vector<1x288x32xbf16> to vector<288x32xbf16>
    %c1_9 = arith.constant 1 : index
    %c0_10 = arith.constant 0 : index
    %c0_11 = arith.constant 0 : index
    %8 = vector.load %arg2[%c1_9, %c0_10, %c0_11] : memref<9x32x64xbf16, #tpu.memory_space<vmem>>, vector<1x32x64xbf16>
    %9 = vector.shape_cast %8 : vector<1x32x64xbf16> to vector<32x64xbf16>
    %cst_12 = arith.constant dense<0.000000e+00> : vector<288x64xf32>
    %10 = tpu.matmul %7, %9, %cst_12 {dimension_numbers = #tpu.dot_dimension_numbers<[1], [0], [0], [1], [0, 0, 1, 1], [], []>} : vector<288x32xbf16>, vector<32x64xbf16>, vector<288x64xf32> -> vector<288x64xf32>
    %c0_13 = arith.constant 0 : index
    %c0_14 = arith.constant 0 : index
    %11 = vector.load %arg5[%c0_13, %c0_14] : memref<288x64xf32, #tpu.memory_space<vmem>>, vector<288x64xf32>
    %12 = arith.addf %11, %10 : vector<288x64xf32>
    %c0_15 = arith.constant 0 : index
    %c0_16 = arith.constant 0 : index
    %13 = vector.load %arg5[%c0_15, %c0_16] : memref<288x64xf32, #tpu.memory_space<vmem>>, vector<288x64xf32>
    tpu.vector_store %arg5[%c0_15, %c0_16], %12 {strides = array<i32>} : memref<288x64xf32, #tpu.memory_space<vmem>>, vector<288x64xf32>,
    %c0_17 = arith.constant 0 : index
    %c2 = arith.constant 2 : index
    %c0_18 = arith.constant 0 : index
    %14 = vector.load %arg1[%c0_17, %c2, %c0_18] : memref<1x342x32xbf16, #tpu.memory_space<vmem>>, vector<1x288x32xbf16>
    %15 = vector.shape_cast %14 : vector<1x288x32xbf16> to vector<288x32xbf16>
    %c2_19 = arith.constant 2 : index
    %c0_20 = arith.constant 0 : index
    %c0_21 = arith.constant 0 : index
    %16 = vector.load %arg2[%c2_19, %c0_20, %c0_21] : memref<9x32x64xbf16, #tpu.memory_space<vmem>>, vector<1x32x64xbf16>
    %17 = vector.shape_cast %16 : vector<1x32x64xbf16> to vector<32x64xbf16>
    %cst_22 = arith.constant dense<0.000000e+00> : vector<288x64xf32>
    %18 = tpu.matmul %15, %17, %cst_22 {dimension_numbers = #tpu.dot_dimension_numbers<[1], [0], [0], [1], [0, 0, 1, 1], [], []>} : vector<288x32xbf16>, vector<32x64xbf16>, vector<288x64xf32> -> vector<288x64xf32>
    %c0_23 = arith.constant 0 : index
    %c0_24 = arith.constant 0 : index
    %19 = vector.load %arg5[%c0_23, %c0_24] : memref<288x64xf32, #tpu.memory_space<vmem>>, vector<288x64xf32>
    %20 = arith.addf %19, %18 : vector<288x64xf32>
    %c0_25 = arith.constant 0 : index
    %c0_26 = arith.constant 0 : index
    %21 = vector.load %arg5[%c0_25, %c0_26] : memref<288x64xf32, #tpu.memory_space<vmem>>, vector<288x64xf32>
    tpu.vector_store %arg5[%c0_25, %c0_26], %20 {strides = array<i32>} : memref<288x64xf32, #tpu.memory_space<vmem>>, vector<288x64xf32>,
    %c0_27 = arith.constant 0 : index
    %c18 = arith.constant 18 : index
    %c0_28 = arith.constant 0 : index
    %22 = vector.load %arg1[%c0_27, %c18, %c0_28] : memref<1x342x32xbf16, #tpu.memory_space<vmem>>, vector<1x288x32xbf16>
    %23 = vector.shape_cast %22 : vector<1x288x32xbf16> to vector<288x32xbf16>
    %c3 = arith.constant 3 : index
    %c0_29 = arith.constant 0 : index
    %c0_30 = arith.constant 0 : index
    %24 = vector.load %arg2[%c3, %c0_29, %c0_30] : memref<9x32x64xbf16, #tpu.memory_space<vmem>>, vector<1x32x64xbf16>
    %25 = vector.shape_cast %24 : vector<1x32x64xbf16> to vector<32x64xbf16>
    %cst_31 = arith.constant dense<0.000000e+00> : vector<288x64xf32>
    %26 = tpu.matmul %23, %25, %cst_31 {dimension_numbers = #tpu.dot_dimension_numbers<[1], [0], [0], [1], [0, 0, 1, 1], [], []>} : vector<288x32xbf16>, vector<32x64xbf16>, vector<288x64xf32> -> vector<288x64xf32>
    %c0_32 = arith.constant 0 : index
    %c0_33 = arith.constant 0 : index
    %27 = vector.load %arg5[%c0_32, %c0_33] : memref<288x64xf32, #tpu.memory_space<vmem>>, vector<288x64xf32>
    %28 = arith.addf %27, %26 : vector<288x64xf32>
    %c0_34 = arith.constant 0 : index
    %c0_35 = arith.constant 0 : index
    %29 = vector.load %arg5[%c0_34, %c0_35] : memref<288x64xf32, #tpu.memory_space<vmem>>, vector<288x64xf32>
    tpu.vector_store %arg5[%c0_34, %c0_35], %28 {strides = array<i32>} : memref<288x64xf32, #tpu.memory_space<vmem>>, vector<288x64xf32>,
    %c0_36 = arith.constant 0 : index
    %c19 = arith.constant 19 : index
    %c0_37 = arith.constant 0 : index
    %30 = vector.load %arg1[%c0_36, %c19, %c0_37] : memref<1x342x32xbf16, #tpu.memory_space<vmem>>, vector<1x288x32xbf16>
    %31 = vector.shape_cast %30 : vector<1x288x32xbf16> to vector<288x32xbf16>
    %c4 = arith.constant 4 : index
    %c0_38 = arith.constant 0 : index
    %c0_39 = arith.constant 0 : index
    %32 = vector.load %arg2[%c4, %c0_38, %c0_39] : memref<9x32x64xbf16, #tpu.memory_space<vmem>>, vector<1x32x64xbf16>
    %33 = vector.shape_cast %32 : vector<1x32x64xbf16> to vector<32x64xbf16>
    %cst_40 = arith.constant dense<0.000000e+00> : vector<288x64xf32>
    %34 = tpu.matmul %31, %33, %cst_40 {dimension_numbers = #tpu.dot_dimension_numbers<[1], [0], [0], [1], [0, 0, 1, 1], [], []>} : vector<288x32xbf16>, vector<32x64xbf16>, vector<288x64xf32> -> vector<288x64xf32>
    %c0_41 = arith.constant 0 : index
    %c0_42 = arith.constant 0 : index
    %35 = vector.load %arg5[%c0_41, %c0_42] : memref<288x64xf32, #tpu.memory_space<vmem>>, vector<288x64xf32>
    %36 = arith.addf %35, %34 : vector<288x64xf32>
    %c0_43 = arith.constant 0 : index
    %c0_44 = arith.constant 0 : index
    %37 = vector.load %arg5[%c0_43, %c0_44] : memref<288x64xf32, #tpu.memory_space<vmem>>, vector<288x64xf32>
    tpu.vector_store %arg5[%c0_43, %c0_44], %36 {strides = array<i32>} : memref<288x64xf32, #tpu.memory_space<vmem>>, vector<288x64xf32>,
    %c0_45 = arith.constant 0 : index
    %c20 = arith.constant 20 : index
    %c0_46 = arith.constant 0 : index
    %38 = vector.load %arg1[%c0_45, %c20, %c0_46] : memref<1x342x32xbf16, #tpu.memory_space<vmem>>, vector<1x288x32xbf16>
    %39 = vector.shape_cast %38 : vector<1x288x32xbf16> to vector<288x32xbf16>
    %c5 = arith.constant 5 : index
    %c0_47 = arith.constant 0 : index
    %c0_48 = arith.constant 0 : index
    %40 = vector.load %arg2[%c5, %c0_47, %c0_48] : memref<9x32x64xbf16, #tpu.memory_space<vmem>>, vector<1x32x64xbf16>
    %41 = vector.shape_cast %40 : vector<1x32x64xbf16> to vector<32x64xbf16>
    %cst_49 = arith.constant dense<0.000000e+00> : vector<288x64xf32>
    %42 = tpu.matmul %39, %41, %cst_49 {dimension_numbers = #tpu.dot_dimension_numbers<[1], [0], [0], [1], [0, 0, 1, 1], [], []>} : vector<288x32xbf16>, vector<32x64xbf16>, vector<288x64xf32> -> vector<288x64xf32>
    %c0_50 = arith.constant 0 : index
    %c0_51 = arith.constant 0 : index
    %43 = vector.load %arg5[%c0_50, %c0_51] : memref<288x64xf32, #tpu.memory_space<vmem>>, vector<288x64xf32>
    %44 = arith.addf %43, %42 : vector<288x64xf32>
    %c0_52 = arith.constant 0 : index
    %c0_53 = arith.constant 0 : index
    %45 = vector.load %arg5[%c0_52, %c0_53] : memref<288x64xf32, #tpu.memory_space<vmem>>, vector<288x64xf32>
    tpu.vector_store %arg5[%c0_52, %c0_53], %44 {strides = array<i32>} : memref<288x64xf32, #tpu.memory_space<vmem>>, vector<288x64xf32>,
    %c0_54 = arith.constant 0 : index
    %c36 = arith.constant 36 : index
    %c0_55 = arith.constant 0 : index
    %46 = vector.load %arg1[%c0_54, %c36, %c0_55] : memref<1x342x32xbf16, #tpu.memory_space<vmem>>, vector<1x288x32xbf16>
    %47 = vector.shape_cast %46 : vector<1x288x32xbf16> to vector<288x32xbf16>
    %c6 = arith.constant 6 : index
    %c0_56 = arith.constant 0 : index
    %c0_57 = arith.constant 0 : index
    %48 = vector.load %arg2[%c6, %c0_56, %c0_57] : memref<9x32x64xbf16, #tpu.memory_space<vmem>>, vector<1x32x64xbf16>
    %49 = vector.shape_cast %48 : vector<1x32x64xbf16> to vector<32x64xbf16>
    %cst_58 = arith.constant dense<0.000000e+00> : vector<288x64xf32>
    %50 = tpu.matmul %47, %49, %cst_58 {dimension_numbers = #tpu.dot_dimension_numbers<[1], [0], [0], [1], [0, 0, 1, 1], [], []>} : vector<288x32xbf16>, vector<32x64xbf16>, vector<288x64xf32> -> vector<288x64xf32>
    %c0_59 = arith.constant 0 : index
    %c0_60 = arith.constant 0 : index
    %51 = vector.load %arg5[%c0_59, %c0_60] : memref<288x64xf32, #tpu.memory_space<vmem>>, vector<288x64xf32>
    %52 = arith.addf %51, %50 : vector<288x64xf32>
    %c0_61 = arith.constant 0 : index
    %c0_62 = arith.constant 0 : index
    %53 = vector.load %arg5[%c0_61, %c0_62] : memref<288x64xf32, #tpu.memory_space<vmem>>, vector<288x64xf32>
    tpu.vector_store %arg5[%c0_61, %c0_62], %52 {strides = array<i32>} : memref<288x64xf32, #tpu.memory_space<vmem>>, vector<288x64xf32>,
    %c0_63 = arith.constant 0 : index
    %c37 = arith.constant 37 : index
    %c0_64 = arith.constant 0 : index
    %54 = vector.load %arg1[%c0_63, %c37, %c0_64] : memref<1x342x32xbf16, #tpu.memory_space<vmem>>, vector<1x288x32xbf16>
    %55 = vector.shape_cast %54 : vector<1x288x32xbf16> to vector<288x32xbf16>
    %c7 = arith.constant 7 : index
    %c0_65 = arith.constant 0 : index
    %c0_66 = arith.constant 0 : index
    %56 = vector.load %arg2[%c7, %c0_65, %c0_66] : memref<9x32x64xbf16, #tpu.memory_space<vmem>>, vector<1x32x64xbf16>
    %57 = vector.shape_cast %56 : vector<1x32x64xbf16> to vector<32x64xbf16>
    %cst_67 = arith.constant dense<0.000000e+00> : vector<288x64xf32>
    %58 = tpu.matmul %55, %57, %cst_67 {dimension_numbers = #tpu.dot_dimension_numbers<[1], [0], [0], [1], [0, 0, 1, 1], [], []>} : vector<288x32xbf16>, vector<32x64xbf16>, vector<288x64xf32> -> vector<288x64xf32>
    %c0_68 = arith.constant 0 : index
    %c0_69 = arith.constant 0 : index
    %59 = vector.load %arg5[%c0_68, %c0_69] : memref<288x64xf32, #tpu.memory_space<vmem>>, vector<288x64xf32>
    %60 = arith.addf %59, %58 : vector<288x64xf32>
    %c0_70 = arith.constant 0 : index
    %c0_71 = arith.constant 0 : index
    %61 = vector.load %arg5[%c0_70, %c0_71] : memref<288x64xf32, #tpu.memory_space<vmem>>, vector<288x64xf32>
    tpu.vector_store %arg5[%c0_70, %c0_71], %60 {strides = array<i32>} : memref<288x64xf32, #tpu.memory_space<vmem>>, vector<288x64xf32>,
    %c0_72 = arith.constant 0 : index
    %c38 = arith.constant 38 : index
    %c0_73 = arith.constant 0 : index
    %62 = vector.load %arg1[%c0_72, %c38, %c0_73] : memref<1x342x32xbf16, #tpu.memory_space<vmem>>, vector<1x288x32xbf16>
    %63 = vector.shape_cast %62 : vector<1x288x32xbf16> to vector<288x32xbf16>
    %c8 = arith.constant 8 : index
    %c0_74 = arith.constant 0 : index
    %c0_75 = arith.constant 0 : index
    %64 = vector.load %arg2[%c8, %c0_74, %c0_75] : memref<9x32x64xbf16, #tpu.memory_space<vmem>>, vector<1x32x64xbf16>
    %65 = vector.shape_cast %64 : vector<1x32x64xbf16> to vector<32x64xbf16>
    %cst_76 = arith.constant dense<0.000000e+00> : vector<288x64xf32>
    %66 = tpu.matmul %63, %65, %cst_76 {dimension_numbers = #tpu.dot_dimension_numbers<[1], [0], [0], [1], [0, 0, 1, 1], [], []>} : vector<288x32xbf16>, vector<32x64xbf16>, vector<288x64xf32> -> vector<288x64xf32>
    %c0_77 = arith.constant 0 : index
    %c0_78 = arith.constant 0 : index
    %67 = vector.load %arg5[%c0_77, %c0_78] : memref<288x64xf32, #tpu.memory_space<vmem>>, vector<288x64xf32>
    %68 = arith.addf %67, %66 : vector<288x64xf32>
    %c0_79 = arith.constant 0 : index
    %c0_80 = arith.constant 0 : index
    %69 = vector.load %arg5[%c0_79, %c0_80] : memref<288x64xf32, #tpu.memory_space<vmem>>, vector<288x64xf32>
    tpu.vector_store %arg5[%c0_79, %c0_80], %68 {strides = array<i32>} : memref<288x64xf32, #tpu.memory_space<vmem>>, vector<288x64xf32>,
    %c0_81 = arith.constant 0 : index
    %c0_82 = arith.constant 0 : index
    %70 = vector.load %arg3[%c0_81, %c0_82] : memref<1x64xf32, #tpu.memory_space<vmem>>, vector<1x64xf32>
    %c0_i32 = arith.constant 0 : i32
    %c8_i32 = arith.constant 8 : i32
    %71 = arith.addi %c0_i32, %c8_i32 : i32
    %c1_i32 = arith.constant 1 : i32
    scf.for %arg7 = %c0_i32 to %71 step %c1_i32  : i32 {
      %c2_i32 = arith.constant 2 : i32
      %72 = arith.muli %c2_i32, %arg7 : i32
      %c18_i32 = arith.constant 18 : i32
      %73 = arith.muli %72, %c18_i32 : i32
      %74 = arith.index_cast %73 : i32 to index
      %c0_84 = arith.constant 0 : index
      %75 = vector.load %arg5[%74, %c0_84] : memref<288x64xf32, #tpu.memory_space<vmem>>, vector<16x64xf32>
      %c18_i32_85 = arith.constant 18 : i32
      %76 = arith.addi %73, %c18_i32_85 : i32
      %77 = arith.index_cast %76 : i32 to index
      %c0_86 = arith.constant 0 : index
      %78 = vector.load %arg5[%77, %c0_86] : memref<288x64xf32, #tpu.memory_space<vmem>>, vector<16x64xf32>
      %79 = arith.maximumf %75, %78 : vector<16x64xf32>
      %c0_87 = arith.constant 0 : index
      %c0_88 = arith.constant 0 : index
      %80 = vector.load %arg6[%c0_87, %c0_88] : memref<16x64xf32, #tpu.memory_space<vmem>>, vector<16x64xf32>
      tpu.vector_store %arg6[%c0_87, %c0_88], %79 {strides = array<i32>} : memref<16x64xf32, #tpu.memory_space<vmem>>, vector<16x64xf32>,
      %c0_89 = arith.constant 0 : index
      %c0_90 = arith.constant 0 : index
      %81 = tpu.strided_load %arg6[%c0_89, %c0_90] {strides = array<i32: 2, 1>} : memref<16x64xf32, #tpu.memory_space<vmem>>, vector<8x64xf32>
      %c1_91 = arith.constant 1 : index
      %c0_92 = arith.constant 0 : index
      %82 = tpu.strided_load %arg6[%c1_91, %c0_92] {strides = array<i32: 2, 1>} : memref<16x64xf32, #tpu.memory_space<vmem>>, vector<8x64xf32>
      %83 = arith.maximumf %81, %82 : vector<8x64xf32>
      %84 = vector.broadcast %70 : vector<1x64xf32> to vector<8x64xf32>
      %85 = arith.addf %83, %84 : vector<8x64xf32>
      %cst_93 = arith.constant 0.000000e+00 : f32
      %86 = vector.broadcast %cst_93 : f32 to vector<8x64xf32>
      %87 = arith.maximumf %85, %86 : vector<8x64xf32>
      %88 = vector.shape_cast %87 : vector<8x64xf32> to vector<1x8x64xf32>
      %89 = arith.truncf %88 : vector<1x8x64xf32> to vector<1x8x64xbf16>
      %c0_94 = arith.constant 0 : index
      %90 = arith.index_cast %arg7 : i32 to index
      %c0_95 = arith.constant 0 : index
      %c0_96 = arith.constant 0 : index
      %91 = vector.load %arg4[%c0_94, %90, %c0_95, %c0_96] : memref<1x8x8x64xbf16, #tpu.memory_space<vmem>>, vector<1x1x8x64xbf16>
      %92 = vector.shape_cast %91 : vector<1x1x8x64xbf16> to vector<1x8x64xbf16>
      %93 = vector.shape_cast %89 : vector<1x8x64xbf16> to vector<1x1x8x64xbf16>
      tpu.vector_store %arg4[%c0_94, %90, %c0_95, %c0_96], %93 {strides = array<i32>} : memref<1x8x8x64xbf16, #tpu.memory_space<vmem>>, vector<1x1x8x64xbf16>,
    }
    %c8_i32_83 = arith.constant 8 : i32
    return
  }
  func.func @transform_0(%arg0: i32) -> (i32, i32, i32) {
    %c0_i32 = arith.constant 0 : i32
    %c0_i32_0 = arith.constant 0 : i32
    %c0_i32_1 = arith.constant 0 : i32
    return %arg0, %c0_i32, %c0_i32_0 : i32, i32, i32
  }
  func.func @transform_1(%arg0: i32) -> (i32, i32, i32) {
    %c0_i32 = arith.constant 0 : i32
    %c0_i32_0 = arith.constant 0 : i32
    %c0_i32_1 = arith.constant 0 : i32
    %c0_i32_2 = arith.constant 0 : i32
    return %c0_i32, %c0_i32_0, %c0_i32_1 : i32, i32, i32
  }
  func.func @transform_2(%arg0: i32) -> (i32, i32) {
    %c0_i32 = arith.constant 0 : i32
    %c0_i32_0 = arith.constant 0 : i32
    %c0_i32_1 = arith.constant 0 : i32
    return %c0_i32, %c0_i32_0 : i32, i32
  }
  func.func @transform_3(%arg0: i32) -> (i32, i32, i32, i32) {
    %c0_i32 = arith.constant 0 : i32
    %c0_i32_0 = arith.constant 0 : i32
    %c0_i32_1 = arith.constant 0 : i32
    %c0_i32_2 = arith.constant 0 : i32
    return %arg0, %c0_i32, %c0_i32_0, %c0_i32_1 : i32, i32, i32, i32
  }
}

module attributes {stable_mosaic.version = 11 : i64} {
  func.func @conv_relu_pool_kernel(%arg0: i32, %arg1: memref<1x110x64xbf16, #tpu.memory_space<vmem>>, %arg2: memref<9x64x128xbf16, #tpu.memory_space<vmem>>, %arg3: memref<1x128xf32, #tpu.memory_space<vmem>>, %arg4: memref<1x4x4x128xbf16, #tpu.memory_space<vmem>>, %arg5: memref<80x128xf32, #tpu.memory_space<vmem>>, %arg6: memref<8x128xf32, #tpu.memory_space<vmem>>) attributes {dimension_semantics = [#tpu.dimension_semantics<parallel>], iteration_bounds = array<i64: 2>, scalar_prefetch = 0 : i64, scratch_operands = 2 : i64, tpu.core_type = #tpu.core_type<tc>, window_params = [{transform_indices = @transform_0, window_bounds = array<i64: 1, 110, 64>}, {pipeline_mode = #tpu.pipeline_mode<synchronous>, transform_indices = @transform_1, window_bounds = array<i64: 9, 64, 128>}, {pipeline_mode = #tpu.pipeline_mode<synchronous>, transform_indices = @transform_2, window_bounds = array<i64: 1, 128>}, {transform_indices = @transform_3, window_bounds = array<i64: 1, 4, 4, 128>}]} {
    %c0 = arith.constant 0 : index
    %c0_0 = arith.constant 0 : index
    %c0_1 = arith.constant 0 : index
    %0 = vector.load %arg1[%c0, %c0_0, %c0_1] : memref<1x110x64xbf16, #tpu.memory_space<vmem>>, vector<1x80x64xbf16>
    %1 = vector.shape_cast %0 : vector<1x80x64xbf16> to vector<80x64xbf16>
    %c0_2 = arith.constant 0 : index
    %c0_3 = arith.constant 0 : index
    %c0_4 = arith.constant 0 : index
    %2 = vector.load %arg2[%c0_2, %c0_3, %c0_4] : memref<9x64x128xbf16, #tpu.memory_space<vmem>>, vector<1x64x128xbf16>
    %3 = vector.shape_cast %2 : vector<1x64x128xbf16> to vector<64x128xbf16>
    %cst = arith.constant dense<0.000000e+00> : vector<80x128xf32>
    %4 = tpu.matmul %1, %3, %cst {dimension_numbers = #tpu.dot_dimension_numbers<[1], [0], [0], [1], [0, 0, 1, 1], [], []>} : vector<80x64xbf16>, vector<64x128xbf16>, vector<80x128xf32> -> vector<80x128xf32>
    %c0_5 = arith.constant 0 : index
    %c0_6 = arith.constant 0 : index
    %5 = vector.load %arg5[%c0_5, %c0_6] : memref<80x128xf32, #tpu.memory_space<vmem>>, vector<80x128xf32>
    tpu.vector_store %arg5[%c0_5, %c0_6], %4 {strides = array<i32>} : memref<80x128xf32, #tpu.memory_space<vmem>>, vector<80x128xf32>,
    %c0_7 = arith.constant 0 : index
    %c1 = arith.constant 1 : index
    %c0_8 = arith.constant 0 : index
    %6 = vector.load %arg1[%c0_7, %c1, %c0_8] : memref<1x110x64xbf16, #tpu.memory_space<vmem>>, vector<1x80x64xbf16>
    %7 = vector.shape_cast %6 : vector<1x80x64xbf16> to vector<80x64xbf16>
    %c1_9 = arith.constant 1 : index
    %c0_10 = arith.constant 0 : index
    %c0_11 = arith.constant 0 : index
    %8 = vector.load %arg2[%c1_9, %c0_10, %c0_11] : memref<9x64x128xbf16, #tpu.memory_space<vmem>>, vector<1x64x128xbf16>
    %9 = vector.shape_cast %8 : vector<1x64x128xbf16> to vector<64x128xbf16>
    %cst_12 = arith.constant dense<0.000000e+00> : vector<80x128xf32>
    %10 = tpu.matmul %7, %9, %cst_12 {dimension_numbers = #tpu.dot_dimension_numbers<[1], [0], [0], [1], [0, 0, 1, 1], [], []>} : vector<80x64xbf16>, vector<64x128xbf16>, vector<80x128xf32> -> vector<80x128xf32>
    %c0_13 = arith.constant 0 : index
    %c0_14 = arith.constant 0 : index
    %11 = vector.load %arg5[%c0_13, %c0_14] : memref<80x128xf32, #tpu.memory_space<vmem>>, vector<80x128xf32>
    %12 = arith.addf %11, %10 : vector<80x128xf32>
    %c0_15 = arith.constant 0 : index
    %c0_16 = arith.constant 0 : index
    %13 = vector.load %arg5[%c0_15, %c0_16] : memref<80x128xf32, #tpu.memory_space<vmem>>, vector<80x128xf32>
    tpu.vector_store %arg5[%c0_15, %c0_16], %12 {strides = array<i32>} : memref<80x128xf32, #tpu.memory_space<vmem>>, vector<80x128xf32>,
    %c0_17 = arith.constant 0 : index
    %c2 = arith.constant 2 : index
    %c0_18 = arith.constant 0 : index
    %14 = vector.load %arg1[%c0_17, %c2, %c0_18] : memref<1x110x64xbf16, #tpu.memory_space<vmem>>, vector<1x80x64xbf16>
    %15 = vector.shape_cast %14 : vector<1x80x64xbf16> to vector<80x64xbf16>
    %c2_19 = arith.constant 2 : index
    %c0_20 = arith.constant 0 : index
    %c0_21 = arith.constant 0 : index
    %16 = vector.load %arg2[%c2_19, %c0_20, %c0_21] : memref<9x64x128xbf16, #tpu.memory_space<vmem>>, vector<1x64x128xbf16>
    %17 = vector.shape_cast %16 : vector<1x64x128xbf16> to vector<64x128xbf16>
    %cst_22 = arith.constant dense<0.000000e+00> : vector<80x128xf32>
    %18 = tpu.matmul %15, %17, %cst_22 {dimension_numbers = #tpu.dot_dimension_numbers<[1], [0], [0], [1], [0, 0, 1, 1], [], []>} : vector<80x64xbf16>, vector<64x128xbf16>, vector<80x128xf32> -> vector<80x128xf32>
    %c0_23 = arith.constant 0 : index
    %c0_24 = arith.constant 0 : index
    %19 = vector.load %arg5[%c0_23, %c0_24] : memref<80x128xf32, #tpu.memory_space<vmem>>, vector<80x128xf32>
    %20 = arith.addf %19, %18 : vector<80x128xf32>
    %c0_25 = arith.constant 0 : index
    %c0_26 = arith.constant 0 : index
    %21 = vector.load %arg5[%c0_25, %c0_26] : memref<80x128xf32, #tpu.memory_space<vmem>>, vector<80x128xf32>
    tpu.vector_store %arg5[%c0_25, %c0_26], %20 {strides = array<i32>} : memref<80x128xf32, #tpu.memory_space<vmem>>, vector<80x128xf32>,
    %c0_27 = arith.constant 0 : index
    %c10 = arith.constant 10 : index
    %c0_28 = arith.constant 0 : index
    %22 = vector.load %arg1[%c0_27, %c10, %c0_28] : memref<1x110x64xbf16, #tpu.memory_space<vmem>>, vector<1x80x64xbf16>
    %23 = vector.shape_cast %22 : vector<1x80x64xbf16> to vector<80x64xbf16>
    %c3 = arith.constant 3 : index
    %c0_29 = arith.constant 0 : index
    %c0_30 = arith.constant 0 : index
    %24 = vector.load %arg2[%c3, %c0_29, %c0_30] : memref<9x64x128xbf16, #tpu.memory_space<vmem>>, vector<1x64x128xbf16>
    %25 = vector.shape_cast %24 : vector<1x64x128xbf16> to vector<64x128xbf16>
    %cst_31 = arith.constant dense<0.000000e+00> : vector<80x128xf32>
    %26 = tpu.matmul %23, %25, %cst_31 {dimension_numbers = #tpu.dot_dimension_numbers<[1], [0], [0], [1], [0, 0, 1, 1], [], []>} : vector<80x64xbf16>, vector<64x128xbf16>, vector<80x128xf32> -> vector<80x128xf32>
    %c0_32 = arith.constant 0 : index
    %c0_33 = arith.constant 0 : index
    %27 = vector.load %arg5[%c0_32, %c0_33] : memref<80x128xf32, #tpu.memory_space<vmem>>, vector<80x128xf32>
    %28 = arith.addf %27, %26 : vector<80x128xf32>
    %c0_34 = arith.constant 0 : index
    %c0_35 = arith.constant 0 : index
    %29 = vector.load %arg5[%c0_34, %c0_35] : memref<80x128xf32, #tpu.memory_space<vmem>>, vector<80x128xf32>
    tpu.vector_store %arg5[%c0_34, %c0_35], %28 {strides = array<i32>} : memref<80x128xf32, #tpu.memory_space<vmem>>, vector<80x128xf32>,
    %c0_36 = arith.constant 0 : index
    %c11 = arith.constant 11 : index
    %c0_37 = arith.constant 0 : index
    %30 = vector.load %arg1[%c0_36, %c11, %c0_37] : memref<1x110x64xbf16, #tpu.memory_space<vmem>>, vector<1x80x64xbf16>
    %31 = vector.shape_cast %30 : vector<1x80x64xbf16> to vector<80x64xbf16>
    %c4 = arith.constant 4 : index
    %c0_38 = arith.constant 0 : index
    %c0_39 = arith.constant 0 : index
    %32 = vector.load %arg2[%c4, %c0_38, %c0_39] : memref<9x64x128xbf16, #tpu.memory_space<vmem>>, vector<1x64x128xbf16>
    %33 = vector.shape_cast %32 : vector<1x64x128xbf16> to vector<64x128xbf16>
    %cst_40 = arith.constant dense<0.000000e+00> : vector<80x128xf32>
    %34 = tpu.matmul %31, %33, %cst_40 {dimension_numbers = #tpu.dot_dimension_numbers<[1], [0], [0], [1], [0, 0, 1, 1], [], []>} : vector<80x64xbf16>, vector<64x128xbf16>, vector<80x128xf32> -> vector<80x128xf32>
    %c0_41 = arith.constant 0 : index
    %c0_42 = arith.constant 0 : index
    %35 = vector.load %arg5[%c0_41, %c0_42] : memref<80x128xf32, #tpu.memory_space<vmem>>, vector<80x128xf32>
    %36 = arith.addf %35, %34 : vector<80x128xf32>
    %c0_43 = arith.constant 0 : index
    %c0_44 = arith.constant 0 : index
    %37 = vector.load %arg5[%c0_43, %c0_44] : memref<80x128xf32, #tpu.memory_space<vmem>>, vector<80x128xf32>
    tpu.vector_store %arg5[%c0_43, %c0_44], %36 {strides = array<i32>} : memref<80x128xf32, #tpu.memory_space<vmem>>, vector<80x128xf32>,
    %c0_45 = arith.constant 0 : index
    %c12 = arith.constant 12 : index
    %c0_46 = arith.constant 0 : index
    %38 = vector.load %arg1[%c0_45, %c12, %c0_46] : memref<1x110x64xbf16, #tpu.memory_space<vmem>>, vector<1x80x64xbf16>
    %39 = vector.shape_cast %38 : vector<1x80x64xbf16> to vector<80x64xbf16>
    %c5 = arith.constant 5 : index
    %c0_47 = arith.constant 0 : index
    %c0_48 = arith.constant 0 : index
    %40 = vector.load %arg2[%c5, %c0_47, %c0_48] : memref<9x64x128xbf16, #tpu.memory_space<vmem>>, vector<1x64x128xbf16>
    %41 = vector.shape_cast %40 : vector<1x64x128xbf16> to vector<64x128xbf16>
    %cst_49 = arith.constant dense<0.000000e+00> : vector<80x128xf32>
    %42 = tpu.matmul %39, %41, %cst_49 {dimension_numbers = #tpu.dot_dimension_numbers<[1], [0], [0], [1], [0, 0, 1, 1], [], []>} : vector<80x64xbf16>, vector<64x128xbf16>, vector<80x128xf32> -> vector<80x128xf32>
    %c0_50 = arith.constant 0 : index
    %c0_51 = arith.constant 0 : index
    %43 = vector.load %arg5[%c0_50, %c0_51] : memref<80x128xf32, #tpu.memory_space<vmem>>, vector<80x128xf32>
    %44 = arith.addf %43, %42 : vector<80x128xf32>
    %c0_52 = arith.constant 0 : index
    %c0_53 = arith.constant 0 : index
    %45 = vector.load %arg5[%c0_52, %c0_53] : memref<80x128xf32, #tpu.memory_space<vmem>>, vector<80x128xf32>
    tpu.vector_store %arg5[%c0_52, %c0_53], %44 {strides = array<i32>} : memref<80x128xf32, #tpu.memory_space<vmem>>, vector<80x128xf32>,
    %c0_54 = arith.constant 0 : index
    %c20 = arith.constant 20 : index
    %c0_55 = arith.constant 0 : index
    %46 = vector.load %arg1[%c0_54, %c20, %c0_55] : memref<1x110x64xbf16, #tpu.memory_space<vmem>>, vector<1x80x64xbf16>
    %47 = vector.shape_cast %46 : vector<1x80x64xbf16> to vector<80x64xbf16>
    %c6 = arith.constant 6 : index
    %c0_56 = arith.constant 0 : index
    %c0_57 = arith.constant 0 : index
    %48 = vector.load %arg2[%c6, %c0_56, %c0_57] : memref<9x64x128xbf16, #tpu.memory_space<vmem>>, vector<1x64x128xbf16>
    %49 = vector.shape_cast %48 : vector<1x64x128xbf16> to vector<64x128xbf16>
    %cst_58 = arith.constant dense<0.000000e+00> : vector<80x128xf32>
    %50 = tpu.matmul %47, %49, %cst_58 {dimension_numbers = #tpu.dot_dimension_numbers<[1], [0], [0], [1], [0, 0, 1, 1], [], []>} : vector<80x64xbf16>, vector<64x128xbf16>, vector<80x128xf32> -> vector<80x128xf32>
    %c0_59 = arith.constant 0 : index
    %c0_60 = arith.constant 0 : index
    %51 = vector.load %arg5[%c0_59, %c0_60] : memref<80x128xf32, #tpu.memory_space<vmem>>, vector<80x128xf32>
    %52 = arith.addf %51, %50 : vector<80x128xf32>
    %c0_61 = arith.constant 0 : index
    %c0_62 = arith.constant 0 : index
    %53 = vector.load %arg5[%c0_61, %c0_62] : memref<80x128xf32, #tpu.memory_space<vmem>>, vector<80x128xf32>
    tpu.vector_store %arg5[%c0_61, %c0_62], %52 {strides = array<i32>} : memref<80x128xf32, #tpu.memory_space<vmem>>, vector<80x128xf32>,
    %c0_63 = arith.constant 0 : index
    %c21 = arith.constant 21 : index
    %c0_64 = arith.constant 0 : index
    %54 = vector.load %arg1[%c0_63, %c21, %c0_64] : memref<1x110x64xbf16, #tpu.memory_space<vmem>>, vector<1x80x64xbf16>
    %55 = vector.shape_cast %54 : vector<1x80x64xbf16> to vector<80x64xbf16>
    %c7 = arith.constant 7 : index
    %c0_65 = arith.constant 0 : index
    %c0_66 = arith.constant 0 : index
    %56 = vector.load %arg2[%c7, %c0_65, %c0_66] : memref<9x64x128xbf16, #tpu.memory_space<vmem>>, vector<1x64x128xbf16>
    %57 = vector.shape_cast %56 : vector<1x64x128xbf16> to vector<64x128xbf16>
    %cst_67 = arith.constant dense<0.000000e+00> : vector<80x128xf32>
    %58 = tpu.matmul %55, %57, %cst_67 {dimension_numbers = #tpu.dot_dimension_numbers<[1], [0], [0], [1], [0, 0, 1, 1], [], []>} : vector<80x64xbf16>, vector<64x128xbf16>, vector<80x128xf32> -> vector<80x128xf32>
    %c0_68 = arith.constant 0 : index
    %c0_69 = arith.constant 0 : index
    %59 = vector.load %arg5[%c0_68, %c0_69] : memref<80x128xf32, #tpu.memory_space<vmem>>, vector<80x128xf32>
    %60 = arith.addf %59, %58 : vector<80x128xf32>
    %c0_70 = arith.constant 0 : index
    %c0_71 = arith.constant 0 : index
    %61 = vector.load %arg5[%c0_70, %c0_71] : memref<80x128xf32, #tpu.memory_space<vmem>>, vector<80x128xf32>
    tpu.vector_store %arg5[%c0_70, %c0_71], %60 {strides = array<i32>} : memref<80x128xf32, #tpu.memory_space<vmem>>, vector<80x128xf32>,
    %c0_72 = arith.constant 0 : index
    %c22 = arith.constant 22 : index
    %c0_73 = arith.constant 0 : index
    %62 = vector.load %arg1[%c0_72, %c22, %c0_73] : memref<1x110x64xbf16, #tpu.memory_space<vmem>>, vector<1x80x64xbf16>
    %63 = vector.shape_cast %62 : vector<1x80x64xbf16> to vector<80x64xbf16>
    %c8 = arith.constant 8 : index
    %c0_74 = arith.constant 0 : index
    %c0_75 = arith.constant 0 : index
    %64 = vector.load %arg2[%c8, %c0_74, %c0_75] : memref<9x64x128xbf16, #tpu.memory_space<vmem>>, vector<1x64x128xbf16>
    %65 = vector.shape_cast %64 : vector<1x64x128xbf16> to vector<64x128xbf16>
    %cst_76 = arith.constant dense<0.000000e+00> : vector<80x128xf32>
    %66 = tpu.matmul %63, %65, %cst_76 {dimension_numbers = #tpu.dot_dimension_numbers<[1], [0], [0], [1], [0, 0, 1, 1], [], []>} : vector<80x64xbf16>, vector<64x128xbf16>, vector<80x128xf32> -> vector<80x128xf32>
    %c0_77 = arith.constant 0 : index
    %c0_78 = arith.constant 0 : index
    %67 = vector.load %arg5[%c0_77, %c0_78] : memref<80x128xf32, #tpu.memory_space<vmem>>, vector<80x128xf32>
    %68 = arith.addf %67, %66 : vector<80x128xf32>
    %c0_79 = arith.constant 0 : index
    %c0_80 = arith.constant 0 : index
    %69 = vector.load %arg5[%c0_79, %c0_80] : memref<80x128xf32, #tpu.memory_space<vmem>>, vector<80x128xf32>
    tpu.vector_store %arg5[%c0_79, %c0_80], %68 {strides = array<i32>} : memref<80x128xf32, #tpu.memory_space<vmem>>, vector<80x128xf32>,
    %c0_81 = arith.constant 0 : index
    %c0_82 = arith.constant 0 : index
    %70 = vector.load %arg3[%c0_81, %c0_82] : memref<1x128xf32, #tpu.memory_space<vmem>>, vector<1x128xf32>
    %c0_i32 = arith.constant 0 : i32
    %c4_i32 = arith.constant 4 : i32
    %71 = arith.addi %c0_i32, %c4_i32 : i32
    %c1_i32 = arith.constant 1 : i32
    scf.for %arg7 = %c0_i32 to %71 step %c1_i32  : i32 {
      %c2_i32 = arith.constant 2 : i32
      %72 = arith.muli %c2_i32, %arg7 : i32
      %c10_i32 = arith.constant 10 : i32
      %73 = arith.muli %72, %c10_i32 : i32
      %74 = arith.index_cast %73 : i32 to index
      %c0_84 = arith.constant 0 : index
      %75 = vector.load %arg5[%74, %c0_84] : memref<80x128xf32, #tpu.memory_space<vmem>>, vector<8x128xf32>
      %c10_i32_85 = arith.constant 10 : i32
      %76 = arith.addi %73, %c10_i32_85 : i32
      %77 = arith.index_cast %76 : i32 to index
      %c0_86 = arith.constant 0 : index
      %78 = vector.load %arg5[%77, %c0_86] : memref<80x128xf32, #tpu.memory_space<vmem>>, vector<8x128xf32>
      %79 = arith.maximumf %75, %78 : vector<8x128xf32>
      %c0_87 = arith.constant 0 : index
      %c0_88 = arith.constant 0 : index
      %80 = vector.load %arg6[%c0_87, %c0_88] : memref<8x128xf32, #tpu.memory_space<vmem>>, vector<8x128xf32>
      tpu.vector_store %arg6[%c0_87, %c0_88], %79 {strides = array<i32>} : memref<8x128xf32, #tpu.memory_space<vmem>>, vector<8x128xf32>,
      %c0_89 = arith.constant 0 : index
      %c0_90 = arith.constant 0 : index
      %81 = tpu.strided_load %arg6[%c0_89, %c0_90] {strides = array<i32: 2, 1>} : memref<8x128xf32, #tpu.memory_space<vmem>>, vector<4x128xf32>
      %c1_91 = arith.constant 1 : index
      %c0_92 = arith.constant 0 : index
      %82 = tpu.strided_load %arg6[%c1_91, %c0_92] {strides = array<i32: 2, 1>} : memref<8x128xf32, #tpu.memory_space<vmem>>, vector<4x128xf32>
      %83 = arith.maximumf %81, %82 : vector<4x128xf32>
      %84 = vector.broadcast %70 : vector<1x128xf32> to vector<4x128xf32>
      %85 = arith.addf %83, %84 : vector<4x128xf32>
      %cst_93 = arith.constant 0.000000e+00 : f32
      %86 = vector.broadcast %cst_93 : f32 to vector<4x128xf32>
      %87 = arith.maximumf %85, %86 : vector<4x128xf32>
      %88 = vector.shape_cast %87 : vector<4x128xf32> to vector<1x4x128xf32>
      %89 = arith.truncf %88 : vector<1x4x128xf32> to vector<1x4x128xbf16>
      %c0_94 = arith.constant 0 : index
      %90 = arith.index_cast %arg7 : i32 to index
      %c0_95 = arith.constant 0 : index
      %c0_96 = arith.constant 0 : index
      %91 = vector.load %arg4[%c0_94, %90, %c0_95, %c0_96] : memref<1x4x4x128xbf16, #tpu.memory_space<vmem>>, vector<1x1x4x128xbf16>
      %92 = vector.shape_cast %91 : vector<1x1x4x128xbf16> to vector<1x4x128xbf16>
      %93 = vector.shape_cast %89 : vector<1x4x128xbf16> to vector<1x1x4x128xbf16>
      tpu.vector_store %arg4[%c0_94, %90, %c0_95, %c0_96], %93 {strides = array<i32>} : memref<1x4x4x128xbf16, #tpu.memory_space<vmem>>, vector<1x1x4x128xbf16>,
    }
    %c4_i32_83 = arith.constant 4 : i32
    return
  }
  func.func @transform_0(%arg0: i32) -> (i32, i32, i32) {
    %c0_i32 = arith.constant 0 : i32
    %c0_i32_0 = arith.constant 0 : i32
    %c0_i32_1 = arith.constant 0 : i32
    return %arg0, %c0_i32, %c0_i32_0 : i32, i32, i32
  }
  func.func @transform_1(%arg0: i32) -> (i32, i32, i32) {
    %c0_i32 = arith.constant 0 : i32
    %c0_i32_0 = arith.constant 0 : i32
    %c0_i32_1 = arith.constant 0 : i32
    %c0_i32_2 = arith.constant 0 : i32
    return %c0_i32, %c0_i32_0, %c0_i32_1 : i32, i32, i32
  }
  func.func @transform_2(%arg0: i32) -> (i32, i32) {
    %c0_i32 = arith.constant 0 : i32
    %c0_i32_0 = arith.constant 0 : i32
    %c0_i32_1 = arith.constant 0 : i32
    return %c0_i32, %c0_i32_0 : i32, i32
  }
  func.func @transform_3(%arg0: i32) -> (i32, i32, i32, i32) {
    %c0_i32 = arith.constant 0 : i32
    %c0_i32_0 = arith.constant 0 : i32
    %c0_i32_1 = arith.constant 0 : i32
    %c0_i32_2 = arith.constant 0 : i32
    return %arg0, %c0_i32, %c0_i32_0, %c0_i32_1 : i32, i32, i32, i32
  }
}

module attributes {stable_mosaic.version = 11 : i64} {
  func.func @fc_kernel(%arg0: i32, %arg1: memref<2x512xbf16, #tpu.memory_space<vmem>>, %arg2: memref<512x512xbf16, #tpu.memory_space<vmem>>, %arg3: memref<1x512xf32, #tpu.memory_space<vmem>>, %arg4: memref<2x512xf32, #tpu.memory_space<vmem>>, %arg5: memref<2x512xf32, #tpu.memory_space<vmem>>) attributes {dimension_semantics = [#tpu.dimension_semantics<arbitrary>], iteration_bounds = array<i64: 4>, scalar_prefetch = 0 : i64, scratch_operands = 1 : i64, tpu.core_type = #tpu.core_type<tc>, window_params = [{transform_indices = @transform_0, window_bounds = array<i64: 2, 512>}, {transform_indices = @transform_1, window_bounds = array<i64: 512, 512>}, {pipeline_mode = #tpu.pipeline_mode<synchronous>, transform_indices = @transform_2, window_bounds = array<i64: 1, 512>}, {pipeline_mode = #tpu.pipeline_mode<synchronous>, transform_indices = @transform_3, window_bounds = array<i64: 2, 512>}]} {
    %c0_i32 = arith.constant 0 : i32
    %0 = arith.cmpi eq, %arg0, %c0_i32 : i32
    %1 = arith.extui %0 : i1 to i32
    %c0_i32_0 = arith.constant 0 : i32
    %2 = arith.cmpi ne, %1, %c0_i32_0 : i32
    scf.if %2 {
      %cst_9 = arith.constant 0.000000e+00 : f32
      %12 = vector.broadcast %cst_9 : f32 to vector<2x512xf32>
      %c0_10 = arith.constant 0 : index
      %c0_11 = arith.constant 0 : index
      %13 = vector.load %arg5[%c0_10, %c0_11] : memref<2x512xf32, #tpu.memory_space<vmem>>, vector<2x512xf32>
      tpu.vector_store %arg5[%c0_10, %c0_11], %12 {strides = array<i32>} : memref<2x512xf32, #tpu.memory_space<vmem>>, vector<2x512xf32>,
    } else {
    }
    %c0 = arith.constant 0 : index
    %c0_1 = arith.constant 0 : index
    %3 = vector.load %arg5[%c0, %c0_1] : memref<2x512xf32, #tpu.memory_space<vmem>>, vector<2x512xf32>
    %c0_2 = arith.constant 0 : index
    %c0_3 = arith.constant 0 : index
    %4 = vector.load %arg1[%c0_2, %c0_3] : memref<2x512xbf16, #tpu.memory_space<vmem>>, vector<2x512xbf16>
    %c0_4 = arith.constant 0 : index
    %c0_5 = arith.constant 0 : index
    %5 = vector.load %arg2[%c0_4, %c0_5] : memref<512x512xbf16, #tpu.memory_space<vmem>>, vector<512x512xbf16>
    %cst = arith.constant dense<0.000000e+00> : vector<2x512xf32>
    %6 = tpu.matmul %4, %5, %cst {dimension_numbers = #tpu.dot_dimension_numbers<[1], [0], [0], [1], [0, 0, 1, 1], [], []>} : vector<2x512xbf16>, vector<512x512xbf16>, vector<2x512xf32> -> vector<2x512xf32>
    %7 = arith.addf %3, %6 : vector<2x512xf32>
    %c0_6 = arith.constant 0 : index
    %c0_7 = arith.constant 0 : index
    %8 = vector.load %arg5[%c0_6, %c0_7] : memref<2x512xf32, #tpu.memory_space<vmem>>, vector<2x512xf32>
    tpu.vector_store %arg5[%c0_6, %c0_7], %7 {strides = array<i32>} : memref<2x512xf32, #tpu.memory_space<vmem>>, vector<2x512xf32>,
    %c3_i32 = arith.constant 3 : i32
    %9 = arith.cmpi eq, %arg0, %c3_i32 : i32
    %10 = arith.extui %9 : i1 to i32
    %c0_i32_8 = arith.constant 0 : i32
    %11 = arith.cmpi ne, %10, %c0_i32_8 : i32
    scf.if %11 {
      %c0_9 = arith.constant 0 : index
      %c0_10 = arith.constant 0 : index
      %12 = vector.load %arg5[%c0_9, %c0_10] : memref<2x512xf32, #tpu.memory_space<vmem>>, vector<2x512xf32>
      %c0_11 = arith.constant 0 : index
      %c0_12 = arith.constant 0 : index
      %13 = vector.load %arg3[%c0_11, %c0_12] : memref<1x512xf32, #tpu.memory_space<vmem>>, vector<1x512xf32>
      %14 = vector.broadcast %13 : vector<1x512xf32> to vector<2x512xf32>
      %15 = arith.addf %12, %14 : vector<2x512xf32>
      %cst_13 = arith.constant 0.000000e+00 : f32
      %16 = vector.broadcast %cst_13 : f32 to vector<2x512xf32>
      %17 = arith.maximumf %15, %16 : vector<2x512xf32>
      %c0_14 = arith.constant 0 : index
      %c0_15 = arith.constant 0 : index
      %18 = vector.load %arg4[%c0_14, %c0_15] : memref<2x512xf32, #tpu.memory_space<vmem>>, vector<2x512xf32>
      tpu.vector_store %arg4[%c0_14, %c0_15], %17 {strides = array<i32>} : memref<2x512xf32, #tpu.memory_space<vmem>>, vector<2x512xf32>,
    } else {
    }
    return
  }
  func.func @transform_0(%arg0: i32) -> (i32, i32) {
    %c0_i32 = arith.constant 0 : i32
    %c0_i32_0 = arith.constant 0 : i32
    return %c0_i32, %arg0 : i32, i32
  }
  func.func @transform_1(%arg0: i32) -> (i32, i32) {
    %c0_i32 = arith.constant 0 : i32
    %c0_i32_0 = arith.constant 0 : i32
    return %arg0, %c0_i32 : i32, i32
  }
  func.func @transform_2(%arg0: i32) -> (i32, i32) {
    %c0_i32 = arith.constant 0 : i32
    %c0_i32_0 = arith.constant 0 : i32
    %c0_i32_1 = arith.constant 0 : i32
    return %c0_i32, %c0_i32_0 : i32, i32
  }
  func.func @transform_3(%arg0: i32) -> (i32, i32) {
    %c0_i32 = arith.constant 0 : i32
    %c0_i32_0 = arith.constant 0 : i32
    %c0_i32_1 = arith.constant 0 : i32
    return %c0_i32, %c0_i32_0 : i32, i32
  }
}

module attributes {stable_mosaic.version = 11 : i64} {
  func.func @fc_kernel(%arg0: i32, %arg1: memref<2x512xf32, #tpu.memory_space<vmem>>, %arg2: memref<512x2xf32, #tpu.memory_space<vmem>>, %arg3: memref<1x2xf32, #tpu.memory_space<vmem>>, %arg4: memref<2x2xf32, #tpu.memory_space<vmem>>, %arg5: memref<2x2xf32, #tpu.memory_space<vmem>>) attributes {dimension_semantics = [#tpu.dimension_semantics<arbitrary>], iteration_bounds = array<i64: 1>, scalar_prefetch = 0 : i64, scratch_operands = 1 : i64, tpu.core_type = #tpu.core_type<tc>, window_params = [{transform_indices = @transform_0, window_bounds = array<i64: 2, 512>}, {transform_indices = @transform_1, window_bounds = array<i64: 512, 2>}, {pipeline_mode = #tpu.pipeline_mode<synchronous>, transform_indices = @transform_2, window_bounds = array<i64: 1, 2>}, {pipeline_mode = #tpu.pipeline_mode<synchronous>, transform_indices = @transform_3, window_bounds = array<i64: 2, 2>}]} {
    %c0_i32 = arith.constant 0 : i32
    %0 = arith.cmpi eq, %arg0, %c0_i32 : i32
    %1 = arith.extui %0 : i1 to i32
    %c0_i32_0 = arith.constant 0 : i32
    %2 = arith.cmpi ne, %1, %c0_i32_0 : i32
    scf.if %2 {
      %cst_10 = arith.constant 0.000000e+00 : f32
      %12 = vector.broadcast %cst_10 : f32 to vector<2x2xf32>
      %c0_11 = arith.constant 0 : index
      %c0_12 = arith.constant 0 : index
      %13 = vector.load %arg5[%c0_11, %c0_12] : memref<2x2xf32, #tpu.memory_space<vmem>>, vector<2x2xf32>
      tpu.vector_store %arg5[%c0_11, %c0_12], %12 {strides = array<i32>} : memref<2x2xf32, #tpu.memory_space<vmem>>, vector<2x2xf32>,
    } else {
    }
    %c0 = arith.constant 0 : index
    %c0_1 = arith.constant 0 : index
    %3 = vector.load %arg5[%c0, %c0_1] : memref<2x2xf32, #tpu.memory_space<vmem>>, vector<2x2xf32>
    %c0_2 = arith.constant 0 : index
    %c0_3 = arith.constant 0 : index
    %4 = vector.load %arg1[%c0_2, %c0_3] : memref<2x512xf32, #tpu.memory_space<vmem>>, vector<2x512xf32>
    %c0_4 = arith.constant 0 : index
    %c0_5 = arith.constant 0 : index
    %5 = vector.load %arg2[%c0_4, %c0_5] : memref<512x2xf32, #tpu.memory_space<vmem>>, vector<512x2xf32>
    %cst = arith.constant dense<0.000000e+00> : vector<2x2xf32>
    %6 = tpu.matmul %4, %5, %cst {dimension_numbers = #tpu.dot_dimension_numbers<[1], [0], [0], [1], [0, 0, 1, 1], [], []>} : vector<2x512xf32>, vector<512x2xf32>, vector<2x2xf32> -> vector<2x2xf32>
    %7 = arith.addf %3, %6 : vector<2x2xf32>
    %c0_6 = arith.constant 0 : index
    %c0_7 = arith.constant 0 : index
    %8 = vector.load %arg5[%c0_6, %c0_7] : memref<2x2xf32, #tpu.memory_space<vmem>>, vector<2x2xf32>
    tpu.vector_store %arg5[%c0_6, %c0_7], %7 {strides = array<i32>} : memref<2x2xf32, #tpu.memory_space<vmem>>, vector<2x2xf32>,
    %c0_i32_8 = arith.constant 0 : i32
    %9 = arith.cmpi eq, %arg0, %c0_i32_8 : i32
    %10 = arith.extui %9 : i1 to i32
    %c0_i32_9 = arith.constant 0 : i32
    %11 = arith.cmpi ne, %10, %c0_i32_9 : i32
    scf.if %11 {
      %c0_10 = arith.constant 0 : index
      %c0_11 = arith.constant 0 : index
      %12 = vector.load %arg5[%c0_10, %c0_11] : memref<2x2xf32, #tpu.memory_space<vmem>>, vector<2x2xf32>
      %c0_12 = arith.constant 0 : index
      %c0_13 = arith.constant 0 : index
      %13 = vector.load %arg3[%c0_12, %c0_13] : memref<1x2xf32, #tpu.memory_space<vmem>>, vector<1x2xf32>
      %14 = vector.broadcast %13 : vector<1x2xf32> to vector<2x2xf32>
      %15 = arith.addf %12, %14 : vector<2x2xf32>
      %c0_14 = arith.constant 0 : index
      %c0_15 = arith.constant 0 : index
      %16 = vector.load %arg4[%c0_14, %c0_15] : memref<2x2xf32, #tpu.memory_space<vmem>>, vector<2x2xf32>
      tpu.vector_store %arg4[%c0_14, %c0_15], %15 {strides = array<i32>} : memref<2x2xf32, #tpu.memory_space<vmem>>, vector<2x2xf32>,
    } else {
    }
    return
  }
  func.func @transform_0(%arg0: i32) -> (i32, i32) {
    %c0_i32 = arith.constant 0 : i32
    %c0_i32_0 = arith.constant 0 : i32
    return %c0_i32, %arg0 : i32, i32
  }
  func.func @transform_1(%arg0: i32) -> (i32, i32) {
    %c0_i32 = arith.constant 0 : i32
    %c0_i32_0 = arith.constant 0 : i32
    return %arg0, %c0_i32 : i32, i32
  }
  func.func @transform_2(%arg0: i32) -> (i32, i32) {
    %c0_i32 = arith.constant 0 : i32
    %c0_i32_0 = arith.constant 0 : i32
    %c0_i32_1 = arith.constant 0 : i32
    return %c0_i32, %c0_i32_0 : i32, i32
  }
  func.func @transform_3(%arg0: i32) -> (i32, i32) {
    %c0_i32 = arith.constant 0 : i32
    %c0_i32_0 = arith.constant 0 : i32
    %c0_i32_1 = arith.constant 0 : i32
    return %c0_i32, %c0_i32_0 : i32, i32
  }
}

</mosaic_0001>

<llo_original>
// kernel: custom_cnn_forward.5
$region0: #{custom_cnn_forward.5}
  #allocation0 [shape = 'u32[]', space=smem, size = 0x4, offset = 0x4, fixed_abs, tag = 'smem constant byte address 0x4 - core index']
  #allocation1 [shape = 'u32[144,128]{1,0:T(1,128)}', space=vmem, size = 0x12000, scoped, tag = 'internal scratch']
  #allocation2 [shape = 'f32[1088,32]{1,0:T(8,128)}', space=vmem, size = 0x88000, scoped, tag = 'scratch operand']
  #allocation3 [shape = 'f32[32,32]{1,0:T(8,128)}', space=vmem, size = 0x4000, scoped, tag = 'scratch operand']
  %s0 = inlined_call_operand.vmem [shape: bf16[2,1088,27], index: 0, kind: input, shape index: {}]
  %s1 = inlined_call_operand.hbm [shape: bf16[1,27,32], index: 1, kind: input, shape index: {}]
  %s2 = inlined_call_operand.hbm [shape: f32[1,32], index: 2, kind: input, shape index: {}]
  %s3 = inlined_call_operand.vmem [shape: bf16[2,16,16,32], index: 3, kind: output, shape index: {}]
  %s4 = sld [smem:[#allocation0]]
  $region60: #{custom_cnn_forward.5} parent=0
    _
  %s6 = ssub.s32 1, %s4
  %s7 = scalar_select 0, %s6, %s4
  $region1: #{custom_cnn_forward.5} parent=0
    #allocation4 [shape = 'u8[8192]{0}', space=vmem, size = 0x2000, scoped, tag = 'input window, operand 1, single buffered']
    #allocation5 [shape = 's32[2]{0}', space=sflag, size = 0x8, scoped, tag = 'scoped memory for custom_cnn_forward.5']
    #allocation6 [shape = 'u8[512]{0}', space=vmem, size = 0x400, scoped, tag = 'input window, operand 2, single buffered']
    #allocation7 [shape = 's32[1]{0}', space=sflag, size = 0x4, scoped, tag = 'scoped memory for custom_cnn_forward.5']
    %8 = vsyncpa [#allocation5], 0
    %9 = vsyncpa [#allocation7], 0
    loop: start=0, step=1, limit=4
    $region2: #{custom_cnn_forward.5} parent=1 // loop_pre_header
      _
    $region3: #{custom_cnn_forward.5} parent=1 // loop_header
      %s11 = sphi 0, %s15
      %p12 = scmp.ge.s32.totalorder %s11, 4
      %s21 = sphi 0, %s23
      %s24 = sphi 0, %s21
      %s25 = sphi 0, %s24
      %s41 = sphi 0, %s25
      %s45 = sphi 0, %s45
      %s47 = sphi 0, %s45
      %s48 = sphi 0, %s47
      %s62 = sphi 0, %s48
      %s66 = sphi 0, %s66
      %s68 = sphi 0, %s66
      %s69 = sphi 0, %s68
      %s83 = sphi 0, %s69
      %s89 = sphi 0, %s91
      %s92 = sphi 0, %s89
      %s93 = sphi 0, %s92
      %s109 = sphi 0, %s93
    $region4: #{custom_cnn_forward.5} parent=1 // loop_header_branch
      %14 = sbr.rel (%p12) target = $region8
    $region5: #{custom_cnn_forward.5} parent=1 // loop_body
      %s16 = ssub.s32 %s11, 1
      %s17 = ssub.s32 %s11, 2
      %s18 = sadd.s32 %s11, 1
      %s19 = ssub.s32 %s11, %s18
      %p20 = scmp.eq.s32.totalorder %s19, 0
      %s22 = sadd.s32 %s21, 1
      %s23 = scalar_select %p20, %s21, %s22
      %p26 = pneg %p20
      %p27 = scmp.eq.s32.totalorder %s11, 1
      %p28 = por %p26, %p27
      %p29 = scmp.ne.s32.totalorder %s21, %s24
      %p30 = scmp.eq.s32.totalorder %s11, 0
      %p31 = por %p29, %p30
      %p32 = scmp.ne.s32.totalorder %s21, %s24
      %p33 = scmp.eq.s32.totalorder %s16, 1
      %p34 = por %p32, %p33
      %p35 = scmp.ne.s32.totalorder %s24, %s25
      %p36 = scmp.eq.s32.totalorder %s16, 0
      %p37 = por %p35, %p36
      %p38 = scmp.ne.s32.totalorder %s24, %s25
      %p39 = scmp.eq.s32.totalorder %s17, 1
      %p40 = por %p38, %p39
      %p42 = scmp.ne.s32.totalorder %s25, %s41
      %p43 = scmp.eq.s32.totalorder %s17, 0
      %p44 = por %p42, %p43
      %s46 = sadd.s32 %s45, 1
      %p49 = scmp.eq.s32.totalorder %s11, 1
      %p50 = scmp.ne.s32.totalorder %s45, %s47
      %p51 = scmp.eq.s32.totalorder %s11, 0
      %p52 = por %p50, %p51
      %p53 = scmp.ne.s32.totalorder %s45, %s47
      %p54 = scmp.eq.s32.totalorder %s16, 1
      %p55 = por %p53, %p54
      %p56 = scmp.ne.s32.totalorder %s47, %s48
      %p57 = scmp.eq.s32.totalorder %s16, 0
      %p58 = por %p56, %p57
      %p59 = scmp.ne.s32.totalorder %s47, %s48
      %p60 = scmp.eq.s32.totalorder %s17, 1
      %p61 = por %p59, %p60
      %p63 = scmp.ne.s32.totalorder %s48, %s62
      %p64 = scmp.eq.s32.totalorder %s17, 0
      %p65 = por %p63, %p64
      %s67 = sadd.s32 %s66, 1
      %p70 = scmp.eq.s32.totalorder %s11, 1
      %p71 = scmp.ne.s32.totalorder %s66, %s68
      %p72 = scmp.eq.s32.totalorder %s11, 0
      %p73 = por %p71, %p72
      %p74 = scmp.ne.s32.totalorder %s66, %s68
      %p75 = scmp.eq.s32.totalorder %s16, 1
      %p76 = por %p74, %p75
      %p77 = scmp.ne.s32.totalorder %s68, %s69
      %p78 = scmp.eq.s32.totalorder %s16, 0
      %p79 = por %p77, %p78
      %p80 = scmp.ne.s32.totalorder %s68, %s69
      %p81 = scmp.eq.s32.totalorder %s17, 1
      %p82 = por %p80, %p81
      %p84 = scmp.ne.s32.totalorder %s69, %s83
      %p85 = scmp.eq.s32.totalorder %s17, 0
      %p86 = por %p84, %p85
      %s87 = ssub.s32 %s11, %s18
      %p88 = scmp.eq.s32.totalorder %s87, 0
      %s90 = sadd.s32 %s89, 1
      %s91 = scalar_select %p88, %s89, %s90
      %p94 = pneg %p88
      %p95 = scmp.eq.s32.totalorder %s11, 1
      %p96 = por %p94, %p95
      %p97 = scmp.ne.s32.totalorder %s89, %s92
      %p98 = scmp.eq.s32.totalorder %s11, 0
      %p99 = por %p97, %p98
      %p100 = scmp.ne.s32.totalorder %s89, %s92
      %p101 = scmp.eq.s32.totalorder %s16, 1
      %p102 = por %p100, %p101
      %p103 = scmp.ne.s32.totalorder %s92, %s93
      %p104 = scmp.eq.s32.totalorder %s16, 0
      %p105 = por %p103, %p104
      %p106 = scmp.ne.s32.totalorder %s92, %s93
      %p107 = scmp.eq.s32.totalorder %s17, 1
      %p108 = por %p106, %p107
      %p110 = scmp.ne.s32.totalorder %s93, %s109
      %p111 = scmp.eq.s32.totalorder %s17, 0
      %p112 = por %p110, %p111
      %p113 = scmp.le.s32.totalorder 1, %s11
      %p114 = scmp.lt.s32.totalorder %s11, 3
      %p115 = pnand %p113, %p114
      %p116 = pneg %p115
      // Predicated region
      $region9: #{custom_cnn_forward.5} parent=5 // pred_check
        _
      $region10: #{custom_cnn_forward.5} parent=5 // pred_check_branch
        %118 = sbr.rel (%p115) target = $region12
      $region11: #{custom_cnn_forward.5} parent=5 // pred_region
        %s119 = ssub.s32 %s11, 1
        // Predicated region
        $region13: #{custom_cnn_forward.5} parent=11 // pred_check
          %p120 = pneg %p58
        $region14: #{custom_cnn_forward.5} parent=11 // pred_check_branch
          %122 = sbr.rel (%p120) target = $region16
        $region15: #{custom_cnn_forward.5} parent=11 // pred_region
          %s124 = ssub.s32 256, 256
          %125 = vsyncadd [#allocation5], %s124
          %s126 = sshll.u32 [#allocation4], 4
          %s127 = int_to_ptr.vmem [resolvable:$true] %s126
          %132 = dma.hbm_to_vmem [thread:$0]  %s1, 256, %s127, [#allocation5], 64, 64, 4
        $region16: #{custom_cnn_forward.5} parent=11 // pred_fallthru
          _
        // Predicated region
        $region17: #{custom_cnn_forward.5} parent=11 // pred_check
          %p133 = pneg %p79
        $region18: #{custom_cnn_forward.5} parent=11 // pred_check_branch
          %135 = sbr.rel (%p133) target = $region20
        $region19: #{custom_cnn_forward.5} parent=11 // pred_region
          %s137 = ssub.s32 16, 16
          %138 = vsyncadd [#allocation7], %s137
          %s140 = sshll.u32 [#allocation6], 4
          %s141 = int_to_ptr.vmem [resolvable:$true] %s140
          %143 = dma.hbm_to_vmem [thread:$0]  %s2, 16, %s141, [#allocation7]
        $region20: #{custom_cnn_forward.5} parent=11 // pred_fallthru
          _
      $region12: #{custom_cnn_forward.5} parent=5 // pred_fallthru
        _
      %p144 = scmp.lt.s32.totalorder %s11, 2
      // Predicated region
      $region21: #{custom_cnn_forward.5} parent=5 // pred_check
        %p145 = pneg %p144
      $region22: #{custom_cnn_forward.5} parent=5 // pred_check_branch
        %147 = sbr.rel (%p145) target = $region24
      $region23: #{custom_cnn_forward.5} parent=5 // pred_region
        // Predicated region
        $region25: #{custom_cnn_forward.5} parent=23 // pred_check
          %p148 = pneg %p31
        $region26: #{custom_cnn_forward.5} parent=23 // pred_check_branch
          %150 = sbr.rel (%p148) target = $region28
        $region27: #{custom_cnn_forward.5} parent=23 // pred_region
          %p151 = scmp.lt.s32.totalorder %s11, 1
          %s152 = scalar_select %p151, %s11, 1
          %s153 = smul.addr %s152, 136
          %s154 = smul.addr %s153, 4
          %s155 = scalar_lea.vmem %s0, %s154
        $region28: #{custom_cnn_forward.5} parent=23 // pred_fallthru
          _
      $region24: #{custom_cnn_forward.5} parent=5 // pred_fallthru
        _
      %p156 = scmp.le.s32.totalorder 1, %s11
      %p157 = scmp.lt.s32.totalorder %s11, 3
      %p158 = pnand %p156, %p157
      %p159 = pneg %p158
      // Predicated region
      $region29: #{custom_cnn_forward.5} parent=5 // pred_check
        _
      $region30: #{custom_cnn_forward.5} parent=5 // pred_check_branch
        %161 = sbr.rel (%p158) target = $region32
      $region31: #{custom_cnn_forward.5} parent=5 // pred_region
        %s162 = ssub.s32 %s11, 1
        // Predicated region
        $region33: #{custom_cnn_forward.5} parent=31 // pred_check
          %p163 = pneg %p58
        $region34: #{custom_cnn_forward.5} parent=31 // pred_check_branch
          %165 = sbr.rel (%p163) target = $region36
        $region35: #{custom_cnn_forward.5} parent=31 // pred_region
          %166 = dma.done [#allocation5], 256
        $region36: #{custom_cnn_forward.5} parent=31 // pred_fallthru
          _
        // Predicated region
        $region37: #{custom_cnn_forward.5} parent=31 // pred_check
          %p167 = pneg %p79
        $region38: #{custom_cnn_forward.5} parent=31 // pred_check_branch
          %169 = sbr.rel (%p167) target = $region40
        $region39: #{custom_cnn_forward.5} parent=31 // pred_region
          %170 = dma.done [#allocation7], 16
        $region40: #{custom_cnn_forward.5} parent=31 // pred_fallthru
          _
        %p171 = scmp.lt.s32.totalorder %s16, 1
        %s172 = scalar_select %p171, %s16, 1
        %s173 = smul.addr %s172, 136
        %s174 = smul.addr %s173, 4
        %s175 = scalar_lea.vmem %s0, %s174
        %p176 = pneg %p37
        %p177 = pneg %p34
        %p178 = pneg %p58
        %p179 = pneg %p55
        %p180 = pneg %p79
        %p181 = pneg %p76
        %p182 = pneg %p105
        %p183 = pneg %p102
        %p184 = scmp.lt.s32.totalorder %s16, 1
        %s185 = scalar_select %p184, %s16, 1
        %s186 = smul.addr %s185, 32
        %s187 = smul.addr %s186, 4
        %s188 = scalar_lea.vmem %s3, %s187
        %p189 = scmp.lt.s32.totalorder %s16, 1
        %s190 = scalar_select %p189, %s16, 1
        %s191 = smul.addr %s190, 136
        %s192 = smul.addr %s191, 4
        %s193 = scalar_lea.vmem %s0, %s192
        %p194 = scmp.lt.s32.totalorder %s16, 1
        %s195 = scalar_select %p194, %s16, 1
        %s196 = smul.addr %s195, 32
        %s197 = smul.addr %s196, 4
        %s198 = scalar_lea.vmem %s3, %s197
        %v200 = vld [vmem:[%s193] sm:$0xf]
        %v201 = vld [vmem:[%s193 + $0x4] sm:$0xf]
        %v202 = vld [vmem:[%s193 + $0x8] sm:$0xf]
        %v203 = vld [vmem:[%s193 + $0xc] sm:$0xf]
        %v204 = vld [vmem:[%s193 + $0x10] sm:$0xf]
        %v205 = vld [vmem:[%s193 + $0x14] sm:$0xf]
        %v206 = vld [vmem:[%s193 + $0x18] sm:$0xf]
        %v207 = vld [vmem:[%s193 + $0x1c] sm:$0xf]
        %v208 = vld [vmem:[%s193 + $0x20] sm:$0xf]
        %v209 = vld [vmem:[%s193 + $0x24] sm:$0xf]
        %v210 = vld [vmem:[%s193 + $0x28] sm:$0xf]
        %v211 = vld [vmem:[%s193 + $0x2c] sm:$0xf]
        %v212 = vld [vmem:[%s193 + $0x30] sm:$0xf]
        %v213 = vld [vmem:[%s193 + $0x34] sm:$0xf]
        %v214 = vld [vmem:[%s193 + $0x38] sm:$0xf]
        %v215 = vld [vmem:[%s193 + $0x3c] sm:$0xf]
        %v216 = vld [vmem:[%s193 + $0x40] sm:$0xf]
        %v217 = vld [vmem:[%s193 + $0x44] sm:$0xf]
        %v218 = vld [vmem:[%s193 + $0x48] sm:$0xf]
        %v219 = vld [vmem:[%s193 + $0x4c] sm:$0xf]
        %v220 = vld [vmem:[%s193 + $0x50] sm:$0xf]
        %v221 = vld [vmem:[%s193 + $0x54] sm:$0xf]
        %v222 = vld [vmem:[%s193 + $0x58] sm:$0xf]
        %v223 = vld [vmem:[%s193 + $0x5c] sm:$0xf]
        %v224 = vld [vmem:[%s193 + $0x60] sm:$0xf]
        %v225 = vld [vmem:[%s193 + $0x64] sm:$0xf]
        %v226 = vld [vmem:[%s193 + $0x68] sm:$0xf]
        %v227 = vld [vmem:[%s193 + $0x6c] sm:$0xf]
        %v228 = vld [vmem:[%s193 + $0x70] sm:$0xf]
        %v229 = vld [vmem:[%s193 + $0x74] sm:$0xf]
        %v230 = vld [vmem:[%s193 + $0x78] sm:$0xf]
        %v231 = vld [vmem:[%s193 + $0x7c] sm:$0xf]
        %v232 = vld [vmem:[%s193 + $0x80] sm:$0xf]
        %v233 = vld [vmem:[%s193 + $0x84] sm:$0xf]
        %v234 = vld [vmem:[%s193 + $0x88] sm:$0xf]
        %v235 = vld [vmem:[%s193 + $0x8c] sm:$0xf]
        %v236 = vld [vmem:[%s193 + $0x90] sm:$0xf]
        %v237 = vld [vmem:[%s193 + $0x94] sm:$0xf]
        %v238 = vld [vmem:[%s193 + $0x98] sm:$0xf]
        %v239 = vld [vmem:[%s193 + $0x9c] sm:$0xf]
        %v240 = vld [vmem:[%s193 + $0xa0] sm:$0xf]
        %v241 = vld [vmem:[%s193 + $0xa4] sm:$0xf]
        %v242 = vld [vmem:[%s193 + $0xa8] sm:$0xf]
        %v243 = vld [vmem:[%s193 + $0xac] sm:$0xf]
        %v244 = vld [vmem:[%s193 + $0xb0] sm:$0xf]
        %v245 = vld [vmem:[%s193 + $0xb4] sm:$0xf]
        %v246 = vld [vmem:[%s193 + $0xb8] sm:$0xf]
        %v247 = vld [vmem:[%s193 + $0xbc] sm:$0xf]
        %v248 = vld [vmem:[%s193 + $0xc0] sm:$0xf]
        %v249 = vld [vmem:[%s193 + $0xc4] sm:$0xf]
        %v250 = vld [vmem:[%s193 + $0xc8] sm:$0xf]
        %v251 = vld [vmem:[%s193 + $0xcc] sm:$0xf]
        %v252 = vld [vmem:[%s193 + $0xd0] sm:$0xf]
        %v253 = vld [vmem:[%s193 + $0xd4] sm:$0xf]
        %v254 = vld [vmem:[%s193 + $0xd8] sm:$0xf]
        %v255 = vld [vmem:[%s193 + $0xdc] sm:$0xf]
        %v256 = vld [vmem:[%s193 + $0xe0] sm:$0xf]
        %v257 = vld [vmem:[%s193 + $0xe4] sm:$0xf]
        %v258 = vld [vmem:[%s193 + $0xe8] sm:$0xf]
        %v259 = vld [vmem:[%s193 + $0xec] sm:$0xf]
        %v260 = vld [vmem:[%s193 + $0xf0] sm:$0xf]
        %v261 = vld [vmem:[%s193 + $0xf4] sm:$0xf]
        %v262 = vld [vmem:[%s193 + $0xf8] sm:$0xf]
        %v263 = vld [vmem:[%s193 + $0xfc] sm:$0xf]
        %v264 = vld [vmem:[%s193 + $0x100] sm:$0xf]
        %v265 = vld [vmem:[%s193 + $0x104] sm:$0xf]
        %v266 = vld [vmem:[%s193 + $0x108] sm:$0xf]
        %v267 = vld [vmem:[%s193 + $0x10c] sm:$0xf]
        %v268 = vld [vmem:[%s193 + $0x110] sm:$0xf]
        %v269 = vld [vmem:[%s193 + $0x114] sm:$0xf]
        %v270 = vld [vmem:[%s193 + $0x118] sm:$0xf]
        %v271 = vld [vmem:[%s193 + $0x11c] sm:$0xf]
        %v272 = vld [vmem:[%s193 + $0x120] sm:$0xf]
        %v273 = vld [vmem:[%s193 + $0x124] sm:$0xf]
        %v274 = vld [vmem:[%s193 + $0x128] sm:$0xf]
        %v275 = vld [vmem:[%s193 + $0x12c] sm:$0xf]
        %v276 = vld [vmem:[%s193 + $0x130] sm:$0xf]
        %v277 = vld [vmem:[%s193 + $0x134] sm:$0xf]
        %v278 = vld [vmem:[%s193 + $0x138] sm:$0xf]
        %v279 = vld [vmem:[%s193 + $0x13c] sm:$0xf]
        %v280 = vld [vmem:[%s193 + $0x140] sm:$0xf]
        %v281 = vld [vmem:[%s193 + $0x144] sm:$0xf]
        %v282 = vld [vmem:[%s193 + $0x148] sm:$0xf]
        %v283 = vld [vmem:[%s193 + $0x14c] sm:$0xf]
        %v284 = vld [vmem:[%s193 + $0x150] sm:$0xf]
        %v285 = vld [vmem:[%s193 + $0x154] sm:$0xf]
        %v286 = vld [vmem:[%s193 + $0x158] sm:$0xf]
        %v287 = vld [vmem:[%s193 + $0x15c] sm:$0xf]
        %v288 = vld [vmem:[%s193 + $0x160] sm:$0xf]
        %v289 = vld [vmem:[%s193 + $0x164] sm:$0xf]
        %v290 = vld [vmem:[%s193 + $0x168] sm:$0xf]
        %v291 = vld [vmem:[%s193 + $0x16c] sm:$0xf]
        %v292 = vld [vmem:[%s193 + $0x170] sm:$0xf]
        %v293 = vld [vmem:[%s193 + $0x174] sm:$0xf]
        %v294 = vld [vmem:[%s193 + $0x178] sm:$0xf]
        %v295 = vld [vmem:[%s193 + $0x17c] sm:$0xf]
        %v296 = vld [vmem:[%s193 + $0x180] sm:$0xf]
        %v297 = vld [vmem:[%s193 + $0x184] sm:$0xf]
        %v298 = vld [vmem:[%s193 + $0x188] sm:$0xf]
        %v299 = vld [vmem:[%s193 + $0x18c] sm:$0xf]
        %v300 = vld [vmem:[%s193 + $0x190] sm:$0xf]
        %v301 = vld [vmem:[%s193 + $0x194] sm:$0xf]
        %v302 = vld [vmem:[%s193 + $0x198] sm:$0xf]
        %v303 = vld [vmem:[%s193 + $0x19c] sm:$0xf]
        %v304 = vld [vmem:[%s193 + $0x1a0] sm:$0xf]
        %v305 = vld [vmem:[%s193 + $0x1a4] sm:$0xf]
        %v306 = vld [vmem:[%s193 + $0x1a8] sm:$0xf]
        %v307 = vld [vmem:[%s193 + $0x1ac] sm:$0xf]
        %v308 = vld [vmem:[%s193 + $0x1b0] sm:$0xf]
        %v309 = vld [vmem:[%s193 + $0x1b4] sm:$0xf]
        %v310 = vld [vmem:[%s193 + $0x1b8] sm:$0xf]
        %v311 = vld [vmem:[%s193 + $0x1bc] sm:$0xf]
        %v312 = vld [vmem:[%s193 + $0x1c0] sm:$0xf]
        %v313 = vld [vmem:[%s193 + $0x1c4] sm:$0xf]
        %v314 = vld [vmem:[%s193 + $0x1c8] sm:$0xf]
        %v315 = vld [vmem:[%s193 + $0x1cc] sm:$0xf]
        %v316 = vld [vmem:[%s193 + $0x1d0] sm:$0xf]
        %v317 = vld [vmem:[%s193 + $0x1d4] sm:$0xf]
        %v318 = vld [vmem:[%s193 + $0x1d8] sm:$0xf]
        %v319 = vld [vmem:[%s193 + $0x1dc] sm:$0xf]
        %v320 = vld [vmem:[%s193 + $0x1e0] sm:$0xf]
        %v321 = vld [vmem:[%s193 + $0x1e4] sm:$0xf]
        %v322 = vld [vmem:[%s193 + $0x1e8] sm:$0xf]
        %v323 = vld [vmem:[%s193 + $0x1ec] sm:$0xf]
        %v324 = vld [vmem:[%s193 + $0x1f0] sm:$0xf]
        %v325 = vld [vmem:[%s193 + $0x1f4] sm:$0xf]
        %v326 = vld [vmem:[%s193 + $0x1f8] sm:$0xf]
        %v327 = vld [vmem:[%s193 + $0x1fc] sm:$0xf]
        %v328 = vld [vmem:[%s193 + $0x200] sm:$0xf]
        %v329 = vld [vmem:[%s193 + $0x204] sm:$0xf]
        %v330 = vld [vmem:[%s193 + $0x208] sm:$0xf]
        %v331 = vld [vmem:[%s193 + $0x20c] sm:$0xf]
        %v332 = vld [vmem:[%s193 + $0x210] sm:$0xf]
        %v333 = vld [vmem:[%s193 + $0x214] sm:$0xf]
        %v334 = vld [vmem:[%s193 + $0x218] sm:$0xf]
        %v335 = vld [vmem:[%s193 + $0x21c] sm:$0xf]
        %v336 = vld [vmem:[#allocation4] sm:$0xf]
        %v337 = vld [vmem:[#allocation4 + $0x4] sm:$0xf]
        %v338 = vld [vmem:[#allocation4 + $0x8] sm:$0xf]
        %v339 = vld [vmem:[#allocation4 + $0xc] sm:$0x3]
        %v476 = vunpack.c.l.b16 %v200
        %v477 = vunpack.c.l.b16 %v201
        %v478 = vunpack.c.l.b16 %v202
        %v479 = vunpack.c.l.b16 %v203
        %v480 = vunpack.c.l.b16 %v204
        %v481 = vunpack.c.l.b16 %v205
        %v482 = vunpack.c.l.b16 %v206
        %v483 = vunpack.c.l.b16 %v207
        %v484 = vunpack.c.l.b16 %v208
        %v485 = vunpack.c.l.b16 %v209
        %v486 = vunpack.c.l.b16 %v210
        %v487 = vunpack.c.l.b16 %v211
        %v488 = vunpack.c.l.b16 %v212
        %v489 = vunpack.c.l.b16 %v213
        %v490 = vunpack.c.l.b16 %v214
        %v491 = vunpack.c.l.b16 %v215
        %v492 = vunpack.c.l.b16 %v216
        %v493 = vunpack.c.l.b16 %v217
        %v494 = vunpack.c.l.b16 %v218
        %v495 = vunpack.c.l.b16 %v219
        %v496 = vunpack.c.l.b16 %v220
        %v497 = vunpack.c.l.b16 %v221
        %v498 = vunpack.c.l.b16 %v222
        %v499 = vunpack.c.l.b16 %v223
        %v500 = vunpack.c.l.b16 %v224
        %v501 = vunpack.c.l.b16 %v225
        %v502 = vunpack.c.l.b16 %v226
        %v503 = vunpack.c.l.b16 %v227
        %v504 = vunpack.c.l.b16 %v228
        %v505 = vunpack.c.l.b16 %v229
        %v506 = vunpack.c.l.b16 %v230
        %v507 = vunpack.c.l.b16 %v231
        %v508 = vunpack.c.l.b16 %v232
        %v509 = vunpack.c.l.b16 %v233
        %v510 = vunpack.c.l.b16 %v234
        %v511 = vunpack.c.l.b16 %v235
        %v512 = vunpack.c.l.b16 %v236
        %v513 = vunpack.c.l.b16 %v237
        %v514 = vunpack.c.l.b16 %v238
        %v515 = vunpack.c.l.b16 %v239
        %v516 = vunpack.c.l.b16 %v240
        %v517 = vunpack.c.l.b16 %v241
        %v518 = vunpack.c.l.b16 %v242
        %v519 = vunpack.c.l.b16 %v243
        %v520 = vunpack.c.l.b16 %v244
        %v521 = vunpack.c.l.b16 %v245
        %v522 = vunpack.c.l.b16 %v246
        %v523 = vunpack.c.l.b16 %v247
        %v524 = vunpack.c.l.b16 %v248
        %v525 = vunpack.c.l.b16 %v249
        %v526 = vunpack.c.l.b16 %v250
        %v527 = vunpack.c.l.b16 %v251
        %v528 = vunpack.c.l.b16 %v252
        %v529 = vunpack.c.l.b16 %v253
        %v530 = vunpack.c.l.b16 %v254
        %v531 = vunpack.c.l.b16 %v255
        %v532 = vunpack.c.l.b16 %v256
        %v533 = vunpack.c.l.b16 %v257
        %v534 = vunpack.c.l.b16 %v258
        %v535 = vunpack.c.l.b16 %v259
        %v536 = vunpack.c.l.b16 %v260
        %v537 = vunpack.c.l.b16 %v261
        %v538 = vunpack.c.l.b16 %v262
        %v539 = vunpack.c.l.b16 %v263
        %v540 = vunpack.c.l.b16 %v264
        %v541 = vunpack.c.l.b16 %v265
        %v542 = vunpack.c.l.b16 %v266
        %v543 = vunpack.c.l.b16 %v267
        %v544 = vunpack.c.l.b16 %v268
        %v545 = vunpack.c.l.b16 %v269
        %v546 = vunpack.c.l.b16 %v270
        %v547 = vunpack.c.l.b16 %v271
        %v548 = vunpack.c.l.b16 %v272
        %v549 = vunpack.c.l.b16 %v273
        %v550 = vunpack.c.l.b16 %v274
        %v551 = vunpack.c.l.b16 %v275
        %v552 = vunpack.c.l.b16 %v276
        %v553 = vunpack.c.l.b16 %v277
        %v554 = vunpack.c.l.b16 %v278
        %v555 = vunpack.c.l.b16 %v279
        %v556 = vunpack.c.l.b16 %v280
        %v557 = vunpack.c.l.b16 %v281
        %v558 = vunpack.c.l.b16 %v282
        %v559 = vunpack.c.l.b16 %v283
        %v560 = vunpack.c.l.b16 %v284
        %v561 = vunpack.c.l.b16 %v285
        %v562 = vunpack.c.l.b16 %v286
        %v563 = vunpack.c.l.b16 %v287
        %v564 = vunpack.c.l.b16 %v288
        %v565 = vunpack.c.l.b16 %v289
        %v566 = vunpack.c.l.b16 %v290
        %v567 = vunpack.c.l.b16 %v291
        %v568 = vunpack.c.l.b16 %v292
        %v569 = vunpack.c.l.b16 %v293
        %v570 = vunpack.c.l.b16 %v294
        %v571 = vunpack.c.l.b16 %v295
        %v572 = vunpack.c.l.b16 %v296
        %v573 = vunpack.c.l.b16 %v297
        %v574 = vunpack.c.l.b16 %v298
        %v575 = vunpack.c.l.b16 %v299
        %v576 = vunpack.c.l.b16 %v300
        %v577 = vunpack.c.l.b16 %v301
        %v578 = vunpack.c.l.b16 %v302
        %v579 = vunpack.c.l.b16 %v303
        %v580 = vunpack.c.l.b16 %v304
        %v581 = vunpack.c.l.b16 %v305
        %v582 = vunpack.c.l.b16 %v306
        %v583 = vunpack.c.l.b16 %v307
        %v584 = vunpack.c.l.b16 %v308
        %v585 = vunpack.c.l.b16 %v309
        %v586 = vunpack.c.l.b16 %v310
        %v587 = vunpack.c.l.b16 %v311
        %v588 = vunpack.c.l.b16 %v312
        %v589 = vunpack.c.l.b16 %v313
        %v590 = vunpack.c.l.b16 %v314
        %v591 = vunpack.c.l.b16 %v315
        %v592 = vunpack.c.l.b16 %v316
        %v593 = vunpack.c.l.b16 %v317
        %v594 = vunpack.c.l.b16 %v318
        %v595 = vunpack.c.l.b16 %v319
        %v596 = vunpack.c.l.b16 %v320
        %v597 = vunpack.c.l.b16 %v321
        %v598 = vunpack.c.l.b16 %v322
        %v599 = vunpack.c.l.b16 %v323
        %v600 = vunpack.c.l.b16 %v324
        %v601 = vunpack.c.l.b16 %v325
        %v602 = vunpack.c.l.b16 %v326
        %v603 = vunpack.c.l.b16 %v327
        %v604 = vunpack.c.l.b16 %v328
        %v605 = vunpack.c.l.b16 %v329
        %v606 = vunpack.c.l.b16 %v330
        %v607 = vunpack.c.l.b16 %v331
        %v608 = vunpack.c.l.b16 %v332
        %v609 = vunpack.c.l.b16 %v333
        %v610 = vunpack.c.l.b16 %v334
        %v611 = vunpack.c.l.b16 %v335
        %v612 = vpack.c.b16 %v477, %v476
        %v613 = vpack.c.b16 %v479, %v478
        %v614 = vpack.c.b16 %v481, %v480
        %v615 = vpack.c.b16 %v483, %v482
        %v616 = vpack.c.b16 %v485, %v484
        %v617 = vpack.c.b16 %v487, %v486
        %v618 = vpack.c.b16 %v489, %v488
        %v619 = vpack.c.b16 %v491, %v490
        %v620 = vpack.c.b16 %v493, %v492
        %v621 = vpack.c.b16 %v495, %v494
        %v622 = vpack.c.b16 %v497, %v496
        %v623 = vpack.c.b16 %v499, %v498
        %v624 = vpack.c.b16 %v501, %v500
        %v625 = vpack.c.b16 %v503, %v502
        %v626 = vpack.c.b16 %v505, %v504
        %v627 = vpack.c.b16 %v507, %v506
        %v628 = vpack.c.b16 %v509, %v508
        %v629 = vpack.c.b16 %v511, %v510
        %v630 = vpack.c.b16 %v513, %v512
        %v631 = vpack.c.b16 %v515, %v514
        %v632 = vpack.c.b16 %v517, %v516
        %v633 = vpack.c.b16 %v519, %v518
        %v634 = vpack.c.b16 %v521, %v520
        %v635 = vpack.c.b16 %v523, %v522
        %v636 = vpack.c.b16 %v525, %v524
        %v637 = vpack.c.b16 %v527, %v526
        %v638 = vpack.c.b16 %v529, %v528
        %v639 = vpack.c.b16 %v531, %v530
        %v640 = vpack.c.b16 %v533, %v532
        %v641 = vpack.c.b16 %v535, %v534
        %v642 = vpack.c.b16 %v537, %v536
        %v643 = vpack.c.b16 %v539, %v538
        %v644 = vpack.c.b16 %v541, %v540
        %v645 = vpack.c.b16 %v543, %v542
        %v646 = vpack.c.b16 %v545, %v544
        %v647 = vpack.c.b16 %v547, %v546
        %v648 = vpack.c.b16 %v549, %v548
        %v649 = vpack.c.b16 %v551, %v550
        %v650 = vpack.c.b16 %v553, %v552
        %v651 = vpack.c.b16 %v555, %v554
        %v652 = vpack.c.b16 %v557, %v556
        %v653 = vpack.c.b16 %v559, %v558
        %v654 = vpack.c.b16 %v561, %v560
        %v655 = vpack.c.b16 %v563, %v562
        %v656 = vpack.c.b16 %v565, %v564
        %v657 = vpack.c.b16 %v567, %v566
        %v658 = vpack.c.b16 %v569, %v568
        %v659 = vpack.c.b16 %v571, %v570
        %v660 = vpack.c.b16 %v573, %v572
        %v661 = vpack.c.b16 %v575, %v574
        %v662 = vpack.c.b16 %v577, %v576
        %v663 = vpack.c.b16 %v579, %v578
        %v664 = vpack.c.b16 %v581, %v580
        %v665 = vpack.c.b16 %v583, %v582
        %v666 = vpack.c.b16 %v585, %v584
        %v667 = vpack.c.b16 %v587, %v586
        %v668 = vpack.c.b16 %v589, %v588
        %v669 = vpack.c.b16 %v591, %v590
        %v670 = vpack.c.b16 %v593, %v592
        %v671 = vpack.c.b16 %v595, %v594
        %v672 = vpack.c.b16 %v597, %v596
        %v673 = vpack.c.b16 %v599, %v598
        %v674 = vpack.c.b16 %v601, %v600
        %v675 = vpack.c.b16 %v603, %v602
        %v676 = vpack.c.b16 %v605, %v604
        %v677 = vpack.c.b16 %v607, %v606
        %v678 = vpack.c.b16 %v609, %v608
        %v679 = vpack.c.b16 %v611, %v610
        %v684 = vunpack.c.l.b16 %v336
        %v685 = vunpack.c.l.b16 %v337
        %v686 = vunpack.c.l.b16 %v338
        %v687 = vunpack.c.l.b16 %v339
        %v688 = vpack.c.b16 %v685, %v684
        %v689 = vpack.c.b16 %v687, %v686
        %vm691 = vcmask 220160
        %v693 = vsel %vm691, %v612, 0
        %v696 = vsel %vm691, %v613, 0
        %v699 = vsel %vm691, %v614, 0
        %v702 = vsel %vm691, %v615, 0
        %v705 = vsel %vm691, %v616, 0
        %v708 = vsel %vm691, %v617, 0
        %v711 = vsel %vm691, %v618, 0
        %v714 = vsel %vm691, %v619, 0
        %v717 = vsel %vm691, %v620, 0
        %v720 = vsel %vm691, %v621, 0
        %v723 = vsel %vm691, %v622, 0
        %v726 = vsel %vm691, %v623, 0
        %v729 = vsel %vm691, %v624, 0
        %v732 = vsel %vm691, %v625, 0
        %v735 = vsel %vm691, %v626, 0
        %v738 = vsel %vm691, %v627, 0
        %v741 = vsel %vm691, %v628, 0
        %v744 = vsel %vm691, %v629, 0
        %v747 = vsel %vm691, %v630, 0
        %v750 = vsel %vm691, %v631, 0
        %v753 = vsel %vm691, %v632, 0
        %v756 = vsel %vm691, %v633, 0
        %v759 = vsel %vm691, %v634, 0
        %v762 = vsel %vm691, %v635, 0
        %v765 = vsel %vm691, %v636, 0
        %v768 = vsel %vm691, %v637, 0
        %v771 = vsel %vm691, %v638, 0
        %v774 = vsel %vm691, %v639, 0
        %v777 = vsel %vm691, %v640, 0
        %v780 = vsel %vm691, %v641, 0
        %v783 = vsel %vm691, %v642, 0
        %v786 = vsel %vm691, %v643, 0
        %v789 = vsel %vm691, %v644, 0
        %v792 = vsel %vm691, %v645, 0
        %v795 = vsel %vm691, %v646, 0
        %v798 = vsel %vm691, %v647, 0
        %v801 = vsel %vm691, %v648, 0
        %v804 = vsel %vm691, %v649, 0
        %v807 = vsel %vm691, %v650, 0
        %v810 = vsel %vm691, %v651, 0
        %v813 = vsel %vm691, %v652, 0
        %v816 = vsel %vm691, %v653, 0
        %v819 = vsel %vm691, %v654, 0
        %v822 = vsel %vm691, %v655, 0
        %v825 = vsel %vm691, %v656, 0
        %v828 = vsel %vm691, %v657, 0
        %v831 = vsel %vm691, %v658, 0
        %v834 = vsel %vm691, %v659, 0
        %v837 = vsel %vm691, %v660, 0
        %v840 = vsel %vm691, %v661, 0
        %v843 = vsel %vm691, %v662, 0
        %v846 = vsel %vm691, %v663, 0
        %v849 = vsel %vm691, %v664, 0
        %v852 = vsel %vm691, %v665, 0
        %v855 = vsel %vm691, %v666, 0
        %v858 = vsel %vm691, %v667, 0
        %v861 = vsel %vm691, %v668, 0
        %v864 = vsel %vm691, %v669, 0
        %v867 = vsel %vm691, %v670, 0
        %v870 = vsel %vm691, %v671, 0
        %v873 = vsel %vm691, %v672, 0
        %v876 = vsel %vm691, %v673, 0
        %v879 = vsel %vm691, %v674, 0
        %v882 = vsel %vm691, %v675, 0
        %v885 = vsel %vm691, %v676, 0
        %v888 = vsel %vm691, %v677, 0
        %v891 = vsel %vm691, %v678, 0
        %v894 = vsel %vm691, %v679, 0
        %vm896 = vcmask 1044480
        %vm897 = vcmask 1045504
        %v898 = vsel %vm896, 4294967295, 65535
        %v899 = vsel %vm897, %v898, 0
        %v901 = vand.u32 %v689, %v899
        %903 = vmatprep.subr.bf16.mxu0 0
        %904 = vmatpush1.bf16.msra.mxu0 %v688
        %905 = vmatprep.subr.bf16.mxu0 0
        %906 = vmatpush1.bf16.msra.mxu0 %v901
        %907 = vmatprep.subr.bf16.mxu0 0
        %908 = vmatpush1.bf16.msra.mxu0 0
        %909 = vmatprep.subr.bf16.mxu0 0
        %910 = vmatpush1.bf16.msra.mxu0 0
        %911 = vmatprep.subr.bf16.mxu0 0
        %912 = vmatpush1.bf16.msra.mxu0 0
        %913 = vmatprep.subr.bf16.mxu0 0
        %914 = vmatpush1.bf16.msra.mxu0 0
        %915 = vmatprep.subr.bf16.mxu0 0
        %916 = vmatpush1.bf16.msra.mxu0 0
        %917 = vmatprep.subr.bf16.mxu0 0
        %918 = vmatpush1.bf16.msra.mxu0 0
        %919 = vmatprep.subr.bf16.mxu0 0
        %920 = vmatpush1.bf16.msra.mxu0 0
        %921 = vmatprep.subr.bf16.mxu0 0
        %922 = vmatpush1.bf16.msra.mxu0 0
        %923 = vmatprep.subr.bf16.mxu0 0
        %924 = vmatpush1.bf16.msra.mxu0 0
        %925 = vmatprep.subr.bf16.mxu0 0
        %926 = vmatpush1.bf16.msra.mxu0 0
        %927 = vmatprep.subr.bf16.mxu0 0
        %928 = vmatpush1.bf16.msra.mxu0 0
        %929 = vmatprep.subr.bf16.mxu0 0
        %930 = vmatpush1.bf16.msra.mxu0 0
        %931 = vmatprep.subr.bf16.mxu0 0
        %932 = vmatpush1.bf16.msra.mxu0 0
        %933 = vmatprep.subr.bf16.mxu0 0
        %934 = vmatpush1.bf16.msra.mxu0 0
        %935 = vmatprep.mubr.bf16.mxu0 0
        %936 = vmatmul.mubr.bf16.gmra.mrb[0].mxu0 %v693
        %v937 = vpop.f32.mrb[0].mxu0
        %v938 = vadd.f32 0.0, %v937
        %v939 = vpop.f32.mrb[0].mxu0
        %v940 = vpop.f32.mrb[0].mxu0
        %v941 = vadd.f32 0.0, %v940
        %v942 = vpop.f32.mrb[0].mxu0
        %943 = vmatprep.mubr.bf16.mxu0 0
        %944 = vmatmul.mubr.bf16.gmra.mrb[0].mxu0 %v696
        %v945 = vpop.f32.mrb[0].mxu0
        %v946 = vadd.f32 0.0, %v945
        %v947 = vpop.f32.mrb[0].mxu0
        %v948 = vpop.f32.mrb[0].mxu0
        %v949 = vadd.f32 0.0, %v948
        %v950 = vpop.f32.mrb[0].mxu0
        %951 = vmatprep.mubr.bf16.mxu0 0
        %952 = vmatmul.mubr.bf16.gmra.mrb[0].mxu0 %v699
        %v953 = vpop.f32.mrb[0].mxu0
        %v954 = vadd.f32 0.0, %v953
        %v955 = vpop.f32.mrb[0].mxu0
        %v956 = vpop.f32.mrb[0].mxu0
        %v957 = vadd.f32 0.0, %v956
        %v958 = vpop.f32.mrb[0].mxu0
        %959 = vmatprep.mubr.bf16.mxu0 0
        %960 = vmatmul.mubr.bf16.gmra.mrb[0].mxu0 %v702
        %v961 = vpop.f32.mrb[0].mxu0
        %v962 = vadd.f32 0.0, %v961
        %v963 = vpop.f32.mrb[0].mxu0
        %v964 = vpop.f32.mrb[0].mxu0
        %v965 = vadd.f32 0.0, %v964
        %v966 = vpop.f32.mrb[0].mxu0
        %967 = vmatprep.mubr.bf16.mxu0 0
        %968 = vmatmul.mubr.bf16.gmra.mrb[0].mxu0 %v705
        %v969 = vpop.f32.mrb[0].mxu0
        %v970 = vadd.f32 0.0, %v969
        %v971 = vpop.f32.mrb[0].mxu0
        %v972 = vpop.f32.mrb[0].mxu0
        %v973 = vadd.f32 0.0, %v972
        %v974 = vpop.f32.mrb[0].mxu0
        %975 = vmatprep.mubr.bf16.mxu0 0
        %976 = vmatmul.mubr.bf16.gmra.mrb[0].mxu0 %v708
        %v977 = vpop.f32.mrb[0].mxu0
        %v978 = vadd.f32 0.0, %v977
        %v979 = vpop.f32.mrb[0].mxu0
        %v980 = vpop.f32.mrb[0].mxu0
        %v981 = vadd.f32 0.0, %v980
        %v982 = vpop.f32.mrb[0].mxu0
        %983 = vmatprep.mubr.bf16.mxu0 0
        %984 = vmatmul.mubr.bf16.gmra.mrb[0].mxu0 %v711
        %v985 = vpop.f32.mrb[0].mxu0
        %v986 = vadd.f32 0.0, %v985
        %v987 = vpop.f32.mrb[0].mxu0
        %v988 = vpop.f32.mrb[0].mxu0
        %v989 = vadd.f32 0.0, %v988
        %v990 = vpop.f32.mrb[0].mxu0
        %991 = vmatprep.mubr.bf16.mxu0 0
        %992 = vmatmul.mubr.bf16.gmra.mrb[0].mxu0 %v714
        %v993 = vpop.f32.mrb[0].mxu0
        %v994 = vadd.f32 0.0, %v993
        %v995 = vpop.f32.mrb[0].mxu0
        %v996 = vpop.f32.mrb[0].mxu0
        %v997 = vadd.f32 0.0, %v996
        %v998 = vpop.f32.mrb[0].mxu0
        %999 = vmatprep.mubr.bf16.mxu0 0
        %1000 = vmatmul.mubr.bf16.gmra.mrb[0].mxu0 %v717
        %v1001 = vpop.f32.mrb[0].mxu0
        %v1002 = vadd.f32 0.0, %v1001
        %v1003 = vpop.f32.mrb[0].mxu0
        %v1004 = vpop.f32.mrb[0].mxu0
        %v1005 = vadd.f32 0.0, %v1004
        %v1006 = vpop.f32.mrb[0].mxu0
        %1007 = vmatprep.mubr.bf16.mxu0 0
        %1008 = vmatmul.mubr.bf16.gmra.mrb[0].mxu0 %v720
        %v1009 = vpop.f32.mrb[0].mxu0
        %v1010 = vadd.f32 0.0, %v1009
        %v1011 = vpop.f32.mrb[0].mxu0
        %v1012 = vpop.f32.mrb[0].mxu0
        %v1013 = vadd.f32 0.0, %v1012
        %v1014 = vpop.f32.mrb[0].mxu0
        %1015 = vmatprep.mubr.bf16.mxu0 0
        %1016 = vmatmul.mubr.bf16.gmra.mrb[0].mxu0 %v723
        %v1017 = vpop.f32.mrb[0].mxu0
        %v1018 = vadd.f32 0.0, %v1017
        %v1019 = vpop.f32.mrb[0].mxu0
        %v1020 = vpop.f32.mrb[0].mxu0
        %v1021 = vadd.f32 0.0, %v1020
        %v1022 = vpop.f32.mrb[0].mxu0
        %1023 = vmatprep.mubr.bf16.mxu0 0
        %1024 = vmatmul.mubr.bf16.gmra.mrb[0].mxu0 %v726
        %v1025 = vpop.f32.mrb[0].mxu0
        %v1026 = vadd.f32 0.0, %v1025
        %v1027 = vpop.f32.mrb[0].mxu0
        %v1028 = vpop.f32.mrb[0].mxu0
        %v1029 = vadd.f32 0.0, %v1028
        %v1030 = vpop.f32.mrb[0].mxu0
        %1031 = vmatprep.mubr.bf16.mxu0 0
        %1032 = vmatmul.mubr.bf16.gmra.mrb[0].mxu0 %v729
        %v1033 = vpop.f32.mrb[0].mxu0
        %v1034 = vadd.f32 0.0, %v1033
        %v1035 = vpop.f32.mrb[0].mxu0
        %v1036 = vpop.f32.mrb[0].mxu0
        %v1037 = vadd.f32 0.0, %v1036
        %v1038 = vpop.f32.mrb[0].mxu0
        %1039 = vmatprep.mubr.bf16.mxu0 0
        %1040 = vmatmul.mubr.bf16.gmra.mrb[0].mxu0 %v732
        %v1041 = vpop.f32.mrb[0].mxu0
        %v1042 = vadd.f32 0.0, %v1041
        %v1043 = vpop.f32.mrb[0].mxu0
        %v1044 = vpop.f32.mrb[0].mxu0
        %v1045 = vadd.f32 0.0, %v1044
        %v1046 = vpop.f32.mrb[0].mxu0
        %1047 = vmatprep.mubr.bf16.mxu0 0
        %1048 = vmatmul.mubr.bf16.gmra.mrb[0].mxu0 %v735
        %v1049 = vpop.f32.mrb[0].mxu0
        %v1050 = vadd.f32 0.0, %v1049
        %v1051 = vpop.f32.mrb[0].mxu0
        %v1052 = vpop.f32.mrb[0].mxu0
        %v1053 = vadd.f32 0.0, %v1052
        %v1054 = vpop.f32.mrb[0].mxu0
        %1055 = vmatprep.mubr.bf16.mxu0 0
        %1056 = vmatmul.mubr.bf16.gmra.mrb[0].mxu0 %v738
        %v1057 = vpop.f32.mrb[0].mxu0
        %v1058 = vadd.f32 0.0, %v1057
        %v1059 = vpop.f32.mrb[0].mxu0
        %v1060 = vpop.f32.mrb[0].mxu0
        %v1061 = vadd.f32 0.0, %v1060
        %v1062 = vpop.f32.mrb[0].mxu0
        %1063 = vmatprep.mubr.bf16.mxu0 0
        %1064 = vmatmul.mubr.bf16.gmra.mrb[0].mxu0 %v741
        %v1065 = vpop.f32.mrb[0].mxu0
        %v1066 = vadd.f32 0.0, %v1065
        %v1067 = vpop.f32.mrb[0].mxu0
        %v1068 = vpop.f32.mrb[0].mxu0
        %v1069 = vadd.f32 0.0, %v1068
        %v1070 = vpop.f32.mrb[0].mxu0
        %1071 = vmatprep.mubr.bf16.mxu0 0
        %1072 = vmatmul.mubr.bf16.gmra.mrb[0].mxu0 %v744
        %v1073 = vpop.f32.mrb[0].mxu0
        %v1074 = vadd.f32 0.0, %v1073
        %v1075 = vpop.f32.mrb[0].mxu0
        %v1076 = vpop.f32.mrb[0].mxu0
        %v1077 = vadd.f32 0.0, %v1076
        %v1078 = vpop.f32.mrb[0].mxu0
        %1079 = vmatprep.mubr.bf16.mxu0 0
        %1080 = vmatmul.mubr.bf16.gmra.mrb[0].mxu0 %v747
        %v1081 = vpop.f32.mrb[0].mxu0
        %v1082 = vadd.f32 0.0, %v1081
        %v1083 = vpop.f32.mrb[0].mxu0
        %v1084 = vpop.f32.mrb[0].mxu0
        %v1085 = vadd.f32 0.0, %v1084
        %v1086 = vpop.f32.mrb[0].mxu0
        %1087 = vmatprep.mubr.bf16.mxu0 0
        %1088 = vmatmul.mubr.bf16.gmra.mrb[0].mxu0 %v750
        %v1089 = vpop.f32.mrb[0].mxu0
        %v1090 = vadd.f32 0.0, %v1089
        %v1091 = vpop.f32.mrb[0].mxu0
        %v1092 = vpop.f32.mrb[0].mxu0
        %v1093 = vadd.f32 0.0, %v1092
        %v1094 = vpop.f32.mrb[0].mxu0
        %1095 = vmatprep.mubr.bf16.mxu0 0
        %1096 = vmatmul.mubr.bf16.gmra.mrb[0].mxu0 %v753
        %v1097 = vpop.f32.mrb[0].mxu0
        %v1098 = vadd.f32 0.0, %v1097
        %v1099 = vpop.f32.mrb[0].mxu0
        %v1100 = vpop.f32.mrb[0].mxu0
        %v1101 = vadd.f32 0.0, %v1100
        %v1102 = vpop.f32.mrb[0].mxu0
        %1103 = vmatprep.mubr.bf16.mxu0 0
        %1104 = vmatmul.mubr.bf16.gmra.mrb[0].mxu0 %v756
        %v1105 = vpop.f32.mrb[0].mxu0
        %v1106 = vadd.f32 0.0, %v1105
        %v1107 = vpop.f32.mrb[0].mxu0
        %v1108 = vpop.f32.mrb[0].mxu0
        %v1109 = vadd.f32 0.0, %v1108
        %v1110 = vpop.f32.mrb[0].mxu0
        %1111 = vmatprep.mubr.bf16.mxu0 0
        %1112 = vmatmul.mubr.bf16.gmra.mrb[0].mxu0 %v759
        %v1113 = vpop.f32.mrb[0].mxu0
        %v1114 = vadd.f32 0.0, %v1113
        %v1115 = vpop.f32.mrb[0].mxu0
        %v1116 = vpop.f32.mrb[0].mxu0
        %v1117 = vadd.f32 0.0, %v1116
        %v1118 = vpop.f32.mrb[0].mxu0
        %1119 = vmatprep.mubr.bf16.mxu0 0
        %1120 = vmatmul.mubr.bf16.gmra.mrb[0].mxu0 %v762
        %v1121 = vpop.f32.mrb[0].mxu0
        %v1122 = vadd.f32 0.0, %v1121
        %v1123 = vpop.f32.mrb[0].mxu0
        %v1124 = vpop.f32.mrb[0].mxu0
        %v1125 = vadd.f32 0.0, %v1124
        %v1126 = vpop.f32.mrb[0].mxu0
        %1127 = vmatprep.mubr.bf16.mxu0 0
        %1128 = vmatmul.mubr.bf16.gmra.mrb[0].mxu0 %v765
        %v1129 = vpop.f32.mrb[0].mxu0
        %v1130 = vadd.f32 0.0, %v1129
        %v1131 = vpop.f32.mrb[0].mxu0
        %v1132 = vpop.f32.mrb[0].mxu0
        %v1133 = vadd.f32 0.0, %v1132
        %v1134 = vpop.f32.mrb[0].mxu0
        %1135 = vmatprep.mubr.bf16.mxu0 0
        %1136 = vmatmul.mubr.bf16.gmra.mrb[0].mxu0 %v768
        %v1137 = vpop.f32.mrb[0].mxu0
        %v1138 = vadd.f32 0.0, %v1137
        %v1139 = vpop.f32.mrb[0].mxu0
        %v1140 = vpop.f32.mrb[0].mxu0
        %v1141 = vadd.f32 0.0, %v1140
        %v1142 = vpop.f32.mrb[0].mxu0
        %1143 = vmatprep.mubr.bf16.mxu0 0
        %1144 = vmatmul.mubr.bf16.gmra.mrb[0].mxu0 %v771
        %v1145 = vpop.f32.mrb[0].mxu0
        %v1146 = vadd.f32 0.0, %v1145
        %v1147 = vpop.f32.mrb[0].mxu0
        %v1148 = vpop.f32.mrb[0].mxu0
        %v1149 = vadd.f32 0.0, %v1148
        %v1150 = vpop.f32.mrb[0].mxu0
        %1151 = vmatprep.mubr.bf16.mxu0 0
        %1152 = vmatmul.mubr.bf16.gmra.mrb[0].mxu0 %v774
        %v1153 = vpop.f32.mrb[0].mxu0
        %v1154 = vadd.f32 0.0, %v1153
        %v1155 = vpop.f32.mrb[0].mxu0
        %v1156 = vpop.f32.mrb[0].mxu0
        %v1157 = vadd.f32 0.0, %v1156
        %v1158 = vpop.f32.mrb[0].mxu0
        %1159 = vmatprep.mubr.bf16.mxu0 0
        %1160 = vmatmul.mubr.bf16.gmra.mrb[0].mxu0 %v777
        %v1161 = vpop.f32.mrb[0].mxu0
        %v1162 = vadd.f32 0.0, %v1161
        %v1163 = vpop.f32.mrb[0].mxu0
        %v1164 = vpop.f32.mrb[0].mxu0
        %v1165 = vadd.f32 0.0, %v1164
        %v1166 = vpop.f32.mrb[0].mxu0
        %1167 = vmatprep.mubr.bf16.mxu0 0
        %1168 = vmatmul.mubr.bf16.gmra.mrb[0].mxu0 %v780
        %v1169 = vpop.f32.mrb[0].mxu0
        %v1170 = vadd.f32 0.0, %v1169
        %v1171 = vpop.f32.mrb[0].mxu0
        %v1172 = vpop.f32.mrb[0].mxu0
        %v1173 = vadd.f32 0.0, %v1172
        %v1174 = vpop.f32.mrb[0].mxu0
        %1175 = vmatprep.mubr.bf16.mxu0 0
        %1176 = vmatmul.mubr.bf16.gmra.mrb[0].mxu0 %v783
        %v1177 = vpop.f32.mrb[0].mxu0
        %v1178 = vadd.f32 0.0, %v1177
        %v1179 = vpop.f32.mrb[0].mxu0
        %v1180 = vpop.f32.mrb[0].mxu0
        %v1181 = vadd.f32 0.0, %v1180
        %v1182 = vpop.f32.mrb[0].mxu0
        %1183 = vmatprep.mubr.bf16.mxu0 0
        %1184 = vmatmul.mubr.bf16.gmra.mrb[0].mxu0 %v786
        %v1185 = vpop.f32.mrb[0].mxu0
        %v1186 = vadd.f32 0.0, %v1185
        %v1187 = vpop.f32.mrb[0].mxu0
        %v1188 = vpop.f32.mrb[0].mxu0
        %v1189 = vadd.f32 0.0, %v1188
        %v1190 = vpop.f32.mrb[0].mxu0
        %1191 = vmatprep.mubr.bf16.mxu0 0
        %1192 = vmatmul.mubr.bf16.gmra.mrb[0].mxu0 %v789
        %v1193 = vpop.f32.mrb[0].mxu0
        %v1194 = vadd.f32 0.0, %v1193
        %v1195 = vpop.f32.mrb[0].mxu0
        %v1196 = vpop.f32.mrb[0].mxu0
        %v1197 = vadd.f32 0.0, %v1196
        %v1198 = vpop.f32.mrb[0].mxu0
        %1199 = vmatprep.mubr.bf16.mxu0 0
        %1200 = vmatmul.mubr.bf16.gmra.mrb[0].mxu0 %v792
        %v1201 = vpop.f32.mrb[0].mxu0
        %v1202 = vadd.f32 0.0, %v1201
        %v1203 = vpop.f32.mrb[0].mxu0
        %v1204 = vpop.f32.mrb[0].mxu0
        %v1205 = vadd.f32 0.0, %v1204
        %v1206 = vpop.f32.mrb[0].mxu0
        %1207 = vmatprep.mubr.bf16.mxu0 0
        %1208 = vmatmul.mubr.bf16.gmra.mrb[0].mxu0 %v795
        %v1209 = vpop.f32.mrb[0].mxu0
        %v1210 = vadd.f32 0.0, %v1209
        %v1211 = vpop.f32.mrb[0].mxu0
        %v1212 = vpop.f32.mrb[0].mxu0
        %v1213 = vadd.f32 0.0, %v1212
        %v1214 = vpop.f32.mrb[0].mxu0
        %1215 = vmatprep.mubr.bf16.mxu0 0
        %1216 = vmatmul.mubr.bf16.gmra.mrb[0].mxu0 %v798
        %v1217 = vpop.f32.mrb[0].mxu0
        %v1218 = vadd.f32 0.0, %v1217
        %v1219 = vpop.f32.mrb[0].mxu0
        %v1220 = vpop.f32.mrb[0].mxu0
        %v1221 = vadd.f32 0.0, %v1220
        %v1222 = vpop.f32.mrb[0].mxu0
        %1223 = vmatprep.mubr.bf16.mxu0 0
        %1224 = vmatmul.mubr.bf16.gmra.mrb[0].mxu0 %v801
        %v1225 = vpop.f32.mrb[0].mxu0
        %v1226 = vadd.f32 0.0, %v1225
        %v1227 = vpop.f32.mrb[0].mxu0
        %v1228 = vpop.f32.mrb[0].mxu0
        %v1229 = vadd.f32 0.0, %v1228
        %v1230 = vpop.f32.mrb[0].mxu0
        %1231 = vmatprep.mubr.bf16.mxu0 0
        %1232 = vmatmul.mubr.bf16.gmra.mrb[0].mxu0 %v804
        %v1233 = vpop.f32.mrb[0].mxu0
        %v1234 = vadd.f32 0.0, %v1233
        %v1235 = vpop.f32.mrb[0].mxu0
        %v1236 = vpop.f32.mrb[0].mxu0
        %v1237 = vadd.f32 0.0, %v1236
        %v1238 = vpop.f32.mrb[0].mxu0
        %1239 = vmatprep.mubr.bf16.mxu0 0
        %1240 = vmatmul.mubr.bf16.gmra.mrb[0].mxu0 %v807
        %v1241 = vpop.f32.mrb[0].mxu0
        %v1242 = vadd.f32 0.0, %v1241
        %v1243 = vpop.f32.mrb[0].mxu0
        %v1244 = vpop.f32.mrb[0].mxu0
        %v1245 = vadd.f32 0.0, %v1244
        %v1246 = vpop.f32.mrb[0].mxu0
        %1247 = vmatprep.mubr.bf16.mxu0 0
        %1248 = vmatmul.mubr.bf16.gmra.mrb[0].mxu0 %v810
        %v1249 = vpop.f32.mrb[0].mxu0
        %v1250 = vadd.f32 0.0, %v1249
        %v1251 = vpop.f32.mrb[0].mxu0
        %v1252 = vpop.f32.mrb[0].mxu0
        %v1253 = vadd.f32 0.0, %v1252
        %v1254 = vpop.f32.mrb[0].mxu0
        %1255 = vmatprep.mubr.bf16.mxu0 0
        %1256 = vmatmul.mubr.bf16.gmra.mrb[0].mxu0 %v813
        %v1257 = vpop.f32.mrb[0].mxu0
        %v1258 = vadd.f32 0.0, %v1257
        %v1259 = vpop.f32.mrb[0].mxu0
        %v1260 = vpop.f32.mrb[0].mxu0
        %v1261 = vadd.f32 0.0, %v1260
        %v1262 = vpop.f32.mrb[0].mxu0
        %1263 = vmatprep.mubr.bf16.mxu0 0
        %1264 = vmatmul.mubr.bf16.gmra.mrb[0].mxu0 %v816
        %v1265 = vpop.f32.mrb[0].mxu0
        %v1266 = vadd.f32 0.0, %v1265
        %v1267 = vpop.f32.mrb[0].mxu0
        %v1268 = vpop.f32.mrb[0].mxu0
        %v1269 = vadd.f32 0.0, %v1268
        %v1270 = vpop.f32.mrb[0].mxu0
        %1271 = vmatprep.mubr.bf16.mxu0 0
        %1272 = vmatmul.mubr.bf16.gmra.mrb[0].mxu0 %v819
        %v1273 = vpop.f32.mrb[0].mxu0
        %v1274 = vadd.f32 0.0, %v1273
        %v1275 = vpop.f32.mrb[0].mxu0
        %v1276 = vpop.f32.mrb[0].mxu0
        %v1277 = vadd.f32 0.0, %v1276
        %v1278 = vpop.f32.mrb[0].mxu0
        %1279 = vmatprep.mubr.bf16.mxu0 0
        %1280 = vmatmul.mubr.bf16.gmra.mrb[0].mxu0 %v822
        %v1281 = vpop.f32.mrb[0].mxu0
        %v1282 = vadd.f32 0.0, %v1281
        %v1283 = vpop.f32.mrb[0].mxu0
        %v1284 = vpop.f32.mrb[0].mxu0
        %v1285 = vadd.f32 0.0, %v1284
        %v1286 = vpop.f32.mrb[0].mxu0
        %1287 = vmatprep.mubr.bf16.mxu0 0
        %1288 = vmatmul.mubr.bf16.gmra.mrb[0].mxu0 %v825
        %v1289 = vpop.f32.mrb[0].mxu0
        %v1290 = vadd.f32 0.0, %v1289
        %v1291 = vpop.f32.mrb[0].mxu0
        %v1292 = vpop.f32.mrb[0].mxu0
        %v1293 = vadd.f32 0.0, %v1292
        %v1294 = vpop.f32.mrb[0].mxu0
        %1295 = vmatprep.mubr.bf16.mxu0 0
        %1296 = vmatmul.mubr.bf16.gmra.mrb[0].mxu0 %v828
        %v1297 = vpop.f32.mrb[0].mxu0
        %v1298 = vadd.f32 0.0, %v1297
        %v1299 = vpop.f32.mrb[0].mxu0
        %v1300 = vpop.f32.mrb[0].mxu0
        %v1301 = vadd.f32 0.0, %v1300
        %v1302 = vpop.f32.mrb[0].mxu0
        %1303 = vmatprep.mubr.bf16.mxu0 0
        %1304 = vmatmul.mubr.bf16.gmra.mrb[0].mxu0 %v831
        %v1305 = vpop.f32.mrb[0].mxu0
        %v1306 = vadd.f32 0.0, %v1305
        %v1307 = vpop.f32.mrb[0].mxu0
        %v1308 = vpop.f32.mrb[0].mxu0
        %v1309 = vadd.f32 0.0, %v1308
        %v1310 = vpop.f32.mrb[0].mxu0
        %1311 = vmatprep.mubr.bf16.mxu0 0
        %1312 = vmatmul.mubr.bf16.gmra.mrb[0].mxu0 %v834
        %v1313 = vpop.f32.mrb[0].mxu0
        %v1314 = vadd.f32 0.0, %v1313
        %v1315 = vpop.f32.mrb[0].mxu0
        %v1316 = vpop.f32.mrb[0].mxu0
        %v1317 = vadd.f32 0.0, %v1316
        %v1318 = vpop.f32.mrb[0].mxu0
        %1319 = vmatprep.mubr.bf16.mxu0 0
        %1320 = vmatmul.mubr.bf16.gmra.mrb[0].mxu0 %v837
        %v1321 = vpop.f32.mrb[0].mxu0
        %v1322 = vadd.f32 0.0, %v1321
        %v1323 = vpop.f32.mrb[0].mxu0
        %v1324 = vpop.f32.mrb[0].mxu0
        %v1325 = vadd.f32 0.0, %v1324
        %v1326 = vpop.f32.mrb[0].mxu0
        %1327 = vmatprep.mubr.bf16.mxu0 0
        %1328 = vmatmul.mubr.bf16.gmra.mrb[0].mxu0 %v840
        %v1329 = vpop.f32.mrb[0].mxu0
        %v1330 = vadd.f32 0.0, %v1329
        %v1331 = vpop.f32.mrb[0].mxu0
        %v1332 = vpop.f32.mrb[0].mxu0
        %v1333 = vadd.f32 0.0, %v1332
        %v1334 = vpop.f32.mrb[0].mxu0
        %1335 = vmatprep.mubr.bf16.mxu0 0
        %1336 = vmatmul.mubr.bf16.gmra.mrb[0].mxu0 %v843
        %v1337 = vpop.f32.mrb[0].mxu0
        %v1338 = vadd.f32 0.0, %v1337
        %v1339 = vpop.f32.mrb[0].mxu0
        %v1340 = vpop.f32.mrb[0].mxu0
        %v1341 = vadd.f32 0.0, %v1340
        %v1342 = vpop.f32.mrb[0].mxu0
        %1343 = vmatprep.mubr.bf16.mxu0 0
        %1344 = vmatmul.mubr.bf16.gmra.mrb[0].mxu0 %v846
        %v1345 = vpop.f32.mrb[0].mxu0
        %v1346 = vadd.f32 0.0, %v1345
        %v1347 = vpop.f32.mrb[0].mxu0
        %v1348 = vpop.f32.mrb[0].mxu0
        %v1349 = vadd.f32 0.0, %v1348
        %v1350 = vpop.f32.mrb[0].mxu0
        %1351 = vmatprep.mubr.bf16.mxu0 0
        %1352 = vmatmul.mubr.bf16.gmra.mrb[0].mxu0 %v849
        %v1353 = vpop.f32.mrb[0].mxu0
        %v1354 = vadd.f32 0.0, %v1353
        %v1355 = vpop.f32.mrb[0].mxu0
        %v1356 = vpop.f32.mrb[0].mxu0
        %v1357 = vadd.f32 0.0, %v1356
        %v1358 = vpop.f32.mrb[0].mxu0
        %1359 = vmatprep.mubr.bf16.mxu0 0
        %1360 = vmatmul.mubr.bf16.gmra.mrb[0].mxu0 %v852
        %v1361 = vpop.f32.mrb[0].mxu0
        %v1362 = vadd.f32 0.0, %v1361
        %v1363 = vpop.f32.mrb[0].mxu0
        %v1364 = vpop.f32.mrb[0].mxu0
        %v1365 = vadd.f32 0.0, %v1364
        %v1366 = vpop.f32.mrb[0].mxu0
        %1367 = vmatprep.mubr.bf16.mxu0 0
        %1368 = vmatmul.mubr.bf16.gmra.mrb[0].mxu0 %v855
        %v1369 = vpop.f32.mrb[0].mxu0
        %v1370 = vadd.f32 0.0, %v1369
        %v1371 = vpop.f32.mrb[0].mxu0
        %v1372 = vpop.f32.mrb[0].mxu0
        %v1373 = vadd.f32 0.0, %v1372
        %v1374 = vpop.f32.mrb[0].mxu0
        %1375 = vmatprep.mubr.bf16.mxu0 0
        %1376 = vmatmul.mubr.bf16.gmra.mrb[0].mxu0 %v858
        %v1377 = vpop.f32.mrb[0].mxu0
        %v1378 = vadd.f32 0.0, %v1377
        %v1379 = vpop.f32.mrb[0].mxu0
        %v1380 = vpop.f32.mrb[0].mxu0
        %v1381 = vadd.f32 0.0, %v1380
        %v1382 = vpop.f32.mrb[0].mxu0
        %1383 = vmatprep.mubr.bf16.mxu0 0
        %1384 = vmatmul.mubr.bf16.gmra.mrb[0].mxu0 %v861
        %v1385 = vpop.f32.mrb[0].mxu0
        %v1386 = vadd.f32 0.0, %v1385
        %v1387 = vpop.f32.mrb[0].mxu0
        %v1388 = vpop.f32.mrb[0].mxu0
        %v1389 = vadd.f32 0.0, %v1388
        %v1390 = vpop.f32.mrb[0].mxu0
        %1391 = vmatprep.mubr.bf16.mxu0 0
        %1392 = vmatmul.mubr.bf16.gmra.mrb[0].mxu0 %v864
        %v1393 = vpop.f32.mrb[0].mxu0
        %v1394 = vadd.f32 0.0, %v1393
        %v1395 = vpop.f32.mrb[0].mxu0
        %v1396 = vpop.f32.mrb[0].mxu0
        %v1397 = vadd.f32 0.0, %v1396
        %v1398 = vpop.f32.mrb[0].mxu0
        %1399 = vmatprep.mubr.bf16.mxu0 0
        %1400 = vmatmul.mubr.bf16.gmra.mrb[0].mxu0 %v867
        %v1401 = vpop.f32.mrb[0].mxu0
        %v1402 = vadd.f32 0.0, %v1401
        %v1403 = vpop.f32.mrb[0].mxu0
        %v1404 = vpop.f32.mrb[0].mxu0
        %v1405 = vadd.f32 0.0, %v1404
        %v1406 = vpop.f32.mrb[0].mxu0
        %1407 = vmatprep.mubr.bf16.mxu0 0
        %1408 = vmatmul.mubr.bf16.gmra.mrb[0].mxu0 %v870
        %v1409 = vpop.f32.mrb[0].mxu0
        %v1410 = vadd.f32 0.0, %v1409
        %v1411 = vpop.f32.mrb[0].mxu0
        %v1412 = vpop.f32.mrb[0].mxu0
        %v1413 = vadd.f32 0.0, %v1412
        %v1414 = vpop.f32.mrb[0].mxu0
        %1415 = vmatprep.mubr.bf16.mxu0 0
        %1416 = vmatmul.mubr.bf16.gmra.mrb[0].mxu0 %v873
        %v1417 = vpop.f32.mrb[0].mxu0
        %v1418 = vadd.f32 0.0, %v1417
        %v1419 = vpop.f32.mrb[0].mxu0
        %v1420 = vpop.f32.mrb[0].mxu0
        %v1421 = vadd.f32 0.0, %v1420
        %v1422 = vpop.f32.mrb[0].mxu0
        %1423 = vmatprep.mubr.bf16.mxu0 0
        %1424 = vmatmul.mubr.bf16.gmra.mrb[0].mxu0 %v876
        %v1425 = vpop.f32.mrb[0].mxu0
        %v1426 = vadd.f32 0.0, %v1425
        %v1427 = vpop.f32.mrb[0].mxu0
        %v1428 = vpop.f32.mrb[0].mxu0
        %v1429 = vadd.f32 0.0, %v1428
        %v1430 = vpop.f32.mrb[0].mxu0
        %1431 = vmatprep.mubr.bf16.mxu0 0
        %1432 = vmatmul.mubr.bf16.gmra.mrb[0].mxu0 %v879
        %v1433 = vpop.f32.mrb[0].mxu0
        %v1434 = vadd.f32 0.0, %v1433
        %v1435 = vpop.f32.mrb[0].mxu0
        %v1436 = vpop.f32.mrb[0].mxu0
        %v1437 = vadd.f32 0.0, %v1436
        %v1438 = vpop.f32.mrb[0].mxu0
        %1439 = vmatprep.mubr.bf16.mxu0 0
        %1440 = vmatmul.mubr.bf16.gmra.mrb[0].mxu0 %v882
        %v1441 = vpop.f32.mrb[0].mxu0
        %v1442 = vadd.f32 0.0, %v1441
        %v1443 = vpop.f32.mrb[0].mxu0
        %v1444 = vpop.f32.mrb[0].mxu0
        %v1445 = vadd.f32 0.0, %v1444
        %v1446 = vpop.f32.mrb[0].mxu0
        %1447 = vmatprep.mubr.bf16.mxu0 0
        %1448 = vmatmul.mubr.bf16.gmra.mrb[0].mxu0 %v885
        %v1449 = vpop.f32.mrb[0].mxu0
        %v1450 = vadd.f32 0.0, %v1449
        %v1451 = vpop.f32.mrb[0].mxu0
        %v1452 = vpop.f32.mrb[0].mxu0
        %v1453 = vadd.f32 0.0, %v1452
        %v1454 = vpop.f32.mrb[0].mxu0
        %1455 = vmatprep.mubr.bf16.mxu0 0
        %1456 = vmatmul.mubr.bf16.gmra.mrb[0].mxu0 %v888
        %v1457 = vpop.f32.mrb[0].mxu0
        %v1458 = vadd.f32 0.0, %v1457
        %v1459 = vpop.f32.mrb[0].mxu0
        %v1460 = vpop.f32.mrb[0].mxu0
        %v1461 = vadd.f32 0.0, %v1460
        %v1462 = vpop.f32.mrb[0].mxu0
        %1463 = vmatprep.mubr.bf16.mxu0 0
        %1464 = vmatmul.mubr.bf16.gmra.mrb[0].mxu0 %v891
        %v1465 = vpop.f32.mrb[0].mxu0
        %v1466 = vadd.f32 0.0, %v1465
        %v1467 = vpop.f32.mrb[0].mxu0
        %v1468 = vpop.f32.mrb[0].mxu0
        %v1469 = vadd.f32 0.0, %v1468
        %v1470 = vpop.f32.mrb[0].mxu0
        %1471 = vmatprep.mubr.bf16.mxu0 0
        %1472 = vmatmul.mubr.bf16.gmra.mrb[0].mxu0 %v894
        %v1473 = vpop.f32.mrb[0].mxu0
        %v1474 = vadd.f32 0.0, %v1473
        %v1475 = vpop.f32.mrb[0].mxu0
        %v1476 = vpop.f32.mrb[0].mxu0
        %v1477 = vadd.f32 0.0, %v1476
        %v1478 = vpop.f32.mrb[0].mxu0
        %1479 = vdwg.mxu0
        %vm1480 = vcmask 261120
        %1481 = vst.msk [vmem:[#allocation2] sm:$0xff] %vm1480, %v938
        %1482 = vst.msk [vmem:[#allocation2 + $0x8] sm:$0xff] %vm1480, %v941
        %1483 = vst.msk [vmem:[#allocation2 + $0x10] sm:$0xff] %vm1480, %v946
        %1484 = vst.msk [vmem:[#allocation2 + $0x18] sm:$0xff] %vm1480, %v949
        %1485 = vst.msk [vmem:[#allocation2 + $0x20] sm:$0xff] %vm1480, %v954
        %1486 = vst.msk [vmem:[#allocation2 + $0x28] sm:$0xff] %vm1480, %v957
        %1487 = vst.msk [vmem:[#allocation2 + $0x30] sm:$0xff] %vm1480, %v962
        %1488 = vst.msk [vmem:[#allocation2 + $0x38] sm:$0xff] %vm1480, %v965
        %1489 = vst.msk [vmem:[#allocation2 + $0x40] sm:$0xff] %vm1480, %v970
        %1490 = vst.msk [vmem:[#allocation2 + $0x48] sm:$0xff] %vm1480, %v973
        %1491 = vst.msk [vmem:[#allocation2 + $0x50] sm:$0xff] %vm1480, %v978
        %1492 = vst.msk [vmem:[#allocation2 + $0x58] sm:$0xff] %vm1480, %v981
        %1493 = vst.msk [vmem:[#allocation2 + $0x60] sm:$0xff] %vm1480, %v986
        %1494 = vst.msk [vmem:[#allocation2 + $0x68] sm:$0xff] %vm1480, %v989
        %1495 = vst.msk [vmem:[#allocation2 + $0x70] sm:$0xff] %vm1480, %v994
        %1496 = vst.msk [vmem:[#allocation2 + $0x78] sm:$0xff] %vm1480, %v997
        %1497 = vst.msk [vmem:[#allocation2 + $0x80] sm:$0xff] %vm1480, %v1002
        %1498 = vst.msk [vmem:[#allocation2 + $0x88] sm:$0xff] %vm1480, %v1005
        %1499 = vst.msk [vmem:[#allocation2 + $0x90] sm:$0xff] %vm1480, %v1010
        %1500 = vst.msk [vmem:[#allocation2 + $0x98] sm:$0xff] %vm1480, %v1013
        %1501 = vst.msk [vmem:[#allocation2 + $0xa0] sm:$0xff] %vm1480, %v1018
        %1502 = vst.msk [vmem:[#allocation2 + $0xa8] sm:$0xff] %vm1480, %v1021
        %1503 = vst.msk [vmem:[#allocation2 + $0xb0] sm:$0xff] %vm1480, %v1026
        %1504 = vst.msk [vmem:[#allocation2 + $0xb8] sm:$0xff] %vm1480, %v1029
        %1505 = vst.msk [vmem:[#allocation2 + $0xc0] sm:$0xff] %vm1480, %v1034
        %1506 = vst.msk [vmem:[#allocation2 + $0xc8] sm:$0xff] %vm1480, %v1037
        %1507 = vst.msk [vmem:[#allocation2 + $0xd0] sm:$0xff] %vm1480, %v1042
        %1508 = vst.msk [vmem:[#allocation2 + $0xd8] sm:$0xff] %vm1480, %v1045
        %1509 = vst.msk [vmem:[#allocation2 + $0xe0] sm:$0xff] %vm1480, %v1050
        %1510 = vst.msk [vmem:[#allocation2 + $0xe8] sm:$0xff] %vm1480, %v1053
        %1511 = vst.msk [vmem:[#allocation2 + $0xf0] sm:$0xff] %vm1480, %v1058
        %1512 = vst.msk [vmem:[#allocation2 + $0xf8] sm:$0xff] %vm1480, %v1061
        %1513 = vst.msk [vmem:[#allocation2 + $0x100] sm:$0xff] %vm1480, %v1066
        %1514 = vst.msk [vmem:[#allocation2 + $0x108] sm:$0xff] %vm1480, %v1069
        %1515 = vst.msk [vmem:[#allocation2 + $0x110] sm:$0xff] %vm1480, %v1074
        %1516 = vst.msk [vmem:[#allocation2 + $0x118] sm:$0xff] %vm1480, %v1077
        %1517 = vst.msk [vmem:[#allocation2 + $0x120] sm:$0xff] %vm1480, %v1082
        %1518 = vst.msk [vmem:[#allocation2 + $0x128] sm:$0xff] %vm1480, %v1085
        %1519 = vst.msk [vmem:[#allocation2 + $0x130] sm:$0xff] %vm1480, %v1090
        %1520 = vst.msk [vmem:[#allocation2 + $0x138] sm:$0xff] %vm1480, %v1093
        %1521 = vst.msk [vmem:[#allocation2 + $0x140] sm:$0xff] %vm1480, %v1098
        %1522 = vst.msk [vmem:[#allocation2 + $0x148] sm:$0xff] %vm1480, %v1101
        %1523 = vst.msk [vmem:[#allocation2 + $0x150] sm:$0xff] %vm1480, %v1106
        %1524 = vst.msk [vmem:[#allocation2 + $0x158] sm:$0xff] %vm1480, %v1109
        %1525 = vst.msk [vmem:[#allocation2 + $0x160] sm:$0xff] %vm1480, %v1114
        %1526 = vst.msk [vmem:[#allocation2 + $0x168] sm:$0xff] %vm1480, %v1117
        %1527 = vst.msk [vmem:[#allocation2 + $0x170] sm:$0xff] %vm1480, %v1122
        %1528 = vst.msk [vmem:[#allocation2 + $0x178] sm:$0xff] %vm1480, %v1125
        %1529 = vst.msk [vmem:[#allocation2 + $0x180] sm:$0xff] %vm1480, %v1130
        %1530 = vst.msk [vmem:[#allocation2 + $0x188] sm:$0xff] %vm1480, %v1133
        %1531 = vst.msk [vmem:[#allocation2 + $0x190] sm:$0xff] %vm1480, %v1138
        %1532 = vst.msk [vmem:[#allocation2 + $0x198] sm:$0xff] %vm1480, %v1141
        %1533 = vst.msk [vmem:[#allocation2 + $0x1a0] sm:$0xff] %vm1480, %v1146
        %1534 = vst.msk [vmem:[#allocation2 + $0x1a8] sm:$0xff] %vm1480, %v1149
        %1535 = vst.msk [vmem:[#allocation2 + $0x1b0] sm:$0xff] %vm1480, %v1154
        %1536 = vst.msk [vmem:[#allocation2 + $0x1b8] sm:$0xff] %vm1480, %v1157
        %1537 = vst.msk [vmem:[#allocation2 + $0x1c0] sm:$0xff] %vm1480, %v1162
        %1538 = vst.msk [vmem:[#allocation2 + $0x1c8] sm:$0xff] %vm1480, %v1165
        %1539 = vst.msk [vmem:[#allocation2 + $0x1d0] sm:$0xff] %vm1480, %v1170
        %1540 = vst.msk [vmem:[#allocation2 + $0x1d8] sm:$0xff] %vm1480, %v1173
        %1541 = vst.msk [vmem:[#allocation2 + $0x1e0] sm:$0xff] %vm1480, %v1178
        %1542 = vst.msk [vmem:[#allocation2 + $0x1e8] sm:$0xff] %vm1480, %v1181
        %1543 = vst.msk [vmem:[#allocation2 + $0x1f0] sm:$0xff] %vm1480, %v1186
        %1544 = vst.msk [vmem:[#allocation2 + $0x1f8] sm:$0xff] %vm1480, %v1189
        %1545 = vst.msk [vmem:[#allocation2 + $0x200] sm:$0xff] %vm1480, %v1194
        %1546 = vst.msk [vmem:[#allocation2 + $0x208] sm:$0xff] %vm1480, %v1197
        %1547 = vst.msk [vmem:[#allocation2 + $0x210] sm:$0xff] %vm1480, %v1202
        %1548 = vst.msk [vmem:[#allocation2 + $0x218] sm:$0xff] %vm1480, %v1205
        %1549 = vst.msk [vmem:[#allocation2 + $0x220] sm:$0xff] %vm1480, %v1210
        %1550 = vst.msk [vmem:[#allocation2 + $0x228] sm:$0xff] %vm1480, %v1213
        %1551 = vst.msk [vmem:[#allocation2 + $0x230] sm:$0xff] %vm1480, %v1218
        %1552 = vst.msk [vmem:[#allocation2 + $0x238] sm:$0xff] %vm1480, %v1221
        %1553 = vst.msk [vmem:[#allocation2 + $0x240] sm:$0xff] %vm1480, %v1226
        %1554 = vst.msk [vmem:[#allocation2 + $0x248] sm:$0xff] %vm1480, %v1229
        %1555 = vst.msk [vmem:[#allocation2 + $0x250] sm:$0xff] %vm1480, %v1234
        %1556 = vst.msk [vmem:[#allocation2 + $0x258] sm:$0xff] %vm1480, %v1237
        %1557 = vst.msk [vmem:[#allocation2 + $0x260] sm:$0xff] %vm1480, %v1242
        %1558 = vst.msk [vmem:[#allocation2 + $0x268] sm:$0xff] %vm1480, %v1245
        %1559 = vst.msk [vmem:[#allocation2 + $0x270] sm:$0xff] %vm1480, %v1250
        %1560 = vst.msk [vmem:[#allocation2 + $0x278] sm:$0xff] %vm1480, %v1253
        %1561 = vst.msk [vmem:[#allocation2 + $0x280] sm:$0xff] %vm1480, %v1258
        %1562 = vst.msk [vmem:[#allocation2 + $0x288] sm:$0xff] %vm1480, %v1261
        %1563 = vst.msk [vmem:[#allocation2 + $0x290] sm:$0xff] %vm1480, %v1266
        %1564 = vst.msk [vmem:[#allocation2 + $0x298] sm:$0xff] %vm1480, %v1269
        %1565 = vst.msk [vmem:[#allocation2 + $0x2a0] sm:$0xff] %vm1480, %v1274
        %1566 = vst.msk [vmem:[#allocation2 + $0x2a8] sm:$0xff] %vm1480, %v1277
        %1567 = vst.msk [vmem:[#allocation2 + $0x2b0] sm:$0xff] %vm1480, %v1282
        %1568 = vst.msk [vmem:[#allocation2 + $0x2b8] sm:$0xff] %vm1480, %v1285
        %1569 = vst.msk [vmem:[#allocation2 + $0x2c0] sm:$0xff] %vm1480, %v1290
        %1570 = vst.msk [vmem:[#allocation2 + $0x2c8] sm:$0xff] %vm1480, %v1293
        %1571 = vst.msk [vmem:[#allocation2 + $0x2d0] sm:$0xff] %vm1480, %v1298
        %1572 = vst.msk [vmem:[#allocation2 + $0x2d8] sm:$0xff] %vm1480, %v1301
        %1573 = vst.msk [vmem:[#allocation2 + $0x2e0] sm:$0xff] %vm1480, %v1306
        %1574 = vst.msk [vmem:[#allocation2 + $0x2e8] sm:$0xff] %vm1480, %v1309
        %1575 = vst.msk [vmem:[#allocation2 + $0x2f0] sm:$0xff] %vm1480, %v1314
        %1576 = vst.msk [vmem:[#allocation2 + $0x2f8] sm:$0xff] %vm1480, %v1317
        %1577 = vst.msk [vmem:[#allocation2 + $0x300] sm:$0xff] %vm1480, %v1322
        %1578 = vst.msk [vmem:[#allocation2 + $0x308] sm:$0xff] %vm1480, %v1325
        %1579 = vst.msk [vmem:[#allocation2 + $0x310] sm:$0xff] %vm1480, %v1330
        %1580 = vst.msk [vmem:[#allocation2 + $0x318] sm:$0xff] %vm1480, %v1333
        %1581 = vst.msk [vmem:[#allocation2 + $0x320] sm:$0xff] %vm1480, %v1338
        %1582 = vst.msk [vmem:[#allocation2 + $0x328] sm:$0xff] %vm1480, %v1341
        %1583 = vst.msk [vmem:[#allocation2 + $0x330] sm:$0xff] %vm1480, %v1346
        %1584 = vst.msk [vmem:[#allocation2 + $0x338] sm:$0xff] %vm1480, %v1349
        %1585 = vst.msk [vmem:[#allocation2 + $0x340] sm:$0xff] %vm1480, %v1354
        %1586 = vst.msk [vmem:[#allocation2 + $0x348] sm:$0xff] %vm1480, %v1357
        %1587 = vst.msk [vmem:[#allocation2 + $0x350] sm:$0xff] %vm1480, %v1362
        %1588 = vst.msk [vmem:[#allocation2 + $0x358] sm:$0xff] %vm1480, %v1365
        %1589 = vst.msk [vmem:[#allocation2 + $0x360] sm:$0xff] %vm1480, %v1370
        %1590 = vst.msk [vmem:[#allocation2 + $0x368] sm:$0xff] %vm1480, %v1373
        %1591 = vst.msk [vmem:[#allocation2 + $0x370] sm:$0xff] %vm1480, %v1378
        %1592 = vst.msk [vmem:[#allocation2 + $0x378] sm:$0xff] %vm1480, %v1381
        %1593 = vst.msk [vmem:[#allocation2 + $0x380] sm:$0xff] %vm1480, %v1386
        %1594 = vst.msk [vmem:[#allocation2 + $0x388] sm:$0xff] %vm1480, %v1389
        %1595 = vst.msk [vmem:[#allocation2 + $0x390] sm:$0xff] %vm1480, %v1394
        %1596 = vst.msk [vmem:[#allocation2 + $0x398] sm:$0xff] %vm1480, %v1397
        %1597 = vst.msk [vmem:[#allocation2 + $0x3a0] sm:$0xff] %vm1480, %v1402
        %1598 = vst.msk [vmem:[#allocation2 + $0x3a8] sm:$0xff] %vm1480, %v1405
        %1599 = vst.msk [vmem:[#allocation2 + $0x3b0] sm:$0xff] %vm1480, %v1410
        %1600 = vst.msk [vmem:[#allocation2 + $0x3b8] sm:$0xff] %vm1480, %v1413
        %1601 = vst.msk [vmem:[#allocation2 + $0x3c0] sm:$0xff] %vm1480, %v1418
        %1602 = vst.msk [vmem:[#allocation2 + $0x3c8] sm:$0xff] %vm1480, %v1421
        %1603 = vst.msk [vmem:[#allocation2 + $0x3d0] sm:$0xff] %vm1480, %v1426
        %1604 = vst.msk [vmem:[#allocation2 + $0x3d8] sm:$0xff] %vm1480, %v1429
        %1605 = vst.msk [vmem:[#allocation2 + $0x3e0] sm:$0xff] %vm1480, %v1434
        %1606 = vst.msk [vmem:[#allocation2 + $0x3e8] sm:$0xff] %vm1480, %v1437
        %1607 = vst.msk [vmem:[#allocation2 + $0x3f0] sm:$0xff] %vm1480, %v1442
        %1608 = vst.msk [vmem:[#allocation2 + $0x3f8] sm:$0xff] %vm1480, %v1445
        %1609 = vst.msk [vmem:[#allocation2 + $0x400] sm:$0xff] %vm1480, %v1450
        %1610 = vst.msk [vmem:[#allocation2 + $0x408] sm:$0xff] %vm1480, %v1453
        %1611 = vst.msk [vmem:[#allocation2 + $0x410] sm:$0xff] %vm1480, %v1458
        %1612 = vst.msk [vmem:[#allocation2 + $0x418] sm:$0xff] %vm1480, %v1461
        %1613 = vst.msk [vmem:[#allocation2 + $0x420] sm:$0xff] %vm1480, %v1466
        %1614 = vst.msk [vmem:[#allocation2 + $0x428] sm:$0xff] %vm1480, %v1469
        %1615 = vst.msk [vmem:[#allocation2 + $0x430] sm:$0xff] %vm1480, %v1474
        %1616 = vst.msk [vmem:[#allocation2 + $0x438] sm:$0xff] %vm1480, %v1477
        %v1617 = vld [vmem:[#allocation6] sm:$0x1]
        loop: start=0, step=1, limit=16
        $region41: #{custom_cnn_forward.5} parent=31 // loop_pre_header
          _
        $region42: #{custom_cnn_forward.5} parent=31 // loop_header
          %s1619 = sphi 0, %s1623
          %p1620 = scmp.ge.s32.totalorder %s1619, 16
        $region43: #{custom_cnn_forward.5} parent=31 // loop_header_branch
          %1622 = sbr.rel (%p1620) target = $region47
        $region44: #{custom_cnn_forward.5} parent=31 // loop_body
          %s1624 = smul.u32 %s1619, 68
          %s1625 = scalar_lea.vmem [#allocation2], %s1624
          %v1626 = vld [vmem:[%s1625] sm:$0xff]
          %v1627 = vld [vmem:[%s1625 + $0x8] sm:$0xff]
          %v1628 = vld [vmem:[%s1625 + $0x10] sm:$0xff]
          %v1629 = vld [vmem:[%s1625 + $0x18] sm:$0xff]
          %s1630 = sadd.s32 %s1624, 34
          %s1631 = scalar_lea.vmem [#allocation2], %s1630
          %v1632 = vld [vmem:[%s1631] sm:$0xff]
          %v1633 = vld [vmem:[%s1631 + $0x8] sm:$0xff]
          %v1634 = vld [vmem:[%s1631 + $0x10] sm:$0xff]
          %v1635 = vld [vmem:[%s1631 + $0x18] sm:$0xff]
          %v1636 = vmax.f32 %v1626, %v1632
          %v1637 = vmax.f32 %v1627, %v1633
          %v1638 = vmax.f32 %v1628, %v1634
          %v1639 = vmax.f32 %v1629, %v1635
          %1640 = vst.msk [vmem:[#allocation3] sm:$0xff] %vm1480, %v1636
          %1641 = vst.msk [vmem:[#allocation3 + $0x8] sm:$0xff] %vm1480, %v1637
          %1642 = vst.msk [vmem:[#allocation3 + $0x10] sm:$0xff] %vm1480, %v1638
          %1643 = vst.msk [vmem:[#allocation3 + $0x18] sm:$0xff] %vm1480, %v1639
          %v1644 = vld [vmem:[#allocation3] ss:$2 sm:$0xff]
          %s1645 = scalar_lea.vmem [#allocation3], 16
          %v1646 = vld [vmem:[%s1645] ss:$2 sm:$0xff]
          %s1647 = scalar_lea.vmem [#allocation3], 1
          %v1648 = vld [vmem:[%s1647] ss:$2 sm:$0xff]
          %s1649 = scalar_lea.vmem [#allocation3], 17
          %v1650 = vld [vmem:[%s1649] ss:$2 sm:$0xff]
          %v1651 = vmax.f32 %v1644, %v1648
          %v1652 = vmax.f32 %v1646, %v1650
          %v1654 = vlaneseq
          %v1655 = vshrl.u32 %v1654, 7
          %v1656 = vsub.s32 0, %v1655
          %v1657 = vrot.slane %v1617, %v1656
          %v1659 = vadd.f32 %v1651, %v1657
          %v1660 = vadd.f32 %v1652, %v1657
          %v1661 = vmax.f32 %v1659, 0.0
          %v1662 = vmax.f32 %v1660, 0.0
          %v1663 = vpack.c.bf16 %v1662, %v1661
          %v1665 = vunpack.c.l.b16 %v1663
          %v1666 = vunpack.c.h.b16 %v1663
          %v1667 = vpack.c.b16 %v1665, %v1665
          %v1668 = vpack.c.b16 %v1666, %v1666
          %s1671 = smul.u32 %s1619, 2
          %s1672 = smul.addr %s1671, 4
          %s1673 = scalar_lea.vmem %s198, %s1672
          %vm1674 = vcmask 257024
          %1675 = vst.msk [vmem:[%s1673] sm:$0xf] %vm1674, %v1667
          %1676 = vst.msk [vmem:[%s1673 + $0x4] sm:$0xf] %vm1674, %v1668
        $region45: #{custom_cnn_forward.5} parent=31 // loop_footer
          %s1623 = sadd.s32 1, %s1619
        $region46: #{custom_cnn_forward.5} parent=31 // loop_footer_branch
          %1618 = sbr.rel target = $region42
        $region47: #{custom_cnn_forward.5} parent=31 // loop_exit
          _
        %p1677 = scmp.lt.s32.totalorder %s16, 1
        %s1678 = scalar_select %p1677, %s16, 1
        %s1679 = smul.addr %s1678, 32
        %s1680 = smul.addr %s1679, 4
        %s1681 = scalar_lea.vmem %s3, %s1680
        // Predicated region
        $region48: #{custom_cnn_forward.5} parent=31 // pred_check
          %p1682 = pneg %p102
        $region49: #{custom_cnn_forward.5} parent=31 // pred_check_branch
          %1684 = sbr.rel (%p1682) target = $region51
        $region50: #{custom_cnn_forward.5} parent=31 // pred_region
          _
        $region51: #{custom_cnn_forward.5} parent=31 // pred_fallthru
          _
      $region32: #{custom_cnn_forward.5} parent=5 // pred_fallthru
        _
      %p1685 = scmp.le.s32.totalorder 2, %s11
      // Predicated region
      $region52: #{custom_cnn_forward.5} parent=5 // pred_check
        %p1686 = pneg %p1685
      $region53: #{custom_cnn_forward.5} parent=5 // pred_check_branch
        %1688 = sbr.rel (%p1686) target = $region55
      $region54: #{custom_cnn_forward.5} parent=5 // pred_region
        %s1689 = ssub.s32 %s11, 2
        // Predicated region
        $region56: #{custom_cnn_forward.5} parent=54 // pred_check
          %p1690 = pneg %p108
        $region57: #{custom_cnn_forward.5} parent=54 // pred_check_branch
          %1692 = sbr.rel (%p1690) target = $region59
        $region58: #{custom_cnn_forward.5} parent=54 // pred_region
          %p1693 = scmp.lt.s32.totalorder %s17, 1
          %s1694 = scalar_select %p1693, %s17, 1
          %s1695 = smul.addr %s1694, 32
          %s1696 = smul.addr %s1695, 4
          %s1697 = scalar_lea.vmem %s3, %s1696
        $region59: #{custom_cnn_forward.5} parent=54 // pred_fallthru
          _
      $region55: #{custom_cnn_forward.5} parent=5 // pred_fallthru
        _
    $region6: #{custom_cnn_forward.5} parent=1 // loop_footer
      %s15 = sadd.s32 1, %s11
    $region7: #{custom_cnn_forward.5} parent=1 // loop_footer_branch
      %10 = sbr.rel target = $region3
    $region8: #{custom_cnn_forward.5} parent=1 // loop_exit
      _
    %1698 = vsyncpa [#allocation5], 1
    %s1699 = scalar_lea.sflag [#allocation5], 1
    %1700 = vsyncpa %s1699, 1
    %1701 = vsyncpa [#allocation7], 1

// kernel: custom_cnn_forward.9
$region0: #{custom_cnn_forward.9}
  #allocation0 [shape = 'u32[]', space=smem, size = 0x4, offset = 0x4, fixed_abs, tag = 'smem constant byte address 0x4 - core index']
  #allocation1 [shape = 'u32[144,128]{1,0:T(1,128)}', space=vmem, size = 0x12000, scoped, tag = 'internal scratch']
  #allocation2 [shape = 'f32[2,2]{1,0:T(2,128)}', space=vmem, size = 0x400, scoped, tag = 'scratch operand']
  %s0 = inlined_call_operand.vmem [shape: f32[2,512], index: 0, kind: input, shape index: {}]
  %s1 = inlined_call_operand.vmem [shape: f32[512,2], index: 1, kind: input, shape index: {}]
  %s2 = inlined_call_operand.vmem [shape: f32[1,2], index: 2, kind: input, shape index: {}]
  %s3 = inlined_call_operand.hbm [shape: f32[2,2], index: 3, kind: output, shape index: {}]
  %s4 = sld [smem:[#allocation0]]
  $region30: #{custom_cnn_forward.9} parent=0
    _
  %s6 = ssub.s32 1, %s4
  %s7 = scalar_select 0, %s6, %s4
  $region1: #{custom_cnn_forward.9} parent=0
    #allocation3 [shape = 'u8[1024]{0}', space=vmem, size = 0x400, scoped, tag = 'output window, operand 0, single buffered']
    #allocation4 [shape = 's32[1]{0}', space=sflag, size = 0x4, scoped, tag = 'scoped memory for custom_cnn_forward.9']
    %8 = vsyncpa [#allocation4], 0
    // Predicated region
    $region2: #{custom_cnn_forward.9} parent=1 // pred_check
      _
    $region3: #{custom_cnn_forward.9} parent=1 // pred_check_branch
      %10 = sbr.rel (0) target = $region5
    $region4: #{custom_cnn_forward.9} parent=1 // pred_region
      _
    $region5: #{custom_cnn_forward.9} parent=1 // pred_fallthru
      _
    // Predicated region
    $region6: #{custom_cnn_forward.9} parent=1 // pred_check
      _
    $region7: #{custom_cnn_forward.9} parent=1 // pred_check_branch
      %12 = sbr.rel (0) target = $region9
    $region8: #{custom_cnn_forward.9} parent=1 // pred_region
      _
    $region9: #{custom_cnn_forward.9} parent=1 // pred_fallthru
      _
    // Predicated region
    $region10: #{custom_cnn_forward.9} parent=1 // pred_check
      _
    $region11: #{custom_cnn_forward.9} parent=1 // pred_check_branch
      %14 = sbr.rel (0) target = $region13
    $region12: #{custom_cnn_forward.9} parent=1 // pred_region
      _
    $region13: #{custom_cnn_forward.9} parent=1 // pred_fallthru
      _
    %p15 = scmp.eq.s32.totalorder 0, 0
    // Predicated region
    $region14: #{custom_cnn_forward.9} parent=1 // pred_check
      %p16 = pneg %p15
    $region15: #{custom_cnn_forward.9} parent=1 // pred_check_branch
      %18 = sbr.rel (%p16) target = $region17
    $region16: #{custom_cnn_forward.9} parent=1 // pred_region
      %vm19 = vcmask 9216
      %20 = vst.msk [vmem:[#allocation2] sm:$0x3] %vm19, 0.0
    $region17: #{custom_cnn_forward.9} parent=1 // pred_fallthru
      _
    %v21 = vld [vmem:[#allocation2] sm:$0x3]
    %v22 = vld [vmem:[%s0] sm:$0xff]
    %v23 = vld [vmem:[%s1] sm:$0xff]
    %v24 = vld [vmem:[%s1 + $0x8] sm:$0xff]
    %v25 = vld [vmem:[%s1 + $0x10] sm:$0xff]
    %v26 = vld [vmem:[%s1 + $0x18] sm:$0xff]
    %v27 = vld [vmem:[%s1 + $0x20] sm:$0xff]
    %v28 = vld [vmem:[%s1 + $0x28] sm:$0xff]
    %v29 = vld [vmem:[%s1 + $0x30] sm:$0xff]
    %v30 = vld [vmem:[%s1 + $0x38] sm:$0xff]
    %v31 = vld [vmem:[%s1 + $0x40] sm:$0xff]
    %v32 = vld [vmem:[%s1 + $0x48] sm:$0xff]
    %v33 = vld [vmem:[%s1 + $0x50] sm:$0xff]
    %v34 = vld [vmem:[%s1 + $0x58] sm:$0xff]
    %v35 = vld [vmem:[%s1 + $0x60] sm:$0xff]
    %v36 = vld [vmem:[%s1 + $0x68] sm:$0xff]
    %v37 = vld [vmem:[%s1 + $0x70] sm:$0xff]
    %v38 = vld [vmem:[%s1 + $0x78] sm:$0xff]
    %v39 = vld [vmem:[%s1 + $0x80] sm:$0xff]
    %v40 = vld [vmem:[%s1 + $0x88] sm:$0xff]
    %v41 = vld [vmem:[%s1 + $0x90] sm:$0xff]
    %v42 = vld [vmem:[%s1 + $0x98] sm:$0xff]
    %v43 = vld [vmem:[%s1 + $0xa0] sm:$0xff]
    %v44 = vld [vmem:[%s1 + $0xa8] sm:$0xff]
    %v45 = vld [vmem:[%s1 + $0xb0] sm:$0xff]
    %v46 = vld [vmem:[%s1 + $0xb8] sm:$0xff]
    %v47 = vld [vmem:[%s1 + $0xc0] sm:$0xff]
    %v48 = vld [vmem:[%s1 + $0xc8] sm:$0xff]
    %v49 = vld [vmem:[%s1 + $0xd0] sm:$0xff]
    %v50 = vld [vmem:[%s1 + $0xd8] sm:$0xff]
    %v51 = vld [vmem:[%s1 + $0xe0] sm:$0xff]
    %v52 = vld [vmem:[%s1 + $0xe8] sm:$0xff]
    %v53 = vld [vmem:[%s1 + $0xf0] sm:$0xff]
    %v54 = vld [vmem:[%s1 + $0xf8] sm:$0xff]
    %v55 = vld [vmem:[%s1 + $0x100] sm:$0xff]
    %v56 = vld [vmem:[%s1 + $0x108] sm:$0xff]
    %v57 = vld [vmem:[%s1 + $0x110] sm:$0xff]
    %v58 = vld [vmem:[%s1 + $0x118] sm:$0xff]
    %v59 = vld [vmem:[%s1 + $0x120] sm:$0xff]
    %v60 = vld [vmem:[%s1 + $0x128] sm:$0xff]
    %v61 = vld [vmem:[%s1 + $0x130] sm:$0xff]
    %v62 = vld [vmem:[%s1 + $0x138] sm:$0xff]
    %v63 = vld [vmem:[%s1 + $0x140] sm:$0xff]
    %v64 = vld [vmem:[%s1 + $0x148] sm:$0xff]
    %v65 = vld [vmem:[%s1 + $0x150] sm:$0xff]
    %v66 = vld [vmem:[%s1 + $0x158] sm:$0xff]
    %v67 = vld [vmem:[%s1 + $0x160] sm:$0xff]
    %v68 = vld [vmem:[%s1 + $0x168] sm:$0xff]
    %v69 = vld [vmem:[%s1 + $0x170] sm:$0xff]
    %v70 = vld [vmem:[%s1 + $0x178] sm:$0xff]
    %v71 = vld [vmem:[%s1 + $0x180] sm:$0xff]
    %v72 = vld [vmem:[%s1 + $0x188] sm:$0xff]
    %v73 = vld [vmem:[%s1 + $0x190] sm:$0xff]
    %v74 = vld [vmem:[%s1 + $0x198] sm:$0xff]
    %v75 = vld [vmem:[%s1 + $0x1a0] sm:$0xff]
    %v76 = vld [vmem:[%s1 + $0x1a8] sm:$0xff]
    %v77 = vld [vmem:[%s1 + $0x1b0] sm:$0xff]
    %v78 = vld [vmem:[%s1 + $0x1b8] sm:$0xff]
    %v79 = vld [vmem:[%s1 + $0x1c0] sm:$0xff]
    %v80 = vld [vmem:[%s1 + $0x1c8] sm:$0xff]
    %v81 = vld [vmem:[%s1 + $0x1d0] sm:$0xff]
    %v82 = vld [vmem:[%s1 + $0x1d8] sm:$0xff]
    %v83 = vld [vmem:[%s1 + $0x1e0] sm:$0xff]
    %v84 = vld [vmem:[%s1 + $0x1e8] sm:$0xff]
    %v85 = vld [vmem:[%s1 + $0x1f0] sm:$0xff]
    %v86 = vld [vmem:[%s1 + $0x1f8] sm:$0xff]
    %v88 = vcombine.high %v22, %v22
    %v90 = vunpack.c.l.s4 1983009808
    %v91 = vunpack.c.0.s8 %v90
    %v92 = vlaneseq
    %v93 = vshrl.u32 %v92, 7
    %v94 = vsub.s32 %v91, %v93
    %v95 = vrot.slane %v22, %v94
    %v97 = vunpack.c.l.s4 1983009808
    %v98 = vunpack.c.0.s8 %v97
    %v99 = vlaneseq
    %v100 = vshrl.u32 %v99, 7
    %v101 = vsub.s32 %v98, %v100
    %v102 = vrot.slane %v88, %v101
    %v103 = vcombine.high %v95, %v95
    %v104 = vcombine.high %v102, %v102
    %109 = vmatprep.subr.mxu0 0.0
    %110 = vmatpush1.msra.mxu0 %v23
    %111 = vmatprep.subr.mxu0 0.0
    %112 = vmatpush1.msra.mxu0 %v24
    %113 = vmatprep.subr.mxu0 0.0
    %114 = vmatpush1.msra.mxu0 %v25
    %115 = vmatprep.subr.mxu0 0.0
    %116 = vmatpush1.msra.mxu0 %v26
    %117 = vmatprep.subr.mxu0 0.0
    %118 = vmatpush1.msra.mxu0 %v27
    %119 = vmatprep.subr.mxu0 0.0
    %120 = vmatpush1.msra.mxu0 %v28
    %121 = vmatprep.subr.mxu0 0.0
    %122 = vmatpush1.msra.mxu0 %v29
    %123 = vmatprep.subr.mxu0 0.0
    %124 = vmatpush1.msra.mxu0 %v30
    %125 = vmatprep.subr.mxu0 0.0
    %126 = vmatpush1.msra.mxu0 %v31
    %127 = vmatprep.subr.mxu0 0.0
    %128 = vmatpush1.msra.mxu0 %v32
    %129 = vmatprep.subr.mxu0 0.0
    %130 = vmatpush1.msra.mxu0 %v33
    %131 = vmatprep.subr.mxu0 0.0
    %132 = vmatpush1.msra.mxu0 %v34
    %133 = vmatprep.subr.mxu0 0.0
    %134 = vmatpush1.msra.mxu0 %v35
    %135 = vmatprep.subr.mxu0 0.0
    %136 = vmatpush1.msra.mxu0 %v36
    %137 = vmatprep.subr.mxu0 0.0
    %138 = vmatpush1.msra.mxu0 %v37
    %139 = vmatprep.subr.mxu0 0.0
    %140 = vmatpush1.msra.mxu0 %v38
    %141 = vmatprep.subr.mxu0 0.0
    %142 = vmatpush1.msra.mxu0 %v39
    %143 = vmatprep.subr.mxu0 0.0
    %144 = vmatpush1.msra.mxu0 %v40
    %145 = vmatprep.subr.mxu0 0.0
    %146 = vmatpush1.msra.mxu0 %v41
    %147 = vmatprep.subr.mxu0 0.0
    %148 = vmatpush1.msra.mxu0 %v42
    %149 = vmatprep.subr.mxu0 0.0
    %150 = vmatpush1.msra.mxu0 %v43
    %151 = vmatprep.subr.mxu0 0.0
    %152 = vmatpush1.msra.mxu0 %v44
    %153 = vmatprep.subr.mxu0 0.0
    %154 = vmatpush1.msra.mxu0 %v45
    %155 = vmatprep.subr.mxu0 0.0
    %156 = vmatpush1.msra.mxu0 %v46
    %157 = vmatprep.subr.mxu0 0.0
    %158 = vmatpush1.msra.mxu0 %v47
    %159 = vmatprep.subr.mxu0 0.0
    %160 = vmatpush1.msra.mxu0 %v48
    %161 = vmatprep.subr.mxu0 0.0
    %162 = vmatpush1.msra.mxu0 %v49
    %163 = vmatprep.subr.mxu0 0.0
    %164 = vmatpush1.msra.mxu0 %v50
    %165 = vmatprep.subr.mxu0 0.0
    %166 = vmatpush1.msra.mxu0 %v51
    %167 = vmatprep.subr.mxu0 0.0
    %168 = vmatpush1.msra.mxu0 %v52
    %169 = vmatprep.subr.mxu0 0.0
    %170 = vmatpush1.msra.mxu0 %v53
    %171 = vmatprep.subr.mxu0 0.0
    %172 = vmatpush1.msra.mxu0 %v54
    %173 = vmatprep.mubr.f32.mxu0 %v103
    %174 = vmatmul.mubr.f32.gmra.mrb[0].mxu0 %v95
    %v175 = vpop.f32.mrb[0].mxu0
    %v176 = vadd.f32 0.0, %v175
    %v177 = vpop.f32.mrb[0].mxu0
    %178 = vdwg.mxu0
    %179 = vmatprep.subr.mxu0 0.0
    %180 = vmatpush1.msra.mxu0 %v55
    %181 = vmatprep.subr.mxu0 0.0
    %182 = vmatpush1.msra.mxu0 %v56
    %183 = vmatprep.subr.mxu0 0.0
    %184 = vmatpush1.msra.mxu0 %v57
    %185 = vmatprep.subr.mxu0 0.0
    %186 = vmatpush1.msra.mxu0 %v58
    %187 = vmatprep.subr.mxu0 0.0
    %188 = vmatpush1.msra.mxu0 %v59
    %189 = vmatprep.subr.mxu0 0.0
    %190 = vmatpush1.msra.mxu0 %v60
    %191 = vmatprep.subr.mxu0 0.0
    %192 = vmatpush1.msra.mxu0 %v61
    %193 = vmatprep.subr.mxu0 0.0
    %194 = vmatpush1.msra.mxu0 %v62
    %195 = vmatprep.subr.mxu0 0.0
    %196 = vmatpush1.msra.mxu0 %v63
    %197 = vmatprep.subr.mxu0 0.0
    %198 = vmatpush1.msra.mxu0 %v64
    %199 = vmatprep.subr.mxu0 0.0
    %200 = vmatpush1.msra.mxu0 %v65
    %201 = vmatprep.subr.mxu0 0.0
    %202 = vmatpush1.msra.mxu0 %v66
    %203 = vmatprep.subr.mxu0 0.0
    %204 = vmatpush1.msra.mxu0 %v67
    %205 = vmatprep.subr.mxu0 0.0
    %206 = vmatpush1.msra.mxu0 %v68
    %207 = vmatprep.subr.mxu0 0.0
    %208 = vmatpush1.msra.mxu0 %v69
    %209 = vmatprep.subr.mxu0 0.0
    %210 = vmatpush1.msra.mxu0 %v70
    %211 = vmatprep.subr.mxu0 0.0
    %212 = vmatpush1.msra.mxu0 %v71
    %213 = vmatprep.subr.mxu0 0.0
    %214 = vmatpush1.msra.mxu0 %v72
    %215 = vmatprep.subr.mxu0 0.0
    %216 = vmatpush1.msra.mxu0 %v73
    %217 = vmatprep.subr.mxu0 0.0
    %218 = vmatpush1.msra.mxu0 %v74
    %219 = vmatprep.subr.mxu0 0.0
    %220 = vmatpush1.msra.mxu0 %v75
    %221 = vmatprep.subr.mxu0 0.0
    %222 = vmatpush1.msra.mxu0 %v76
    %223 = vmatprep.subr.mxu0 0.0
    %224 = vmatpush1.msra.mxu0 %v77
    %225 = vmatprep.subr.mxu0 0.0
    %226 = vmatpush1.msra.mxu0 %v78
    %227 = vmatprep.subr.mxu0 0.0
    %228 = vmatpush1.msra.mxu0 %v79
    %229 = vmatprep.subr.mxu0 0.0
    %230 = vmatpush1.msra.mxu0 %v80
    %231 = vmatprep.subr.mxu0 0.0
    %232 = vmatpush1.msra.mxu0 %v81
    %233 = vmatprep.subr.mxu0 0.0
    %234 = vmatpush1.msra.mxu0 %v82
    %235 = vmatprep.subr.mxu0 0.0
    %236 = vmatpush1.msra.mxu0 %v83
    %237 = vmatprep.subr.mxu0 0.0
    %238 = vmatpush1.msra.mxu0 %v84
    %239 = vmatprep.subr.mxu0 0.0
    %240 = vmatpush1.msra.mxu0 %v85
    %241 = vmatprep.subr.mxu0 0.0
    %242 = vmatpush1.msra.mxu0 %v86
    %243 = vmatprep.mubr.f32.mxu0 %v104
    %244 = vmatmul.mubr.f32.gmra.mrb[0].mxu0 %v102
    %v245 = vpop.f32.mrb[0].mxu0
    %v246 = vadd.f32 %v176, %v245
    %v247 = vpop.f32.mrb[0].mxu0
    %248 = vdwg.mxu0
    %v249 = vadd.f32 %v21, %v246
    %vm250 = vcmask 9216
    %251 = vst.msk [vmem:[#allocation2] sm:$0x3] %vm250, %v249
    // Predicated region
    $region18: #{custom_cnn_forward.9} parent=1 // pred_check
      %p252 = pneg %p15
    $region19: #{custom_cnn_forward.9} parent=1 // pred_check_branch
      %254 = sbr.rel (%p252) target = $region21
    $region20: #{custom_cnn_forward.9} parent=1 // pred_region
      %v255 = vld [vmem:[#allocation2] sm:$0x3]
      %v256 = vld [vmem:[%s2] sm:$0x1]
      %v258 = vlaneseq
      %v259 = vshrl.u32 %v258, 7
      %v260 = vsub.s32 0, %v259
      %v261 = vrot.slane %v256, %v260
      %v263 = vadd.f32 %v255, %v261
      %264 = vst.msk [vmem:[#allocation3] sm:$0x3] %vm250, %v263
    $region21: #{custom_cnn_forward.9} parent=1 // pred_fallthru
      _
    // Predicated region
    $region22: #{custom_cnn_forward.9} parent=1 // pred_check
      _
    $region23: #{custom_cnn_forward.9} parent=1 // pred_check_branch
      %266 = sbr.rel (0) target = $region25
    $region24: #{custom_cnn_forward.9} parent=1 // pred_region
      %s268 = ssub.s32 32, 32
      %269 = vsyncadd [#allocation4], %s268
      %s271 = sshll.u32 [#allocation3], 4
      %s272 = int_to_ptr.vmem [resolvable:$true] %s271
      %274 = dma.vmem_to_hbm [thread:$0]  %s272, 32, %s3, [#allocation4]
    $region25: #{custom_cnn_forward.9} parent=1 // pred_fallthru
      _
    // Predicated region
    $region26: #{custom_cnn_forward.9} parent=1 // pred_check
      _
    $region27: #{custom_cnn_forward.9} parent=1 // pred_check_branch
      %276 = sbr.rel (0) target = $region29
    $region28: #{custom_cnn_forward.9} parent=1 // pred_region
      %277 = dma.done [#allocation4], 32
    $region29: #{custom_cnn_forward.9} parent=1 // pred_fallthru
      _
    %278 = vsyncpa [#allocation4], 1

// kernel: custom_cnn_forward.8
$region0: #{custom_cnn_forward.8}
  #allocation0 [shape = 'u32[]', space=smem, size = 0x4, offset = 0x4, fixed_abs, tag = 'smem constant byte address 0x4 - core index']
  #allocation1 [shape = 'u32[144,128]{1,0:T(1,128)}', space=vmem, size = 0x12000, scoped, tag = 'internal scratch']
  #allocation2 [shape = 'f32[2,512]{1,0:T(2,128)}', space=vmem, size = 0x1000, scoped, tag = 'scratch operand']
  %s0 = inlined_call_operand.vmem [shape: bf16[2,2048], index: 0, kind: input, shape index: {}]
  %s1 = inlined_call_operand.vmem [shape: bf16[2048,512], index: 1, kind: input, shape index: {}]
  %s2 = inlined_call_operand.vmem [shape: f32[1,512], index: 2, kind: input, shape index: {}]
  %s3 = inlined_call_operand.vmem [shape: f32[2,512], index: 3, kind: output, shape index: {}]
  %s4 = sld [smem:[#allocation0]]
  $region53: #{custom_cnn_forward.8} parent=0
    _
  %s6 = ssub.s32 1, %s4
  %s7 = scalar_select 0, %s6, %s4
  loop: start=0, step=1, limit=6
  $region2: #{custom_cnn_forward.8} parent=0 // loop_pre_header
    _
  $region3: #{custom_cnn_forward.8} parent=0 // loop_header
    %s9 = sphi 0, %s13
    %p10 = scmp.ge.s32.totalorder %s9, 6
    %s19 = sphi 0, %s21
    %s22 = sphi 0, %s19
    %s23 = sphi 0, %s22
    %s39 = sphi 0, %s23
    %s45 = sphi 0, %s47
    %s48 = sphi 0, %s45
    %s49 = sphi 0, %s48
    %s65 = sphi 0, %s49
    %s69 = sphi 0, %s69
    %s71 = sphi 0, %s69
    %s72 = sphi 0, %s71
    %s86 = sphi 0, %s72
    %s90 = sphi 0, %s90
    %s92 = sphi 0, %s90
    %s93 = sphi 0, %s92
    %s107 = sphi 0, %s93
  $region4: #{custom_cnn_forward.8} parent=0 // loop_header_branch
    %12 = sbr.rel (%p10) target = $region8
  $region5: #{custom_cnn_forward.8} parent=0 // loop_body
    %s14 = ssub.s32 %s9, 1
    %s15 = ssub.s32 %s9, 2
    %s16 = sadd.s32 %s9, 1
    %s17 = ssub.s32 %s9, %s16
    %p18 = scmp.eq.s32.totalorder %s17, 0
    %s20 = sadd.s32 %s19, 1
    %s21 = scalar_select %p18, %s19, %s20
    %p24 = pneg %p18
    %p25 = scmp.eq.s32.totalorder %s9, 3
    %p26 = por %p24, %p25
    %p27 = scmp.ne.s32.totalorder %s19, %s22
    %p28 = scmp.eq.s32.totalorder %s9, 0
    %p29 = por %p27, %p28
    %p30 = scmp.ne.s32.totalorder %s19, %s22
    %p31 = scmp.eq.s32.totalorder %s14, 3
    %p32 = por %p30, %p31
    %p33 = scmp.ne.s32.totalorder %s22, %s23
    %p34 = scmp.eq.s32.totalorder %s14, 0
    %p35 = por %p33, %p34
    %p36 = scmp.ne.s32.totalorder %s22, %s23
    %p37 = scmp.eq.s32.totalorder %s15, 3
    %p38 = por %p36, %p37
    %p40 = scmp.ne.s32.totalorder %s23, %s39
    %p41 = scmp.eq.s32.totalorder %s15, 0
    %p42 = por %p40, %p41
    %s43 = ssub.s32 %s9, %s16
    %p44 = scmp.eq.s32.totalorder %s43, 0
    %s46 = sadd.s32 %s45, 1
    %s47 = scalar_select %p44, %s45, %s46
    %p50 = pneg %p44
    %p51 = scmp.eq.s32.totalorder %s9, 3
    %p52 = por %p50, %p51
    %p53 = scmp.ne.s32.totalorder %s45, %s48
    %p54 = scmp.eq.s32.totalorder %s9, 0
    %p55 = por %p53, %p54
    %p56 = scmp.ne.s32.totalorder %s45, %s48
    %p57 = scmp.eq.s32.totalorder %s14, 3
    %p58 = por %p56, %p57
    %p59 = scmp.ne.s32.totalorder %s48, %s49
    %p60 = scmp.eq.s32.totalorder %s14, 0
    %p61 = por %p59, %p60
    %p62 = scmp.ne.s32.totalorder %s48, %s49
    %p63 = scmp.eq.s32.totalorder %s15, 3
    %p64 = por %p62, %p63
    %p66 = scmp.ne.s32.totalorder %s49, %s65
    %p67 = scmp.eq.s32.totalorder %s15, 0
    %p68 = por %p66, %p67
    %s70 = sadd.s32 %s69, 1
    %p73 = scmp.eq.s32.totalorder %s9, 3
    %p74 = scmp.ne.s32.totalorder %s69, %s71
    %p75 = scmp.eq.s32.totalorder %s9, 0
    %p76 = por %p74, %p75
    %p77 = scmp.ne.s32.totalorder %s69, %s71
    %p78 = scmp.eq.s32.totalorder %s14, 3
    %p79 = por %p77, %p78
    %p80 = scmp.ne.s32.totalorder %s71, %s72
    %p81 = scmp.eq.s32.totalorder %s14, 0
    %p82 = por %p80, %p81
    %p83 = scmp.ne.s32.totalorder %s71, %s72
    %p84 = scmp.eq.s32.totalorder %s15, 3
    %p85 = por %p83, %p84
    %p87 = scmp.ne.s32.totalorder %s72, %s86
    %p88 = scmp.eq.s32.totalorder %s15, 0
    %p89 = por %p87, %p88
    %s91 = sadd.s32 %s90, 1
    %p94 = scmp.eq.s32.totalorder %s9, 3
    %p95 = scmp.ne.s32.totalorder %s90, %s92
    %p96 = scmp.eq.s32.totalorder %s9, 0
    %p97 = por %p95, %p96
    %p98 = scmp.ne.s32.totalorder %s90, %s92
    %p99 = scmp.eq.s32.totalorder %s14, 3
    %p100 = por %p98, %p99
    %p101 = scmp.ne.s32.totalorder %s92, %s93
    %p102 = scmp.eq.s32.totalorder %s14, 0
    %p103 = por %p101, %p102
    %p104 = scmp.ne.s32.totalorder %s92, %s93
    %p105 = scmp.eq.s32.totalorder %s15, 3
    %p106 = por %p104, %p105
    %p108 = scmp.ne.s32.totalorder %s93, %s107
    %p109 = scmp.eq.s32.totalorder %s15, 0
    %p110 = por %p108, %p109
    %p111 = scmp.le.s32.totalorder 1, %s9
    %p112 = scmp.lt.s32.totalorder %s9, 5
    %p113 = pnand %p111, %p112
    %p114 = pneg %p113
    // Predicated region
    $region9: #{custom_cnn_forward.8} parent=5 // pred_check
      _
    $region10: #{custom_cnn_forward.8} parent=5 // pred_check_branch
      %116 = sbr.rel (%p113) target = $region12
    $region11: #{custom_cnn_forward.8} parent=5 // pred_region
      %s117 = ssub.s32 %s9, 1
      // Predicated region
      $region13: #{custom_cnn_forward.8} parent=11 // pred_check
        %p118 = pneg %p82
      $region14: #{custom_cnn_forward.8} parent=11 // pred_check_branch
        %120 = sbr.rel (%p118) target = $region16
      $region15: #{custom_cnn_forward.8} parent=11 // pred_region
        _
      $region16: #{custom_cnn_forward.8} parent=11 // pred_fallthru
        _
    $region12: #{custom_cnn_forward.8} parent=5 // pred_fallthru
      _
    %p121 = scmp.lt.s32.totalorder %s9, 4
    // Predicated region
    $region17: #{custom_cnn_forward.8} parent=5 // pred_check
      %p122 = pneg %p121
    $region18: #{custom_cnn_forward.8} parent=5 // pred_check_branch
      %124 = sbr.rel (%p122) target = $region20
    $region19: #{custom_cnn_forward.8} parent=5 // pred_region
      // Predicated region
      $region21: #{custom_cnn_forward.8} parent=19 // pred_check
        %p125 = pneg %p29
      $region22: #{custom_cnn_forward.8} parent=19 // pred_check_branch
        %127 = sbr.rel (%p125) target = $region24
      $region23: #{custom_cnn_forward.8} parent=19 // pred_region
        %s128 = smul.u32 4, %s9
        %p129 = scmp.lt.s32.totalorder %s128, 15
        %s130 = scalar_select %p129, %s128, 15
        %s131 = scalar_lea.vmem %s0, %s130
        %s132 = smul.u32 4, %s9
      $region24: #{custom_cnn_forward.8} parent=19 // pred_fallthru
        _
      // Predicated region
      $region25: #{custom_cnn_forward.8} parent=19 // pred_check
        %p133 = pneg %p55
      $region26: #{custom_cnn_forward.8} parent=19 // pred_check_branch
        %135 = sbr.rel (%p133) target = $region28
      $region27: #{custom_cnn_forward.8} parent=19 // pred_region
        %s136 = smul.u32 64, %s9
        %p137 = scmp.lt.s32.totalorder %s136, 255
        %s138 = scalar_select %p137, %s136, 255
        %s139 = smul.addr %s138, 4
        %s140 = smul.addr %s139, 4
        %s141 = scalar_lea.vmem %s1, %s140
        %s142 = smul.u32 64, %s9
      $region28: #{custom_cnn_forward.8} parent=19 // pred_fallthru
        _
    $region20: #{custom_cnn_forward.8} parent=5 // pred_fallthru
      _
    %p143 = scmp.le.s32.totalorder 1, %s9
    %p144 = scmp.lt.s32.totalorder %s9, 5
    %p145 = pnand %p143, %p144
    %p146 = pneg %p145
    // Predicated region
    $region29: #{custom_cnn_forward.8} parent=5 // pred_check
      _
    $region30: #{custom_cnn_forward.8} parent=5 // pred_check_branch
      %148 = sbr.rel (%p145) target = $region32
    $region31: #{custom_cnn_forward.8} parent=5 // pred_region
      %s149 = ssub.s32 %s9, 1
      %s150 = smul.u32 4, %s14
      %p151 = scmp.lt.s32.totalorder %s150, 15
      %s152 = scalar_select %p151, %s150, 15
      %s153 = scalar_lea.vmem %s0, %s152
      %p154 = pneg %p35
      %p155 = pneg %p32
      %s156 = smul.u32 64, %s14
      %p157 = scmp.lt.s32.totalorder %s156, 255
      %s158 = scalar_select %p157, %s156, 255
      %s159 = smul.addr %s158, 4
      %s160 = smul.addr %s159, 4
      %s161 = scalar_lea.vmem %s1, %s160
      %p162 = pneg %p61
      %p163 = pneg %p58
      %p164 = pneg %p82
      %p165 = pneg %p79
      %p166 = pneg %p103
      %p167 = pneg %p100
      %s168 = smul.u32 4, %s14
      %p169 = scmp.lt.s32.totalorder %s168, 15
      %s170 = scalar_select %p169, %s168, 15
      %s171 = scalar_lea.vmem %s0, %s170
      %s172 = smul.u32 4, %s14
      %s173 = smul.u32 64, %s14
      %p174 = scmp.lt.s32.totalorder %s173, 255
      %s175 = scalar_select %p174, %s173, 255
      %s176 = smul.addr %s175, 4
      %s177 = smul.addr %s176, 4
      %s178 = scalar_lea.vmem %s1, %s177
      %s179 = smul.u32 64, %s14
      %p180 = scmp.eq.s32.totalorder %s14, 0
      // Predicated region
      $region33: #{custom_cnn_forward.8} parent=31 // pred_check
        %p181 = pneg %p180
      $region34: #{custom_cnn_forward.8} parent=31 // pred_check_branch
        %183 = sbr.rel (%p181) target = $region36
      $region35: #{custom_cnn_forward.8} parent=31 // pred_region
        %184 = vst [vmem:[#allocation2] sm:$0xff] 0.0
      $region36: #{custom_cnn_forward.8} parent=31 // pred_fallthru
        _
      %v185 = vld [vmem:[#allocation2] sm:$0xff]
      %v186 = vld [vmem:[%s171] sm:$0xf]
      %v187 = vld [vmem:[%s178] sm:$0xff]
      %v188 = vld [vmem:[%s178 + $0x8] sm:$0xff]
      %v189 = vld [vmem:[%s178 + $0x10] sm:$0xff]
      %v190 = vld [vmem:[%s178 + $0x18] sm:$0xff]
      %v191 = vld [vmem:[%s178 + $0x20] sm:$0xff]
      %v192 = vld [vmem:[%s178 + $0x28] sm:$0xff]
      %v193 = vld [vmem:[%s178 + $0x30] sm:$0xff]
      %v194 = vld [vmem:[%s178 + $0x38] sm:$0xff]
      %v195 = vld [vmem:[%s178 + $0x40] sm:$0xff]
      %v196 = vld [vmem:[%s178 + $0x48] sm:$0xff]
      %v197 = vld [vmem:[%s178 + $0x50] sm:$0xff]
      %v198 = vld [vmem:[%s178 + $0x58] sm:$0xff]
      %v199 = vld [vmem:[%s178 + $0x60] sm:$0xff]
      %v200 = vld [vmem:[%s178 + $0x68] sm:$0xff]
      %v201 = vld [vmem:[%s178 + $0x70] sm:$0xff]
      %v202 = vld [vmem:[%s178 + $0x78] sm:$0xff]
      %v203 = vld [vmem:[%s178 + $0x80] sm:$0xff]
      %v204 = vld [vmem:[%s178 + $0x88] sm:$0xff]
      %v205 = vld [vmem:[%s178 + $0x90] sm:$0xff]
      %v206 = vld [vmem:[%s178 + $0x98] sm:$0xff]
      %v207 = vld [vmem:[%s178 + $0xa0] sm:$0xff]
      %v208 = vld [vmem:[%s178 + $0xa8] sm:$0xff]
      %v209 = vld [vmem:[%s178 + $0xb0] sm:$0xff]
      %v210 = vld [vmem:[%s178 + $0xb8] sm:$0xff]
      %v211 = vld [vmem:[%s178 + $0xc0] sm:$0xff]
      %v212 = vld [vmem:[%s178 + $0xc8] sm:$0xff]
      %v213 = vld [vmem:[%s178 + $0xd0] sm:$0xff]
      %v214 = vld [vmem:[%s178 + $0xd8] sm:$0xff]
      %v215 = vld [vmem:[%s178 + $0xe0] sm:$0xff]
      %v216 = vld [vmem:[%s178 + $0xe8] sm:$0xff]
      %v217 = vld [vmem:[%s178 + $0xf0] sm:$0xff]
      %v218 = vld [vmem:[%s178 + $0xf8] sm:$0xff]
      %v219 = vld [vmem:[%s178 + $0x100] sm:$0xff]
      %v220 = vld [vmem:[%s178 + $0x108] sm:$0xff]
      %v221 = vld [vmem:[%s178 + $0x110] sm:$0xff]
      %v222 = vld [vmem:[%s178 + $0x118] sm:$0xff]
      %v223 = vld [vmem:[%s178 + $0x120] sm:$0xff]
      %v224 = vld [vmem:[%s178 + $0x128] sm:$0xff]
      %v225 = vld [vmem:[%s178 + $0x130] sm:$0xff]
      %v226 = vld [vmem:[%s178 + $0x138] sm:$0xff]
      %v227 = vld [vmem:[%s178 + $0x140] sm:$0xff]
      %v228 = vld [vmem:[%s178 + $0x148] sm:$0xff]
      %v229 = vld [vmem:[%s178 + $0x150] sm:$0xff]
      %v230 = vld [vmem:[%s178 + $0x158] sm:$0xff]
      %v231 = vld [vmem:[%s178 + $0x160] sm:$0xff]
      %v232 = vld [vmem:[%s178 + $0x168] sm:$0xff]
      %v233 = vld [vmem:[%s178 + $0x170] sm:$0xff]
      %v234 = vld [vmem:[%s178 + $0x178] sm:$0xff]
      %v235 = vld [vmem:[%s178 + $0x180] sm:$0xff]
      %v236 = vld [vmem:[%s178 + $0x188] sm:$0xff]
      %v237 = vld [vmem:[%s178 + $0x190] sm:$0xff]
      %v238 = vld [vmem:[%s178 + $0x198] sm:$0xff]
      %v239 = vld [vmem:[%s178 + $0x1a0] sm:$0xff]
      %v240 = vld [vmem:[%s178 + $0x1a8] sm:$0xff]
      %v241 = vld [vmem:[%s178 + $0x1b0] sm:$0xff]
      %v242 = vld [vmem:[%s178 + $0x1b8] sm:$0xff]
      %v243 = vld [vmem:[%s178 + $0x1c0] sm:$0xff]
      %v244 = vld [vmem:[%s178 + $0x1c8] sm:$0xff]
      %v245 = vld [vmem:[%s178 + $0x1d0] sm:$0xff]
      %v246 = vld [vmem:[%s178 + $0x1d8] sm:$0xff]
      %v247 = vld [vmem:[%s178 + $0x1e0] sm:$0xff]
      %v248 = vld [vmem:[%s178 + $0x1e8] sm:$0xff]
      %v249 = vld [vmem:[%s178 + $0x1f0] sm:$0xff]
      %v250 = vld [vmem:[%s178 + $0x1f8] sm:$0xff]
      %v251 = vld [vmem:[%s178 + $0x200] sm:$0xff]
      %v252 = vld [vmem:[%s178 + $0x208] sm:$0xff]
      %v253 = vld [vmem:[%s178 + $0x210] sm:$0xff]
      %v254 = vld [vmem:[%s178 + $0x218] sm:$0xff]
      %v255 = vld [vmem:[%s178 + $0x220] sm:$0xff]
      %v256 = vld [vmem:[%s178 + $0x228] sm:$0xff]
      %v257 = vld [vmem:[%s178 + $0x230] sm:$0xff]
      %v258 = vld [vmem:[%s178 + $0x238] sm:$0xff]
      %v259 = vld [vmem:[%s178 + $0x240] sm:$0xff]
      %v260 = vld [vmem:[%s178 + $0x248] sm:$0xff]
      %v261 = vld [vmem:[%s178 + $0x250] sm:$0xff]
      %v262 = vld [vmem:[%s178 + $0x258] sm:$0xff]
      %v263 = vld [vmem:[%s178 + $0x260] sm:$0xff]
      %v264 = vld [vmem:[%s178 + $0x268] sm:$0xff]
      %v265 = vld [vmem:[%s178 + $0x270] sm:$0xff]
      %v266 = vld [vmem:[%s178 + $0x278] sm:$0xff]
      %v267 = vld [vmem:[%s178 + $0x280] sm:$0xff]
      %v268 = vld [vmem:[%s178 + $0x288] sm:$0xff]
      %v269 = vld [vmem:[%s178 + $0x290] sm:$0xff]
      %v270 = vld [vmem:[%s178 + $0x298] sm:$0xff]
      %v271 = vld [vmem:[%s178 + $0x2a0] sm:$0xff]
      %v272 = vld [vmem:[%s178 + $0x2a8] sm:$0xff]
      %v273 = vld [vmem:[%s178 + $0x2b0] sm:$0xff]
      %v274 = vld [vmem:[%s178 + $0x2b8] sm:$0xff]
      %v275 = vld [vmem:[%s178 + $0x2c0] sm:$0xff]
      %v276 = vld [vmem:[%s178 + $0x2c8] sm:$0xff]
      %v277 = vld [vmem:[%s178 + $0x2d0] sm:$0xff]
      %v278 = vld [vmem:[%s178 + $0x2d8] sm:$0xff]
      %v279 = vld [vmem:[%s178 + $0x2e0] sm:$0xff]
      %v280 = vld [vmem:[%s178 + $0x2e8] sm:$0xff]
      %v281 = vld [vmem:[%s178 + $0x2f0] sm:$0xff]
      %v282 = vld [vmem:[%s178 + $0x2f8] sm:$0xff]
      %v283 = vld [vmem:[%s178 + $0x300] sm:$0xff]
      %v284 = vld [vmem:[%s178 + $0x308] sm:$0xff]
      %v285 = vld [vmem:[%s178 + $0x310] sm:$0xff]
      %v286 = vld [vmem:[%s178 + $0x318] sm:$0xff]
      %v287 = vld [vmem:[%s178 + $0x320] sm:$0xff]
      %v288 = vld [vmem:[%s178 + $0x328] sm:$0xff]
      %v289 = vld [vmem:[%s178 + $0x330] sm:$0xff]
      %v290 = vld [vmem:[%s178 + $0x338] sm:$0xff]
      %v291 = vld [vmem:[%s178 + $0x340] sm:$0xff]
      %v292 = vld [vmem:[%s178 + $0x348] sm:$0xff]
      %v293 = vld [vmem:[%s178 + $0x350] sm:$0xff]
      %v294 = vld [vmem:[%s178 + $0x358] sm:$0xff]
      %v295 = vld [vmem:[%s178 + $0x360] sm:$0xff]
      %v296 = vld [vmem:[%s178 + $0x368] sm:$0xff]
      %v297 = vld [vmem:[%s178 + $0x370] sm:$0xff]
      %v298 = vld [vmem:[%s178 + $0x378] sm:$0xff]
      %v299 = vld [vmem:[%s178 + $0x380] sm:$0xff]
      %v300 = vld [vmem:[%s178 + $0x388] sm:$0xff]
      %v301 = vld [vmem:[%s178 + $0x390] sm:$0xff]
      %v302 = vld [vmem:[%s178 + $0x398] sm:$0xff]
      %v303 = vld [vmem:[%s178 + $0x3a0] sm:$0xff]
      %v304 = vld [vmem:[%s178 + $0x3a8] sm:$0xff]
      %v305 = vld [vmem:[%s178 + $0x3b0] sm:$0xff]
      %v306 = vld [vmem:[%s178 + $0x3b8] sm:$0xff]
      %v307 = vld [vmem:[%s178 + $0x3c0] sm:$0xff]
      %v308 = vld [vmem:[%s178 + $0x3c8] sm:$0xff]
      %v309 = vld [vmem:[%s178 + $0x3d0] sm:$0xff]
      %v310 = vld [vmem:[%s178 + $0x3d8] sm:$0xff]
      %v311 = vld [vmem:[%s178 + $0x3e0] sm:$0xff]
      %v312 = vld [vmem:[%s178 + $0x3e8] sm:$0xff]
      %v313 = vld [vmem:[%s178 + $0x3f0] sm:$0xff]
      %v314 = vld [vmem:[%s178 + $0x3f8] sm:$0xff]
      %v317 = vunpack.c.l.s4 1966171168
      %v318 = vunpack.c.0.s8 %v317
      %v319 = vlaneseq
      %v320 = vshrl.u32 %v319, 7
      %v321 = vsub.s32 %v318, %v320
      %v322 = vrot.slane %v186, %v321
      %v323 = vcombine.high %v322, %v322
      %v325 = vunpack.c.l.s4 1966171168
      %v326 = vunpack.c.0.s8 %v325
      %v327 = vlaneseq
      %v328 = vshrl.u32 %v327, 7
      %v329 = vsub.s32 %v326, %v328
      %v330 = vrot.slane %v322, %v329
      %v332 = vunpack.c.l.s4 1966171168
      %v333 = vunpack.c.0.s8 %v332
      %v334 = vlaneseq
      %v335 = vshrl.u32 %v334, 7
      %v336 = vsub.s32 %v333, %v335
      %v337 = vrot.slane %v323, %v336
      %v338 = vcombine.high %v330, %v330
      %v339 = vcombine.high %v337, %v337
      %v472 = vunpack.c.l.b16 %v187
      %v473 = vunpack.c.h.b16 %v187
      %v474 = vunpack.c.l.b16 %v188
      %v475 = vunpack.c.h.b16 %v188
      %v476 = vunpack.c.l.b16 %v189
      %v477 = vunpack.c.h.b16 %v189
      %v478 = vunpack.c.l.b16 %v190
      %v479 = vunpack.c.h.b16 %v190
      %v480 = vunpack.c.l.b16 %v191
      %v481 = vunpack.c.h.b16 %v191
      %v482 = vunpack.c.l.b16 %v192
      %v483 = vunpack.c.h.b16 %v192
      %v484 = vunpack.c.l.b16 %v193
      %v485 = vunpack.c.h.b16 %v193
      %v486 = vunpack.c.l.b16 %v194
      %v487 = vunpack.c.h.b16 %v194
      %v488 = vunpack.c.l.b16 %v195
      %v489 = vunpack.c.h.b16 %v195
      %v490 = vunpack.c.l.b16 %v196
      %v491 = vunpack.c.h.b16 %v196
      %v492 = vunpack.c.l.b16 %v197
      %v493 = vunpack.c.h.b16 %v197
      %v494 = vunpack.c.l.b16 %v198
      %v495 = vunpack.c.h.b16 %v198
      %v496 = vunpack.c.l.b16 %v199
      %v497 = vunpack.c.h.b16 %v199
      %v498 = vunpack.c.l.b16 %v200
      %v499 = vunpack.c.h.b16 %v200
      %v500 = vunpack.c.l.b16 %v201
      %v501 = vunpack.c.h.b16 %v201
      %v502 = vunpack.c.l.b16 %v202
      %v503 = vunpack.c.h.b16 %v202
      %v504 = vunpack.c.l.b16 %v203
      %v505 = vunpack.c.h.b16 %v203
      %v506 = vunpack.c.l.b16 %v204
      %v507 = vunpack.c.h.b16 %v204
      %v508 = vunpack.c.l.b16 %v205
      %v509 = vunpack.c.h.b16 %v205
      %v510 = vunpack.c.l.b16 %v206
      %v511 = vunpack.c.h.b16 %v206
      %v512 = vunpack.c.l.b16 %v207
      %v513 = vunpack.c.h.b16 %v207
      %v514 = vunpack.c.l.b16 %v208
      %v515 = vunpack.c.h.b16 %v208
      %v516 = vunpack.c.l.b16 %v209
      %v517 = vunpack.c.h.b16 %v209
      %v518 = vunpack.c.l.b16 %v210
      %v519 = vunpack.c.h.b16 %v210
      %v520 = vunpack.c.l.b16 %v211
      %v521 = vunpack.c.h.b16 %v211
      %v522 = vunpack.c.l.b16 %v212
      %v523 = vunpack.c.h.b16 %v212
      %v524 = vunpack.c.l.b16 %v213
      %v525 = vunpack.c.h.b16 %v213
      %v526 = vunpack.c.l.b16 %v214
      %v527 = vunpack.c.h.b16 %v214
      %v528 = vunpack.c.l.b16 %v215
      %v529 = vunpack.c.h.b16 %v215
      %v530 = vunpack.c.l.b16 %v216
      %v531 = vunpack.c.h.b16 %v216
      %v532 = vunpack.c.l.b16 %v217
      %v533 = vunpack.c.h.b16 %v217
      %v534 = vunpack.c.l.b16 %v218
      %v535 = vunpack.c.h.b16 %v218
      %v536 = vunpack.c.l.b16 %v219
      %v537 = vunpack.c.h.b16 %v219
      %v538 = vunpack.c.l.b16 %v220
      %v539 = vunpack.c.h.b16 %v220
      %v540 = vunpack.c.l.b16 %v221
      %v541 = vunpack.c.h.b16 %v221
      %v542 = vunpack.c.l.b16 %v222
      %v543 = vunpack.c.h.b16 %v222
      %v544 = vunpack.c.l.b16 %v223
      %v545 = vunpack.c.h.b16 %v223
      %v546 = vunpack.c.l.b16 %v224
      %v547 = vunpack.c.h.b16 %v224
      %v548 = vunpack.c.l.b16 %v225
      %v549 = vunpack.c.h.b16 %v225
      %v550 = vunpack.c.l.b16 %v226
      %v551 = vunpack.c.h.b16 %v226
      %v552 = vunpack.c.l.b16 %v227
      %v553 = vunpack.c.h.b16 %v227
      %v554 = vunpack.c.l.b16 %v228
      %v555 = vunpack.c.h.b16 %v228
      %v556 = vunpack.c.l.b16 %v229
      %v557 = vunpack.c.h.b16 %v229
      %v558 = vunpack.c.l.b16 %v230
      %v559 = vunpack.c.h.b16 %v230
      %v560 = vunpack.c.l.b16 %v231
      %v561 = vunpack.c.h.b16 %v231
      %v562 = vunpack.c.l.b16 %v232
      %v563 = vunpack.c.h.b16 %v232
      %v564 = vunpack.c.l.b16 %v233
      %v565 = vunpack.c.h.b16 %v233
      %v566 = vunpack.c.l.b16 %v234
      %v567 = vunpack.c.h.b16 %v234
      %v568 = vunpack.c.l.b16 %v235
      %v569 = vunpack.c.h.b16 %v235
      %v570 = vunpack.c.l.b16 %v236
      %v571 = vunpack.c.h.b16 %v236
      %v572 = vunpack.c.l.b16 %v237
      %v573 = vunpack.c.h.b16 %v237
      %v574 = vunpack.c.l.b16 %v238
      %v575 = vunpack.c.h.b16 %v238
      %v576 = vunpack.c.l.b16 %v239
      %v577 = vunpack.c.h.b16 %v239
      %v578 = vunpack.c.l.b16 %v240
      %v579 = vunpack.c.h.b16 %v240
      %v580 = vunpack.c.l.b16 %v241
      %v581 = vunpack.c.h.b16 %v241
      %v582 = vunpack.c.l.b16 %v242
      %v583 = vunpack.c.h.b16 %v242
      %v584 = vunpack.c.l.b16 %v243
      %v585 = vunpack.c.h.b16 %v243
      %v586 = vunpack.c.l.b16 %v244
      %v587 = vunpack.c.h.b16 %v244
      %v588 = vunpack.c.l.b16 %v245
      %v589 = vunpack.c.h.b16 %v245
      %v590 = vunpack.c.l.b16 %v246
      %v591 = vunpack.c.h.b16 %v246
      %v592 = vunpack.c.l.b16 %v247
      %v593 = vunpack.c.h.b16 %v247
      %v594 = vunpack.c.l.b16 %v248
      %v595 = vunpack.c.h.b16 %v248
      %v596 = vunpack.c.l.b16 %v249
      %v597 = vunpack.c.h.b16 %v249
      %v598 = vunpack.c.l.b16 %v250
      %v599 = vunpack.c.h.b16 %v250
      %v600 = vunpack.c.l.b16 %v251
      %v601 = vunpack.c.h.b16 %v251
      %v602 = vunpack.c.l.b16 %v252
      %v603 = vunpack.c.h.b16 %v252
      %v604 = vunpack.c.l.b16 %v253
      %v605 = vunpack.c.h.b16 %v253
      %v606 = vunpack.c.l.b16 %v254
      %v607 = vunpack.c.h.b16 %v254
      %v608 = vunpack.c.l.b16 %v255
      %v609 = vunpack.c.h.b16 %v255
      %v610 = vunpack.c.l.b16 %v256
      %v611 = vunpack.c.h.b16 %v256
      %v612 = vunpack.c.l.b16 %v257
      %v613 = vunpack.c.h.b16 %v257
      %v614 = vunpack.c.l.b16 %v258
      %v615 = vunpack.c.h.b16 %v258
      %v616 = vunpack.c.l.b16 %v259
      %v617 = vunpack.c.h.b16 %v259
      %v618 = vunpack.c.l.b16 %v260
      %v619 = vunpack.c.h.b16 %v260
      %v620 = vunpack.c.l.b16 %v261
      %v621 = vunpack.c.h.b16 %v261
      %v622 = vunpack.c.l.b16 %v262
      %v623 = vunpack.c.h.b16 %v262
      %v624 = vunpack.c.l.b16 %v263
      %v625 = vunpack.c.h.b16 %v263
      %v626 = vunpack.c.l.b16 %v264
      %v627 = vunpack.c.h.b16 %v264
      %v628 = vunpack.c.l.b16 %v265
      %v629 = vunpack.c.h.b16 %v265
      %v630 = vunpack.c.l.b16 %v266
      %v631 = vunpack.c.h.b16 %v266
      %v632 = vunpack.c.l.b16 %v267
      %v633 = vunpack.c.h.b16 %v267
      %v634 = vunpack.c.l.b16 %v268
      %v635 = vunpack.c.h.b16 %v268
      %v636 = vunpack.c.l.b16 %v269
      %v637 = vunpack.c.h.b16 %v269
      %v638 = vunpack.c.l.b16 %v270
      %v639 = vunpack.c.h.b16 %v270
      %v640 = vunpack.c.l.b16 %v271
      %v641 = vunpack.c.h.b16 %v271
      %v642 = vunpack.c.l.b16 %v272
      %v643 = vunpack.c.h.b16 %v272
      %v644 = vunpack.c.l.b16 %v273
      %v645 = vunpack.c.h.b16 %v273
      %v646 = vunpack.c.l.b16 %v274
      %v647 = vunpack.c.h.b16 %v274
      %v648 = vunpack.c.l.b16 %v275
      %v649 = vunpack.c.h.b16 %v275
      %v650 = vunpack.c.l.b16 %v276
      %v651 = vunpack.c.h.b16 %v276
      %v652 = vunpack.c.l.b16 %v277
      %v653 = vunpack.c.h.b16 %v277
      %v654 = vunpack.c.l.b16 %v278
      %v655 = vunpack.c.h.b16 %v278
      %v656 = vunpack.c.l.b16 %v279
      %v657 = vunpack.c.h.b16 %v279
      %v658 = vunpack.c.l.b16 %v280
      %v659 = vunpack.c.h.b16 %v280
      %v660 = vunpack.c.l.b16 %v281
      %v661 = vunpack.c.h.b16 %v281
      %v662 = vunpack.c.l.b16 %v282
      %v663 = vunpack.c.h.b16 %v282
      %v664 = vunpack.c.l.b16 %v283
      %v665 = vunpack.c.h.b16 %v283
      %v666 = vunpack.c.l.b16 %v284
      %v667 = vunpack.c.h.b16 %v284
      %v668 = vunpack.c.l.b16 %v285
      %v669 = vunpack.c.h.b16 %v285
      %v670 = vunpack.c.l.b16 %v286
      %v671 = vunpack.c.h.b16 %v286
      %v672 = vunpack.c.l.b16 %v287
      %v673 = vunpack.c.h.b16 %v287
      %v674 = vunpack.c.l.b16 %v288
      %v675 = vunpack.c.h.b16 %v288
      %v676 = vunpack.c.l.b16 %v289
      %v677 = vunpack.c.h.b16 %v289
      %v678 = vunpack.c.l.b16 %v290
      %v679 = vunpack.c.h.b16 %v290
      %v680 = vunpack.c.l.b16 %v291
      %v681 = vunpack.c.h.b16 %v291
      %v682 = vunpack.c.l.b16 %v292
      %v683 = vunpack.c.h.b16 %v292
      %v684 = vunpack.c.l.b16 %v293
      %v685 = vunpack.c.h.b16 %v293
      %v686 = vunpack.c.l.b16 %v294
      %v687 = vunpack.c.h.b16 %v294
      %v688 = vunpack.c.l.b16 %v295
      %v689 = vunpack.c.h.b16 %v295
      %v690 = vunpack.c.l.b16 %v296
      %v691 = vunpack.c.h.b16 %v296
      %v692 = vunpack.c.l.b16 %v297
      %v693 = vunpack.c.h.b16 %v297
      %v694 = vunpack.c.l.b16 %v298
      %v695 = vunpack.c.h.b16 %v298
      %v696 = vunpack.c.l.b16 %v299
      %v697 = vunpack.c.h.b16 %v299
      %v698 = vunpack.c.l.b16 %v300
      %v699 = vunpack.c.h.b16 %v300
      %v700 = vunpack.c.l.b16 %v301
      %v701 = vunpack.c.h.b16 %v301
      %v702 = vunpack.c.l.b16 %v302
      %v703 = vunpack.c.h.b16 %v302
      %v704 = vunpack.c.l.b16 %v303
      %v705 = vunpack.c.h.b16 %v303
      %v706 = vunpack.c.l.b16 %v304
      %v707 = vunpack.c.h.b16 %v304
      %v708 = vunpack.c.l.b16 %v305
      %v709 = vunpack.c.h.b16 %v305
      %v710 = vunpack.c.l.b16 %v306
      %v711 = vunpack.c.h.b16 %v306
      %v712 = vunpack.c.l.b16 %v307
      %v713 = vunpack.c.h.b16 %v307
      %v714 = vunpack.c.l.b16 %v308
      %v715 = vunpack.c.h.b16 %v308
      %v716 = vunpack.c.l.b16 %v309
      %v717 = vunpack.c.h.b16 %v309
      %v718 = vunpack.c.l.b16 %v310
      %v719 = vunpack.c.h.b16 %v310
      %v720 = vunpack.c.l.b16 %v311
      %v721 = vunpack.c.h.b16 %v311
      %v722 = vunpack.c.l.b16 %v312
      %v723 = vunpack.c.h.b16 %v312
      %v724 = vunpack.c.l.b16 %v313
      %v725 = vunpack.c.h.b16 %v313
      %v726 = vunpack.c.l.b16 %v314
      %v727 = vunpack.c.h.b16 %v314
      %v728 = vpack.c.b16 %v476, %v472
      %v729 = vpack.c.b16 %v477, %v473
      %v730 = vpack.c.b16 %v478, %v474
      %v731 = vpack.c.b16 %v479, %v475
      %v732 = vpack.c.b16 %v484, %v480
      %v733 = vpack.c.b16 %v485, %v481
      %v734 = vpack.c.b16 %v486, %v482
      %v735 = vpack.c.b16 %v487, %v483
      %v736 = vpack.c.b16 %v492, %v488
      %v737 = vpack.c.b16 %v493, %v489
      %v738 = vpack.c.b16 %v494, %v490
      %v739 = vpack.c.b16 %v495, %v491
      %v740 = vpack.c.b16 %v500, %v496
      %v741 = vpack.c.b16 %v501, %v497
      %v742 = vpack.c.b16 %v502, %v498
      %v743 = vpack.c.b16 %v503, %v499
      %v744 = vpack.c.b16 %v508, %v504
      %v745 = vpack.c.b16 %v509, %v505
      %v746 = vpack.c.b16 %v510, %v506
      %v747 = vpack.c.b16 %v511, %v507
      %v748 = vpack.c.b16 %v516, %v512
      %v749 = vpack.c.b16 %v517, %v513
      %v750 = vpack.c.b16 %v518, %v514
      %v751 = vpack.c.b16 %v519, %v515
      %v752 = vpack.c.b16 %v524, %v520
      %v753 = vpack.c.b16 %v525, %v521
      %v754 = vpack.c.b16 %v526, %v522
      %v755 = vpack.c.b16 %v527, %v523
      %v756 = vpack.c.b16 %v532, %v528
      %v757 = vpack.c.b16 %v533, %v529
      %v758 = vpack.c.b16 %v534, %v530
      %v759 = vpack.c.b16 %v535, %v531
      %v760 = vpack.c.b16 %v540, %v536
      %v761 = vpack.c.b16 %v541, %v537
      %v762 = vpack.c.b16 %v542, %v538
      %v763 = vpack.c.b16 %v543, %v539
      %v764 = vpack.c.b16 %v548, %v544
      %v765 = vpack.c.b16 %v549, %v545
      %v766 = vpack.c.b16 %v550, %v546
      %v767 = vpack.c.b16 %v551, %v547
      %v768 = vpack.c.b16 %v556, %v552
      %v769 = vpack.c.b16 %v557, %v553
      %v770 = vpack.c.b16 %v558, %v554
      %v771 = vpack.c.b16 %v559, %v555
      %v772 = vpack.c.b16 %v564, %v560
      %v773 = vpack.c.b16 %v565, %v561
      %v774 = vpack.c.b16 %v566, %v562
      %v775 = vpack.c.b16 %v567, %v563
      %v776 = vpack.c.b16 %v572, %v568
      %v777 = vpack.c.b16 %v573, %v569
      %v778 = vpack.c.b16 %v574, %v570
      %v779 = vpack.c.b16 %v575, %v571
      %v780 = vpack.c.b16 %v580, %v576
      %v781 = vpack.c.b16 %v581, %v577
      %v782 = vpack.c.b16 %v582, %v578
      %v783 = vpack.c.b16 %v583, %v579
      %v784 = vpack.c.b16 %v588, %v584
      %v785 = vpack.c.b16 %v589, %v585
      %v786 = vpack.c.b16 %v590, %v586
      %v787 = vpack.c.b16 %v591, %v587
      %v788 = vpack.c.b16 %v596, %v592
      %v789 = vpack.c.b16 %v597, %v593
      %v790 = vpack.c.b16 %v598, %v594
      %v791 = vpack.c.b16 %v599, %v595
      %v792 = vpack.c.b16 %v604, %v600
      %v793 = vpack.c.b16 %v605, %v601
      %v794 = vpack.c.b16 %v606, %v602
      %v795 = vpack.c.b16 %v607, %v603
      %v796 = vpack.c.b16 %v612, %v608
      %v797 = vpack.c.b16 %v613, %v609
      %v798 = vpack.c.b16 %v614, %v610
      %v799 = vpack.c.b16 %v615, %v611
      %v800 = vpack.c.b16 %v620, %v616
      %v801 = vpack.c.b16 %v621, %v617
      %v802 = vpack.c.b16 %v622, %v618
      %v803 = vpack.c.b16 %v623, %v619
      %v804 = vpack.c.b16 %v628, %v624
      %v805 = vpack.c.b16 %v629, %v625
      %v806 = vpack.c.b16 %v630, %v626
      %v807 = vpack.c.b16 %v631, %v627
      %v808 = vpack.c.b16 %v636, %v632
      %v809 = vpack.c.b16 %v637, %v633
      %v810 = vpack.c.b16 %v638, %v634
      %v811 = vpack.c.b16 %v639, %v635
      %v812 = vpack.c.b16 %v644, %v640
      %v813 = vpack.c.b16 %v645, %v641
      %v814 = vpack.c.b16 %v646, %v642
      %v815 = vpack.c.b16 %v647, %v643
      %v816 = vpack.c.b16 %v652, %v648
      %v817 = vpack.c.b16 %v653, %v649
      %v818 = vpack.c.b16 %v654, %v650
      %v819 = vpack.c.b16 %v655, %v651
      %v820 = vpack.c.b16 %v660, %v656
      %v821 = vpack.c.b16 %v661, %v657
      %v822 = vpack.c.b16 %v662, %v658
      %v823 = vpack.c.b16 %v663, %v659
      %v824 = vpack.c.b16 %v668, %v664
      %v825 = vpack.c.b16 %v669, %v665
      %v826 = vpack.c.b16 %v670, %v666
      %v827 = vpack.c.b16 %v671, %v667
      %v828 = vpack.c.b16 %v676, %v672
      %v829 = vpack.c.b16 %v677, %v673
      %v830 = vpack.c.b16 %v678, %v674
      %v831 = vpack.c.b16 %v679, %v675
      %v832 = vpack.c.b16 %v684, %v680
      %v833 = vpack.c.b16 %v685, %v681
      %v834 = vpack.c.b16 %v686, %v682
      %v835 = vpack.c.b16 %v687, %v683
      %v836 = vpack.c.b16 %v692, %v688
      %v837 = vpack.c.b16 %v693, %v689
      %v838 = vpack.c.b16 %v694, %v690
      %v839 = vpack.c.b16 %v695, %v691
      %v840 = vpack.c.b16 %v700, %v696
      %v841 = vpack.c.b16 %v701, %v697
      %v842 = vpack.c.b16 %v702, %v698
      %v843 = vpack.c.b16 %v703, %v699
      %v844 = vpack.c.b16 %v708, %v704
      %v845 = vpack.c.b16 %v709, %v705
      %v846 = vpack.c.b16 %v710, %v706
      %v847 = vpack.c.b16 %v711, %v707
      %v848 = vpack.c.b16 %v716, %v712
      %v849 = vpack.c.b16 %v717, %v713
      %v850 = vpack.c.b16 %v718, %v714
      %v851 = vpack.c.b16 %v719, %v715
      %v852 = vpack.c.b16 %v724, %v720
      %v853 = vpack.c.b16 %v725, %v721
      %v854 = vpack.c.b16 %v726, %v722
      %v855 = vpack.c.b16 %v727, %v723
      %984 = vmatprep.subr.bf16.mxu0 %v729
      %985 = vmatpush1.bf16.msra.mxu0 %v728
      %986 = vmatprep.subr.bf16.mxu0 %v733
      %987 = vmatpush1.bf16.msra.mxu0 %v732
      %988 = vmatprep.subr.bf16.mxu0 %v737
      %989 = vmatpush1.bf16.msra.mxu0 %v736
      %990 = vmatprep.subr.bf16.mxu0 %v741
      %991 = vmatpush1.bf16.msra.mxu0 %v740
      %992 = vmatprep.subr.bf16.mxu0 %v745
      %993 = vmatpush1.bf16.msra.mxu0 %v744
      %994 = vmatprep.subr.bf16.mxu0 %v749
      %995 = vmatpush1.bf16.msra.mxu0 %v748
      %996 = vmatprep.subr.bf16.mxu0 %v753
      %997 = vmatpush1.bf16.msra.mxu0 %v752
      %998 = vmatprep.subr.bf16.mxu0 %v757
      %999 = vmatpush1.bf16.msra.mxu0 %v756
      %1000 = vmatprep.subr.bf16.mxu0 %v761
      %1001 = vmatpush1.bf16.msra.mxu0 %v760
      %1002 = vmatprep.subr.bf16.mxu0 %v765
      %1003 = vmatpush1.bf16.msra.mxu0 %v764
      %1004 = vmatprep.subr.bf16.mxu0 %v769
      %1005 = vmatpush1.bf16.msra.mxu0 %v768
      %1006 = vmatprep.subr.bf16.mxu0 %v773
      %1007 = vmatpush1.bf16.msra.mxu0 %v772
      %1008 = vmatprep.subr.bf16.mxu0 %v777
      %1009 = vmatpush1.bf16.msra.mxu0 %v776
      %1010 = vmatprep.subr.bf16.mxu0 %v781
      %1011 = vmatpush1.bf16.msra.mxu0 %v780
      %1012 = vmatprep.subr.bf16.mxu0 %v785
      %1013 = vmatpush1.bf16.msra.mxu0 %v784
      %1014 = vmatprep.subr.bf16.mxu0 %v789
      %1015 = vmatpush1.bf16.msra.mxu0 %v788
      %1016 = vmatprep.mubr.bf16.mxu0 %v337
      %1017 = vmatmul.mubr.bf16.gmra.mrb[0].mxu0 %v330
      %v1018 = vpop.f32.mrb[0].mxu0
      %v1019 = vadd.f32 0.0, %v1018
      %v1020 = vpop.f32.mrb[0].mxu0
      %v1021 = vadd.f32 0.0, %v1020
      %v1022 = vpop.f32.mrb[0].mxu0
      %v1023 = vpop.f32.mrb[0].mxu0
      %1024 = vdwg.mxu0
      %1025 = vmatprep.subr.bf16.mxu0 %v793
      %1026 = vmatpush1.bf16.msra.mxu0 %v792
      %1027 = vmatprep.subr.bf16.mxu0 %v797
      %1028 = vmatpush1.bf16.msra.mxu0 %v796
      %1029 = vmatprep.subr.bf16.mxu0 %v801
      %1030 = vmatpush1.bf16.msra.mxu0 %v800
      %1031 = vmatprep.subr.bf16.mxu0 %v805
      %1032 = vmatpush1.bf16.msra.mxu0 %v804
      %1033 = vmatprep.subr.bf16.mxu0 %v809
      %1034 = vmatpush1.bf16.msra.mxu0 %v808
      %1035 = vmatprep.subr.bf16.mxu0 %v813
      %1036 = vmatpush1.bf16.msra.mxu0 %v812
      %1037 = vmatprep.subr.bf16.mxu0 %v817
      %1038 = vmatpush1.bf16.msra.mxu0 %v816
      %1039 = vmatprep.subr.bf16.mxu0 %v821
      %1040 = vmatpush1.bf16.msra.mxu0 %v820
      %1041 = vmatprep.subr.bf16.mxu0 %v825
      %1042 = vmatpush1.bf16.msra.mxu0 %v824
      %1043 = vmatprep.subr.bf16.mxu0 %v829
      %1044 = vmatpush1.bf16.msra.mxu0 %v828
      %1045 = vmatprep.subr.bf16.mxu0 %v833
      %1046 = vmatpush1.bf16.msra.mxu0 %v832
      %1047 = vmatprep.subr.bf16.mxu0 %v837
      %1048 = vmatpush1.bf16.msra.mxu0 %v836
      %1049 = vmatprep.subr.bf16.mxu0 %v841
      %1050 = vmatpush1.bf16.msra.mxu0 %v840
      %1051 = vmatprep.subr.bf16.mxu0 %v845
      %1052 = vmatpush1.bf16.msra.mxu0 %v844
      %1053 = vmatprep.subr.bf16.mxu0 %v849
      %1054 = vmatpush1.bf16.msra.mxu0 %v848
      %1055 = vmatprep.subr.bf16.mxu0 %v853
      %1056 = vmatpush1.bf16.msra.mxu0 %v852
      %1057 = vmatprep.mubr.bf16.mxu0 %v339
      %1058 = vmatmul.mubr.bf16.gmra.mrb[0].mxu0 %v338
      %v1059 = vpop.f32.mrb[0].mxu0
      %v1060 = vadd.f32 %v1019, %v1059
      %v1061 = vpop.f32.mrb[0].mxu0
      %v1062 = vadd.f32 %v1021, %v1061
      %v1063 = vpop.f32.mrb[0].mxu0
      %v1064 = vpop.f32.mrb[0].mxu0
      %1065 = vdwg.mxu0
      %1066 = vmatprep.subr.bf16.mxu0 %v731
      %1067 = vmatpush1.bf16.msra.mxu0 %v730
      %1068 = vmatprep.subr.bf16.mxu0 %v735
      %1069 = vmatpush1.bf16.msra.mxu0 %v734
      %1070 = vmatprep.subr.bf16.mxu0 %v739
      %1071 = vmatpush1.bf16.msra.mxu0 %v738
      %1072 = vmatprep.subr.bf16.mxu0 %v743
      %1073 = vmatpush1.bf16.msra.mxu0 %v742
      %1074 = vmatprep.subr.bf16.mxu0 %v747
      %1075 = vmatpush1.bf16.msra.mxu0 %v746
      %1076 = vmatprep.subr.bf16.mxu0 %v751
      %1077 = vmatpush1.bf16.msra.mxu0 %v750
      %1078 = vmatprep.subr.bf16.mxu0 %v755
      %1079 = vmatpush1.bf16.msra.mxu0 %v754
      %1080 = vmatprep.subr.bf16.mxu0 %v759
      %1081 = vmatpush1.bf16.msra.mxu0 %v758
      %1082 = vmatprep.subr.bf16.mxu0 %v763
      %1083 = vmatpush1.bf16.msra.mxu0 %v762
      %1084 = vmatprep.subr.bf16.mxu0 %v767
      %1085 = vmatpush1.bf16.msra.mxu0 %v766
      %1086 = vmatprep.subr.bf16.mxu0 %v771
      %1087 = vmatpush1.bf16.msra.mxu0 %v770
      %1088 = vmatprep.subr.bf16.mxu0 %v775
      %1089 = vmatpush1.bf16.msra.mxu0 %v774
      %1090 = vmatprep.subr.bf16.mxu0 %v779
      %1091 = vmatpush1.bf16.msra.mxu0 %v778
      %1092 = vmatprep.subr.bf16.mxu0 %v783
      %1093 = vmatpush1.bf16.msra.mxu0 %v782
      %1094 = vmatprep.subr.bf16.mxu0 %v787
      %1095 = vmatpush1.bf16.msra.mxu0 %v786
      %1096 = vmatprep.subr.bf16.mxu0 %v791
      %1097 = vmatpush1.bf16.msra.mxu0 %v790
      %1098 = vmatprep.mubr.bf16.mxu0 %v337
      %1099 = vmatmul.mubr.bf16.gmra.mrb[0].mxu0 %v330
      %v1100 = vpop.f32.mrb[0].mxu0
      %v1101 = vadd.f32 0.0, %v1100
      %v1102 = vpop.f32.mrb[0].mxu0
      %v1103 = vadd.f32 0.0, %v1102
      %v1104 = vpop.f32.mrb[0].mxu0
      %v1105 = vpop.f32.mrb[0].mxu0
      %1106 = vdwg.mxu0
      %1107 = vmatprep.subr.bf16.mxu0 %v795
      %1108 = vmatpush1.bf16.msra.mxu0 %v794
      %1109 = vmatprep.subr.bf16.mxu0 %v799
      %1110 = vmatpush1.bf16.msra.mxu0 %v798
      %1111 = vmatprep.subr.bf16.mxu0 %v803
      %1112 = vmatpush1.bf16.msra.mxu0 %v802
      %1113 = vmatprep.subr.bf16.mxu0 %v807
      %1114 = vmatpush1.bf16.msra.mxu0 %v806
      %1115 = vmatprep.subr.bf16.mxu0 %v811
      %1116 = vmatpush1.bf16.msra.mxu0 %v810
      %1117 = vmatprep.subr.bf16.mxu0 %v815
      %1118 = vmatpush1.bf16.msra.mxu0 %v814
      %1119 = vmatprep.subr.bf16.mxu0 %v819
      %1120 = vmatpush1.bf16.msra.mxu0 %v818
      %1121 = vmatprep.subr.bf16.mxu0 %v823
      %1122 = vmatpush1.bf16.msra.mxu0 %v822
      %1123 = vmatprep.subr.bf16.mxu0 %v827
      %1124 = vmatpush1.bf16.msra.mxu0 %v826
      %1125 = vmatprep.subr.bf16.mxu0 %v831
      %1126 = vmatpush1.bf16.msra.mxu0 %v830
      %1127 = vmatprep.subr.bf16.mxu0 %v835
      %1128 = vmatpush1.bf16.msra.mxu0 %v834
      %1129 = vmatprep.subr.bf16.mxu0 %v839
      %1130 = vmatpush1.bf16.msra.mxu0 %v838
      %1131 = vmatprep.subr.bf16.mxu0 %v843
      %1132 = vmatpush1.bf16.msra.mxu0 %v842
      %1133 = vmatprep.subr.bf16.mxu0 %v847
      %1134 = vmatpush1.bf16.msra.mxu0 %v846
      %1135 = vmatprep.subr.bf16.mxu0 %v851
      %1136 = vmatpush1.bf16.msra.mxu0 %v850
      %1137 = vmatprep.subr.bf16.mxu0 %v855
      %1138 = vmatpush1.bf16.msra.mxu0 %v854
      %1139 = vmatprep.mubr.bf16.mxu0 %v339
      %1140 = vmatmul.mubr.bf16.gmra.mrb[0].mxu0 %v338
      %v1141 = vpop.f32.mrb[0].mxu0
      %v1142 = vadd.f32 %v1101, %v1141
      %v1143 = vpop.f32.mrb[0].mxu0
      %v1144 = vadd.f32 %v1103, %v1143
      %v1145 = vpop.f32.mrb[0].mxu0
      %v1146 = vpop.f32.mrb[0].mxu0
      %1147 = vdwg.mxu0
      %v1152 = vcombine.low %v1060, %v1062
      %v1153 = vcombine.low %v1142, %v1144
      %v1155 = vunpack.c.l.s4 1983009808
      %v1156 = vunpack.c.0.s8 %v1155
      %v1157 = vlaneseq
      %v1158 = vshrl.u32 %v1157, 7
      %v1159 = vsub.s32 %v1156, %v1158
      %v1160 = vrot.slane %v1152, %v1159
      %v1162 = vunpack.c.l.s4 1983009808
      %v1163 = vunpack.c.0.s8 %v1162
      %v1164 = vlaneseq
      %v1165 = vshrl.u32 %v1164, 7
      %v1166 = vsub.s32 %v1163, %v1165
      %v1167 = vrot.slane %v1153, %v1166
      %v1168 = vcombine.low %v1160, %v1167
      %v1170 = vadd.f32 %v185, %v1168
      %1171 = vst [vmem:[#allocation2] sm:$0xff] %v1170
      %p1172 = scmp.eq.s32.totalorder %s14, 3
      // Predicated region
      $region37: #{custom_cnn_forward.8} parent=31 // pred_check
        %p1173 = pneg %p1172
      $region38: #{custom_cnn_forward.8} parent=31 // pred_check_branch
        %1175 = sbr.rel (%p1173) target = $region40
      $region39: #{custom_cnn_forward.8} parent=31 // pred_region
        %v1176 = vld [vmem:[#allocation2] sm:$0xff]
        %v1177 = vld [vmem:[%s2] sm:$0xf]
        %v1179 = vlaneseq
        %v1180 = vshrl.u32 %v1179, 7
        %v1181 = vsub.s32 0, %v1180
        %v1182 = vrot.slane %v1177, %v1181
        %v1183 = vlaneseq
        %v1184 = vshrl.u32 %v1183, 7
        %v1185 = vsub.s32 1, %v1184
        %v1186 = vrot.slane %v1177, %v1185
        %v1187 = vlaneseq
        %v1188 = vshrl.u32 %v1187, 7
        %v1189 = vsub.s32 2, %v1188
        %v1190 = vrot.slane %v1177, %v1189
        %v1191 = vlaneseq
        %v1192 = vshrl.u32 %v1191, 7
        %v1193 = vsub.s32 3, %v1192
        %v1194 = vrot.slane %v1177, %v1193
        %v1195 = vcombine.low %v1182, %v1186
        %v1196 = vcombine.low %v1190, %v1194
        %v1198 = vunpack.c.l.s4 1983009808
        %v1199 = vunpack.c.0.s8 %v1198
        %v1200 = vlaneseq
        %v1201 = vshrl.u32 %v1200, 7
        %v1202 = vsub.s32 %v1199, %v1201
        %v1203 = vrot.slane %v1195, %v1202
        %v1205 = vunpack.c.l.s4 1983009808
        %v1206 = vunpack.c.0.s8 %v1205
        %v1207 = vlaneseq
        %v1208 = vshrl.u32 %v1207, 7
        %v1209 = vsub.s32 %v1206, %v1208
        %v1210 = vrot.slane %v1196, %v1209
        %v1211 = vcombine.low %v1203, %v1210
        %v1213 = vadd.f32 %v1176, %v1211
        %v1214 = vmax.f32 %v1213, 0.0
        %1215 = vst [vmem:[%s3] sm:$0xff] %v1214
      $region40: #{custom_cnn_forward.8} parent=31 // pred_fallthru
        _
      // Predicated region
      $region41: #{custom_cnn_forward.8} parent=31 // pred_check
        %p1216 = pneg %p100
      $region42: #{custom_cnn_forward.8} parent=31 // pred_check_branch
        %1218 = sbr.rel (%p1216) target = $region44
      $region43: #{custom_cnn_forward.8} parent=31 // pred_region
        _
      $region44: #{custom_cnn_forward.8} parent=31 // pred_fallthru
        _
      // Predicated region
      $region45: #{custom_cnn_forward.8} parent=31 // pred_check
        %p1219 = pneg %p100
      $region46: #{custom_cnn_forward.8} parent=31 // pred_check_branch
        %1221 = sbr.rel (%p1219) target = $region48
      $region47: #{custom_cnn_forward.8} parent=31 // pred_region
        _
      $region48: #{custom_cnn_forward.8} parent=31 // pred_fallthru
        _
    $region32: #{custom_cnn_forward.8} parent=5 // pred_fallthru
      _
    %p1222 = scmp.le.s32.totalorder 2, %s9
    // Predicated region
    $region49: #{custom_cnn_forward.8} parent=5 // pred_check
      %p1223 = pneg %p1222
    $region50: #{custom_cnn_forward.8} parent=5 // pred_check_branch
      %1225 = sbr.rel (%p1223) target = $region52
    $region51: #{custom_cnn_forward.8} parent=5 // pred_region
      %s1226 = ssub.s32 %s9, 2
    $region52: #{custom_cnn_forward.8} parent=5 // pred_fallthru
      _
  $region6: #{custom_cnn_forward.8} parent=0 // loop_footer
    %s13 = sadd.s32 1, %s9
  $region7: #{custom_cnn_forward.8} parent=0 // loop_footer_branch
    %8 = sbr.rel target = $region3
  $region8: #{custom_cnn_forward.8} parent=0 // loop_exit
    _

// kernel: custom_cnn_forward.7
$region0: #{custom_cnn_forward.7}
  #allocation0 [shape = 'u32[]', space=smem, size = 0x4, offset = 0x4, fixed_abs, tag = 'smem constant byte address 0x4 - core index']
  #allocation1 [shape = 'u32[144,128]{1,0:T(1,128)}', space=vmem, size = 0x12000, scoped, tag = 'internal scratch']
  #allocation2 [shape = 'f32[80,128]{1,0:T(8,128)}', space=vmem, size = 0xa000, scoped, tag = 'scratch operand']
  #allocation3 [shape = 'f32[8,128]{1,0:T(8,128)}', space=vmem, size = 0x1000, scoped, tag = 'scratch operand']
  %s0 = inlined_call_operand.vmem [shape: bf16[2,110,64], index: 0, kind: input, shape index: {}]
  %s1 = inlined_call_operand.vmem [shape: bf16[9,64,128], index: 1, kind: input, shape index: {}]
  %s2 = inlined_call_operand.vmem [shape: f32[1,128], index: 2, kind: input, shape index: {}]
  %s3 = inlined_call_operand.vmem [shape: bf16[2,4,4,128], index: 3, kind: output, shape index: {}]
  %s4 = sld [smem:[#allocation0]]
  $region52: #{custom_cnn_forward.7} parent=0
    _
  %s6 = ssub.s32 1, %s4
  %s7 = scalar_select 0, %s6, %s4
  loop: start=0, step=1, limit=4
  $region2: #{custom_cnn_forward.7} parent=0 // loop_pre_header
    _
  $region3: #{custom_cnn_forward.7} parent=0 // loop_header
    %s9 = sphi 0, %s13
    %p10 = scmp.ge.s32.totalorder %s9, 4
    %s19 = sphi 0, %s21
    %s22 = sphi 0, %s19
    %s23 = sphi 0, %s22
    %s39 = sphi 0, %s23
    %s43 = sphi 0, %s43
    %s45 = sphi 0, %s43
    %s46 = sphi 0, %s45
    %s60 = sphi 0, %s46
    %s64 = sphi 0, %s64
    %s66 = sphi 0, %s64
    %s67 = sphi 0, %s66
    %s81 = sphi 0, %s67
    %s87 = sphi 0, %s89
    %s90 = sphi 0, %s87
    %s91 = sphi 0, %s90
    %s107 = sphi 0, %s91
  $region4: #{custom_cnn_forward.7} parent=0 // loop_header_branch
    %12 = sbr.rel (%p10) target = $region8
  $region5: #{custom_cnn_forward.7} parent=0 // loop_body
    %s14 = ssub.s32 %s9, 1
    %s15 = ssub.s32 %s9, 2
    %s16 = sadd.s32 %s9, 1
    %s17 = ssub.s32 %s9, %s16
    %p18 = scmp.eq.s32.totalorder %s17, 0
    %s20 = sadd.s32 %s19, 1
    %s21 = scalar_select %p18, %s19, %s20
    %p24 = pneg %p18
    %p25 = scmp.eq.s32.totalorder %s9, 1
    %p26 = por %p24, %p25
    %p27 = scmp.ne.s32.totalorder %s19, %s22
    %p28 = scmp.eq.s32.totalorder %s9, 0
    %p29 = por %p27, %p28
    %p30 = scmp.ne.s32.totalorder %s19, %s22
    %p31 = scmp.eq.s32.totalorder %s14, 1
    %p32 = por %p30, %p31
    %p33 = scmp.ne.s32.totalorder %s22, %s23
    %p34 = scmp.eq.s32.totalorder %s14, 0
    %p35 = por %p33, %p34
    %p36 = scmp.ne.s32.totalorder %s22, %s23
    %p37 = scmp.eq.s32.totalorder %s15, 1
    %p38 = por %p36, %p37
    %p40 = scmp.ne.s32.totalorder %s23, %s39
    %p41 = scmp.eq.s32.totalorder %s15, 0
    %p42 = por %p40, %p41
    %s44 = sadd.s32 %s43, 1
    %p47 = scmp.eq.s32.totalorder %s9, 1
    %p48 = scmp.ne.s32.totalorder %s43, %s45
    %p49 = scmp.eq.s32.totalorder %s9, 0
    %p50 = por %p48, %p49
    %p51 = scmp.ne.s32.totalorder %s43, %s45
    %p52 = scmp.eq.s32.totalorder %s14, 1
    %p53 = por %p51, %p52
    %p54 = scmp.ne.s32.totalorder %s45, %s46
    %p55 = scmp.eq.s32.totalorder %s14, 0
    %p56 = por %p54, %p55
    %p57 = scmp.ne.s32.totalorder %s45, %s46
    %p58 = scmp.eq.s32.totalorder %s15, 1
    %p59 = por %p57, %p58
    %p61 = scmp.ne.s32.totalorder %s46, %s60
    %p62 = scmp.eq.s32.totalorder %s15, 0
    %p63 = por %p61, %p62
    %s65 = sadd.s32 %s64, 1
    %p68 = scmp.eq.s32.totalorder %s9, 1
    %p69 = scmp.ne.s32.totalorder %s64, %s66
    %p70 = scmp.eq.s32.totalorder %s9, 0
    %p71 = por %p69, %p70
    %p72 = scmp.ne.s32.totalorder %s64, %s66
    %p73 = scmp.eq.s32.totalorder %s14, 1
    %p74 = por %p72, %p73
    %p75 = scmp.ne.s32.totalorder %s66, %s67
    %p76 = scmp.eq.s32.totalorder %s14, 0
    %p77 = por %p75, %p76
    %p78 = scmp.ne.s32.totalorder %s66, %s67
    %p79 = scmp.eq.s32.totalorder %s15, 1
    %p80 = por %p78, %p79
    %p82 = scmp.ne.s32.totalorder %s67, %s81
    %p83 = scmp.eq.s32.totalorder %s15, 0
    %p84 = por %p82, %p83
    %s85 = ssub.s32 %s9, %s16
    %p86 = scmp.eq.s32.totalorder %s85, 0
    %s88 = sadd.s32 %s87, 1
    %s89 = scalar_select %p86, %s87, %s88
    %p92 = pneg %p86
    %p93 = scmp.eq.s32.totalorder %s9, 1
    %p94 = por %p92, %p93
    %p95 = scmp.ne.s32.totalorder %s87, %s90
    %p96 = scmp.eq.s32.totalorder %s9, 0
    %p97 = por %p95, %p96
    %p98 = scmp.ne.s32.totalorder %s87, %s90
    %p99 = scmp.eq.s32.totalorder %s14, 1
    %p100 = por %p98, %p99
    %p101 = scmp.ne.s32.totalorder %s90, %s91
    %p102 = scmp.eq.s32.totalorder %s14, 0
    %p103 = por %p101, %p102
    %p104 = scmp.ne.s32.totalorder %s90, %s91
    %p105 = scmp.eq.s32.totalorder %s15, 1
    %p106 = por %p104, %p105
    %p108 = scmp.ne.s32.totalorder %s91, %s107
    %p109 = scmp.eq.s32.totalorder %s15, 0
    %p110 = por %p108, %p109
    %p111 = scmp.le.s32.totalorder 1, %s9
    %p112 = scmp.lt.s32.totalorder %s9, 3
    %p113 = pnand %p111, %p112
    %p114 = pneg %p113
    // Predicated region
    $region9: #{custom_cnn_forward.7} parent=5 // pred_check
      _
    $region10: #{custom_cnn_forward.7} parent=5 // pred_check_branch
      %116 = sbr.rel (%p113) target = $region12
    $region11: #{custom_cnn_forward.7} parent=5 // pred_region
      %s117 = ssub.s32 %s9, 1
      // Predicated region
      $region13: #{custom_cnn_forward.7} parent=11 // pred_check
        %p118 = pneg %p56
      $region14: #{custom_cnn_forward.7} parent=11 // pred_check_branch
        %120 = sbr.rel (%p118) target = $region16
      $region15: #{custom_cnn_forward.7} parent=11 // pred_region
        _
      $region16: #{custom_cnn_forward.7} parent=11 // pred_fallthru
        _
      // Predicated region
      $region17: #{custom_cnn_forward.7} parent=11 // pred_check
        %p121 = pneg %p77
      $region18: #{custom_cnn_forward.7} parent=11 // pred_check_branch
        %123 = sbr.rel (%p121) target = $region20
      $region19: #{custom_cnn_forward.7} parent=11 // pred_region
        _
      $region20: #{custom_cnn_forward.7} parent=11 // pred_fallthru
        _
    $region12: #{custom_cnn_forward.7} parent=5 // pred_fallthru
      _
    %p124 = scmp.lt.s32.totalorder %s9, 2
    // Predicated region
    $region21: #{custom_cnn_forward.7} parent=5 // pred_check
      %p125 = pneg %p124
    $region22: #{custom_cnn_forward.7} parent=5 // pred_check_branch
      %127 = sbr.rel (%p125) target = $region24
    $region23: #{custom_cnn_forward.7} parent=5 // pred_region
      // Predicated region
      $region25: #{custom_cnn_forward.7} parent=23 // pred_check
        %p128 = pneg %p29
      $region26: #{custom_cnn_forward.7} parent=23 // pred_check_branch
        %130 = sbr.rel (%p128) target = $region28
      $region27: #{custom_cnn_forward.7} parent=23 // pred_region
        %p131 = scmp.lt.s32.totalorder %s9, 1
        %s132 = scalar_select %p131, %s9, 1
        %s133 = smul.addr %s132, 14
        %s134 = smul.addr %s133, 4
        %s135 = scalar_lea.vmem %s0, %s134
      $region28: #{custom_cnn_forward.7} parent=23 // pred_fallthru
        _
    $region24: #{custom_cnn_forward.7} parent=5 // pred_fallthru
      _
    %p136 = scmp.le.s32.totalorder 1, %s9
    %p137 = scmp.lt.s32.totalorder %s9, 3
    %p138 = pnand %p136, %p137
    %p139 = pneg %p138
    // Predicated region
    $region29: #{custom_cnn_forward.7} parent=5 // pred_check
      _
    $region30: #{custom_cnn_forward.7} parent=5 // pred_check_branch
      %141 = sbr.rel (%p138) target = $region32
    $region31: #{custom_cnn_forward.7} parent=5 // pred_region
      %s142 = ssub.s32 %s9, 1
      %p143 = scmp.lt.s32.totalorder %s14, 1
      %s144 = scalar_select %p143, %s14, 1
      %s145 = smul.addr %s144, 14
      %s146 = smul.addr %s145, 4
      %s147 = scalar_lea.vmem %s0, %s146
      %p148 = pneg %p35
      %p149 = pneg %p32
      %p150 = pneg %p56
      %p151 = pneg %p53
      %p152 = pneg %p77
      %p153 = pneg %p74
      %p154 = pneg %p103
      %p155 = pneg %p100
      %p156 = scmp.lt.s32.totalorder %s14, 1
      %s157 = scalar_select %p156, %s14, 1
      %s158 = smul.addr %s157, 4
      %s159 = smul.addr %s158, 2
      %s160 = scalar_lea.vmem %s3, %s159
      %p161 = scmp.lt.s32.totalorder %s14, 1
      %s162 = scalar_select %p161, %s14, 1
      %s163 = smul.addr %s162, 14
      %s164 = smul.addr %s163, 4
      %s165 = scalar_lea.vmem %s0, %s164
      %p166 = scmp.lt.s32.totalorder %s14, 1
      %s167 = scalar_select %p166, %s14, 1
      %s168 = smul.addr %s167, 4
      %s169 = smul.addr %s168, 2
      %s170 = scalar_lea.vmem %s3, %s169
      %v172 = vld [vmem:[%s165] sm:$0xf]
      %v173 = vld [vmem:[%s165 + $0x4] sm:$0xf]
      %v174 = vld [vmem:[%s165 + $0x8] sm:$0xf]
      %v175 = vld [vmem:[%s165 + $0xc] sm:$0xf]
      %v176 = vld [vmem:[%s165 + $0x10] sm:$0xf]
      %v177 = vld [vmem:[%s165 + $0x14] sm:$0xf]
      %v178 = vld [vmem:[%s165 + $0x18] sm:$0xf]
      %v179 = vld [vmem:[%s165 + $0x1c] sm:$0xf]
      %v180 = vld [vmem:[%s165 + $0x20] sm:$0xf]
      %v181 = vld [vmem:[%s165 + $0x24] sm:$0xf]
      %v182 = vld [vmem:[%s1] sm:$0xf]
      %v183 = vld [vmem:[%s1 + $0x4] sm:$0xf]
      %v184 = vld [vmem:[%s1 + $0x8] sm:$0xf]
      %v185 = vld [vmem:[%s1 + $0xc] sm:$0xf]
      %v186 = vld [vmem:[%s1 + $0x10] sm:$0xf]
      %v187 = vld [vmem:[%s1 + $0x14] sm:$0xf]
      %v188 = vld [vmem:[%s1 + $0x18] sm:$0xf]
      %v189 = vld [vmem:[%s1 + $0x1c] sm:$0xf]
      %v200 = vunpack.c.l.b16 %v172
      %v201 = vunpack.c.l.b16 %v173
      %v202 = vunpack.c.l.b16 %v174
      %v203 = vunpack.c.l.b16 %v175
      %v204 = vunpack.c.l.b16 %v176
      %v205 = vunpack.c.l.b16 %v177
      %v206 = vunpack.c.l.b16 %v178
      %v207 = vunpack.c.l.b16 %v179
      %v208 = vunpack.c.l.b16 %v180
      %v209 = vunpack.c.l.b16 %v181
      %v210 = vpack.c.b16 %v201, %v200
      %v211 = vpack.c.b16 %v203, %v202
      %v212 = vpack.c.b16 %v205, %v204
      %v213 = vpack.c.b16 %v207, %v206
      %v214 = vpack.c.b16 %v209, %v208
      %v223 = vunpack.c.l.b16 %v182
      %v224 = vunpack.c.l.b16 %v183
      %v225 = vunpack.c.l.b16 %v184
      %v226 = vunpack.c.l.b16 %v185
      %v227 = vunpack.c.l.b16 %v186
      %v228 = vunpack.c.l.b16 %v187
      %v229 = vunpack.c.l.b16 %v188
      %v230 = vunpack.c.l.b16 %v189
      %v231 = vpack.c.b16 %v224, %v223
      %v232 = vpack.c.b16 %v226, %v225
      %v233 = vpack.c.b16 %v228, %v227
      %v234 = vpack.c.b16 %v230, %v229
      %vm239 = vcmask 523264
      %v241 = vsel %vm239, %v210, 0
      %v244 = vsel %vm239, %v211, 0
      %v247 = vsel %vm239, %v212, 0
      %v250 = vsel %vm239, %v213, 0
      %v253 = vsel %vm239, %v214, 0
      %255 = vmatprep.subr.bf16.mxu0 0
      %256 = vmatpush1.bf16.msra.mxu0 %v231
      %257 = vmatprep.subr.bf16.mxu0 0
      %258 = vmatpush1.bf16.msra.mxu0 %v232
      %259 = vmatprep.subr.bf16.mxu0 0
      %260 = vmatpush1.bf16.msra.mxu0 %v233
      %261 = vmatprep.subr.bf16.mxu0 0
      %262 = vmatpush1.bf16.msra.mxu0 %v234
      %263 = vmatprep.subr.bf16.mxu0 0
      %264 = vmatpush1.bf16.msra.mxu0 0
      %265 = vmatprep.subr.bf16.mxu0 0
      %266 = vmatpush1.bf16.msra.mxu0 0
      %267 = vmatprep.subr.bf16.mxu0 0
      %268 = vmatpush1.bf16.msra.mxu0 0
      %269 = vmatprep.subr.bf16.mxu0 0
      %270 = vmatpush1.bf16.msra.mxu0 0
      %271 = vmatprep.subr.bf16.mxu0 0
      %272 = vmatpush1.bf16.msra.mxu0 0
      %273 = vmatprep.subr.bf16.mxu0 0
      %274 = vmatpush1.bf16.msra.mxu0 0
      %275 = vmatprep.subr.bf16.mxu0 0
      %276 = vmatpush1.bf16.msra.mxu0 0
      %277 = vmatprep.subr.bf16.mxu0 0
      %278 = vmatpush1.bf16.msra.mxu0 0
      %279 = vmatprep.subr.bf16.mxu0 0
      %280 = vmatpush1.bf16.msra.mxu0 0
      %281 = vmatprep.subr.bf16.mxu0 0
      %282 = vmatpush1.bf16.msra.mxu0 0
      %283 = vmatprep.subr.bf16.mxu0 0
      %284 = vmatpush1.bf16.msra.mxu0 0
      %285 = vmatprep.subr.bf16.mxu0 0
      %286 = vmatpush1.bf16.msra.mxu0 0
      %287 = vmatprep.mubr.bf16.mxu0 0
      %288 = vmatmul.mubr.bf16.gmra.mrb[0].mxu0 %v241
      %v289 = vpop.f32.mrb[0].mxu0
      %v290 = vadd.f32 0.0, %v289
      %v291 = vpop.f32.mrb[0].mxu0
      %v292 = vpop.f32.mrb[0].mxu0
      %v293 = vadd.f32 0.0, %v292
      %v294 = vpop.f32.mrb[0].mxu0
      %295 = vmatprep.mubr.bf16.mxu0 0
      %296 = vmatmul.mubr.bf16.gmra.mrb[0].mxu0 %v244
      %v297 = vpop.f32.mrb[0].mxu0
      %v298 = vadd.f32 0.0, %v297
      %v299 = vpop.f32.mrb[0].mxu0
      %v300 = vpop.f32.mrb[0].mxu0
      %v301 = vadd.f32 0.0, %v300
      %v302 = vpop.f32.mrb[0].mxu0
      %303 = vmatprep.mubr.bf16.mxu0 0
      %304 = vmatmul.mubr.bf16.gmra.mrb[0].mxu0 %v247
      %v305 = vpop.f32.mrb[0].mxu0
      %v306 = vadd.f32 0.0, %v305
      %v307 = vpop.f32.mrb[0].mxu0
      %v308 = vpop.f32.mrb[0].mxu0
      %v309 = vadd.f32 0.0, %v308
      %v310 = vpop.f32.mrb[0].mxu0
      %311 = vmatprep.mubr.bf16.mxu0 0
      %312 = vmatmul.mubr.bf16.gmra.mrb[0].mxu0 %v250
      %v313 = vpop.f32.mrb[0].mxu0
      %v314 = vadd.f32 0.0, %v313
      %v315 = vpop.f32.mrb[0].mxu0
      %v316 = vpop.f32.mrb[0].mxu0
      %v317 = vadd.f32 0.0, %v316
      %v318 = vpop.f32.mrb[0].mxu0
      %319 = vmatprep.mubr.bf16.mxu0 0
      %320 = vmatmul.mubr.bf16.gmra.mrb[0].mxu0 %v253
      %v321 = vpop.f32.mrb[0].mxu0
      %v322 = vadd.f32 0.0, %v321
      %v323 = vpop.f32.mrb[0].mxu0
      %v324 = vpop.f32.mrb[0].mxu0
      %v325 = vadd.f32 0.0, %v324
      %v326 = vpop.f32.mrb[0].mxu0
      %327 = vdwg.mxu0
      %328 = vst [vmem:[#allocation2] sm:$0xff] %v290
      %329 = vst [vmem:[#allocation2 + $0x8] sm:$0xff] %v293
      %330 = vst [vmem:[#allocation2 + $0x10] sm:$0xff] %v298
      %331 = vst [vmem:[#allocation2 + $0x18] sm:$0xff] %v301
      %332 = vst [vmem:[#allocation2 + $0x20] sm:$0xff] %v306
      %333 = vst [vmem:[#allocation2 + $0x28] sm:$0xff] %v309
      %334 = vst [vmem:[#allocation2 + $0x30] sm:$0xff] %v314
      %335 = vst [vmem:[#allocation2 + $0x38] sm:$0xff] %v317
      %336 = vst [vmem:[#allocation2 + $0x40] sm:$0xff] %v322
      %337 = vst [vmem:[#allocation2 + $0x48] sm:$0xff] %v325
      %v338 = vld [vmem:[%s165] sm:$0xf]
      %v339 = vld [vmem:[%s165 + $0x4] sm:$0xf]
      %v340 = vld [vmem:[%s165 + $0x8] sm:$0xf]
      %v341 = vld [vmem:[%s165 + $0xc] sm:$0xf]
      %v342 = vld [vmem:[%s165 + $0x10] sm:$0xf]
      %v343 = vld [vmem:[%s165 + $0x14] sm:$0xf]
      %v344 = vld [vmem:[%s165 + $0x18] sm:$0xf]
      %v345 = vld [vmem:[%s165 + $0x1c] sm:$0xf]
      %v346 = vld [vmem:[%s165 + $0x20] sm:$0xf]
      %v347 = vld [vmem:[%s165 + $0x24] sm:$0xf]
      %v348 = vld [vmem:[%s165 + $0x28] sm:$0x1]
      %s349 = scalar_lea.vmem %s1, 32
      %v350 = vld [vmem:[%s349] sm:$0xf]
      %v351 = vld [vmem:[%s349 + $0x4] sm:$0xf]
      %v352 = vld [vmem:[%s349 + $0x8] sm:$0xf]
      %v353 = vld [vmem:[%s349 + $0xc] sm:$0xf]
      %v354 = vld [vmem:[%s349 + $0x10] sm:$0xf]
      %v355 = vld [vmem:[%s349 + $0x14] sm:$0xf]
      %v356 = vld [vmem:[%s349 + $0x18] sm:$0xf]
      %v357 = vld [vmem:[%s349 + $0x1c] sm:$0xf]
      %v369 = vunpack.c.l.b16 %v338
      %v370 = vunpack.c.l.b16 %v339
      %v371 = vunpack.c.l.b16 %v340
      %v372 = vunpack.c.l.b16 %v341
      %v373 = vunpack.c.l.b16 %v342
      %v374 = vunpack.c.l.b16 %v343
      %v375 = vunpack.c.l.b16 %v344
      %v376 = vunpack.c.l.b16 %v345
      %v377 = vunpack.c.l.b16 %v346
      %v378 = vunpack.c.l.b16 %v347
      %v379 = vunpack.c.l.b16 %v348
      %v380 = vpack.c.b16 %v370, %v369
      %v381 = vpack.c.b16 %v372, %v371
      %v382 = vpack.c.b16 %v374, %v373
      %v383 = vpack.c.b16 %v376, %v375
      %v384 = vpack.c.b16 %v378, %v377
      %v385 = vpack.c.b16 %v379, %v379
      %vm386 = vsmask.f32 7424
      %v388 = vshrl.u32 %v380, 16
      %v390 = vshll.u32 %v380, 16
      %v392 = vrot.slane %v390, 1
      %v393 = vor.u32 %v388, %v392
      %v395 = vshll.u32 %v381, 16
      %v397 = vrot.slane %v395, 1
      %v398 = vsel %vm386, %v393, %v397
      %v399 = vshrl.u32 %v381, 16
      %v401 = vor.u32 %v399, %v397
      %v403 = vshll.u32 %v382, 16
      %v405 = vrot.slane %v403, 1
      %v406 = vsel %vm386, %v401, %v405
      %v407 = vshrl.u32 %v382, 16
      %v409 = vor.u32 %v407, %v405
      %v411 = vshll.u32 %v383, 16
      %v413 = vrot.slane %v411, 1
      %v414 = vsel %vm386, %v409, %v413
      %v415 = vshrl.u32 %v383, 16
      %v417 = vor.u32 %v415, %v413
      %v419 = vshll.u32 %v384, 16
      %v421 = vrot.slane %v419, 1
      %v422 = vsel %vm386, %v417, %v421
      %v423 = vshrl.u32 %v384, 16
      %v425 = vor.u32 %v423, %v421
      %v427 = vshll.u32 %v385, 16
      %v429 = vrot.slane %v427, 1
      %v430 = vsel %vm386, %v425, %v429
      %v439 = vunpack.c.l.b16 %v350
      %v440 = vunpack.c.l.b16 %v351
      %v441 = vunpack.c.l.b16 %v352
      %v442 = vunpack.c.l.b16 %v353
      %v443 = vunpack.c.l.b16 %v354
      %v444 = vunpack.c.l.b16 %v355
      %v445 = vunpack.c.l.b16 %v356
      %v446 = vunpack.c.l.b16 %v357
      %v447 = vpack.c.b16 %v440, %v439
      %v448 = vpack.c.b16 %v442, %v441
      %v449 = vpack.c.b16 %v444, %v443
      %v450 = vpack.c.b16 %v446, %v445
      %v456 = vsel %vm239, %v398, 0
      %v459 = vsel %vm239, %v406, 0
      %v462 = vsel %vm239, %v414, 0
      %v465 = vsel %vm239, %v422, 0
      %v468 = vsel %vm239, %v430, 0
      %470 = vmatprep.subr.bf16.mxu0 0
      %471 = vmatpush1.bf16.msra.mxu0 %v447
      %472 = vmatprep.subr.bf16.mxu0 0
      %473 = vmatpush1.bf16.msra.mxu0 %v448
      %474 = vmatprep.subr.bf16.mxu0 0
      %475 = vmatpush1.bf16.msra.mxu0 %v449
      %476 = vmatprep.subr.bf16.mxu0 0
      %477 = vmatpush1.bf16.msra.mxu0 %v450
      %478 = vmatprep.subr.bf16.mxu0 0
      %479 = vmatpush1.bf16.msra.mxu0 0
      %480 = vmatprep.subr.bf16.mxu0 0
      %481 = vmatpush1.bf16.msra.mxu0 0
      %482 = vmatprep.subr.bf16.mxu0 0
      %483 = vmatpush1.bf16.msra.mxu0 0
      %484 = vmatprep.subr.bf16.mxu0 0
      %485 = vmatpush1.bf16.msra.mxu0 0
      %486 = vmatprep.subr.bf16.mxu0 0
      %487 = vmatpush1.bf16.msra.mxu0 0
      %488 = vmatprep.subr.bf16.mxu0 0
      %489 = vmatpush1.bf16.msra.mxu0 0
      %490 = vmatprep.subr.bf16.mxu0 0
      %491 = vmatpush1.bf16.msra.mxu0 0
      %492 = vmatprep.subr.bf16.mxu0 0
      %493 = vmatpush1.bf16.msra.mxu0 0
      %494 = vmatprep.subr.bf16.mxu0 0
      %495 = vmatpush1.bf16.msra.mxu0 0
      %496 = vmatprep.subr.bf16.mxu0 0
      %497 = vmatpush1.bf16.msra.mxu0 0
      %498 = vmatprep.subr.bf16.mxu0 0
      %499 = vmatpush1.bf16.msra.mxu0 0
      %500 = vmatprep.subr.bf16.mxu0 0
      %501 = vmatpush1.bf16.msra.mxu0 0
      %502 = vmatprep.mubr.bf16.mxu0 0
      %503 = vmatmul.mubr.bf16.gmra.mrb[0].mxu0 %v456
      %v504 = vpop.f32.mrb[0].mxu0
      %v505 = vadd.f32 0.0, %v504
      %v506 = vpop.f32.mrb[0].mxu0
      %v507 = vpop.f32.mrb[0].mxu0
      %v508 = vadd.f32 0.0, %v507
      %v509 = vpop.f32.mrb[0].mxu0
      %510 = vmatprep.mubr.bf16.mxu0 0
      %511 = vmatmul.mubr.bf16.gmra.mrb[0].mxu0 %v459
      %v512 = vpop.f32.mrb[0].mxu0
      %v513 = vadd.f32 0.0, %v512
      %v514 = vpop.f32.mrb[0].mxu0
      %v515 = vpop.f32.mrb[0].mxu0
      %v516 = vadd.f32 0.0, %v515
      %v517 = vpop.f32.mrb[0].mxu0
      %518 = vmatprep.mubr.bf16.mxu0 0
      %519 = vmatmul.mubr.bf16.gmra.mrb[0].mxu0 %v462
      %v520 = vpop.f32.mrb[0].mxu0
      %v521 = vadd.f32 0.0, %v520
      %v522 = vpop.f32.mrb[0].mxu0
      %v523 = vpop.f32.mrb[0].mxu0
      %v524 = vadd.f32 0.0, %v523
      %v525 = vpop.f32.mrb[0].mxu0
      %526 = vmatprep.mubr.bf16.mxu0 0
      %527 = vmatmul.mubr.bf16.gmra.mrb[0].mxu0 %v465
      %v528 = vpop.f32.mrb[0].mxu0
      %v529 = vadd.f32 0.0, %v528
      %v530 = vpop.f32.mrb[0].mxu0
      %v531 = vpop.f32.mrb[0].mxu0
      %v532 = vadd.f32 0.0, %v531
      %v533 = vpop.f32.mrb[0].mxu0
      %534 = vmatprep.mubr.bf16.mxu0 0
      %535 = vmatmul.mubr.bf16.gmra.mrb[0].mxu0 %v468
      %v536 = vpop.f32.mrb[0].mxu0
      %v537 = vadd.f32 0.0, %v536
      %v538 = vpop.f32.mrb[0].mxu0
      %v539 = vpop.f32.mrb[0].mxu0
      %v540 = vadd.f32 0.0, %v539
      %v541 = vpop.f32.mrb[0].mxu0
      %542 = vdwg.mxu0
      %v543 = vld [vmem:[#allocation2] sm:$0xff]
      %v544 = vld [vmem:[#allocation2 + $0x8] sm:$0xff]
      %v545 = vld [vmem:[#allocation2 + $0x10] sm:$0xff]
      %v546 = vld [vmem:[#allocation2 + $0x18] sm:$0xff]
      %v547 = vld [vmem:[#allocation2 + $0x20] sm:$0xff]
      %v548 = vld [vmem:[#allocation2 + $0x28] sm:$0xff]
      %v549 = vld [vmem:[#allocation2 + $0x30] sm:$0xff]
      %v550 = vld [vmem:[#allocation2 + $0x38] sm:$0xff]
      %v551 = vld [vmem:[#allocation2 + $0x40] sm:$0xff]
      %v552 = vld [vmem:[#allocation2 + $0x48] sm:$0xff]
      %v553 = vadd.f32 %v543, %v505
      %v554 = vadd.f32 %v544, %v508
      %v555 = vadd.f32 %v545, %v513
      %v556 = vadd.f32 %v546, %v516
      %v557 = vadd.f32 %v547, %v521
      %v558 = vadd.f32 %v548, %v524
      %v559 = vadd.f32 %v549, %v529
      %v560 = vadd.f32 %v550, %v532
      %v561 = vadd.f32 %v551, %v537
      %v562 = vadd.f32 %v552, %v540
      %563 = vst [vmem:[#allocation2] sm:$0xff] %v553
      %564 = vst [vmem:[#allocation2 + $0x8] sm:$0xff] %v554
      %565 = vst [vmem:[#allocation2 + $0x10] sm:$0xff] %v555
      %566 = vst [vmem:[#allocation2 + $0x18] sm:$0xff] %v556
      %567 = vst [vmem:[#allocation2 + $0x20] sm:$0xff] %v557
      %568 = vst [vmem:[#allocation2 + $0x28] sm:$0xff] %v558
      %569 = vst [vmem:[#allocation2 + $0x30] sm:$0xff] %v559
      %570 = vst [vmem:[#allocation2 + $0x38] sm:$0xff] %v560
      %571 = vst [vmem:[#allocation2 + $0x40] sm:$0xff] %v561
      %572 = vst [vmem:[#allocation2 + $0x48] sm:$0xff] %v562
      %v573 = vld [vmem:[%s165] sm:$0xe]
      %v574 = vld [vmem:[%s165 + $0x4] sm:$0xf]
      %v575 = vld [vmem:[%s165 + $0x8] sm:$0xf]
      %v576 = vld [vmem:[%s165 + $0xc] sm:$0xf]
      %v577 = vld [vmem:[%s165 + $0x10] sm:$0xf]
      %v578 = vld [vmem:[%s165 + $0x14] sm:$0xf]
      %v579 = vld [vmem:[%s165 + $0x18] sm:$0xf]
      %v580 = vld [vmem:[%s165 + $0x1c] sm:$0xf]
      %v581 = vld [vmem:[%s165 + $0x20] sm:$0xf]
      %v582 = vld [vmem:[%s165 + $0x24] sm:$0xf]
      %v583 = vld [vmem:[%s165 + $0x28] sm:$0x1]
      %s584 = scalar_lea.vmem %s1, 64
      %v585 = vld [vmem:[%s584] sm:$0xf]
      %v586 = vld [vmem:[%s584 + $0x4] sm:$0xf]
      %v587 = vld [vmem:[%s584 + $0x8] sm:$0xf]
      %v588 = vld [vmem:[%s584 + $0xc] sm:$0xf]
      %v589 = vld [vmem:[%s584 + $0x10] sm:$0xf]
      %v590 = vld [vmem:[%s584 + $0x14] sm:$0xf]
      %v591 = vld [vmem:[%s584 + $0x18] sm:$0xf]
      %v592 = vld [vmem:[%s584 + $0x1c] sm:$0xf]
      %v604 = vunpack.c.l.b16 %v573
      %v605 = vunpack.c.l.b16 %v574
      %v606 = vunpack.c.l.b16 %v575
      %v607 = vunpack.c.l.b16 %v576
      %v608 = vunpack.c.l.b16 %v577
      %v609 = vunpack.c.l.b16 %v578
      %v610 = vunpack.c.l.b16 %v579
      %v611 = vunpack.c.l.b16 %v580
      %v612 = vunpack.c.l.b16 %v581
      %v613 = vunpack.c.l.b16 %v582
      %v614 = vunpack.c.l.b16 %v583
      %v615 = vpack.c.b16 %v605, %v604
      %v616 = vpack.c.b16 %v607, %v606
      %v617 = vpack.c.b16 %v609, %v608
      %v618 = vpack.c.b16 %v611, %v610
      %v619 = vpack.c.b16 %v613, %v612
      %v620 = vpack.c.b16 %v614, %v614
      %vm621 = vcmask 1046528
      %v622 = vrot.slane %v615, 1
      %v623 = vrot.slane %v616, 1
      %v624 = vsel %vm621, %v622, %v623
      %v625 = vrot.slane %v617, 1
      %v626 = vsel %vm621, %v623, %v625
      %v627 = vrot.slane %v618, 1
      %v628 = vsel %vm621, %v625, %v627
      %v629 = vrot.slane %v619, 1
      %v630 = vsel %vm621, %v627, %v629
      %v631 = vrot.slane %v620, 1
      %v632 = vsel %vm621, %v629, %v631
      %v641 = vunpack.c.l.b16 %v585
      %v642 = vunpack.c.l.b16 %v586
      %v643 = vunpack.c.l.b16 %v587
      %v644 = vunpack.c.l.b16 %v588
      %v645 = vunpack.c.l.b16 %v589
      %v646 = vunpack.c.l.b16 %v590
      %v647 = vunpack.c.l.b16 %v591
      %v648 = vunpack.c.l.b16 %v592
      %v649 = vpack.c.b16 %v642, %v641
      %v650 = vpack.c.b16 %v644, %v643
      %v651 = vpack.c.b16 %v646, %v645
      %v652 = vpack.c.b16 %v648, %v647
      %v658 = vsel %vm239, %v624, 0
      %v661 = vsel %vm239, %v626, 0
      %v664 = vsel %vm239, %v628, 0
      %v667 = vsel %vm239, %v630, 0
      %v670 = vsel %vm239, %v632, 0
      %672 = vmatprep.subr.bf16.mxu0 0
      %673 = vmatpush1.bf16.msra.mxu0 %v649
      %674 = vmatprep.subr.bf16.mxu0 0
      %675 = vmatpush1.bf16.msra.mxu0 %v650
      %676 = vmatprep.subr.bf16.mxu0 0
      %677 = vmatpush1.bf16.msra.mxu0 %v651
      %678 = vmatprep.subr.bf16.mxu0 0
      %679 = vmatpush1.bf16.msra.mxu0 %v652
      %680 = vmatprep.subr.bf16.mxu0 0
      %681 = vmatpush1.bf16.msra.mxu0 0
      %682 = vmatprep.subr.bf16.mxu0 0
      %683 = vmatpush1.bf16.msra.mxu0 0
      %684 = vmatprep.subr.bf16.mxu0 0
      %685 = vmatpush1.bf16.msra.mxu0 0
      %686 = vmatprep.subr.bf16.mxu0 0
      %687 = vmatpush1.bf16.msra.mxu0 0
      %688 = vmatprep.subr.bf16.mxu0 0
      %689 = vmatpush1.bf16.msra.mxu0 0
      %690 = vmatprep.subr.bf16.mxu0 0
      %691 = vmatpush1.bf16.msra.mxu0 0
      %692 = vmatprep.subr.bf16.mxu0 0
      %693 = vmatpush1.bf16.msra.mxu0 0
      %694 = vmatprep.subr.bf16.mxu0 0
      %695 = vmatpush1.bf16.msra.mxu0 0
      %696 = vmatprep.subr.bf16.mxu0 0
      %697 = vmatpush1.bf16.msra.mxu0 0
      %698 = vmatprep.subr.bf16.mxu0 0
      %699 = vmatpush1.bf16.msra.mxu0 0
      %700 = vmatprep.subr.bf16.mxu0 0
      %701 = vmatpush1.bf16.msra.mxu0 0
      %702 = vmatprep.subr.bf16.mxu0 0
      %703 = vmatpush1.bf16.msra.mxu0 0
      %704 = vmatprep.mubr.bf16.mxu0 0
      %705 = vmatmul.mubr.bf16.gmra.mrb[0].mxu0 %v658
      %v706 = vpop.f32.mrb[0].mxu0
      %v707 = vadd.f32 0.0, %v706
      %v708 = vpop.f32.mrb[0].mxu0
      %v709 = vpop.f32.mrb[0].mxu0
      %v710 = vadd.f32 0.0, %v709
      %v711 = vpop.f32.mrb[0].mxu0
      %712 = vmatprep.mubr.bf16.mxu0 0
      %713 = vmatmul.mubr.bf16.gmra.mrb[0].mxu0 %v661
      %v714 = vpop.f32.mrb[0].mxu0
      %v715 = vadd.f32 0.0, %v714
      %v716 = vpop.f32.mrb[0].mxu0
      %v717 = vpop.f32.mrb[0].mxu0
      %v718 = vadd.f32 0.0, %v717
      %v719 = vpop.f32.mrb[0].mxu0
      %720 = vmatprep.mubr.bf16.mxu0 0
      %721 = vmatmul.mubr.bf16.gmra.mrb[0].mxu0 %v664
      %v722 = vpop.f32.mrb[0].mxu0
      %v723 = vadd.f32 0.0, %v722
      %v724 = vpop.f32.mrb[0].mxu0
      %v725 = vpop.f32.mrb[0].mxu0
      %v726 = vadd.f32 0.0, %v725
      %v727 = vpop.f32.mrb[0].mxu0
      %728 = vmatprep.mubr.bf16.mxu0 0
      %729 = vmatmul.mubr.bf16.gmra.mrb[0].mxu0 %v667
      %v730 = vpop.f32.mrb[0].mxu0
      %v731 = vadd.f32 0.0, %v730
      %v732 = vpop.f32.mrb[0].mxu0
      %v733 = vpop.f32.mrb[0].mxu0
      %v734 = vadd.f32 0.0, %v733
      %v735 = vpop.f32.mrb[0].mxu0
      %736 = vmatprep.mubr.bf16.mxu0 0
      %737 = vmatmul.mubr.bf16.gmra.mrb[0].mxu0 %v670
      %v738 = vpop.f32.mrb[0].mxu0
      %v739 = vadd.f32 0.0, %v738
      %v740 = vpop.f32.mrb[0].mxu0
      %v741 = vpop.f32.mrb[0].mxu0
      %v742 = vadd.f32 0.0, %v741
      %v743 = vpop.f32.mrb[0].mxu0
      %744 = vdwg.mxu0
      %v745 = vld [vmem:[#allocation2] sm:$0xff]
      %v746 = vld [vmem:[#allocation2 + $0x8] sm:$0xff]
      %v747 = vld [vmem:[#allocation2 + $0x10] sm:$0xff]
      %v748 = vld [vmem:[#allocation2 + $0x18] sm:$0xff]
      %v749 = vld [vmem:[#allocation2 + $0x20] sm:$0xff]
      %v750 = vld [vmem:[#allocation2 + $0x28] sm:$0xff]
      %v751 = vld [vmem:[#allocation2 + $0x30] sm:$0xff]
      %v752 = vld [vmem:[#allocation2 + $0x38] sm:$0xff]
      %v753 = vld [vmem:[#allocation2 + $0x40] sm:$0xff]
      %v754 = vld [vmem:[#allocation2 + $0x48] sm:$0xff]
      %v755 = vadd.f32 %v745, %v707
      %v756 = vadd.f32 %v746, %v710
      %v757 = vadd.f32 %v747, %v715
      %v758 = vadd.f32 %v748, %v718
      %v759 = vadd.f32 %v749, %v723
      %v760 = vadd.f32 %v750, %v726
      %v761 = vadd.f32 %v751, %v731
      %v762 = vadd.f32 %v752, %v734
      %v763 = vadd.f32 %v753, %v739
      %v764 = vadd.f32 %v754, %v742
      %765 = vst [vmem:[#allocation2] sm:$0xff] %v755
      %766 = vst [vmem:[#allocation2 + $0x8] sm:$0xff] %v756
      %767 = vst [vmem:[#allocation2 + $0x10] sm:$0xff] %v757
      %768 = vst [vmem:[#allocation2 + $0x18] sm:$0xff] %v758
      %769 = vst [vmem:[#allocation2 + $0x20] sm:$0xff] %v759
      %770 = vst [vmem:[#allocation2 + $0x28] sm:$0xff] %v760
      %771 = vst [vmem:[#allocation2 + $0x30] sm:$0xff] %v761
      %772 = vst [vmem:[#allocation2 + $0x38] sm:$0xff] %v762
      %773 = vst [vmem:[#allocation2 + $0x40] sm:$0xff] %v763
      %774 = vst [vmem:[#allocation2 + $0x48] sm:$0xff] %v764
      %v775 = vld [vmem:[%s165 + $0x4] sm:$0xe]
      %v776 = vld [vmem:[%s165 + $0x8] sm:$0xf]
      %v777 = vld [vmem:[%s165 + $0xc] sm:$0xf]
      %v778 = vld [vmem:[%s165 + $0x10] sm:$0xf]
      %v779 = vld [vmem:[%s165 + $0x14] sm:$0xf]
      %v780 = vld [vmem:[%s165 + $0x18] sm:$0xf]
      %v781 = vld [vmem:[%s165 + $0x1c] sm:$0xf]
      %v782 = vld [vmem:[%s165 + $0x20] sm:$0xf]
      %v783 = vld [vmem:[%s165 + $0x24] sm:$0xf]
      %v784 = vld [vmem:[%s165 + $0x28] sm:$0xf]
      %v785 = vld [vmem:[%s165 + $0x2c] sm:$0x1]
      %s786 = scalar_lea.vmem %s1, 96
      %v787 = vld [vmem:[%s786] sm:$0xf]
      %v788 = vld [vmem:[%s786 + $0x4] sm:$0xf]
      %v789 = vld [vmem:[%s786 + $0x8] sm:$0xf]
      %v790 = vld [vmem:[%s786 + $0xc] sm:$0xf]
      %v791 = vld [vmem:[%s786 + $0x10] sm:$0xf]
      %v792 = vld [vmem:[%s786 + $0x14] sm:$0xf]
      %v793 = vld [vmem:[%s786 + $0x18] sm:$0xf]
      %v794 = vld [vmem:[%s786 + $0x1c] sm:$0xf]
      %v806 = vunpack.c.l.b16 %v775
      %v807 = vunpack.c.l.b16 %v776
      %v808 = vunpack.c.l.b16 %v777
      %v809 = vunpack.c.l.b16 %v778
      %v810 = vunpack.c.l.b16 %v779
      %v811 = vunpack.c.l.b16 %v780
      %v812 = vunpack.c.l.b16 %v781
      %v813 = vunpack.c.l.b16 %v782
      %v814 = vunpack.c.l.b16 %v783
      %v815 = vunpack.c.l.b16 %v784
      %v816 = vunpack.c.l.b16 %v785
      %v817 = vpack.c.b16 %v807, %v806
      %v818 = vpack.c.b16 %v809, %v808
      %v819 = vpack.c.b16 %v811, %v810
      %v820 = vpack.c.b16 %v813, %v812
      %v821 = vpack.c.b16 %v815, %v814
      %v822 = vpack.c.b16 %v816, %v816
      %v823 = vrot.slane %v817, 1
      %v824 = vrot.slane %v818, 1
      %v825 = vsel %vm621, %v823, %v824
      %v826 = vrot.slane %v819, 1
      %v827 = vsel %vm621, %v824, %v826
      %v828 = vrot.slane %v820, 1
      %v829 = vsel %vm621, %v826, %v828
      %v830 = vrot.slane %v821, 1
      %v831 = vsel %vm621, %v828, %v830
      %v832 = vrot.slane %v822, 1
      %v833 = vsel %vm621, %v830, %v832
      %v842 = vunpack.c.l.b16 %v787
      %v843 = vunpack.c.l.b16 %v788
      %v844 = vunpack.c.l.b16 %v789
      %v845 = vunpack.c.l.b16 %v790
      %v846 = vunpack.c.l.b16 %v791
      %v847 = vunpack.c.l.b16 %v792
      %v848 = vunpack.c.l.b16 %v793
      %v849 = vunpack.c.l.b16 %v794
      %v850 = vpack.c.b16 %v843, %v842
      %v851 = vpack.c.b16 %v845, %v844
      %v852 = vpack.c.b16 %v847, %v846
      %v853 = vpack.c.b16 %v849, %v848
      %v859 = vsel %vm239, %v825, 0
      %v862 = vsel %vm239, %v827, 0
      %v865 = vsel %vm239, %v829, 0
      %v868 = vsel %vm239, %v831, 0
      %v871 = vsel %vm239, %v833, 0
      %873 = vmatprep.subr.bf16.mxu0 0
      %874 = vmatpush1.bf16.msra.mxu0 %v850
      %875 = vmatprep.subr.bf16.mxu0 0
      %876 = vmatpush1.bf16.msra.mxu0 %v851
      %877 = vmatprep.subr.bf16.mxu0 0
      %878 = vmatpush1.bf16.msra.mxu0 %v852
      %879 = vmatprep.subr.bf16.mxu0 0
      %880 = vmatpush1.bf16.msra.mxu0 %v853
      %881 = vmatprep.subr.bf16.mxu0 0
      %882 = vmatpush1.bf16.msra.mxu0 0
      %883 = vmatprep.subr.bf16.mxu0 0
      %884 = vmatpush1.bf16.msra.mxu0 0
      %885 = vmatprep.subr.bf16.mxu0 0
      %886 = vmatpush1.bf16.msra.mxu0 0
      %887 = vmatprep.subr.bf16.mxu0 0
      %888 = vmatpush1.bf16.msra.mxu0 0
      %889 = vmatprep.subr.bf16.mxu0 0
      %890 = vmatpush1.bf16.msra.mxu0 0
      %891 = vmatprep.subr.bf16.mxu0 0
      %892 = vmatpush1.bf16.msra.mxu0 0
      %893 = vmatprep.subr.bf16.mxu0 0
      %894 = vmatpush1.bf16.msra.mxu0 0
      %895 = vmatprep.subr.bf16.mxu0 0
      %896 = vmatpush1.bf16.msra.mxu0 0
      %897 = vmatprep.subr.bf16.mxu0 0
      %898 = vmatpush1.bf16.msra.mxu0 0
      %899 = vmatprep.subr.bf16.mxu0 0
      %900 = vmatpush1.bf16.msra.mxu0 0
      %901 = vmatprep.subr.bf16.mxu0 0
      %902 = vmatpush1.bf16.msra.mxu0 0
      %903 = vmatprep.subr.bf16.mxu0 0
      %904 = vmatpush1.bf16.msra.mxu0 0
      %905 = vmatprep.mubr.bf16.mxu0 0
      %906 = vmatmul.mubr.bf16.gmra.mrb[0].mxu0 %v859
      %v907 = vpop.f32.mrb[0].mxu0
      %v908 = vadd.f32 0.0, %v907
      %v909 = vpop.f32.mrb[0].mxu0
      %v910 = vpop.f32.mrb[0].mxu0
      %v911 = vadd.f32 0.0, %v910
      %v912 = vpop.f32.mrb[0].mxu0
      %913 = vmatprep.mubr.bf16.mxu0 0
      %914 = vmatmul.mubr.bf16.gmra.mrb[0].mxu0 %v862
      %v915 = vpop.f32.mrb[0].mxu0
      %v916 = vadd.f32 0.0, %v915
      %v917 = vpop.f32.mrb[0].mxu0
      %v918 = vpop.f32.mrb[0].mxu0
      %v919 = vadd.f32 0.0, %v918
      %v920 = vpop.f32.mrb[0].mxu0
      %921 = vmatprep.mubr.bf16.mxu0 0
      %922 = vmatmul.mubr.bf16.gmra.mrb[0].mxu0 %v865
      %v923 = vpop.f32.mrb[0].mxu0
      %v924 = vadd.f32 0.0, %v923
      %v925 = vpop.f32.mrb[0].mxu0
      %v926 = vpop.f32.mrb[0].mxu0
      %v927 = vadd.f32 0.0, %v926
      %v928 = vpop.f32.mrb[0].mxu0
      %929 = vmatprep.mubr.bf16.mxu0 0
      %930 = vmatmul.mubr.bf16.gmra.mrb[0].mxu0 %v868
      %v931 = vpop.f32.mrb[0].mxu0
      %v932 = vadd.f32 0.0, %v931
      %v933 = vpop.f32.mrb[0].mxu0
      %v934 = vpop.f32.mrb[0].mxu0
      %v935 = vadd.f32 0.0, %v934
      %v936 = vpop.f32.mrb[0].mxu0
      %937 = vmatprep.mubr.bf16.mxu0 0
      %938 = vmatmul.mubr.bf16.gmra.mrb[0].mxu0 %v871
      %v939 = vpop.f32.mrb[0].mxu0
      %v940 = vadd.f32 0.0, %v939
      %v941 = vpop.f32.mrb[0].mxu0
      %v942 = vpop.f32.mrb[0].mxu0
      %v943 = vadd.f32 0.0, %v942
      %v944 = vpop.f32.mrb[0].mxu0
      %945 = vdwg.mxu0
      %v946 = vld [vmem:[#allocation2] sm:$0xff]
      %v947 = vld [vmem:[#allocation2 + $0x8] sm:$0xff]
      %v948 = vld [vmem:[#allocation2 + $0x10] sm:$0xff]
      %v949 = vld [vmem:[#allocation2 + $0x18] sm:$0xff]
      %v950 = vld [vmem:[#allocation2 + $0x20] sm:$0xff]
      %v951 = vld [vmem:[#allocation2 + $0x28] sm:$0xff]
      %v952 = vld [vmem:[#allocation2 + $0x30] sm:$0xff]
      %v953 = vld [vmem:[#allocation2 + $0x38] sm:$0xff]
      %v954 = vld [vmem:[#allocation2 + $0x40] sm:$0xff]
      %v955 = vld [vmem:[#allocation2 + $0x48] sm:$0xff]
      %v956 = vadd.f32 %v946, %v908
      %v957 = vadd.f32 %v947, %v911
      %v958 = vadd.f32 %v948, %v916
      %v959 = vadd.f32 %v949, %v919
      %v960 = vadd.f32 %v950, %v924
      %v961 = vadd.f32 %v951, %v927
      %v962 = vadd.f32 %v952, %v932
      %v963 = vadd.f32 %v953, %v935
      %v964 = vadd.f32 %v954, %v940
      %v965 = vadd.f32 %v955, %v943
      %966 = vst [vmem:[#allocation2] sm:$0xff] %v956
      %967 = vst [vmem:[#allocation2 + $0x8] sm:$0xff] %v957
      %968 = vst [vmem:[#allocation2 + $0x10] sm:$0xff] %v958
      %969 = vst [vmem:[#allocation2 + $0x18] sm:$0xff] %v959
      %970 = vst [vmem:[#allocation2 + $0x20] sm:$0xff] %v960
      %971 = vst [vmem:[#allocation2 + $0x28] sm:$0xff] %v961
      %972 = vst [vmem:[#allocation2 + $0x30] sm:$0xff] %v962
      %973 = vst [vmem:[#allocation2 + $0x38] sm:$0xff] %v963
      %974 = vst [vmem:[#allocation2 + $0x40] sm:$0xff] %v964
      %975 = vst [vmem:[#allocation2 + $0x48] sm:$0xff] %v965
      %v976 = vld [vmem:[%s165 + $0x4] sm:$0xe]
      %v977 = vld [vmem:[%s165 + $0x8] sm:$0xf]
      %v978 = vld [vmem:[%s165 + $0xc] sm:$0xf]
      %v979 = vld [vmem:[%s165 + $0x10] sm:$0xf]
      %v980 = vld [vmem:[%s165 + $0x14] sm:$0xf]
      %v981 = vld [vmem:[%s165 + $0x18] sm:$0xf]
      %v982 = vld [vmem:[%s165 + $0x1c] sm:$0xf]
      %v983 = vld [vmem:[%s165 + $0x20] sm:$0xf]
      %v984 = vld [vmem:[%s165 + $0x24] sm:$0xf]
      %v985 = vld [vmem:[%s165 + $0x28] sm:$0xf]
      %v986 = vld [vmem:[%s165 + $0x2c] sm:$0x3]
      %s987 = scalar_lea.vmem %s1, 128
      %v988 = vld [vmem:[%s987] sm:$0xf]
      %v989 = vld [vmem:[%s987 + $0x4] sm:$0xf]
      %v990 = vld [vmem:[%s987 + $0x8] sm:$0xf]
      %v991 = vld [vmem:[%s987 + $0xc] sm:$0xf]
      %v992 = vld [vmem:[%s987 + $0x10] sm:$0xf]
      %v993 = vld [vmem:[%s987 + $0x14] sm:$0xf]
      %v994 = vld [vmem:[%s987 + $0x18] sm:$0xf]
      %v995 = vld [vmem:[%s987 + $0x1c] sm:$0xf]
      %v1007 = vunpack.c.l.b16 %v976
      %v1008 = vunpack.c.l.b16 %v977
      %v1009 = vunpack.c.l.b16 %v978
      %v1010 = vunpack.c.l.b16 %v979
      %v1011 = vunpack.c.l.b16 %v980
      %v1012 = vunpack.c.l.b16 %v981
      %v1013 = vunpack.c.l.b16 %v982
      %v1014 = vunpack.c.l.b16 %v983
      %v1015 = vunpack.c.l.b16 %v984
      %v1016 = vunpack.c.l.b16 %v985
      %v1017 = vunpack.c.l.b16 %v986
      %v1018 = vpack.c.b16 %v1008, %v1007
      %v1019 = vpack.c.b16 %v1010, %v1009
      %v1020 = vpack.c.b16 %v1012, %v1011
      %v1021 = vpack.c.b16 %v1014, %v1013
      %v1022 = vpack.c.b16 %v1016, %v1015
      %v1023 = vpack.c.b16 %v1017, %v1017
      %vm1024 = vsmask.f32 6400
      %v1026 = vshrl.u32 %v1018, 16
      %v1028 = vrot.slane %v1026, 1
      %v1029 = vshll.u32 %v1018, 16
      %v1031 = vrot.slane %v1029, 2
      %v1032 = vor.u32 %v1028, %v1031
      %v1034 = vshrl.u32 %v1019, 16
      %v1036 = vrot.slane %v1034, 1
      %v1037 = vshll.u32 %v1019, 16
      %v1039 = vrot.slane %v1037, 2
      %v1040 = vor.u32 %v1036, %v1039
      %v1041 = vsel %vm1024, %v1032, %v1040
      %v1043 = vshrl.u32 %v1020, 16
      %v1045 = vrot.slane %v1043, 1
      %v1046 = vshll.u32 %v1020, 16
      %v1048 = vrot.slane %v1046, 2
      %v1049 = vor.u32 %v1045, %v1048
      %v1050 = vsel %vm1024, %v1040, %v1049
      %v1052 = vshrl.u32 %v1021, 16
      %v1054 = vrot.slane %v1052, 1
      %v1055 = vshll.u32 %v1021, 16
      %v1057 = vrot.slane %v1055, 2
      %v1058 = vor.u32 %v1054, %v1057
      %v1059 = vsel %vm1024, %v1049, %v1058
      %v1061 = vshrl.u32 %v1022, 16
      %v1063 = vrot.slane %v1061, 1
      %v1064 = vshll.u32 %v1022, 16
      %v1066 = vrot.slane %v1064, 2
      %v1067 = vor.u32 %v1063, %v1066
      %v1068 = vsel %vm1024, %v1058, %v1067
      %v1070 = vshrl.u32 %v1023, 16
      %v1072 = vrot.slane %v1070, 1
      %v1073 = vshll.u32 %v1023, 16
      %v1075 = vrot.slane %v1073, 2
      %v1076 = vor.u32 %v1072, %v1075
      %v1077 = vsel %vm1024, %v1067, %v1076
      %v1086 = vunpack.c.l.b16 %v988
      %v1087 = vunpack.c.l.b16 %v989
      %v1088 = vunpack.c.l.b16 %v990
      %v1089 = vunpack.c.l.b16 %v991
      %v1090 = vunpack.c.l.b16 %v992
      %v1091 = vunpack.c.l.b16 %v993
      %v1092 = vunpack.c.l.b16 %v994
      %v1093 = vunpack.c.l.b16 %v995
      %v1094 = vpack.c.b16 %v1087, %v1086
      %v1095 = vpack.c.b16 %v1089, %v1088
      %v1096 = vpack.c.b16 %v1091, %v1090
      %v1097 = vpack.c.b16 %v1093, %v1092
      %v1103 = vsel %vm239, %v1041, 0
      %v1106 = vsel %vm239, %v1050, 0
      %v1109 = vsel %vm239, %v1059, 0
      %v1112 = vsel %vm239, %v1068, 0
      %v1115 = vsel %vm239, %v1077, 0
      %1117 = vmatprep.subr.bf16.mxu0 0
      %1118 = vmatpush1.bf16.msra.mxu0 %v1094
      %1119 = vmatprep.subr.bf16.mxu0 0
      %1120 = vmatpush1.bf16.msra.mxu0 %v1095
      %1121 = vmatprep.subr.bf16.mxu0 0
      %1122 = vmatpush1.bf16.msra.mxu0 %v1096
      %1123 = vmatprep.subr.bf16.mxu0 0
      %1124 = vmatpush1.bf16.msra.mxu0 %v1097
      %1125 = vmatprep.subr.bf16.mxu0 0
      %1126 = vmatpush1.bf16.msra.mxu0 0
      %1127 = vmatprep.subr.bf16.mxu0 0
      %1128 = vmatpush1.bf16.msra.mxu0 0
      %1129 = vmatprep.subr.bf16.mxu0 0
      %1130 = vmatpush1.bf16.msra.mxu0 0
      %1131 = vmatprep.subr.bf16.mxu0 0
      %1132 = vmatpush1.bf16.msra.mxu0 0
      %1133 = vmatprep.subr.bf16.mxu0 0
      %1134 = vmatpush1.bf16.msra.mxu0 0
      %1135 = vmatprep.subr.bf16.mxu0 0
      %1136 = vmatpush1.bf16.msra.mxu0 0
      %1137 = vmatprep.subr.bf16.mxu0 0
      %1138 = vmatpush1.bf16.msra.mxu0 0
      %1139 = vmatprep.subr.bf16.mxu0 0
      %1140 = vmatpush1.bf16.msra.mxu0 0
      %1141 = vmatprep.subr.bf16.mxu0 0
      %1142 = vmatpush1.bf16.msra.mxu0 0
      %1143 = vmatprep.subr.bf16.mxu0 0
      %1144 = vmatpush1.bf16.msra.mxu0 0
      %1145 = vmatprep.subr.bf16.mxu0 0
      %1146 = vmatpush1.bf16.msra.mxu0 0
      %1147 = vmatprep.subr.bf16.mxu0 0
      %1148 = vmatpush1.bf16.msra.mxu0 0
      %1149 = vmatprep.mubr.bf16.mxu0 0
      %1150 = vmatmul.mubr.bf16.gmra.mrb[0].mxu0 %v1103
      %v1151 = vpop.f32.mrb[0].mxu0
      %v1152 = vadd.f32 0.0, %v1151
      %v1153 = vpop.f32.mrb[0].mxu0
      %v1154 = vpop.f32.mrb[0].mxu0
      %v1155 = vadd.f32 0.0, %v1154
      %v1156 = vpop.f32.mrb[0].mxu0
      %1157 = vmatprep.mubr.bf16.mxu0 0
      %1158 = vmatmul.mubr.bf16.gmra.mrb[0].mxu0 %v1106
      %v1159 = vpop.f32.mrb[0].mxu0
      %v1160 = vadd.f32 0.0, %v1159
      %v1161 = vpop.f32.mrb[0].mxu0
      %v1162 = vpop.f32.mrb[0].mxu0
      %v1163 = vadd.f32 0.0, %v1162
      %v1164 = vpop.f32.mrb[0].mxu0
      %1165 = vmatprep.mubr.bf16.mxu0 0
      %1166 = vmatmul.mubr.bf16.gmra.mrb[0].mxu0 %v1109
      %v1167 = vpop.f32.mrb[0].mxu0
      %v1168 = vadd.f32 0.0, %v1167
      %v1169 = vpop.f32.mrb[0].mxu0
      %v1170 = vpop.f32.mrb[0].mxu0
      %v1171 = vadd.f32 0.0, %v1170
      %v1172 = vpop.f32.mrb[0].mxu0
      %1173 = vmatprep.mubr.bf16.mxu0 0
      %1174 = vmatmul.mubr.bf16.gmra.mrb[0].mxu0 %v1112
      %v1175 = vpop.f32.mrb[0].mxu0
      %v1176 = vadd.f32 0.0, %v1175
      %v1177 = vpop.f32.mrb[0].mxu0
      %v1178 = vpop.f32.mrb[0].mxu0
      %v1179 = vadd.f32 0.0, %v1178
      %v1180 = vpop.f32.mrb[0].mxu0
      %1181 = vmatprep.mubr.bf16.mxu0 0
      %1182 = vmatmul.mubr.bf16.gmra.mrb[0].mxu0 %v1115
      %v1183 = vpop.f32.mrb[0].mxu0
      %v1184 = vadd.f32 0.0, %v1183
      %v1185 = vpop.f32.mrb[0].mxu0
      %v1186 = vpop.f32.mrb[0].mxu0
      %v1187 = vadd.f32 0.0, %v1186
      %v1188 = vpop.f32.mrb[0].mxu0
      %1189 = vdwg.mxu0
      %v1190 = vld [vmem:[#allocation2] sm:$0xff]
      %v1191 = vld [vmem:[#allocation2 + $0x8] sm:$0xff]
      %v1192 = vld [vmem:[#allocation2 + $0x10] sm:$0xff]
      %v1193 = vld [vmem:[#allocation2 + $0x18] sm:$0xff]
      %v1194 = vld [vmem:[#allocation2 + $0x20] sm:$0xff]
      %v1195 = vld [vmem:[#allocation2 + $0x28] sm:$0xff]
      %v1196 = vld [vmem:[#allocation2 + $0x30] sm:$0xff]
      %v1197 = vld [vmem:[#allocation2 + $0x38] sm:$0xff]
      %v1198 = vld [vmem:[#allocation2 + $0x40] sm:$0xff]
      %v1199 = vld [vmem:[#allocation2 + $0x48] sm:$0xff]
      %v1200 = vadd.f32 %v1190, %v1152
      %v1201 = vadd.f32 %v1191, %v1155
      %v1202 = vadd.f32 %v1192, %v1160
      %v1203 = vadd.f32 %v1193, %v1163
      %v1204 = vadd.f32 %v1194, %v1168
      %v1205 = vadd.f32 %v1195, %v1171
      %v1206 = vadd.f32 %v1196, %v1176
      %v1207 = vadd.f32 %v1197, %v1179
      %v1208 = vadd.f32 %v1198, %v1184
      %v1209 = vadd.f32 %v1199, %v1187
      %1210 = vst [vmem:[#allocation2] sm:$0xff] %v1200
      %1211 = vst [vmem:[#allocation2 + $0x8] sm:$0xff] %v1201
      %1212 = vst [vmem:[#allocation2 + $0x10] sm:$0xff] %v1202
      %1213 = vst [vmem:[#allocation2 + $0x18] sm:$0xff] %v1203
      %1214 = vst [vmem:[#allocation2 + $0x20] sm:$0xff] %v1204
      %1215 = vst [vmem:[#allocation2 + $0x28] sm:$0xff] %v1205
      %1216 = vst [vmem:[#allocation2 + $0x30] sm:$0xff] %v1206
      %1217 = vst [vmem:[#allocation2 + $0x38] sm:$0xff] %v1207
      %1218 = vst [vmem:[#allocation2 + $0x40] sm:$0xff] %v1208
      %1219 = vst [vmem:[#allocation2 + $0x48] sm:$0xff] %v1209
      %v1220 = vld [vmem:[%s165 + $0x4] sm:$0xc]
      %v1221 = vld [vmem:[%s165 + $0x8] sm:$0xf]
      %v1222 = vld [vmem:[%s165 + $0xc] sm:$0xf]
      %v1223 = vld [vmem:[%s165 + $0x10] sm:$0xf]
      %v1224 = vld [vmem:[%s165 + $0x14] sm:$0xf]
      %v1225 = vld [vmem:[%s165 + $0x18] sm:$0xf]
      %v1226 = vld [vmem:[%s165 + $0x1c] sm:$0xf]
      %v1227 = vld [vmem:[%s165 + $0x20] sm:$0xf]
      %v1228 = vld [vmem:[%s165 + $0x24] sm:$0xf]
      %v1229 = vld [vmem:[%s165 + $0x28] sm:$0xf]
      %v1230 = vld [vmem:[%s165 + $0x2c] sm:$0x3]
      %s1231 = scalar_lea.vmem %s1, 160
      %v1232 = vld [vmem:[%s1231] sm:$0xf]
      %v1233 = vld [vmem:[%s1231 + $0x4] sm:$0xf]
      %v1234 = vld [vmem:[%s1231 + $0x8] sm:$0xf]
      %v1235 = vld [vmem:[%s1231 + $0xc] sm:$0xf]
      %v1236 = vld [vmem:[%s1231 + $0x10] sm:$0xf]
      %v1237 = vld [vmem:[%s1231 + $0x14] sm:$0xf]
      %v1238 = vld [vmem:[%s1231 + $0x18] sm:$0xf]
      %v1239 = vld [vmem:[%s1231 + $0x1c] sm:$0xf]
      %v1251 = vunpack.c.l.b16 %v1220
      %v1252 = vunpack.c.l.b16 %v1221
      %v1253 = vunpack.c.l.b16 %v1222
      %v1254 = vunpack.c.l.b16 %v1223
      %v1255 = vunpack.c.l.b16 %v1224
      %v1256 = vunpack.c.l.b16 %v1225
      %v1257 = vunpack.c.l.b16 %v1226
      %v1258 = vunpack.c.l.b16 %v1227
      %v1259 = vunpack.c.l.b16 %v1228
      %v1260 = vunpack.c.l.b16 %v1229
      %v1261 = vunpack.c.l.b16 %v1230
      %v1262 = vpack.c.b16 %v1252, %v1251
      %v1263 = vpack.c.b16 %v1254, %v1253
      %v1264 = vpack.c.b16 %v1256, %v1255
      %v1265 = vpack.c.b16 %v1258, %v1257
      %v1266 = vpack.c.b16 %v1260, %v1259
      %v1267 = vpack.c.b16 %v1261, %v1261
      %vm1268 = vcmask 1045504
      %v1269 = vrot.slane %v1262, 2
      %v1270 = vrot.slane %v1263, 2
      %v1271 = vsel %vm1268, %v1269, %v1270
      %v1272 = vrot.slane %v1264, 2
      %v1273 = vsel %vm1268, %v1270, %v1272
      %v1274 = vrot.slane %v1265, 2
      %v1275 = vsel %vm1268, %v1272, %v1274
      %v1276 = vrot.slane %v1266, 2
      %v1277 = vsel %vm1268, %v1274, %v1276
      %v1278 = vrot.slane %v1267, 2
      %v1279 = vsel %vm1268, %v1276, %v1278
      %v1288 = vunpack.c.l.b16 %v1232
      %v1289 = vunpack.c.l.b16 %v1233
      %v1290 = vunpack.c.l.b16 %v1234
      %v1291 = vunpack.c.l.b16 %v1235
      %v1292 = vunpack.c.l.b16 %v1236
      %v1293 = vunpack.c.l.b16 %v1237
      %v1294 = vunpack.c.l.b16 %v1238
      %v1295 = vunpack.c.l.b16 %v1239
      %v1296 = vpack.c.b16 %v1289, %v1288
      %v1297 = vpack.c.b16 %v1291, %v1290
      %v1298 = vpack.c.b16 %v1293, %v1292
      %v1299 = vpack.c.b16 %v1295, %v1294
      %v1305 = vsel %vm239, %v1271, 0
      %v1308 = vsel %vm239, %v1273, 0
      %v1311 = vsel %vm239, %v1275, 0
      %v1314 = vsel %vm239, %v1277, 0
      %v1317 = vsel %vm239, %v1279, 0
      %1319 = vmatprep.subr.bf16.mxu0 0
      %1320 = vmatpush1.bf16.msra.mxu0 %v1296
      %1321 = vmatprep.subr.bf16.mxu0 0
      %1322 = vmatpush1.bf16.msra.mxu0 %v1297
      %1323 = vmatprep.subr.bf16.mxu0 0
      %1324 = vmatpush1.bf16.msra.mxu0 %v1298
      %1325 = vmatprep.subr.bf16.mxu0 0
      %1326 = vmatpush1.bf16.msra.mxu0 %v1299
      %1327 = vmatprep.subr.bf16.mxu0 0
      %1328 = vmatpush1.bf16.msra.mxu0 0
      %1329 = vmatprep.subr.bf16.mxu0 0
      %1330 = vmatpush1.bf16.msra.mxu0 0
      %1331 = vmatprep.subr.bf16.mxu0 0
      %1332 = vmatpush1.bf16.msra.mxu0 0
      %1333 = vmatprep.subr.bf16.mxu0 0
      %1334 = vmatpush1.bf16.msra.mxu0 0
      %1335 = vmatprep.subr.bf16.mxu0 0
      %1336 = vmatpush1.bf16.msra.mxu0 0
      %1337 = vmatprep.subr.bf16.mxu0 0
      %1338 = vmatpush1.bf16.msra.mxu0 0
      %1339 = vmatprep.subr.bf16.mxu0 0
      %1340 = vmatpush1.bf16.msra.mxu0 0
      %1341 = vmatprep.subr.bf16.mxu0 0
      %1342 = vmatpush1.bf16.msra.mxu0 0
      %1343 = vmatprep.subr.bf16.mxu0 0
      %1344 = vmatpush1.bf16.msra.mxu0 0
      %1345 = vmatprep.subr.bf16.mxu0 0
      %1346 = vmatpush1.bf16.msra.mxu0 0
      %1347 = vmatprep.subr.bf16.mxu0 0
      %1348 = vmatpush1.bf16.msra.mxu0 0
      %1349 = vmatprep.subr.bf16.mxu0 0
      %1350 = vmatpush1.bf16.msra.mxu0 0
      %1351 = vmatprep.mubr.bf16.mxu0 0
      %1352 = vmatmul.mubr.bf16.gmra.mrb[0].mxu0 %v1305
      %v1353 = vpop.f32.mrb[0].mxu0
      %v1354 = vadd.f32 0.0, %v1353
      %v1355 = vpop.f32.mrb[0].mxu0
      %v1356 = vpop.f32.mrb[0].mxu0
      %v1357 = vadd.f32 0.0, %v1356
      %v1358 = vpop.f32.mrb[0].mxu0
      %1359 = vmatprep.mubr.bf16.mxu0 0
      %1360 = vmatmul.mubr.bf16.gmra.mrb[0].mxu0 %v1308
      %v1361 = vpop.f32.mrb[0].mxu0
      %v1362 = vadd.f32 0.0, %v1361
      %v1363 = vpop.f32.mrb[0].mxu0
      %v1364 = vpop.f32.mrb[0].mxu0
      %v1365 = vadd.f32 0.0, %v1364
      %v1366 = vpop.f32.mrb[0].mxu0
      %1367 = vmatprep.mubr.bf16.mxu0 0
      %1368 = vmatmul.mubr.bf16.gmra.mrb[0].mxu0 %v1311
      %v1369 = vpop.f32.mrb[0].mxu0
      %v1370 = vadd.f32 0.0, %v1369
      %v1371 = vpop.f32.mrb[0].mxu0
      %v1372 = vpop.f32.mrb[0].mxu0
      %v1373 = vadd.f32 0.0, %v1372
      %v1374 = vpop.f32.mrb[0].mxu0
      %1375 = vmatprep.mubr.bf16.mxu0 0
      %1376 = vmatmul.mubr.bf16.gmra.mrb[0].mxu0 %v1314
      %v1377 = vpop.f32.mrb[0].mxu0
      %v1378 = vadd.f32 0.0, %v1377
      %v1379 = vpop.f32.mrb[0].mxu0
      %v1380 = vpop.f32.mrb[0].mxu0
      %v1381 = vadd.f32 0.0, %v1380
      %v1382 = vpop.f32.mrb[0].mxu0
      %1383 = vmatprep.mubr.bf16.mxu0 0
      %1384 = vmatmul.mubr.bf16.gmra.mrb[0].mxu0 %v1317
      %v1385 = vpop.f32.mrb[0].mxu0
      %v1386 = vadd.f32 0.0, %v1385
      %v1387 = vpop.f32.mrb[0].mxu0
      %v1388 = vpop.f32.mrb[0].mxu0
      %v1389 = vadd.f32 0.0, %v1388
      %v1390 = vpop.f32.mrb[0].mxu0
      %1391 = vdwg.mxu0
      %v1392 = vld [vmem:[#allocation2] sm:$0xff]
      %v1393 = vld [vmem:[#allocation2 + $0x8] sm:$0xff]
      %v1394 = vld [vmem:[#allocation2 + $0x10] sm:$0xff]
      %v1395 = vld [vmem:[#allocation2 + $0x18] sm:$0xff]
      %v1396 = vld [vmem:[#allocation2 + $0x20] sm:$0xff]
      %v1397 = vld [vmem:[#allocation2 + $0x28] sm:$0xff]
      %v1398 = vld [vmem:[#allocation2 + $0x30] sm:$0xff]
      %v1399 = vld [vmem:[#allocation2 + $0x38] sm:$0xff]
      %v1400 = vld [vmem:[#allocation2 + $0x40] sm:$0xff]
      %v1401 = vld [vmem:[#allocation2 + $0x48] sm:$0xff]
      %v1402 = vadd.f32 %v1392, %v1354
      %v1403 = vadd.f32 %v1393, %v1357
      %v1404 = vadd.f32 %v1394, %v1362
      %v1405 = vadd.f32 %v1395, %v1365
      %v1406 = vadd.f32 %v1396, %v1370
      %v1407 = vadd.f32 %v1397, %v1373
      %v1408 = vadd.f32 %v1398, %v1378
      %v1409 = vadd.f32 %v1399, %v1381
      %v1410 = vadd.f32 %v1400, %v1386
      %v1411 = vadd.f32 %v1401, %v1389
      %1412 = vst [vmem:[#allocation2] sm:$0xff] %v1402
      %1413 = vst [vmem:[#allocation2 + $0x8] sm:$0xff] %v1403
      %1414 = vst [vmem:[#allocation2 + $0x10] sm:$0xff] %v1404
      %1415 = vst [vmem:[#allocation2 + $0x18] sm:$0xff] %v1405
      %1416 = vst [vmem:[#allocation2 + $0x20] sm:$0xff] %v1406
      %1417 = vst [vmem:[#allocation2 + $0x28] sm:$0xff] %v1407
      %1418 = vst [vmem:[#allocation2 + $0x30] sm:$0xff] %v1408
      %1419 = vst [vmem:[#allocation2 + $0x38] sm:$0xff] %v1409
      %1420 = vst [vmem:[#allocation2 + $0x40] sm:$0xff] %v1410
      %1421 = vst [vmem:[#allocation2 + $0x48] sm:$0xff] %v1411
      %v1422 = vld [vmem:[%s165 + $0x8] sm:$0xc]
      %v1423 = vld [vmem:[%s165 + $0xc] sm:$0xf]
      %v1424 = vld [vmem:[%s165 + $0x10] sm:$0xf]
      %v1425 = vld [vmem:[%s165 + $0x14] sm:$0xf]
      %v1426 = vld [vmem:[%s165 + $0x18] sm:$0xf]
      %v1427 = vld [vmem:[%s165 + $0x1c] sm:$0xf]
      %v1428 = vld [vmem:[%s165 + $0x20] sm:$0xf]
      %v1429 = vld [vmem:[%s165 + $0x24] sm:$0xf]
      %v1430 = vld [vmem:[%s165 + $0x28] sm:$0xf]
      %v1431 = vld [vmem:[%s165 + $0x2c] sm:$0xf]
      %v1432 = vld [vmem:[%s165 + $0x30] sm:$0x3]
      %s1433 = scalar_lea.vmem %s1, 192
      %v1434 = vld [vmem:[%s1433] sm:$0xf]
      %v1435 = vld [vmem:[%s1433 + $0x4] sm:$0xf]
      %v1436 = vld [vmem:[%s1433 + $0x8] sm:$0xf]
      %v1437 = vld [vmem:[%s1433 + $0xc] sm:$0xf]
      %v1438 = vld [vmem:[%s1433 + $0x10] sm:$0xf]
      %v1439 = vld [vmem:[%s1433 + $0x14] sm:$0xf]
      %v1440 = vld [vmem:[%s1433 + $0x18] sm:$0xf]
      %v1441 = vld [vmem:[%s1433 + $0x1c] sm:$0xf]
      %v1453 = vunpack.c.l.b16 %v1422
      %v1454 = vunpack.c.l.b16 %v1423
      %v1455 = vunpack.c.l.b16 %v1424
      %v1456 = vunpack.c.l.b16 %v1425
      %v1457 = vunpack.c.l.b16 %v1426
      %v1458 = vunpack.c.l.b16 %v1427
      %v1459 = vunpack.c.l.b16 %v1428
      %v1460 = vunpack.c.l.b16 %v1429
      %v1461 = vunpack.c.l.b16 %v1430
      %v1462 = vunpack.c.l.b16 %v1431
      %v1463 = vunpack.c.l.b16 %v1432
      %v1464 = vpack.c.b16 %v1454, %v1453
      %v1465 = vpack.c.b16 %v1456, %v1455
      %v1466 = vpack.c.b16 %v1458, %v1457
      %v1467 = vpack.c.b16 %v1460, %v1459
      %v1468 = vpack.c.b16 %v1462, %v1461
      %v1469 = vpack.c.b16 %v1463, %v1463
      %v1470 = vrot.slane %v1464, 2
      %v1471 = vrot.slane %v1465, 2
      %v1472 = vsel %vm1268, %v1470, %v1471
      %v1473 = vrot.slane %v1466, 2
      %v1474 = vsel %vm1268, %v1471, %v1473
      %v1475 = vrot.slane %v1467, 2
      %v1476 = vsel %vm1268, %v1473, %v1475
      %v1477 = vrot.slane %v1468, 2
      %v1478 = vsel %vm1268, %v1475, %v1477
      %v1479 = vrot.slane %v1469, 2
      %v1480 = vsel %vm1268, %v1477, %v1479
      %v1489 = vunpack.c.l.b16 %v1434
      %v1490 = vunpack.c.l.b16 %v1435
      %v1491 = vunpack.c.l.b16 %v1436
      %v1492 = vunpack.c.l.b16 %v1437
      %v1493 = vunpack.c.l.b16 %v1438
      %v1494 = vunpack.c.l.b16 %v1439
      %v1495 = vunpack.c.l.b16 %v1440
      %v1496 = vunpack.c.l.b16 %v1441
      %v1497 = vpack.c.b16 %v1490, %v1489
      %v1498 = vpack.c.b16 %v1492, %v1491
      %v1499 = vpack.c.b16 %v1494, %v1493
      %v1500 = vpack.c.b16 %v1496, %v1495
      %v1506 = vsel %vm239, %v1472, 0
      %v1509 = vsel %vm239, %v1474, 0
      %v1512 = vsel %vm239, %v1476, 0
      %v1515 = vsel %vm239, %v1478, 0
      %v1518 = vsel %vm239, %v1480, 0
      %1520 = vmatprep.subr.bf16.mxu0 0
      %1521 = vmatpush1.bf16.msra.mxu0 %v1497
      %1522 = vmatprep.subr.bf16.mxu0 0
      %1523 = vmatpush1.bf16.msra.mxu0 %v1498
      %1524 = vmatprep.subr.bf16.mxu0 0
      %1525 = vmatpush1.bf16.msra.mxu0 %v1499
      %1526 = vmatprep.subr.bf16.mxu0 0
      %1527 = vmatpush1.bf16.msra.mxu0 %v1500
      %1528 = vmatprep.subr.bf16.mxu0 0
      %1529 = vmatpush1.bf16.msra.mxu0 0
      %1530 = vmatprep.subr.bf16.mxu0 0
      %1531 = vmatpush1.bf16.msra.mxu0 0
      %1532 = vmatprep.subr.bf16.mxu0 0
      %1533 = vmatpush1.bf16.msra.mxu0 0
      %1534 = vmatprep.subr.bf16.mxu0 0
      %1535 = vmatpush1.bf16.msra.mxu0 0
      %1536 = vmatprep.subr.bf16.mxu0 0
      %1537 = vmatpush1.bf16.msra.mxu0 0
      %1538 = vmatprep.subr.bf16.mxu0 0
      %1539 = vmatpush1.bf16.msra.mxu0 0
      %1540 = vmatprep.subr.bf16.mxu0 0
      %1541 = vmatpush1.bf16.msra.mxu0 0
      %1542 = vmatprep.subr.bf16.mxu0 0
      %1543 = vmatpush1.bf16.msra.mxu0 0
      %1544 = vmatprep.subr.bf16.mxu0 0
      %1545 = vmatpush1.bf16.msra.mxu0 0
      %1546 = vmatprep.subr.bf16.mxu0 0
      %1547 = vmatpush1.bf16.msra.mxu0 0
      %1548 = vmatprep.subr.bf16.mxu0 0
      %1549 = vmatpush1.bf16.msra.mxu0 0
      %1550 = vmatprep.subr.bf16.mxu0 0
      %1551 = vmatpush1.bf16.msra.mxu0 0
      %1552 = vmatprep.mubr.bf16.mxu0 0
      %1553 = vmatmul.mubr.bf16.gmra.mrb[0].mxu0 %v1506
      %v1554 = vpop.f32.mrb[0].mxu0
      %v1555 = vadd.f32 0.0, %v1554
      %v1556 = vpop.f32.mrb[0].mxu0
      %v1557 = vpop.f32.mrb[0].mxu0
      %v1558 = vadd.f32 0.0, %v1557
      %v1559 = vpop.f32.mrb[0].mxu0
      %1560 = vmatprep.mubr.bf16.mxu0 0
      %1561 = vmatmul.mubr.bf16.gmra.mrb[0].mxu0 %v1509
      %v1562 = vpop.f32.mrb[0].mxu0
      %v1563 = vadd.f32 0.0, %v1562
      %v1564 = vpop.f32.mrb[0].mxu0
      %v1565 = vpop.f32.mrb[0].mxu0
      %v1566 = vadd.f32 0.0, %v1565
      %v1567 = vpop.f32.mrb[0].mxu0
      %1568 = vmatprep.mubr.bf16.mxu0 0
      %1569 = vmatmul.mubr.bf16.gmra.mrb[0].mxu0 %v1512
      %v1570 = vpop.f32.mrb[0].mxu0
      %v1571 = vadd.f32 0.0, %v1570
      %v1572 = vpop.f32.mrb[0].mxu0
      %v1573 = vpop.f32.mrb[0].mxu0
      %v1574 = vadd.f32 0.0, %v1573
      %v1575 = vpop.f32.mrb[0].mxu0
      %1576 = vmatprep.mubr.bf16.mxu0 0
      %1577 = vmatmul.mubr.bf16.gmra.mrb[0].mxu0 %v1515
      %v1578 = vpop.f32.mrb[0].mxu0
      %v1579 = vadd.f32 0.0, %v1578
      %v1580 = vpop.f32.mrb[0].mxu0
      %v1581 = vpop.f32.mrb[0].mxu0
      %v1582 = vadd.f32 0.0, %v1581
      %v1583 = vpop.f32.mrb[0].mxu0
      %1584 = vmatprep.mubr.bf16.mxu0 0
      %1585 = vmatmul.mubr.bf16.gmra.mrb[0].mxu0 %v1518
      %v1586 = vpop.f32.mrb[0].mxu0
      %v1587 = vadd.f32 0.0, %v1586
      %v1588 = vpop.f32.mrb[0].mxu0
      %v1589 = vpop.f32.mrb[0].mxu0
      %v1590 = vadd.f32 0.0, %v1589
      %v1591 = vpop.f32.mrb[0].mxu0
      %1592 = vdwg.mxu0
      %v1593 = vld [vmem:[#allocation2] sm:$0xff]
      %v1594 = vld [vmem:[#allocation2 + $0x8] sm:$0xff]
      %v1595 = vld [vmem:[#allocation2 + $0x10] sm:$0xff]
      %v1596 = vld [vmem:[#allocation2 + $0x18] sm:$0xff]
      %v1597 = vld [vmem:[#allocation2 + $0x20] sm:$0xff]
      %v1598 = vld [vmem:[#allocation2 + $0x28] sm:$0xff]
      %v1599 = vld [vmem:[#allocation2 + $0x30] sm:$0xff]
      %v1600 = vld [vmem:[#allocation2 + $0x38] sm:$0xff]
      %v1601 = vld [vmem:[#allocation2 + $0x40] sm:$0xff]
      %v1602 = vld [vmem:[#allocation2 + $0x48] sm:$0xff]
      %v1603 = vadd.f32 %v1593, %v1555
      %v1604 = vadd.f32 %v1594, %v1558
      %v1605 = vadd.f32 %v1595, %v1563
      %v1606 = vadd.f32 %v1596, %v1566
      %v1607 = vadd.f32 %v1597, %v1571
      %v1608 = vadd.f32 %v1598, %v1574
      %v1609 = vadd.f32 %v1599, %v1579
      %v1610 = vadd.f32 %v1600, %v1582
      %v1611 = vadd.f32 %v1601, %v1587
      %v1612 = vadd.f32 %v1602, %v1590
      %1613 = vst [vmem:[#allocation2] sm:$0xff] %v1603
      %1614 = vst [vmem:[#allocation2 + $0x8] sm:$0xff] %v1604
      %1615 = vst [vmem:[#allocation2 + $0x10] sm:$0xff] %v1605
      %1616 = vst [vmem:[#allocation2 + $0x18] sm:$0xff] %v1606
      %1617 = vst [vmem:[#allocation2 + $0x20] sm:$0xff] %v1607
      %1618 = vst [vmem:[#allocation2 + $0x28] sm:$0xff] %v1608
      %1619 = vst [vmem:[#allocation2 + $0x30] sm:$0xff] %v1609
      %1620 = vst [vmem:[#allocation2 + $0x38] sm:$0xff] %v1610
      %1621 = vst [vmem:[#allocation2 + $0x40] sm:$0xff] %v1611
      %1622 = vst [vmem:[#allocation2 + $0x48] sm:$0xff] %v1612
      %v1623 = vld [vmem:[%s165 + $0x8] sm:$0xc]
      %v1624 = vld [vmem:[%s165 + $0xc] sm:$0xf]
      %v1625 = vld [vmem:[%s165 + $0x10] sm:$0xf]
      %v1626 = vld [vmem:[%s165 + $0x14] sm:$0xf]
      %v1627 = vld [vmem:[%s165 + $0x18] sm:$0xf]
      %v1628 = vld [vmem:[%s165 + $0x1c] sm:$0xf]
      %v1629 = vld [vmem:[%s165 + $0x20] sm:$0xf]
      %v1630 = vld [vmem:[%s165 + $0x24] sm:$0xf]
      %v1631 = vld [vmem:[%s165 + $0x28] sm:$0xf]
      %v1632 = vld [vmem:[%s165 + $0x2c] sm:$0xf]
      %v1633 = vld [vmem:[%s165 + $0x30] sm:$0x7]
      %s1634 = scalar_lea.vmem %s1, 224
      %v1635 = vld [vmem:[%s1634] sm:$0xf]
      %v1636 = vld [vmem:[%s1634 + $0x4] sm:$0xf]
      %v1637 = vld [vmem:[%s1634 + $0x8] sm:$0xf]
      %v1638 = vld [vmem:[%s1634 + $0xc] sm:$0xf]
      %v1639 = vld [vmem:[%s1634 + $0x10] sm:$0xf]
      %v1640 = vld [vmem:[%s1634 + $0x14] sm:$0xf]
      %v1641 = vld [vmem:[%s1634 + $0x18] sm:$0xf]
      %v1642 = vld [vmem:[%s1634 + $0x1c] sm:$0xf]
      %v1654 = vunpack.c.l.b16 %v1623
      %v1655 = vunpack.c.l.b16 %v1624
      %v1656 = vunpack.c.l.b16 %v1625
      %v1657 = vunpack.c.l.b16 %v1626
      %v1658 = vunpack.c.l.b16 %v1627
      %v1659 = vunpack.c.l.b16 %v1628
      %v1660 = vunpack.c.l.b16 %v1629
      %v1661 = vunpack.c.l.b16 %v1630
      %v1662 = vunpack.c.l.b16 %v1631
      %v1663 = vunpack.c.l.b16 %v1632
      %v1664 = vunpack.c.l.b16 %v1633
      %v1665 = vpack.c.b16 %v1655, %v1654
      %v1666 = vpack.c.b16 %v1657, %v1656
      %v1667 = vpack.c.b16 %v1659, %v1658
      %v1668 = vpack.c.b16 %v1661, %v1660
      %v1669 = vpack.c.b16 %v1663, %v1662
      %v1670 = vpack.c.b16 %v1664, %v1664
      %vm1671 = vsmask.f32 5376
      %v1673 = vshrl.u32 %v1665, 16
      %v1675 = vrot.slane %v1673, 2
      %v1676 = vshll.u32 %v1665, 16
      %v1678 = vrot.slane %v1676, 3
      %v1679 = vor.u32 %v1675, %v1678
      %v1681 = vshrl.u32 %v1666, 16
      %v1683 = vrot.slane %v1681, 2
      %v1684 = vshll.u32 %v1666, 16
      %v1686 = vrot.slane %v1684, 3
      %v1687 = vor.u32 %v1683, %v1686
      %v1688 = vsel %vm1671, %v1679, %v1687
      %v1690 = vshrl.u32 %v1667, 16
      %v1692 = vrot.slane %v1690, 2
      %v1693 = vshll.u32 %v1667, 16
      %v1695 = vrot.slane %v1693, 3
      %v1696 = vor.u32 %v1692, %v1695
      %v1697 = vsel %vm1671, %v1687, %v1696
      %v1699 = vshrl.u32 %v1668, 16
      %v1701 = vrot.slane %v1699, 2
      %v1702 = vshll.u32 %v1668, 16
      %v1704 = vrot.slane %v1702, 3
      %v1705 = vor.u32 %v1701, %v1704
      %v1706 = vsel %vm1671, %v1696, %v1705
      %v1708 = vshrl.u32 %v1669, 16
      %v1710 = vrot.slane %v1708, 2
      %v1711 = vshll.u32 %v1669, 16
      %v1713 = vrot.slane %v1711, 3
      %v1714 = vor.u32 %v1710, %v1713
      %v1715 = vsel %vm1671, %v1705, %v1714
      %v1717 = vshrl.u32 %v1670, 16
      %v1719 = vrot.slane %v1717, 2
      %v1720 = vshll.u32 %v1670, 16
      %v1722 = vrot.slane %v1720, 3
      %v1723 = vor.u32 %v1719, %v1722
      %v1724 = vsel %vm1671, %v1714, %v1723
      %v1733 = vunpack.c.l.b16 %v1635
      %v1734 = vunpack.c.l.b16 %v1636
      %v1735 = vunpack.c.l.b16 %v1637
      %v1736 = vunpack.c.l.b16 %v1638
      %v1737 = vunpack.c.l.b16 %v1639
      %v1738 = vunpack.c.l.b16 %v1640
      %v1739 = vunpack.c.l.b16 %v1641
      %v1740 = vunpack.c.l.b16 %v1642
      %v1741 = vpack.c.b16 %v1734, %v1733
      %v1742 = vpack.c.b16 %v1736, %v1735
      %v1743 = vpack.c.b16 %v1738, %v1737
      %v1744 = vpack.c.b16 %v1740, %v1739
      %v1750 = vsel %vm239, %v1688, 0
      %v1753 = vsel %vm239, %v1697, 0
      %v1756 = vsel %vm239, %v1706, 0
      %v1759 = vsel %vm239, %v1715, 0
      %v1762 = vsel %vm239, %v1724, 0
      %1764 = vmatprep.subr.bf16.mxu0 0
      %1765 = vmatpush1.bf16.msra.mxu0 %v1741
      %1766 = vmatprep.subr.bf16.mxu0 0
      %1767 = vmatpush1.bf16.msra.mxu0 %v1742
      %1768 = vmatprep.subr.bf16.mxu0 0
      %1769 = vmatpush1.bf16.msra.mxu0 %v1743
      %1770 = vmatprep.subr.bf16.mxu0 0
      %1771 = vmatpush1.bf16.msra.mxu0 %v1744
      %1772 = vmatprep.subr.bf16.mxu0 0
      %1773 = vmatpush1.bf16.msra.mxu0 0
      %1774 = vmatprep.subr.bf16.mxu0 0
      %1775 = vmatpush1.bf16.msra.mxu0 0
      %1776 = vmatprep.subr.bf16.mxu0 0
      %1777 = vmatpush1.bf16.msra.mxu0 0
      %1778 = vmatprep.subr.bf16.mxu0 0
      %1779 = vmatpush1.bf16.msra.mxu0 0
      %1780 = vmatprep.subr.bf16.mxu0 0
      %1781 = vmatpush1.bf16.msra.mxu0 0
      %1782 = vmatprep.subr.bf16.mxu0 0
      %1783 = vmatpush1.bf16.msra.mxu0 0
      %1784 = vmatprep.subr.bf16.mxu0 0
      %1785 = vmatpush1.bf16.msra.mxu0 0
      %1786 = vmatprep.subr.bf16.mxu0 0
      %1787 = vmatpush1.bf16.msra.mxu0 0
      %1788 = vmatprep.subr.bf16.mxu0 0
      %1789 = vmatpush1.bf16.msra.mxu0 0
      %1790 = vmatprep.subr.bf16.mxu0 0
      %1791 = vmatpush1.bf16.msra.mxu0 0
      %1792 = vmatprep.subr.bf16.mxu0 0
      %1793 = vmatpush1.bf16.msra.mxu0 0
      %1794 = vmatprep.subr.bf16.mxu0 0
      %1795 = vmatpush1.bf16.msra.mxu0 0
      %1796 = vmatprep.mubr.bf16.mxu0 0
      %1797 = vmatmul.mubr.bf16.gmra.mrb[0].mxu0 %v1750
      %v1798 = vpop.f32.mrb[0].mxu0
      %v1799 = vadd.f32 0.0, %v1798
      %v1800 = vpop.f32.mrb[0].mxu0
      %v1801 = vpop.f32.mrb[0].mxu0
      %v1802 = vadd.f32 0.0, %v1801
      %v1803 = vpop.f32.mrb[0].mxu0
      %1804 = vmatprep.mubr.bf16.mxu0 0
      %1805 = vmatmul.mubr.bf16.gmra.mrb[0].mxu0 %v1753
      %v1806 = vpop.f32.mrb[0].mxu0
      %v1807 = vadd.f32 0.0, %v1806
      %v1808 = vpop.f32.mrb[0].mxu0
      %v1809 = vpop.f32.mrb[0].mxu0
      %v1810 = vadd.f32 0.0, %v1809
      %v1811 = vpop.f32.mrb[0].mxu0
      %1812 = vmatprep.mubr.bf16.mxu0 0
      %1813 = vmatmul.mubr.bf16.gmra.mrb[0].mxu0 %v1756
      %v1814 = vpop.f32.mrb[0].mxu0
      %v1815 = vadd.f32 0.0, %v1814
      %v1816 = vpop.f32.mrb[0].mxu0
      %v1817 = vpop.f32.mrb[0].mxu0
      %v1818 = vadd.f32 0.0, %v1817
      %v1819 = vpop.f32.mrb[0].mxu0
      %1820 = vmatprep.mubr.bf16.mxu0 0
      %1821 = vmatmul.mubr.bf16.gmra.mrb[0].mxu0 %v1759
      %v1822 = vpop.f32.mrb[0].mxu0
      %v1823 = vadd.f32 0.0, %v1822
      %v1824 = vpop.f32.mrb[0].mxu0
      %v1825 = vpop.f32.mrb[0].mxu0
      %v1826 = vadd.f32 0.0, %v1825
      %v1827 = vpop.f32.mrb[0].mxu0
      %1828 = vmatprep.mubr.bf16.mxu0 0
      %1829 = vmatmul.mubr.bf16.gmra.mrb[0].mxu0 %v1762
      %v1830 = vpop.f32.mrb[0].mxu0
      %v1831 = vadd.f32 0.0, %v1830
      %v1832 = vpop.f32.mrb[0].mxu0
      %v1833 = vpop.f32.mrb[0].mxu0
      %v1834 = vadd.f32 0.0, %v1833
      %v1835 = vpop.f32.mrb[0].mxu0
      %1836 = vdwg.mxu0
      %v1837 = vld [vmem:[#allocation2] sm:$0xff]
      %v1838 = vld [vmem:[#allocation2 + $0x8] sm:$0xff]
      %v1839 = vld [vmem:[#allocation2 + $0x10] sm:$0xff]
      %v1840 = vld [vmem:[#allocation2 + $0x18] sm:$0xff]
      %v1841 = vld [vmem:[#allocation2 + $0x20] sm:$0xff]
      %v1842 = vld [vmem:[#allocation2 + $0x28] sm:$0xff]
      %v1843 = vld [vmem:[#allocation2 + $0x30] sm:$0xff]
      %v1844 = vld [vmem:[#allocation2 + $0x38] sm:$0xff]
      %v1845 = vld [vmem:[#allocation2 + $0x40] sm:$0xff]
      %v1846 = vld [vmem:[#allocation2 + $0x48] sm:$0xff]
      %v1847 = vadd.f32 %v1837, %v1799
      %v1848 = vadd.f32 %v1838, %v1802
      %v1849 = vadd.f32 %v1839, %v1807
      %v1850 = vadd.f32 %v1840, %v1810
      %v1851 = vadd.f32 %v1841, %v1815
      %v1852 = vadd.f32 %v1842, %v1818
      %v1853 = vadd.f32 %v1843, %v1823
      %v1854 = vadd.f32 %v1844, %v1826
      %v1855 = vadd.f32 %v1845, %v1831
      %v1856 = vadd.f32 %v1846, %v1834
      %1857 = vst [vmem:[#allocation2] sm:$0xff] %v1847
      %1858 = vst [vmem:[#allocation2 + $0x8] sm:$0xff] %v1848
      %1859 = vst [vmem:[#allocation2 + $0x10] sm:$0xff] %v1849
      %1860 = vst [vmem:[#allocation2 + $0x18] sm:$0xff] %v1850
      %1861 = vst [vmem:[#allocation2 + $0x20] sm:$0xff] %v1851
      %1862 = vst [vmem:[#allocation2 + $0x28] sm:$0xff] %v1852
      %1863 = vst [vmem:[#allocation2 + $0x30] sm:$0xff] %v1853
      %1864 = vst [vmem:[#allocation2 + $0x38] sm:$0xff] %v1854
      %1865 = vst [vmem:[#allocation2 + $0x40] sm:$0xff] %v1855
      %1866 = vst [vmem:[#allocation2 + $0x48] sm:$0xff] %v1856
      %v1867 = vld [vmem:[%s165 + $0x8] sm:$0x8]
      %v1868 = vld [vmem:[%s165 + $0xc] sm:$0xf]
      %v1869 = vld [vmem:[%s165 + $0x10] sm:$0xf]
      %v1870 = vld [vmem:[%s165 + $0x14] sm:$0xf]
      %v1871 = vld [vmem:[%s165 + $0x18] sm:$0xf]
      %v1872 = vld [vmem:[%s165 + $0x1c] sm:$0xf]
      %v1873 = vld [vmem:[%s165 + $0x20] sm:$0xf]
      %v1874 = vld [vmem:[%s165 + $0x24] sm:$0xf]
      %v1875 = vld [vmem:[%s165 + $0x28] sm:$0xf]
      %v1876 = vld [vmem:[%s165 + $0x2c] sm:$0xf]
      %v1877 = vld [vmem:[%s165 + $0x30] sm:$0x7]
      %s1878 = scalar_lea.vmem %s1, 256
      %v1879 = vld [vmem:[%s1878] sm:$0xf]
      %v1880 = vld [vmem:[%s1878 + $0x4] sm:$0xf]
      %v1881 = vld [vmem:[%s1878 + $0x8] sm:$0xf]
      %v1882 = vld [vmem:[%s1878 + $0xc] sm:$0xf]
      %v1883 = vld [vmem:[%s1878 + $0x10] sm:$0xf]
      %v1884 = vld [vmem:[%s1878 + $0x14] sm:$0xf]
      %v1885 = vld [vmem:[%s1878 + $0x18] sm:$0xf]
      %v1886 = vld [vmem:[%s1878 + $0x1c] sm:$0xf]
      %v1898 = vunpack.c.l.b16 %v1867
      %v1899 = vunpack.c.l.b16 %v1868
      %v1900 = vunpack.c.l.b16 %v1869
      %v1901 = vunpack.c.l.b16 %v1870
      %v1902 = vunpack.c.l.b16 %v1871
      %v1903 = vunpack.c.l.b16 %v1872
      %v1904 = vunpack.c.l.b16 %v1873
      %v1905 = vunpack.c.l.b16 %v1874
      %v1906 = vunpack.c.l.b16 %v1875
      %v1907 = vunpack.c.l.b16 %v1876
      %v1908 = vunpack.c.l.b16 %v1877
      %v1909 = vpack.c.b16 %v1899, %v1898
      %v1910 = vpack.c.b16 %v1901, %v1900
      %v1911 = vpack.c.b16 %v1903, %v1902
      %v1912 = vpack.c.b16 %v1905, %v1904
      %v1913 = vpack.c.b16 %v1907, %v1906
      %v1914 = vpack.c.b16 %v1908, %v1908
      %vm1915 = vcmask 1044480
      %v1916 = vrot.slane %v1909, 3
      %v1917 = vrot.slane %v1910, 3
      %v1918 = vsel %vm1915, %v1916, %v1917
      %v1919 = vrot.slane %v1911, 3
      %v1920 = vsel %vm1915, %v1917, %v1919
      %v1921 = vrot.slane %v1912, 3
      %v1922 = vsel %vm1915, %v1919, %v1921
      %v1923 = vrot.slane %v1913, 3
      %v1924 = vsel %vm1915, %v1921, %v1923
      %v1925 = vrot.slane %v1914, 3
      %v1926 = vsel %vm1915, %v1923, %v1925
      %v1935 = vunpack.c.l.b16 %v1879
      %v1936 = vunpack.c.l.b16 %v1880
      %v1937 = vunpack.c.l.b16 %v1881
      %v1938 = vunpack.c.l.b16 %v1882
      %v1939 = vunpack.c.l.b16 %v1883
      %v1940 = vunpack.c.l.b16 %v1884
      %v1941 = vunpack.c.l.b16 %v1885
      %v1942 = vunpack.c.l.b16 %v1886
      %v1943 = vpack.c.b16 %v1936, %v1935
      %v1944 = vpack.c.b16 %v1938, %v1937
      %v1945 = vpack.c.b16 %v1940, %v1939
      %v1946 = vpack.c.b16 %v1942, %v1941
      %v1952 = vsel %vm239, %v1918, 0
      %v1955 = vsel %vm239, %v1920, 0
      %v1958 = vsel %vm239, %v1922, 0
      %v1961 = vsel %vm239, %v1924, 0
      %v1964 = vsel %vm239, %v1926, 0
      %1966 = vmatprep.subr.bf16.mxu0 0
      %1967 = vmatpush1.bf16.msra.mxu0 %v1943
      %1968 = vmatprep.subr.bf16.mxu0 0
      %1969 = vmatpush1.bf16.msra.mxu0 %v1944
      %1970 = vmatprep.subr.bf16.mxu0 0
      %1971 = vmatpush1.bf16.msra.mxu0 %v1945
      %1972 = vmatprep.subr.bf16.mxu0 0
      %1973 = vmatpush1.bf16.msra.mxu0 %v1946
      %1974 = vmatprep.subr.bf16.mxu0 0
      %1975 = vmatpush1.bf16.msra.mxu0 0
      %1976 = vmatprep.subr.bf16.mxu0 0
      %1977 = vmatpush1.bf16.msra.mxu0 0
      %1978 = vmatprep.subr.bf16.mxu0 0
      %1979 = vmatpush1.bf16.msra.mxu0 0
      %1980 = vmatprep.subr.bf16.mxu0 0
      %1981 = vmatpush1.bf16.msra.mxu0 0
      %1982 = vmatprep.subr.bf16.mxu0 0
      %1983 = vmatpush1.bf16.msra.mxu0 0
      %1984 = vmatprep.subr.bf16.mxu0 0
      %1985 = vmatpush1.bf16.msra.mxu0 0
      %1986 = vmatprep.subr.bf16.mxu0 0
      %1987 = vmatpush1.bf16.msra.mxu0 0
      %1988 = vmatprep.subr.bf16.mxu0 0
      %1989 = vmatpush1.bf16.msra.mxu0 0
      %1990 = vmatprep.subr.bf16.mxu0 0
      %1991 = vmatpush1.bf16.msra.mxu0 0
      %1992 = vmatprep.subr.bf16.mxu0 0
      %1993 = vmatpush1.bf16.msra.mxu0 0
      %1994 = vmatprep.subr.bf16.mxu0 0
      %1995 = vmatpush1.bf16.msra.mxu0 0
      %1996 = vmatprep.subr.bf16.mxu0 0
      %1997 = vmatpush1.bf16.msra.mxu0 0
      %1998 = vmatprep.mubr.bf16.mxu0 0
      %1999 = vmatmul.mubr.bf16.gmra.mrb[0].mxu0 %v1952
      %v2000 = vpop.f32.mrb[0].mxu0
      %v2001 = vadd.f32 0.0, %v2000
      %v2002 = vpop.f32.mrb[0].mxu0
      %v2003 = vpop.f32.mrb[0].mxu0
      %v2004 = vadd.f32 0.0, %v2003
      %v2005 = vpop.f32.mrb[0].mxu0
      %2006 = vmatprep.mubr.bf16.mxu0 0
      %2007 = vmatmul.mubr.bf16.gmra.mrb[0].mxu0 %v1955
      %v2008 = vpop.f32.mrb[0].mxu0
      %v2009 = vadd.f32 0.0, %v2008
      %v2010 = vpop.f32.mrb[0].mxu0
      %v2011 = vpop.f32.mrb[0].mxu0
      %v2012 = vadd.f32 0.0, %v2011
      %v2013 = vpop.f32.mrb[0].mxu0
      %2014 = vmatprep.mubr.bf16.mxu0 0
      %2015 = vmatmul.mubr.bf16.gmra.mrb[0].mxu0 %v1958
      %v2016 = vpop.f32.mrb[0].mxu0
      %v2017 = vadd.f32 0.0, %v2016
      %v2018 = vpop.f32.mrb[0].mxu0
      %v2019 = vpop.f32.mrb[0].mxu0
      %v2020 = vadd.f32 0.0, %v2019
      %v2021 = vpop.f32.mrb[0].mxu0
      %2022 = vmatprep.mubr.bf16.mxu0 0
      %2023 = vmatmul.mubr.bf16.gmra.mrb[0].mxu0 %v1961
      %v2024 = vpop.f32.mrb[0].mxu0
      %v2025 = vadd.f32 0.0, %v2024
      %v2026 = vpop.f32.mrb[0].mxu0
      %v2027 = vpop.f32.mrb[0].mxu0
      %v2028 = vadd.f32 0.0, %v2027
      %v2029 = vpop.f32.mrb[0].mxu0
      %2030 = vmatprep.mubr.bf16.mxu0 0
      %2031 = vmatmul.mubr.bf16.gmra.mrb[0].mxu0 %v1964
      %v2032 = vpop.f32.mrb[0].mxu0
      %v2033 = vadd.f32 0.0, %v2032
      %v2034 = vpop.f32.mrb[0].mxu0
      %v2035 = vpop.f32.mrb[0].mxu0
      %v2036 = vadd.f32 0.0, %v2035
      %v2037 = vpop.f32.mrb[0].mxu0
      %2038 = vdwg.mxu0
      %v2039 = vld [vmem:[#allocation2] sm:$0xff]
      %v2040 = vld [vmem:[#allocation2 + $0x8] sm:$0xff]
      %v2041 = vld [vmem:[#allocation2 + $0x10] sm:$0xff]
      %v2042 = vld [vmem:[#allocation2 + $0x18] sm:$0xff]
      %v2043 = vld [vmem:[#allocation2 + $0x20] sm:$0xff]
      %v2044 = vld [vmem:[#allocation2 + $0x28] sm:$0xff]
      %v2045 = vld [vmem:[#allocation2 + $0x30] sm:$0xff]
      %v2046 = vld [vmem:[#allocation2 + $0x38] sm:$0xff]
      %v2047 = vld [vmem:[#allocation2 + $0x40] sm:$0xff]
      %v2048 = vld [vmem:[#allocation2 + $0x48] sm:$0xff]
      %v2049 = vadd.f32 %v2039, %v2001
      %v2050 = vadd.f32 %v2040, %v2004
      %v2051 = vadd.f32 %v2041, %v2009
      %v2052 = vadd.f32 %v2042, %v2012
      %v2053 = vadd.f32 %v2043, %v2017
      %v2054 = vadd.f32 %v2044, %v2020
      %v2055 = vadd.f32 %v2045, %v2025
      %v2056 = vadd.f32 %v2046, %v2028
      %v2057 = vadd.f32 %v2047, %v2033
      %v2058 = vadd.f32 %v2048, %v2036
      %2059 = vst [vmem:[#allocation2] sm:$0xff] %v2049
      %2060 = vst [vmem:[#allocation2 + $0x8] sm:$0xff] %v2050
      %2061 = vst [vmem:[#allocation2 + $0x10] sm:$0xff] %v2051
      %2062 = vst [vmem:[#allocation2 + $0x18] sm:$0xff] %v2052
      %2063 = vst [vmem:[#allocation2 + $0x20] sm:$0xff] %v2053
      %2064 = vst [vmem:[#allocation2 + $0x28] sm:$0xff] %v2054
      %2065 = vst [vmem:[#allocation2 + $0x30] sm:$0xff] %v2055
      %2066 = vst [vmem:[#allocation2 + $0x38] sm:$0xff] %v2056
      %2067 = vst [vmem:[#allocation2 + $0x40] sm:$0xff] %v2057
      %2068 = vst [vmem:[#allocation2 + $0x48] sm:$0xff] %v2058
      %v2069 = vld [vmem:[%s2] sm:$0x1]
      loop: start=0, step=1, limit=4
      $region33: #{custom_cnn_forward.7} parent=31 // loop_pre_header
        _
      $region34: #{custom_cnn_forward.7} parent=31 // loop_header
        %s2071 = sphi 0, %s2075
        %p2072 = scmp.ge.s32.totalorder %s2071, 4
      $region35: #{custom_cnn_forward.7} parent=31 // loop_header_branch
        %2074 = sbr.rel (%p2072) target = $region39
      $region36: #{custom_cnn_forward.7} parent=31 // loop_body
        %s2076 = smul.u32 %s2071, 20
        %s2077 = scalar_lea.vmem [#allocation2], %s2076
        %v2078 = vld [vmem:[%s2077] sm:$0xff]
        %s2079 = sadd.s32 %s2076, 10
        %s2080 = scalar_lea.vmem [#allocation2], %s2079
        %v2081 = vld [vmem:[%s2080] sm:$0xff]
        %v2082 = vmax.f32 %v2078, %v2081
        %2083 = vst [vmem:[#allocation3] sm:$0xff] %v2082
        %v2084 = vld [vmem:[#allocation3] ss:$2 sm:$0xf]
        %s2085 = scalar_lea.vmem [#allocation3], 1
        %v2086 = vld [vmem:[%s2085] ss:$2 sm:$0xf]
        %v2087 = vmax.f32 %v2084, %v2086
        %v2089 = vlaneseq
        %v2090 = vshrl.u32 %v2089, 7
        %v2091 = vsub.s32 0, %v2090
        %v2092 = vrot.slane %v2069, %v2091
        %v2094 = vadd.f32 %v2087, %v2092
        %v2095 = vmax.f32 %v2094, 0.0
        %v2096 = vpack.c.bf16 %v2095, %v2095
        %s2097 = smul.addr %s2071, 2
        %s2098 = scalar_lea.vmem %s170, %s2097
        %2099 = vst [vmem:[%s2098] sm:$0x3] %v2096
      $region37: #{custom_cnn_forward.7} parent=31 // loop_footer
        %s2075 = sadd.s32 1, %s2071
      $region38: #{custom_cnn_forward.7} parent=31 // loop_footer_branch
        %2070 = sbr.rel target = $region34
      $region39: #{custom_cnn_forward.7} parent=31 // loop_exit
        _
      %p2100 = scmp.lt.s32.totalorder %s14, 1
      %s2101 = scalar_select %p2100, %s14, 1
      %s2102 = smul.addr %s2101, 4
      %s2103 = smul.addr %s2102, 2
      %s2104 = scalar_lea.vmem %s3, %s2103
      // Predicated region
      $region40: #{custom_cnn_forward.7} parent=31 // pred_check
        %p2105 = pneg %p100
      $region41: #{custom_cnn_forward.7} parent=31 // pred_check_branch
        %2107 = sbr.rel (%p2105) target = $region43
      $region42: #{custom_cnn_forward.7} parent=31 // pred_region
        _
      $region43: #{custom_cnn_forward.7} parent=31 // pred_fallthru
        _
    $region32: #{custom_cnn_forward.7} parent=5 // pred_fallthru
      _
    %p2108 = scmp.le.s32.totalorder 2, %s9
    // Predicated region
    $region44: #{custom_cnn_forward.7} parent=5 // pred_check
      %p2109 = pneg %p2108
    $region45: #{custom_cnn_forward.7} parent=5 // pred_check_branch
      %2111 = sbr.rel (%p2109) target = $region47
    $region46: #{custom_cnn_forward.7} parent=5 // pred_region
      %s2112 = ssub.s32 %s9, 2
      // Predicated region
      $region48: #{custom_cnn_forward.7} parent=46 // pred_check
        %p2113 = pneg %p106
      $region49: #{custom_cnn_forward.7} parent=46 // pred_check_branch
        %2115 = sbr.rel (%p2113) target = $region51
      $region50: #{custom_cnn_forward.7} parent=46 // pred_region
        %p2116 = scmp.lt.s32.totalorder %s15, 1
        %s2117 = scalar_select %p2116, %s15, 1
        %s2118 = smul.addr %s2117, 4
        %s2119 = smul.addr %s2118, 2
        %s2120 = scalar_lea.vmem %s3, %s2119
      $region51: #{custom_cnn_forward.7} parent=46 // pred_fallthru
        _
    $region47: #{custom_cnn_forward.7} parent=5 // pred_fallthru
      _
  $region6: #{custom_cnn_forward.7} parent=0 // loop_footer
    %s13 = sadd.s32 1, %s9
  $region7: #{custom_cnn_forward.7} parent=0 // loop_footer_branch
    %8 = sbr.rel target = $region3
  $region8: #{custom_cnn_forward.7} parent=0 // loop_exit
    _

// kernel: custom_cnn_forward.6
$region0: #{custom_cnn_forward.6}
  #allocation0 [shape = 'u32[]', space=smem, size = 0x4, offset = 0x4, fixed_abs, tag = 'smem constant byte address 0x4 - core index']
  #allocation1 [shape = 'u32[144,128]{1,0:T(1,128)}', space=vmem, size = 0x12000, scoped, tag = 'internal scratch']
  #allocation2 [shape = 'f32[288,64]{1,0:T(8,128)}', space=vmem, size = 0x24000, scoped, tag = 'scratch operand']
  #allocation3 [shape = 'f32[16,64]{1,0:T(8,128)}', space=vmem, size = 0x2000, scoped, tag = 'scratch operand']
  %s0 = inlined_call_operand.vmem [shape: bf16[2,342,32], index: 0, kind: input, shape index: {}]
  %s1 = inlined_call_operand.vmem [shape: bf16[9,32,64], index: 1, kind: input, shape index: {}]
  %s2 = inlined_call_operand.vmem [shape: f32[1,64], index: 2, kind: input, shape index: {}]
  %s3 = inlined_call_operand.vmem [shape: bf16[2,8,8,64], index: 3, kind: output, shape index: {}]
  %s4 = sld [smem:[#allocation0]]
  $region52: #{custom_cnn_forward.6} parent=0
    _
  %s6 = ssub.s32 1, %s4
  %s7 = scalar_select 0, %s6, %s4
  loop: start=0, step=1, limit=4
  $region2: #{custom_cnn_forward.6} parent=0 // loop_pre_header
    _
  $region3: #{custom_cnn_forward.6} parent=0 // loop_header
    %s9 = sphi 0, %s13
    %p10 = scmp.ge.s32.totalorder %s9, 4
    %s19 = sphi 0, %s21
    %s22 = sphi 0, %s19
    %s23 = sphi 0, %s22
    %s39 = sphi 0, %s23
    %s43 = sphi 0, %s43
    %s45 = sphi 0, %s43
    %s46 = sphi 0, %s45
    %s60 = sphi 0, %s46
    %s64 = sphi 0, %s64
    %s66 = sphi 0, %s64
    %s67 = sphi 0, %s66
    %s81 = sphi 0, %s67
    %s87 = sphi 0, %s89
    %s90 = sphi 0, %s87
    %s91 = sphi 0, %s90
    %s107 = sphi 0, %s91
  $region4: #{custom_cnn_forward.6} parent=0 // loop_header_branch
    %12 = sbr.rel (%p10) target = $region8
  $region5: #{custom_cnn_forward.6} parent=0 // loop_body
    %s14 = ssub.s32 %s9, 1
    %s15 = ssub.s32 %s9, 2
    %s16 = sadd.s32 %s9, 1
    %s17 = ssub.s32 %s9, %s16
    %p18 = scmp.eq.s32.totalorder %s17, 0
    %s20 = sadd.s32 %s19, 1
    %s21 = scalar_select %p18, %s19, %s20
    %p24 = pneg %p18
    %p25 = scmp.eq.s32.totalorder %s9, 1
    %p26 = por %p24, %p25
    %p27 = scmp.ne.s32.totalorder %s19, %s22
    %p28 = scmp.eq.s32.totalorder %s9, 0
    %p29 = por %p27, %p28
    %p30 = scmp.ne.s32.totalorder %s19, %s22
    %p31 = scmp.eq.s32.totalorder %s14, 1
    %p32 = por %p30, %p31
    %p33 = scmp.ne.s32.totalorder %s22, %s23
    %p34 = scmp.eq.s32.totalorder %s14, 0
    %p35 = por %p33, %p34
    %p36 = scmp.ne.s32.totalorder %s22, %s23
    %p37 = scmp.eq.s32.totalorder %s15, 1
    %p38 = por %p36, %p37
    %p40 = scmp.ne.s32.totalorder %s23, %s39
    %p41 = scmp.eq.s32.totalorder %s15, 0
    %p42 = por %p40, %p41
    %s44 = sadd.s32 %s43, 1
    %p47 = scmp.eq.s32.totalorder %s9, 1
    %p48 = scmp.ne.s32.totalorder %s43, %s45
    %p49 = scmp.eq.s32.totalorder %s9, 0
    %p50 = por %p48, %p49
    %p51 = scmp.ne.s32.totalorder %s43, %s45
    %p52 = scmp.eq.s32.totalorder %s14, 1
    %p53 = por %p51, %p52
    %p54 = scmp.ne.s32.totalorder %s45, %s46
    %p55 = scmp.eq.s32.totalorder %s14, 0
    %p56 = por %p54, %p55
    %p57 = scmp.ne.s32.totalorder %s45, %s46
    %p58 = scmp.eq.s32.totalorder %s15, 1
    %p59 = por %p57, %p58
    %p61 = scmp.ne.s32.totalorder %s46, %s60
    %p62 = scmp.eq.s32.totalorder %s15, 0
    %p63 = por %p61, %p62
    %s65 = sadd.s32 %s64, 1
    %p68 = scmp.eq.s32.totalorder %s9, 1
    %p69 = scmp.ne.s32.totalorder %s64, %s66
    %p70 = scmp.eq.s32.totalorder %s9, 0
    %p71 = por %p69, %p70
    %p72 = scmp.ne.s32.totalorder %s64, %s66
    %p73 = scmp.eq.s32.totalorder %s14, 1
    %p74 = por %p72, %p73
    %p75 = scmp.ne.s32.totalorder %s66, %s67
    %p76 = scmp.eq.s32.totalorder %s14, 0
    %p77 = por %p75, %p76
    %p78 = scmp.ne.s32.totalorder %s66, %s67
    %p79 = scmp.eq.s32.totalorder %s15, 1
    %p80 = por %p78, %p79
    %p82 = scmp.ne.s32.totalorder %s67, %s81
    %p83 = scmp.eq.s32.totalorder %s15, 0
    %p84 = por %p82, %p83
    %s85 = ssub.s32 %s9, %s16
    %p86 = scmp.eq.s32.totalorder %s85, 0
    %s88 = sadd.s32 %s87, 1
    %s89 = scalar_select %p86, %s87, %s88
    %p92 = pneg %p86
    %p93 = scmp.eq.s32.totalorder %s9, 1
    %p94 = por %p92, %p93
    %p95 = scmp.ne.s32.totalorder %s87, %s90
    %p96 = scmp.eq.s32.totalorder %s9, 0
    %p97 = por %p95, %p96
    %p98 = scmp.ne.s32.totalorder %s87, %s90
    %p99 = scmp.eq.s32.totalorder %s14, 1
    %p100 = por %p98, %p99
    %p101 = scmp.ne.s32.totalorder %s90, %s91
    %p102 = scmp.eq.s32.totalorder %s14, 0
    %p103 = por %p101, %p102
    %p104 = scmp.ne.s32.totalorder %s90, %s91
    %p105 = scmp.eq.s32.totalorder %s15, 1
    %p106 = por %p104, %p105
    %p108 = scmp.ne.s32.totalorder %s91, %s107
    %p109 = scmp.eq.s32.totalorder %s15, 0
    %p110 = por %p108, %p109
    %p111 = scmp.le.s32.totalorder 1, %s9
    %p112 = scmp.lt.s32.totalorder %s9, 3
    %p113 = pnand %p111, %p112
    %p114 = pneg %p113
    // Predicated region
    $region9: #{custom_cnn_forward.6} parent=5 // pred_check
      _
    $region10: #{custom_cnn_forward.6} parent=5 // pred_check_branch
      %116 = sbr.rel (%p113) target = $region12
    $region11: #{custom_cnn_forward.6} parent=5 // pred_region
      %s117 = ssub.s32 %s9, 1
      // Predicated region
      $region13: #{custom_cnn_forward.6} parent=11 // pred_check
        %p118 = pneg %p56
      $region14: #{custom_cnn_forward.6} parent=11 // pred_check_branch
        %120 = sbr.rel (%p118) target = $region16
      $region15: #{custom_cnn_forward.6} parent=11 // pred_region
        _
      $region16: #{custom_cnn_forward.6} parent=11 // pred_fallthru
        _
      // Predicated region
      $region17: #{custom_cnn_forward.6} parent=11 // pred_check
        %p121 = pneg %p77
      $region18: #{custom_cnn_forward.6} parent=11 // pred_check_branch
        %123 = sbr.rel (%p121) target = $region20
      $region19: #{custom_cnn_forward.6} parent=11 // pred_region
        _
      $region20: #{custom_cnn_forward.6} parent=11 // pred_fallthru
        _
    $region12: #{custom_cnn_forward.6} parent=5 // pred_fallthru
      _
    %p124 = scmp.lt.s32.totalorder %s9, 2
    // Predicated region
    $region21: #{custom_cnn_forward.6} parent=5 // pred_check
      %p125 = pneg %p124
    $region22: #{custom_cnn_forward.6} parent=5 // pred_check_branch
      %127 = sbr.rel (%p125) target = $region24
    $region23: #{custom_cnn_forward.6} parent=5 // pred_region
      // Predicated region
      $region25: #{custom_cnn_forward.6} parent=23 // pred_check
        %p128 = pneg %p29
      $region26: #{custom_cnn_forward.6} parent=23 // pred_check_branch
        %130 = sbr.rel (%p128) target = $region28
      $region27: #{custom_cnn_forward.6} parent=23 // pred_region
        %p131 = scmp.lt.s32.totalorder %s9, 1
        %s132 = scalar_select %p131, %s9, 1
        %s133 = smul.addr %s132, 43
        %s134 = smul.addr %s133, 4
        %s135 = scalar_lea.vmem %s0, %s134
      $region28: #{custom_cnn_forward.6} parent=23 // pred_fallthru
        _
    $region24: #{custom_cnn_forward.6} parent=5 // pred_fallthru
      _
    %p136 = scmp.le.s32.totalorder 1, %s9
    %p137 = scmp.lt.s32.totalorder %s9, 3
    %p138 = pnand %p136, %p137
    %p139 = pneg %p138
    // Predicated region
    $region29: #{custom_cnn_forward.6} parent=5 // pred_check
      _
    $region30: #{custom_cnn_forward.6} parent=5 // pred_check_branch
      %141 = sbr.rel (%p138) target = $region32
    $region31: #{custom_cnn_forward.6} parent=5 // pred_region
      %s142 = ssub.s32 %s9, 1
      %p143 = scmp.lt.s32.totalorder %s14, 1
      %s144 = scalar_select %p143, %s14, 1
      %s145 = smul.addr %s144, 43
      %s146 = smul.addr %s145, 4
      %s147 = scalar_lea.vmem %s0, %s146
      %p148 = pneg %p35
      %p149 = pneg %p32
      %p150 = pneg %p56
      %p151 = pneg %p53
      %p152 = pneg %p77
      %p153 = pneg %p74
      %p154 = pneg %p103
      %p155 = pneg %p100
      %p156 = scmp.lt.s32.totalorder %s14, 1
      %s157 = scalar_select %p156, %s14, 1
      %s158 = smul.addr %s157, 8
      %s159 = smul.addr %s158, 4
      %s160 = scalar_lea.vmem %s3, %s159
      %p161 = scmp.lt.s32.totalorder %s14, 1
      %s162 = scalar_select %p161, %s14, 1
      %s163 = smul.addr %s162, 43
      %s164 = smul.addr %s163, 4
      %s165 = scalar_lea.vmem %s0, %s164
      %p166 = scmp.lt.s32.totalorder %s14, 1
      %s167 = scalar_select %p166, %s14, 1
      %s168 = smul.addr %s167, 8
      %s169 = smul.addr %s168, 4
      %s170 = scalar_lea.vmem %s3, %s169
      %v172 = vld [vmem:[%s165] sm:$0xf]
      %v173 = vld [vmem:[%s165 + $0x4] sm:$0xf]
      %v174 = vld [vmem:[%s165 + $0x8] sm:$0xf]
      %v175 = vld [vmem:[%s165 + $0xc] sm:$0xf]
      %v176 = vld [vmem:[%s165 + $0x10] sm:$0xf]
      %v177 = vld [vmem:[%s165 + $0x14] sm:$0xf]
      %v178 = vld [vmem:[%s165 + $0x18] sm:$0xf]
      %v179 = vld [vmem:[%s165 + $0x1c] sm:$0xf]
      %v180 = vld [vmem:[%s165 + $0x20] sm:$0xf]
      %v181 = vld [vmem:[%s165 + $0x24] sm:$0xf]
      %v182 = vld [vmem:[%s165 + $0x28] sm:$0xf]
      %v183 = vld [vmem:[%s165 + $0x2c] sm:$0xf]
      %v184 = vld [vmem:[%s165 + $0x30] sm:$0xf]
      %v185 = vld [vmem:[%s165 + $0x34] sm:$0xf]
      %v186 = vld [vmem:[%s165 + $0x38] sm:$0xf]
      %v187 = vld [vmem:[%s165 + $0x3c] sm:$0xf]
      %v188 = vld [vmem:[%s165 + $0x40] sm:$0xf]
      %v189 = vld [vmem:[%s165 + $0x44] sm:$0xf]
      %v190 = vld [vmem:[%s165 + $0x48] sm:$0xf]
      %v191 = vld [vmem:[%s165 + $0x4c] sm:$0xf]
      %v192 = vld [vmem:[%s165 + $0x50] sm:$0xf]
      %v193 = vld [vmem:[%s165 + $0x54] sm:$0xf]
      %v194 = vld [vmem:[%s165 + $0x58] sm:$0xf]
      %v195 = vld [vmem:[%s165 + $0x5c] sm:$0xf]
      %v196 = vld [vmem:[%s165 + $0x60] sm:$0xf]
      %v197 = vld [vmem:[%s165 + $0x64] sm:$0xf]
      %v198 = vld [vmem:[%s165 + $0x68] sm:$0xf]
      %v199 = vld [vmem:[%s165 + $0x6c] sm:$0xf]
      %v200 = vld [vmem:[%s165 + $0x70] sm:$0xf]
      %v201 = vld [vmem:[%s165 + $0x74] sm:$0xf]
      %v202 = vld [vmem:[%s165 + $0x78] sm:$0xf]
      %v203 = vld [vmem:[%s165 + $0x7c] sm:$0xf]
      %v204 = vld [vmem:[%s165 + $0x80] sm:$0xf]
      %v205 = vld [vmem:[%s165 + $0x84] sm:$0xf]
      %v206 = vld [vmem:[%s165 + $0x88] sm:$0xf]
      %v207 = vld [vmem:[%s165 + $0x8c] sm:$0xf]
      %v208 = vld [vmem:[%s1] sm:$0xf]
      %v209 = vld [vmem:[%s1 + $0x4] sm:$0xf]
      %v210 = vld [vmem:[%s1 + $0x8] sm:$0xf]
      %v211 = vld [vmem:[%s1 + $0xc] sm:$0xf]
      %v248 = vunpack.c.l.b16 %v172
      %v249 = vunpack.c.l.b16 %v173
      %v250 = vunpack.c.l.b16 %v174
      %v251 = vunpack.c.l.b16 %v175
      %v252 = vunpack.c.l.b16 %v176
      %v253 = vunpack.c.l.b16 %v177
      %v254 = vunpack.c.l.b16 %v178
      %v255 = vunpack.c.l.b16 %v179
      %v256 = vunpack.c.l.b16 %v180
      %v257 = vunpack.c.l.b16 %v181
      %v258 = vunpack.c.l.b16 %v182
      %v259 = vunpack.c.l.b16 %v183
      %v260 = vunpack.c.l.b16 %v184
      %v261 = vunpack.c.l.b16 %v185
      %v262 = vunpack.c.l.b16 %v186
      %v263 = vunpack.c.l.b16 %v187
      %v264 = vunpack.c.l.b16 %v188
      %v265 = vunpack.c.l.b16 %v189
      %v266 = vunpack.c.l.b16 %v190
      %v267 = vunpack.c.l.b16 %v191
      %v268 = vunpack.c.l.b16 %v192
      %v269 = vunpack.c.l.b16 %v193
      %v270 = vunpack.c.l.b16 %v194
      %v271 = vunpack.c.l.b16 %v195
      %v272 = vunpack.c.l.b16 %v196
      %v273 = vunpack.c.l.b16 %v197
      %v274 = vunpack.c.l.b16 %v198
      %v275 = vunpack.c.l.b16 %v199
      %v276 = vunpack.c.l.b16 %v200
      %v277 = vunpack.c.l.b16 %v201
      %v278 = vunpack.c.l.b16 %v202
      %v279 = vunpack.c.l.b16 %v203
      %v280 = vunpack.c.l.b16 %v204
      %v281 = vunpack.c.l.b16 %v205
      %v282 = vunpack.c.l.b16 %v206
      %v283 = vunpack.c.l.b16 %v207
      %v284 = vpack.c.b16 %v249, %v248
      %v285 = vpack.c.b16 %v251, %v250
      %v286 = vpack.c.b16 %v253, %v252
      %v287 = vpack.c.b16 %v255, %v254
      %v288 = vpack.c.b16 %v257, %v256
      %v289 = vpack.c.b16 %v259, %v258
      %v290 = vpack.c.b16 %v261, %v260
      %v291 = vpack.c.b16 %v263, %v262
      %v292 = vpack.c.b16 %v265, %v264
      %v293 = vpack.c.b16 %v267, %v266
      %v294 = vpack.c.b16 %v269, %v268
      %v295 = vpack.c.b16 %v271, %v270
      %v296 = vpack.c.b16 %v273, %v272
      %v297 = vpack.c.b16 %v275, %v274
      %v298 = vpack.c.b16 %v277, %v276
      %v299 = vpack.c.b16 %v279, %v278
      %v300 = vpack.c.b16 %v281, %v280
      %v301 = vpack.c.b16 %v283, %v282
      %v306 = vunpack.c.l.b16 %v208
      %v307 = vunpack.c.l.b16 %v209
      %v308 = vunpack.c.l.b16 %v210
      %v309 = vunpack.c.l.b16 %v211
      %v310 = vpack.c.b16 %v307, %v306
      %v311 = vpack.c.b16 %v309, %v308
      %vm314 = vcmask 261120
      %v316 = vsel %vm314, %v284, 0
      %v319 = vsel %vm314, %v285, 0
      %v322 = vsel %vm314, %v286, 0
      %v325 = vsel %vm314, %v287, 0
      %v328 = vsel %vm314, %v288, 0
      %v331 = vsel %vm314, %v289, 0
      %v334 = vsel %vm314, %v290, 0
      %v337 = vsel %vm314, %v291, 0
      %v340 = vsel %vm314, %v292, 0
      %v343 = vsel %vm314, %v293, 0
      %v346 = vsel %vm314, %v294, 0
      %v349 = vsel %vm314, %v295, 0
      %v352 = vsel %vm314, %v296, 0
      %v355 = vsel %vm314, %v297, 0
      %v358 = vsel %vm314, %v298, 0
      %v361 = vsel %vm314, %v299, 0
      %v364 = vsel %vm314, %v300, 0
      %v367 = vsel %vm314, %v301, 0
      %369 = vmatprep.subr.bf16.mxu0 0
      %370 = vmatpush1.bf16.msra.mxu0 %v310
      %371 = vmatprep.subr.bf16.mxu0 0
      %372 = vmatpush1.bf16.msra.mxu0 %v311
      %373 = vmatprep.subr.bf16.mxu0 0
      %374 = vmatpush1.bf16.msra.mxu0 0
      %375 = vmatprep.subr.bf16.mxu0 0
      %376 = vmatpush1.bf16.msra.mxu0 0
      %377 = vmatprep.subr.bf16.mxu0 0
      %378 = vmatpush1.bf16.msra.mxu0 0
      %379 = vmatprep.subr.bf16.mxu0 0
      %380 = vmatpush1.bf16.msra.mxu0 0
      %381 = vmatprep.subr.bf16.mxu0 0
      %382 = vmatpush1.bf16.msra.mxu0 0
      %383 = vmatprep.subr.bf16.mxu0 0
      %384 = vmatpush1.bf16.msra.mxu0 0
      %385 = vmatprep.subr.bf16.mxu0 0
      %386 = vmatpush1.bf16.msra.mxu0 0
      %387 = vmatprep.subr.bf16.mxu0 0
      %388 = vmatpush1.bf16.msra.mxu0 0
      %389 = vmatprep.subr.bf16.mxu0 0
      %390 = vmatpush1.bf16.msra.mxu0 0
      %391 = vmatprep.subr.bf16.mxu0 0
      %392 = vmatpush1.bf16.msra.mxu0 0
      %393 = vmatprep.subr.bf16.mxu0 0
      %394 = vmatpush1.bf16.msra.mxu0 0
      %395 = vmatprep.subr.bf16.mxu0 0
      %396 = vmatpush1.bf16.msra.mxu0 0
      %397 = vmatprep.subr.bf16.mxu0 0
      %398 = vmatpush1.bf16.msra.mxu0 0
      %399 = vmatprep.subr.bf16.mxu0 0
      %400 = vmatpush1.bf16.msra.mxu0 0
      %401 = vmatprep.mubr.bf16.mxu0 0
      %402 = vmatmul.mubr.bf16.gmra.mrb[0].mxu0 %v316
      %v403 = vpop.f32.mrb[0].mxu0
      %v404 = vadd.f32 0.0, %v403
      %v405 = vpop.f32.mrb[0].mxu0
      %v406 = vpop.f32.mrb[0].mxu0
      %v407 = vadd.f32 0.0, %v406
      %v408 = vpop.f32.mrb[0].mxu0
      %409 = vmatprep.mubr.bf16.mxu0 0
      %410 = vmatmul.mubr.bf16.gmra.mrb[0].mxu0 %v319
      %v411 = vpop.f32.mrb[0].mxu0
      %v412 = vadd.f32 0.0, %v411
      %v413 = vpop.f32.mrb[0].mxu0
      %v414 = vpop.f32.mrb[0].mxu0
      %v415 = vadd.f32 0.0, %v414
      %v416 = vpop.f32.mrb[0].mxu0
      %417 = vmatprep.mubr.bf16.mxu0 0
      %418 = vmatmul.mubr.bf16.gmra.mrb[0].mxu0 %v322
      %v419 = vpop.f32.mrb[0].mxu0
      %v420 = vadd.f32 0.0, %v419
      %v421 = vpop.f32.mrb[0].mxu0
      %v422 = vpop.f32.mrb[0].mxu0
      %v423 = vadd.f32 0.0, %v422
      %v424 = vpop.f32.mrb[0].mxu0
      %425 = vmatprep.mubr.bf16.mxu0 0
      %426 = vmatmul.mubr.bf16.gmra.mrb[0].mxu0 %v325
      %v427 = vpop.f32.mrb[0].mxu0
      %v428 = vadd.f32 0.0, %v427
      %v429 = vpop.f32.mrb[0].mxu0
      %v430 = vpop.f32.mrb[0].mxu0
      %v431 = vadd.f32 0.0, %v430
      %v432 = vpop.f32.mrb[0].mxu0
      %433 = vmatprep.mubr.bf16.mxu0 0
      %434 = vmatmul.mubr.bf16.gmra.mrb[0].mxu0 %v328
      %v435 = vpop.f32.mrb[0].mxu0
      %v436 = vadd.f32 0.0, %v435
      %v437 = vpop.f32.mrb[0].mxu0
      %v438 = vpop.f32.mrb[0].mxu0
      %v439 = vadd.f32 0.0, %v438
      %v440 = vpop.f32.mrb[0].mxu0
      %441 = vmatprep.mubr.bf16.mxu0 0
      %442 = vmatmul.mubr.bf16.gmra.mrb[0].mxu0 %v331
      %v443 = vpop.f32.mrb[0].mxu0
      %v444 = vadd.f32 0.0, %v443
      %v445 = vpop.f32.mrb[0].mxu0
      %v446 = vpop.f32.mrb[0].mxu0
      %v447 = vadd.f32 0.0, %v446
      %v448 = vpop.f32.mrb[0].mxu0
      %449 = vmatprep.mubr.bf16.mxu0 0
      %450 = vmatmul.mubr.bf16.gmra.mrb[0].mxu0 %v334
      %v451 = vpop.f32.mrb[0].mxu0
      %v452 = vadd.f32 0.0, %v451
      %v453 = vpop.f32.mrb[0].mxu0
      %v454 = vpop.f32.mrb[0].mxu0
      %v455 = vadd.f32 0.0, %v454
      %v456 = vpop.f32.mrb[0].mxu0
      %457 = vmatprep.mubr.bf16.mxu0 0
      %458 = vmatmul.mubr.bf16.gmra.mrb[0].mxu0 %v337
      %v459 = vpop.f32.mrb[0].mxu0
      %v460 = vadd.f32 0.0, %v459
      %v461 = vpop.f32.mrb[0].mxu0
      %v462 = vpop.f32.mrb[0].mxu0
      %v463 = vadd.f32 0.0, %v462
      %v464 = vpop.f32.mrb[0].mxu0
      %465 = vmatprep.mubr.bf16.mxu0 0
      %466 = vmatmul.mubr.bf16.gmra.mrb[0].mxu0 %v340
      %v467 = vpop.f32.mrb[0].mxu0
      %v468 = vadd.f32 0.0, %v467
      %v469 = vpop.f32.mrb[0].mxu0
      %v470 = vpop.f32.mrb[0].mxu0
      %v471 = vadd.f32 0.0, %v470
      %v472 = vpop.f32.mrb[0].mxu0
      %473 = vmatprep.mubr.bf16.mxu0 0
      %474 = vmatmul.mubr.bf16.gmra.mrb[0].mxu0 %v343
      %v475 = vpop.f32.mrb[0].mxu0
      %v476 = vadd.f32 0.0, %v475
      %v477 = vpop.f32.mrb[0].mxu0
      %v478 = vpop.f32.mrb[0].mxu0
      %v479 = vadd.f32 0.0, %v478
      %v480 = vpop.f32.mrb[0].mxu0
      %481 = vmatprep.mubr.bf16.mxu0 0
      %482 = vmatmul.mubr.bf16.gmra.mrb[0].mxu0 %v346
      %v483 = vpop.f32.mrb[0].mxu0
      %v484 = vadd.f32 0.0, %v483
      %v485 = vpop.f32.mrb[0].mxu0
      %v486 = vpop.f32.mrb[0].mxu0
      %v487 = vadd.f32 0.0, %v486
      %v488 = vpop.f32.mrb[0].mxu0
      %489 = vmatprep.mubr.bf16.mxu0 0
      %490 = vmatmul.mubr.bf16.gmra.mrb[0].mxu0 %v349
      %v491 = vpop.f32.mrb[0].mxu0
      %v492 = vadd.f32 0.0, %v491
      %v493 = vpop.f32.mrb[0].mxu0
      %v494 = vpop.f32.mrb[0].mxu0
      %v495 = vadd.f32 0.0, %v494
      %v496 = vpop.f32.mrb[0].mxu0
      %497 = vmatprep.mubr.bf16.mxu0 0
      %498 = vmatmul.mubr.bf16.gmra.mrb[0].mxu0 %v352
      %v499 = vpop.f32.mrb[0].mxu0
      %v500 = vadd.f32 0.0, %v499
      %v501 = vpop.f32.mrb[0].mxu0
      %v502 = vpop.f32.mrb[0].mxu0
      %v503 = vadd.f32 0.0, %v502
      %v504 = vpop.f32.mrb[0].mxu0
      %505 = vmatprep.mubr.bf16.mxu0 0
      %506 = vmatmul.mubr.bf16.gmra.mrb[0].mxu0 %v355
      %v507 = vpop.f32.mrb[0].mxu0
      %v508 = vadd.f32 0.0, %v507
      %v509 = vpop.f32.mrb[0].mxu0
      %v510 = vpop.f32.mrb[0].mxu0
      %v511 = vadd.f32 0.0, %v510
      %v512 = vpop.f32.mrb[0].mxu0
      %513 = vmatprep.mubr.bf16.mxu0 0
      %514 = vmatmul.mubr.bf16.gmra.mrb[0].mxu0 %v358
      %v515 = vpop.f32.mrb[0].mxu0
      %v516 = vadd.f32 0.0, %v515
      %v517 = vpop.f32.mrb[0].mxu0
      %v518 = vpop.f32.mrb[0].mxu0
      %v519 = vadd.f32 0.0, %v518
      %v520 = vpop.f32.mrb[0].mxu0
      %521 = vmatprep.mubr.bf16.mxu0 0
      %522 = vmatmul.mubr.bf16.gmra.mrb[0].mxu0 %v361
      %v523 = vpop.f32.mrb[0].mxu0
      %v524 = vadd.f32 0.0, %v523
      %v525 = vpop.f32.mrb[0].mxu0
      %v526 = vpop.f32.mrb[0].mxu0
      %v527 = vadd.f32 0.0, %v526
      %v528 = vpop.f32.mrb[0].mxu0
      %529 = vmatprep.mubr.bf16.mxu0 0
      %530 = vmatmul.mubr.bf16.gmra.mrb[0].mxu0 %v364
      %v531 = vpop.f32.mrb[0].mxu0
      %v532 = vadd.f32 0.0, %v531
      %v533 = vpop.f32.mrb[0].mxu0
      %v534 = vpop.f32.mrb[0].mxu0
      %v535 = vadd.f32 0.0, %v534
      %v536 = vpop.f32.mrb[0].mxu0
      %537 = vmatprep.mubr.bf16.mxu0 0
      %538 = vmatmul.mubr.bf16.gmra.mrb[0].mxu0 %v367
      %v539 = vpop.f32.mrb[0].mxu0
      %v540 = vadd.f32 0.0, %v539
      %v541 = vpop.f32.mrb[0].mxu0
      %v542 = vpop.f32.mrb[0].mxu0
      %v543 = vadd.f32 0.0, %v542
      %v544 = vpop.f32.mrb[0].mxu0
      %545 = vdwg.mxu0
      %vm546 = vcmask 523264
      %547 = vst.msk [vmem:[#allocation2] sm:$0xff] %vm546, %v404
      %548 = vst.msk [vmem:[#allocation2 + $0x8] sm:$0xff] %vm546, %v407
      %549 = vst.msk [vmem:[#allocation2 + $0x10] sm:$0xff] %vm546, %v412
      %550 = vst.msk [vmem:[#allocation2 + $0x18] sm:$0xff] %vm546, %v415
      %551 = vst.msk [vmem:[#allocation2 + $0x20] sm:$0xff] %vm546, %v420
      %552 = vst.msk [vmem:[#allocation2 + $0x28] sm:$0xff] %vm546, %v423
      %553 = vst.msk [vmem:[#allocation2 + $0x30] sm:$0xff] %vm546, %v428
      %554 = vst.msk [vmem:[#allocation2 + $0x38] sm:$0xff] %vm546, %v431
      %555 = vst.msk [vmem:[#allocation2 + $0x40] sm:$0xff] %vm546, %v436
      %556 = vst.msk [vmem:[#allocation2 + $0x48] sm:$0xff] %vm546, %v439
      %557 = vst.msk [vmem:[#allocation2 + $0x50] sm:$0xff] %vm546, %v444
      %558 = vst.msk [vmem:[#allocation2 + $0x58] sm:$0xff] %vm546, %v447
      %559 = vst.msk [vmem:[#allocation2 + $0x60] sm:$0xff] %vm546, %v452
      %560 = vst.msk [vmem:[#allocation2 + $0x68] sm:$0xff] %vm546, %v455
      %561 = vst.msk [vmem:[#allocation2 + $0x70] sm:$0xff] %vm546, %v460
      %562 = vst.msk [vmem:[#allocation2 + $0x78] sm:$0xff] %vm546, %v463
      %563 = vst.msk [vmem:[#allocation2 + $0x80] sm:$0xff] %vm546, %v468
      %564 = vst.msk [vmem:[#allocation2 + $0x88] sm:$0xff] %vm546, %v471
      %565 = vst.msk [vmem:[#allocation2 + $0x90] sm:$0xff] %vm546, %v476
      %566 = vst.msk [vmem:[#allocation2 + $0x98] sm:$0xff] %vm546, %v479
      %567 = vst.msk [vmem:[#allocation2 + $0xa0] sm:$0xff] %vm546, %v484
      %568 = vst.msk [vmem:[#allocation2 + $0xa8] sm:$0xff] %vm546, %v487
      %569 = vst.msk [vmem:[#allocation2 + $0xb0] sm:$0xff] %vm546, %v492
      %570 = vst.msk [vmem:[#allocation2 + $0xb8] sm:$0xff] %vm546, %v495
      %571 = vst.msk [vmem:[#allocation2 + $0xc0] sm:$0xff] %vm546, %v500
      %572 = vst.msk [vmem:[#allocation2 + $0xc8] sm:$0xff] %vm546, %v503
      %573 = vst.msk [vmem:[#allocation2 + $0xd0] sm:$0xff] %vm546, %v508
      %574 = vst.msk [vmem:[#allocation2 + $0xd8] sm:$0xff] %vm546, %v511
      %575 = vst.msk [vmem:[#allocation2 + $0xe0] sm:$0xff] %vm546, %v516
      %576 = vst.msk [vmem:[#allocation2 + $0xe8] sm:$0xff] %vm546, %v519
      %577 = vst.msk [vmem:[#allocation2 + $0xf0] sm:$0xff] %vm546, %v524
      %578 = vst.msk [vmem:[#allocation2 + $0xf8] sm:$0xff] %vm546, %v527
      %579 = vst.msk [vmem:[#allocation2 + $0x100] sm:$0xff] %vm546, %v532
      %580 = vst.msk [vmem:[#allocation2 + $0x108] sm:$0xff] %vm546, %v535
      %581 = vst.msk [vmem:[#allocation2 + $0x110] sm:$0xff] %vm546, %v540
      %582 = vst.msk [vmem:[#allocation2 + $0x118] sm:$0xff] %vm546, %v543
      %v583 = vld [vmem:[%s165] sm:$0xf]
      %v584 = vld [vmem:[%s165 + $0x4] sm:$0xf]
      %v585 = vld [vmem:[%s165 + $0x8] sm:$0xf]
      %v586 = vld [vmem:[%s165 + $0xc] sm:$0xf]
      %v587 = vld [vmem:[%s165 + $0x10] sm:$0xf]
      %v588 = vld [vmem:[%s165 + $0x14] sm:$0xf]
      %v589 = vld [vmem:[%s165 + $0x18] sm:$0xf]
      %v590 = vld [vmem:[%s165 + $0x1c] sm:$0xf]
      %v591 = vld [vmem:[%s165 + $0x20] sm:$0xf]
      %v592 = vld [vmem:[%s165 + $0x24] sm:$0xf]
      %v593 = vld [vmem:[%s165 + $0x28] sm:$0xf]
      %v594 = vld [vmem:[%s165 + $0x2c] sm:$0xf]
      %v595 = vld [vmem:[%s165 + $0x30] sm:$0xf]
      %v596 = vld [vmem:[%s165 + $0x34] sm:$0xf]
      %v597 = vld [vmem:[%s165 + $0x38] sm:$0xf]
      %v598 = vld [vmem:[%s165 + $0x3c] sm:$0xf]
      %v599 = vld [vmem:[%s165 + $0x40] sm:$0xf]
      %v600 = vld [vmem:[%s165 + $0x44] sm:$0xf]
      %v601 = vld [vmem:[%s165 + $0x48] sm:$0xf]
      %v602 = vld [vmem:[%s165 + $0x4c] sm:$0xf]
      %v603 = vld [vmem:[%s165 + $0x50] sm:$0xf]
      %v604 = vld [vmem:[%s165 + $0x54] sm:$0xf]
      %v605 = vld [vmem:[%s165 + $0x58] sm:$0xf]
      %v606 = vld [vmem:[%s165 + $0x5c] sm:$0xf]
      %v607 = vld [vmem:[%s165 + $0x60] sm:$0xf]
      %v608 = vld [vmem:[%s165 + $0x64] sm:$0xf]
      %v609 = vld [vmem:[%s165 + $0x68] sm:$0xf]
      %v610 = vld [vmem:[%s165 + $0x6c] sm:$0xf]
      %v611 = vld [vmem:[%s165 + $0x70] sm:$0xf]
      %v612 = vld [vmem:[%s165 + $0x74] sm:$0xf]
      %v613 = vld [vmem:[%s165 + $0x78] sm:$0xf]
      %v614 = vld [vmem:[%s165 + $0x7c] sm:$0xf]
      %v615 = vld [vmem:[%s165 + $0x80] sm:$0xf]
      %v616 = vld [vmem:[%s165 + $0x84] sm:$0xf]
      %v617 = vld [vmem:[%s165 + $0x88] sm:$0xf]
      %v618 = vld [vmem:[%s165 + $0x8c] sm:$0xf]
      %v619 = vld [vmem:[%s165 + $0x90] sm:$0x1]
      %s620 = scalar_lea.vmem %s1, 16
      %v621 = vld [vmem:[%s620] sm:$0xf]
      %v622 = vld [vmem:[%s620 + $0x4] sm:$0xf]
      %v623 = vld [vmem:[%s620 + $0x8] sm:$0xf]
      %v624 = vld [vmem:[%s620 + $0xc] sm:$0xf]
      %v662 = vunpack.c.l.b16 %v583
      %v663 = vunpack.c.l.b16 %v584
      %v664 = vunpack.c.l.b16 %v585
      %v665 = vunpack.c.l.b16 %v586
      %v666 = vunpack.c.l.b16 %v587
      %v667 = vunpack.c.l.b16 %v588
      %v668 = vunpack.c.l.b16 %v589
      %v669 = vunpack.c.l.b16 %v590
      %v670 = vunpack.c.l.b16 %v591
      %v671 = vunpack.c.l.b16 %v592
      %v672 = vunpack.c.l.b16 %v593
      %v673 = vunpack.c.l.b16 %v594
      %v674 = vunpack.c.l.b16 %v595
      %v675 = vunpack.c.l.b16 %v596
      %v676 = vunpack.c.l.b16 %v597
      %v677 = vunpack.c.l.b16 %v598
      %v678 = vunpack.c.l.b16 %v599
      %v679 = vunpack.c.l.b16 %v600
      %v680 = vunpack.c.l.b16 %v601
      %v681 = vunpack.c.l.b16 %v602
      %v682 = vunpack.c.l.b16 %v603
      %v683 = vunpack.c.l.b16 %v604
      %v684 = vunpack.c.l.b16 %v605
      %v685 = vunpack.c.l.b16 %v606
      %v686 = vunpack.c.l.b16 %v607
      %v687 = vunpack.c.l.b16 %v608
      %v688 = vunpack.c.l.b16 %v609
      %v689 = vunpack.c.l.b16 %v610
      %v690 = vunpack.c.l.b16 %v611
      %v691 = vunpack.c.l.b16 %v612
      %v692 = vunpack.c.l.b16 %v613
      %v693 = vunpack.c.l.b16 %v614
      %v694 = vunpack.c.l.b16 %v615
      %v695 = vunpack.c.l.b16 %v616
      %v696 = vunpack.c.l.b16 %v617
      %v697 = vunpack.c.l.b16 %v618
      %v698 = vunpack.c.l.b16 %v619
      %v699 = vpack.c.b16 %v663, %v662
      %v700 = vpack.c.b16 %v665, %v664
      %v701 = vpack.c.b16 %v667, %v666
      %v702 = vpack.c.b16 %v669, %v668
      %v703 = vpack.c.b16 %v671, %v670
      %v704 = vpack.c.b16 %v673, %v672
      %v705 = vpack.c.b16 %v675, %v674
      %v706 = vpack.c.b16 %v677, %v676
      %v707 = vpack.c.b16 %v679, %v678
      %v708 = vpack.c.b16 %v681, %v680
      %v709 = vpack.c.b16 %v683, %v682
      %v710 = vpack.c.b16 %v685, %v684
      %v711 = vpack.c.b16 %v687, %v686
      %v712 = vpack.c.b16 %v689, %v688
      %v713 = vpack.c.b16 %v691, %v690
      %v714 = vpack.c.b16 %v693, %v692
      %v715 = vpack.c.b16 %v695, %v694
      %v716 = vpack.c.b16 %v697, %v696
      %v717 = vpack.c.b16 %v698, %v698
      %vm718 = vsmask.f32 7424
      %v720 = vshrl.u32 %v699, 16
      %v722 = vshll.u32 %v699, 16
      %v724 = vrot.slane %v722, 1
      %v725 = vor.u32 %v720, %v724
      %v727 = vshll.u32 %v700, 16
      %v729 = vrot.slane %v727, 1
      %v730 = vsel %vm718, %v725, %v729
      %v731 = vshrl.u32 %v700, 16
      %v733 = vor.u32 %v731, %v729
      %v735 = vshll.u32 %v701, 16
      %v737 = vrot.slane %v735, 1
      %v738 = vsel %vm718, %v733, %v737
      %v739 = vshrl.u32 %v701, 16
      %v741 = vor.u32 %v739, %v737
      %v743 = vshll.u32 %v702, 16
      %v745 = vrot.slane %v743, 1
      %v746 = vsel %vm718, %v741, %v745
      %v747 = vshrl.u32 %v702, 16
      %v749 = vor.u32 %v747, %v745
      %v751 = vshll.u32 %v703, 16
      %v753 = vrot.slane %v751, 1
      %v754 = vsel %vm718, %v749, %v753
      %v755 = vshrl.u32 %v703, 16
      %v757 = vor.u32 %v755, %v753
      %v759 = vshll.u32 %v704, 16
      %v761 = vrot.slane %v759, 1
      %v762 = vsel %vm718, %v757, %v761
      %v763 = vshrl.u32 %v704, 16
      %v765 = vor.u32 %v763, %v761
      %v767 = vshll.u32 %v705, 16
      %v769 = vrot.slane %v767, 1
      %v770 = vsel %vm718, %v765, %v769
      %v771 = vshrl.u32 %v705, 16
      %v773 = vor.u32 %v771, %v769
      %v775 = vshll.u32 %v706, 16
      %v777 = vrot.slane %v775, 1
      %v778 = vsel %vm718, %v773, %v777
      %v779 = vshrl.u32 %v706, 16
      %v781 = vor.u32 %v779, %v777
      %v783 = vshll.u32 %v707, 16
      %v785 = vrot.slane %v783, 1
      %v786 = vsel %vm718, %v781, %v785
      %v787 = vshrl.u32 %v707, 16
      %v789 = vor.u32 %v787, %v785
      %v791 = vshll.u32 %v708, 16
      %v793 = vrot.slane %v791, 1
      %v794 = vsel %vm718, %v789, %v793
      %v795 = vshrl.u32 %v708, 16
      %v797 = vor.u32 %v795, %v793
      %v799 = vshll.u32 %v709, 16
      %v801 = vrot.slane %v799, 1
      %v802 = vsel %vm718, %v797, %v801
      %v803 = vshrl.u32 %v709, 16
      %v805 = vor.u32 %v803, %v801
      %v807 = vshll.u32 %v710, 16
      %v809 = vrot.slane %v807, 1
      %v810 = vsel %vm718, %v805, %v809
      %v811 = vshrl.u32 %v710, 16
      %v813 = vor.u32 %v811, %v809
      %v815 = vshll.u32 %v711, 16
      %v817 = vrot.slane %v815, 1
      %v818 = vsel %vm718, %v813, %v817
      %v819 = vshrl.u32 %v711, 16
      %v821 = vor.u32 %v819, %v817
      %v823 = vshll.u32 %v712, 16
      %v825 = vrot.slane %v823, 1
      %v826 = vsel %vm718, %v821, %v825
      %v827 = vshrl.u32 %v712, 16
      %v829 = vor.u32 %v827, %v825
      %v831 = vshll.u32 %v713, 16
      %v833 = vrot.slane %v831, 1
      %v834 = vsel %vm718, %v829, %v833
      %v835 = vshrl.u32 %v713, 16
      %v837 = vor.u32 %v835, %v833
      %v839 = vshll.u32 %v714, 16
      %v841 = vrot.slane %v839, 1
      %v842 = vsel %vm718, %v837, %v841
      %v843 = vshrl.u32 %v714, 16
      %v845 = vor.u32 %v843, %v841
      %v847 = vshll.u32 %v715, 16
      %v849 = vrot.slane %v847, 1
      %v850 = vsel %vm718, %v845, %v849
      %v851 = vshrl.u32 %v715, 16
      %v853 = vor.u32 %v851, %v849
      %v855 = vshll.u32 %v716, 16
      %v857 = vrot.slane %v855, 1
      %v858 = vsel %vm718, %v853, %v857
      %v859 = vshrl.u32 %v716, 16
      %v861 = vor.u32 %v859, %v857
      %v863 = vshll.u32 %v717, 16
      %v865 = vrot.slane %v863, 1
      %v866 = vsel %vm718, %v861, %v865
      %v871 = vunpack.c.l.b16 %v621
      %v872 = vunpack.c.l.b16 %v622
      %v873 = vunpack.c.l.b16 %v623
      %v874 = vunpack.c.l.b16 %v624
      %v875 = vpack.c.b16 %v872, %v871
      %v876 = vpack.c.b16 %v874, %v873
      %v880 = vsel %vm314, %v730, 0
      %v883 = vsel %vm314, %v738, 0
      %v886 = vsel %vm314, %v746, 0
      %v889 = vsel %vm314, %v754, 0
      %v892 = vsel %vm314, %v762, 0
      %v895 = vsel %vm314, %v770, 0
      %v898 = vsel %vm314, %v778, 0
      %v901 = vsel %vm314, %v786, 0
      %v904 = vsel %vm314, %v794, 0
      %v907 = vsel %vm314, %v802, 0
      %v910 = vsel %vm314, %v810, 0
      %v913 = vsel %vm314, %v818, 0
      %v916 = vsel %vm314, %v826, 0
      %v919 = vsel %vm314, %v834, 0
      %v922 = vsel %vm314, %v842, 0
      %v925 = vsel %vm314, %v850, 0
      %v928 = vsel %vm314, %v858, 0
      %v931 = vsel %vm314, %v866, 0
      %933 = vmatprep.subr.bf16.mxu0 0
      %934 = vmatpush1.bf16.msra.mxu0 %v875
      %935 = vmatprep.subr.bf16.mxu0 0
      %936 = vmatpush1.bf16.msra.mxu0 %v876
      %937 = vmatprep.subr.bf16.mxu0 0
      %938 = vmatpush1.bf16.msra.mxu0 0
      %939 = vmatprep.subr.bf16.mxu0 0
      %940 = vmatpush1.bf16.msra.mxu0 0
      %941 = vmatprep.subr.bf16.mxu0 0
      %942 = vmatpush1.bf16.msra.mxu0 0
      %943 = vmatprep.subr.bf16.mxu0 0
      %944 = vmatpush1.bf16.msra.mxu0 0
      %945 = vmatprep.subr.bf16.mxu0 0
      %946 = vmatpush1.bf16.msra.mxu0 0
      %947 = vmatprep.subr.bf16.mxu0 0
      %948 = vmatpush1.bf16.msra.mxu0 0
      %949 = vmatprep.subr.bf16.mxu0 0
      %950 = vmatpush1.bf16.msra.mxu0 0
      %951 = vmatprep.subr.bf16.mxu0 0
      %952 = vmatpush1.bf16.msra.mxu0 0
      %953 = vmatprep.subr.bf16.mxu0 0
      %954 = vmatpush1.bf16.msra.mxu0 0
      %955 = vmatprep.subr.bf16.mxu0 0
      %956 = vmatpush1.bf16.msra.mxu0 0
      %957 = vmatprep.subr.bf16.mxu0 0
      %958 = vmatpush1.bf16.msra.mxu0 0
      %959 = vmatprep.subr.bf16.mxu0 0
      %960 = vmatpush1.bf16.msra.mxu0 0
      %961 = vmatprep.subr.bf16.mxu0 0
      %962 = vmatpush1.bf16.msra.mxu0 0
      %963 = vmatprep.subr.bf16.mxu0 0
      %964 = vmatpush1.bf16.msra.mxu0 0
      %965 = vmatprep.mubr.bf16.mxu0 0
      %966 = vmatmul.mubr.bf16.gmra.mrb[0].mxu0 %v880
      %v967 = vpop.f32.mrb[0].mxu0
      %v968 = vadd.f32 0.0, %v967
      %v969 = vpop.f32.mrb[0].mxu0
      %v970 = vpop.f32.mrb[0].mxu0
      %v971 = vadd.f32 0.0, %v970
      %v972 = vpop.f32.mrb[0].mxu0
      %973 = vmatprep.mubr.bf16.mxu0 0
      %974 = vmatmul.mubr.bf16.gmra.mrb[0].mxu0 %v883
      %v975 = vpop.f32.mrb[0].mxu0
      %v976 = vadd.f32 0.0, %v975
      %v977 = vpop.f32.mrb[0].mxu0
      %v978 = vpop.f32.mrb[0].mxu0
      %v979 = vadd.f32 0.0, %v978
      %v980 = vpop.f32.mrb[0].mxu0
      %981 = vmatprep.mubr.bf16.mxu0 0
      %982 = vmatmul.mubr.bf16.gmra.mrb[0].mxu0 %v886
      %v983 = vpop.f32.mrb[0].mxu0
      %v984 = vadd.f32 0.0, %v983
      %v985 = vpop.f32.mrb[0].mxu0
      %v986 = vpop.f32.mrb[0].mxu0
      %v987 = vadd.f32 0.0, %v986
      %v988 = vpop.f32.mrb[0].mxu0
      %989 = vmatprep.mubr.bf16.mxu0 0
      %990 = vmatmul.mubr.bf16.gmra.mrb[0].mxu0 %v889
      %v991 = vpop.f32.mrb[0].mxu0
      %v992 = vadd.f32 0.0, %v991
      %v993 = vpop.f32.mrb[0].mxu0
      %v994 = vpop.f32.mrb[0].mxu0
      %v995 = vadd.f32 0.0, %v994
      %v996 = vpop.f32.mrb[0].mxu0
      %997 = vmatprep.mubr.bf16.mxu0 0
      %998 = vmatmul.mubr.bf16.gmra.mrb[0].mxu0 %v892
      %v999 = vpop.f32.mrb[0].mxu0
      %v1000 = vadd.f32 0.0, %v999
      %v1001 = vpop.f32.mrb[0].mxu0
      %v1002 = vpop.f32.mrb[0].mxu0
      %v1003 = vadd.f32 0.0, %v1002
      %v1004 = vpop.f32.mrb[0].mxu0
      %1005 = vmatprep.mubr.bf16.mxu0 0
      %1006 = vmatmul.mubr.bf16.gmra.mrb[0].mxu0 %v895
      %v1007 = vpop.f32.mrb[0].mxu0
      %v1008 = vadd.f32 0.0, %v1007
      %v1009 = vpop.f32.mrb[0].mxu0
      %v1010 = vpop.f32.mrb[0].mxu0
      %v1011 = vadd.f32 0.0, %v1010
      %v1012 = vpop.f32.mrb[0].mxu0
      %1013 = vmatprep.mubr.bf16.mxu0 0
      %1014 = vmatmul.mubr.bf16.gmra.mrb[0].mxu0 %v898
      %v1015 = vpop.f32.mrb[0].mxu0
      %v1016 = vadd.f32 0.0, %v1015
      %v1017 = vpop.f32.mrb[0].mxu0
      %v1018 = vpop.f32.mrb[0].mxu0
      %v1019 = vadd.f32 0.0, %v1018
      %v1020 = vpop.f32.mrb[0].mxu0
      %1021 = vmatprep.mubr.bf16.mxu0 0
      %1022 = vmatmul.mubr.bf16.gmra.mrb[0].mxu0 %v901
      %v1023 = vpop.f32.mrb[0].mxu0
      %v1024 = vadd.f32 0.0, %v1023
      %v1025 = vpop.f32.mrb[0].mxu0
      %v1026 = vpop.f32.mrb[0].mxu0
      %v1027 = vadd.f32 0.0, %v1026
      %v1028 = vpop.f32.mrb[0].mxu0
      %1029 = vmatprep.mubr.bf16.mxu0 0
      %1030 = vmatmul.mubr.bf16.gmra.mrb[0].mxu0 %v904
      %v1031 = vpop.f32.mrb[0].mxu0
      %v1032 = vadd.f32 0.0, %v1031
      %v1033 = vpop.f32.mrb[0].mxu0
      %v1034 = vpop.f32.mrb[0].mxu0
      %v1035 = vadd.f32 0.0, %v1034
      %v1036 = vpop.f32.mrb[0].mxu0
      %1037 = vmatprep.mubr.bf16.mxu0 0
      %1038 = vmatmul.mubr.bf16.gmra.mrb[0].mxu0 %v907
      %v1039 = vpop.f32.mrb[0].mxu0
      %v1040 = vadd.f32 0.0, %v1039
      %v1041 = vpop.f32.mrb[0].mxu0
      %v1042 = vpop.f32.mrb[0].mxu0
      %v1043 = vadd.f32 0.0, %v1042
      %v1044 = vpop.f32.mrb[0].mxu0
      %1045 = vmatprep.mubr.bf16.mxu0 0
      %1046 = vmatmul.mubr.bf16.gmra.mrb[0].mxu0 %v910
      %v1047 = vpop.f32.mrb[0].mxu0
      %v1048 = vadd.f32 0.0, %v1047
      %v1049 = vpop.f32.mrb[0].mxu0
      %v1050 = vpop.f32.mrb[0].mxu0
      %v1051 = vadd.f32 0.0, %v1050
      %v1052 = vpop.f32.mrb[0].mxu0
      %1053 = vmatprep.mubr.bf16.mxu0 0
      %1054 = vmatmul.mubr.bf16.gmra.mrb[0].mxu0 %v913
      %v1055 = vpop.f32.mrb[0].mxu0
      %v1056 = vadd.f32 0.0, %v1055
      %v1057 = vpop.f32.mrb[0].mxu0
      %v1058 = vpop.f32.mrb[0].mxu0
      %v1059 = vadd.f32 0.0, %v1058
      %v1060 = vpop.f32.mrb[0].mxu0
      %1061 = vmatprep.mubr.bf16.mxu0 0
      %1062 = vmatmul.mubr.bf16.gmra.mrb[0].mxu0 %v916
      %v1063 = vpop.f32.mrb[0].mxu0
      %v1064 = vadd.f32 0.0, %v1063
      %v1065 = vpop.f32.mrb[0].mxu0
      %v1066 = vpop.f32.mrb[0].mxu0
      %v1067 = vadd.f32 0.0, %v1066
      %v1068 = vpop.f32.mrb[0].mxu0
      %1069 = vmatprep.mubr.bf16.mxu0 0
      %1070 = vmatmul.mubr.bf16.gmra.mrb[0].mxu0 %v919
      %v1071 = vpop.f32.mrb[0].mxu0
      %v1072 = vadd.f32 0.0, %v1071
      %v1073 = vpop.f32.mrb[0].mxu0
      %v1074 = vpop.f32.mrb[0].mxu0
      %v1075 = vadd.f32 0.0, %v1074
      %v1076 = vpop.f32.mrb[0].mxu0
      %1077 = vmatprep.mubr.bf16.mxu0 0
      %1078 = vmatmul.mubr.bf16.gmra.mrb[0].mxu0 %v922
      %v1079 = vpop.f32.mrb[0].mxu0
      %v1080 = vadd.f32 0.0, %v1079
      %v1081 = vpop.f32.mrb[0].mxu0
      %v1082 = vpop.f32.mrb[0].mxu0
      %v1083 = vadd.f32 0.0, %v1082
      %v1084 = vpop.f32.mrb[0].mxu0
      %1085 = vmatprep.mubr.bf16.mxu0 0
      %1086 = vmatmul.mubr.bf16.gmra.mrb[0].mxu0 %v925
      %v1087 = vpop.f32.mrb[0].mxu0
      %v1088 = vadd.f32 0.0, %v1087
      %v1089 = vpop.f32.mrb[0].mxu0
      %v1090 = vpop.f32.mrb[0].mxu0
      %v1091 = vadd.f32 0.0, %v1090
      %v1092 = vpop.f32.mrb[0].mxu0
      %1093 = vmatprep.mubr.bf16.mxu0 0
      %1094 = vmatmul.mubr.bf16.gmra.mrb[0].mxu0 %v928
      %v1095 = vpop.f32.mrb[0].mxu0
      %v1096 = vadd.f32 0.0, %v1095
      %v1097 = vpop.f32.mrb[0].mxu0
      %v1098 = vpop.f32.mrb[0].mxu0
      %v1099 = vadd.f32 0.0, %v1098
      %v1100 = vpop.f32.mrb[0].mxu0
      %1101 = vmatprep.mubr.bf16.mxu0 0
      %1102 = vmatmul.mubr.bf16.gmra.mrb[0].mxu0 %v931
      %v1103 = vpop.f32.mrb[0].mxu0
      %v1104 = vadd.f32 0.0, %v1103
      %v1105 = vpop.f32.mrb[0].mxu0
      %v1106 = vpop.f32.mrb[0].mxu0
      %v1107 = vadd.f32 0.0, %v1106
      %v1108 = vpop.f32.mrb[0].mxu0
      %1109 = vdwg.mxu0
      %v1110 = vld [vmem:[#allocation2] sm:$0xff]
      %v1111 = vld [vmem:[#allocation2 + $0x8] sm:$0xff]
      %v1112 = vld [vmem:[#allocation2 + $0x10] sm:$0xff]
      %v1113 = vld [vmem:[#allocation2 + $0x18] sm:$0xff]
      %v1114 = vld [vmem:[#allocation2 + $0x20] sm:$0xff]
      %v1115 = vld [vmem:[#allocation2 + $0x28] sm:$0xff]
      %v1116 = vld [vmem:[#allocation2 + $0x30] sm:$0xff]
      %v1117 = vld [vmem:[#allocation2 + $0x38] sm:$0xff]
      %v1118 = vld [vmem:[#allocation2 + $0x40] sm:$0xff]
      %v1119 = vld [vmem:[#allocation2 + $0x48] sm:$0xff]
      %v1120 = vld [vmem:[#allocation2 + $0x50] sm:$0xff]
      %v1121 = vld [vmem:[#allocation2 + $0x58] sm:$0xff]
      %v1122 = vld [vmem:[#allocation2 + $0x60] sm:$0xff]
      %v1123 = vld [vmem:[#allocation2 + $0x68] sm:$0xff]
      %v1124 = vld [vmem:[#allocation2 + $0x70] sm:$0xff]
      %v1125 = vld [vmem:[#allocation2 + $0x78] sm:$0xff]
      %v1126 = vld [vmem:[#allocation2 + $0x80] sm:$0xff]
      %v1127 = vld [vmem:[#allocation2 + $0x88] sm:$0xff]
      %v1128 = vld [vmem:[#allocation2 + $0x90] sm:$0xff]
      %v1129 = vld [vmem:[#allocation2 + $0x98] sm:$0xff]
      %v1130 = vld [vmem:[#allocation2 + $0xa0] sm:$0xff]
      %v1131 = vld [vmem:[#allocation2 + $0xa8] sm:$0xff]
      %v1132 = vld [vmem:[#allocation2 + $0xb0] sm:$0xff]
      %v1133 = vld [vmem:[#allocation2 + $0xb8] sm:$0xff]
      %v1134 = vld [vmem:[#allocation2 + $0xc0] sm:$0xff]
      %v1135 = vld [vmem:[#allocation2 + $0xc8] sm:$0xff]
      %v1136 = vld [vmem:[#allocation2 + $0xd0] sm:$0xff]
      %v1137 = vld [vmem:[#allocation2 + $0xd8] sm:$0xff]
      %v1138 = vld [vmem:[#allocation2 + $0xe0] sm:$0xff]
      %v1139 = vld [vmem:[#allocation2 + $0xe8] sm:$0xff]
      %v1140 = vld [vmem:[#allocation2 + $0xf0] sm:$0xff]
      %v1141 = vld [vmem:[#allocation2 + $0xf8] sm:$0xff]
      %v1142 = vld [vmem:[#allocation2 + $0x100] sm:$0xff]
      %v1143 = vld [vmem:[#allocation2 + $0x108] sm:$0xff]
      %v1144 = vld [vmem:[#allocation2 + $0x110] sm:$0xff]
      %v1145 = vld [vmem:[#allocation2 + $0x118] sm:$0xff]
      %v1146 = vadd.f32 %v1110, %v968
      %v1147 = vadd.f32 %v1111, %v971
      %v1148 = vadd.f32 %v1112, %v976
      %v1149 = vadd.f32 %v1113, %v979
      %v1150 = vadd.f32 %v1114, %v984
      %v1151 = vadd.f32 %v1115, %v987
      %v1152 = vadd.f32 %v1116, %v992
      %v1153 = vadd.f32 %v1117, %v995
      %v1154 = vadd.f32 %v1118, %v1000
      %v1155 = vadd.f32 %v1119, %v1003
      %v1156 = vadd.f32 %v1120, %v1008
      %v1157 = vadd.f32 %v1121, %v1011
      %v1158 = vadd.f32 %v1122, %v1016
      %v1159 = vadd.f32 %v1123, %v1019
      %v1160 = vadd.f32 %v1124, %v1024
      %v1161 = vadd.f32 %v1125, %v1027
      %v1162 = vadd.f32 %v1126, %v1032
      %v1163 = vadd.f32 %v1127, %v1035
      %v1164 = vadd.f32 %v1128, %v1040
      %v1165 = vadd.f32 %v1129, %v1043
      %v1166 = vadd.f32 %v1130, %v1048
      %v1167 = vadd.f32 %v1131, %v1051
      %v1168 = vadd.f32 %v1132, %v1056
      %v1169 = vadd.f32 %v1133, %v1059
      %v1170 = vadd.f32 %v1134, %v1064
      %v1171 = vadd.f32 %v1135, %v1067
      %v1172 = vadd.f32 %v1136, %v1072
      %v1173 = vadd.f32 %v1137, %v1075
      %v1174 = vadd.f32 %v1138, %v1080
      %v1175 = vadd.f32 %v1139, %v1083
      %v1176 = vadd.f32 %v1140, %v1088
      %v1177 = vadd.f32 %v1141, %v1091
      %v1178 = vadd.f32 %v1142, %v1096
      %v1179 = vadd.f32 %v1143, %v1099
      %v1180 = vadd.f32 %v1144, %v1104
      %v1181 = vadd.f32 %v1145, %v1107
      %1182 = vst.msk [vmem:[#allocation2] sm:$0xff] %vm546, %v1146
      %1183 = vst.msk [vmem:[#allocation2 + $0x8] sm:$0xff] %vm546, %v1147
      %1184 = vst.msk [vmem:[#allocation2 + $0x10] sm:$0xff] %vm546, %v1148
      %1185 = vst.msk [vmem:[#allocation2 + $0x18] sm:$0xff] %vm546, %v1149
      %1186 = vst.msk [vmem:[#allocation2 + $0x20] sm:$0xff] %vm546, %v1150
      %1187 = vst.msk [vmem:[#allocation2 + $0x28] sm:$0xff] %vm546, %v1151
      %1188 = vst.msk [vmem:[#allocation2 + $0x30] sm:$0xff] %vm546, %v1152
      %1189 = vst.msk [vmem:[#allocation2 + $0x38] sm:$0xff] %vm546, %v1153
      %1190 = vst.msk [vmem:[#allocation2 + $0x40] sm:$0xff] %vm546, %v1154
      %1191 = vst.msk [vmem:[#allocation2 + $0x48] sm:$0xff] %vm546, %v1155
      %1192 = vst.msk [vmem:[#allocation2 + $0x50] sm:$0xff] %vm546, %v1156
      %1193 = vst.msk [vmem:[#allocation2 + $0x58] sm:$0xff] %vm546, %v1157
      %1194 = vst.msk [vmem:[#allocation2 + $0x60] sm:$0xff] %vm546, %v1158
      %1195 = vst.msk [vmem:[#allocation2 + $0x68] sm:$0xff] %vm546, %v1159
      %1196 = vst.msk [vmem:[#allocation2 + $0x70] sm:$0xff] %vm546, %v1160
      %1197 = vst.msk [vmem:[#allocation2 + $0x78] sm:$0xff] %vm546, %v1161
      %1198 = vst.msk [vmem:[#allocation2 + $0x80] sm:$0xff] %vm546, %v1162
      %1199 = vst.msk [vmem:[#allocation2 + $0x88] sm:$0xff] %vm546, %v1163
      %1200 = vst.msk [vmem:[#allocation2 + $0x90] sm:$0xff] %vm546, %v1164
      %1201 = vst.msk [vmem:[#allocation2 + $0x98] sm:$0xff] %vm546, %v1165
      %1202 = vst.msk [vmem:[#allocation2 + $0xa0] sm:$0xff] %vm546, %v1166
      %1203 = vst.msk [vmem:[#allocation2 + $0xa8] sm:$0xff] %vm546, %v1167
      %1204 = vst.msk [vmem:[#allocation2 + $0xb0] sm:$0xff] %vm546, %v1168
      %1205 = vst.msk [vmem:[#allocation2 + $0xb8] sm:$0xff] %vm546, %v1169
      %1206 = vst.msk [vmem:[#allocation2 + $0xc0] sm:$0xff] %vm546, %v1170
      %1207 = vst.msk [vmem:[#allocation2 + $0xc8] sm:$0xff] %vm546, %v1171
      %1208 = vst.msk [vmem:[#allocation2 + $0xd0] sm:$0xff] %vm546, %v1172
      %1209 = vst.msk [vmem:[#allocation2 + $0xd8] sm:$0xff] %vm546, %v1173
      %1210 = vst.msk [vmem:[#allocation2 + $0xe0] sm:$0xff] %vm546, %v1174
      %1211 = vst.msk [vmem:[#allocation2 + $0xe8] sm:$0xff] %vm546, %v1175
      %1212 = vst.msk [vmem:[#allocation2 + $0xf0] sm:$0xff] %vm546, %v1176
      %1213 = vst.msk [vmem:[#allocation2 + $0xf8] sm:$0xff] %vm546, %v1177
      %1214 = vst.msk [vmem:[#allocation2 + $0x100] sm:$0xff] %vm546, %v1178
      %1215 = vst.msk [vmem:[#allocation2 + $0x108] sm:$0xff] %vm546, %v1179
      %1216 = vst.msk [vmem:[#allocation2 + $0x110] sm:$0xff] %vm546, %v1180
      %1217 = vst.msk [vmem:[#allocation2 + $0x118] sm:$0xff] %vm546, %v1181
      %v1218 = vld [vmem:[%s165] sm:$0xe]
      %v1219 = vld [vmem:[%s165 + $0x4] sm:$0xf]
      %v1220 = vld [vmem:[%s165 + $0x8] sm:$0xf]
      %v1221 = vld [vmem:[%s165 + $0xc] sm:$0xf]
      %v1222 = vld [vmem:[%s165 + $0x10] sm:$0xf]
      %v1223 = vld [vmem:[%s165 + $0x14] sm:$0xf]
      %v1224 = vld [vmem:[%s165 + $0x18] sm:$0xf]
      %v1225 = vld [vmem:[%s165 + $0x1c] sm:$0xf]
      %v1226 = vld [vmem:[%s165 + $0x20] sm:$0xf]
      %v1227 = vld [vmem:[%s165 + $0x24] sm:$0xf]
      %v1228 = vld [vmem:[%s165 + $0x28] sm:$0xf]
      %v1229 = vld [vmem:[%s165 + $0x2c] sm:$0xf]
      %v1230 = vld [vmem:[%s165 + $0x30] sm:$0xf]
      %v1231 = vld [vmem:[%s165 + $0x34] sm:$0xf]
      %v1232 = vld [vmem:[%s165 + $0x38] sm:$0xf]
      %v1233 = vld [vmem:[%s165 + $0x3c] sm:$0xf]
      %v1234 = vld [vmem:[%s165 + $0x40] sm:$0xf]
      %v1235 = vld [vmem:[%s165 + $0x44] sm:$0xf]
      %v1236 = vld [vmem:[%s165 + $0x48] sm:$0xf]
      %v1237 = vld [vmem:[%s165 + $0x4c] sm:$0xf]
      %v1238 = vld [vmem:[%s165 + $0x50] sm:$0xf]
      %v1239 = vld [vmem:[%s165 + $0x54] sm:$0xf]
      %v1240 = vld [vmem:[%s165 + $0x58] sm:$0xf]
      %v1241 = vld [vmem:[%s165 + $0x5c] sm:$0xf]
      %v1242 = vld [vmem:[%s165 + $0x60] sm:$0xf]
      %v1243 = vld [vmem:[%s165 + $0x64] sm:$0xf]
      %v1244 = vld [vmem:[%s165 + $0x68] sm:$0xf]
      %v1245 = vld [vmem:[%s165 + $0x6c] sm:$0xf]
      %v1246 = vld [vmem:[%s165 + $0x70] sm:$0xf]
      %v1247 = vld [vmem:[%s165 + $0x74] sm:$0xf]
      %v1248 = vld [vmem:[%s165 + $0x78] sm:$0xf]
      %v1249 = vld [vmem:[%s165 + $0x7c] sm:$0xf]
      %v1250 = vld [vmem:[%s165 + $0x80] sm:$0xf]
      %v1251 = vld [vmem:[%s165 + $0x84] sm:$0xf]
      %v1252 = vld [vmem:[%s165 + $0x88] sm:$0xf]
      %v1253 = vld [vmem:[%s165 + $0x8c] sm:$0xf]
      %v1254 = vld [vmem:[%s165 + $0x90] sm:$0x1]
      %s1255 = scalar_lea.vmem %s1, 32
      %v1256 = vld [vmem:[%s1255] sm:$0xf]
      %v1257 = vld [vmem:[%s1255 + $0x4] sm:$0xf]
      %v1258 = vld [vmem:[%s1255 + $0x8] sm:$0xf]
      %v1259 = vld [vmem:[%s1255 + $0xc] sm:$0xf]
      %v1297 = vunpack.c.l.b16 %v1218
      %v1298 = vunpack.c.l.b16 %v1219
      %v1299 = vunpack.c.l.b16 %v1220
      %v1300 = vunpack.c.l.b16 %v1221
      %v1301 = vunpack.c.l.b16 %v1222
      %v1302 = vunpack.c.l.b16 %v1223
      %v1303 = vunpack.c.l.b16 %v1224
      %v1304 = vunpack.c.l.b16 %v1225
      %v1305 = vunpack.c.l.b16 %v1226
      %v1306 = vunpack.c.l.b16 %v1227
      %v1307 = vunpack.c.l.b16 %v1228
      %v1308 = vunpack.c.l.b16 %v1229
      %v1309 = vunpack.c.l.b16 %v1230
      %v1310 = vunpack.c.l.b16 %v1231
      %v1311 = vunpack.c.l.b16 %v1232
      %v1312 = vunpack.c.l.b16 %v1233
      %v1313 = vunpack.c.l.b16 %v1234
      %v1314 = vunpack.c.l.b16 %v1235
      %v1315 = vunpack.c.l.b16 %v1236
      %v1316 = vunpack.c.l.b16 %v1237
      %v1317 = vunpack.c.l.b16 %v1238
      %v1318 = vunpack.c.l.b16 %v1239
      %v1319 = vunpack.c.l.b16 %v1240
      %v1320 = vunpack.c.l.b16 %v1241
      %v1321 = vunpack.c.l.b16 %v1242
      %v1322 = vunpack.c.l.b16 %v1243
      %v1323 = vunpack.c.l.b16 %v1244
      %v1324 = vunpack.c.l.b16 %v1245
      %v1325 = vunpack.c.l.b16 %v1246
      %v1326 = vunpack.c.l.b16 %v1247
      %v1327 = vunpack.c.l.b16 %v1248
      %v1328 = vunpack.c.l.b16 %v1249
      %v1329 = vunpack.c.l.b16 %v1250
      %v1330 = vunpack.c.l.b16 %v1251
      %v1331 = vunpack.c.l.b16 %v1252
      %v1332 = vunpack.c.l.b16 %v1253
      %v1333 = vunpack.c.l.b16 %v1254
      %v1334 = vpack.c.b16 %v1298, %v1297
      %v1335 = vpack.c.b16 %v1300, %v1299
      %v1336 = vpack.c.b16 %v1302, %v1301
      %v1337 = vpack.c.b16 %v1304, %v1303
      %v1338 = vpack.c.b16 %v1306, %v1305
      %v1339 = vpack.c.b16 %v1308, %v1307
      %v1340 = vpack.c.b16 %v1310, %v1309
      %v1341 = vpack.c.b16 %v1312, %v1311
      %v1342 = vpack.c.b16 %v1314, %v1313
      %v1343 = vpack.c.b16 %v1316, %v1315
      %v1344 = vpack.c.b16 %v1318, %v1317
      %v1345 = vpack.c.b16 %v1320, %v1319
      %v1346 = vpack.c.b16 %v1322, %v1321
      %v1347 = vpack.c.b16 %v1324, %v1323
      %v1348 = vpack.c.b16 %v1326, %v1325
      %v1349 = vpack.c.b16 %v1328, %v1327
      %v1350 = vpack.c.b16 %v1330, %v1329
      %v1351 = vpack.c.b16 %v1332, %v1331
      %v1352 = vpack.c.b16 %v1333, %v1333
      %vm1353 = vcmask 1046528
      %v1354 = vrot.slane %v1334, 1
      %v1355 = vrot.slane %v1335, 1
      %v1356 = vsel %vm1353, %v1354, %v1355
      %v1357 = vrot.slane %v1336, 1
      %v1358 = vsel %vm1353, %v1355, %v1357
      %v1359 = vrot.slane %v1337, 1
      %v1360 = vsel %vm1353, %v1357, %v1359
      %v1361 = vrot.slane %v1338, 1
      %v1362 = vsel %vm1353, %v1359, %v1361
      %v1363 = vrot.slane %v1339, 1
      %v1364 = vsel %vm1353, %v1361, %v1363
      %v1365 = vrot.slane %v1340, 1
      %v1366 = vsel %vm1353, %v1363, %v1365
      %v1367 = vrot.slane %v1341, 1
      %v1368 = vsel %vm1353, %v1365, %v1367
      %v1369 = vrot.slane %v1342, 1
      %v1370 = vsel %vm1353, %v1367, %v1369
      %v1371 = vrot.slane %v1343, 1
      %v1372 = vsel %vm1353, %v1369, %v1371
      %v1373 = vrot.slane %v1344, 1
      %v1374 = vsel %vm1353, %v1371, %v1373
      %v1375 = vrot.slane %v1345, 1
      %v1376 = vsel %vm1353, %v1373, %v1375
      %v1377 = vrot.slane %v1346, 1
      %v1378 = vsel %vm1353, %v1375, %v1377
      %v1379 = vrot.slane %v1347, 1
      %v1380 = vsel %vm1353, %v1377, %v1379
      %v1381 = vrot.slane %v1348, 1
      %v1382 = vsel %vm1353, %v1379, %v1381
      %v1383 = vrot.slane %v1349, 1
      %v1384 = vsel %vm1353, %v1381, %v1383
      %v1385 = vrot.slane %v1350, 1
      %v1386 = vsel %vm1353, %v1383, %v1385
      %v1387 = vrot.slane %v1351, 1
      %v1388 = vsel %vm1353, %v1385, %v1387
      %v1389 = vrot.slane %v1352, 1
      %v1390 = vsel %vm1353, %v1387, %v1389
      %v1395 = vunpack.c.l.b16 %v1256
      %v1396 = vunpack.c.l.b16 %v1257
      %v1397 = vunpack.c.l.b16 %v1258
      %v1398 = vunpack.c.l.b16 %v1259
      %v1399 = vpack.c.b16 %v1396, %v1395
      %v1400 = vpack.c.b16 %v1398, %v1397
      %v1404 = vsel %vm314, %v1356, 0
      %v1407 = vsel %vm314, %v1358, 0
      %v1410 = vsel %vm314, %v1360, 0
      %v1413 = vsel %vm314, %v1362, 0
      %v1416 = vsel %vm314, %v1364, 0
      %v1419 = vsel %vm314, %v1366, 0
      %v1422 = vsel %vm314, %v1368, 0
      %v1425 = vsel %vm314, %v1370, 0
      %v1428 = vsel %vm314, %v1372, 0
      %v1431 = vsel %vm314, %v1374, 0
      %v1434 = vsel %vm314, %v1376, 0
      %v1437 = vsel %vm314, %v1378, 0
      %v1440 = vsel %vm314, %v1380, 0
      %v1443 = vsel %vm314, %v1382, 0
      %v1446 = vsel %vm314, %v1384, 0
      %v1449 = vsel %vm314, %v1386, 0
      %v1452 = vsel %vm314, %v1388, 0
      %v1455 = vsel %vm314, %v1390, 0
      %1457 = vmatprep.subr.bf16.mxu0 0
      %1458 = vmatpush1.bf16.msra.mxu0 %v1399
      %1459 = vmatprep.subr.bf16.mxu0 0
      %1460 = vmatpush1.bf16.msra.mxu0 %v1400
      %1461 = vmatprep.subr.bf16.mxu0 0
      %1462 = vmatpush1.bf16.msra.mxu0 0
      %1463 = vmatprep.subr.bf16.mxu0 0
      %1464 = vmatpush1.bf16.msra.mxu0 0
      %1465 = vmatprep.subr.bf16.mxu0 0
      %1466 = vmatpush1.bf16.msra.mxu0 0
      %1467 = vmatprep.subr.bf16.mxu0 0
      %1468 = vmatpush1.bf16.msra.mxu0 0
      %1469 = vmatprep.subr.bf16.mxu0 0
      %1470 = vmatpush1.bf16.msra.mxu0 0
      %1471 = vmatprep.subr.bf16.mxu0 0
      %1472 = vmatpush1.bf16.msra.mxu0 0
      %1473 = vmatprep.subr.bf16.mxu0 0
      %1474 = vmatpush1.bf16.msra.mxu0 0
      %1475 = vmatprep.subr.bf16.mxu0 0
      %1476 = vmatpush1.bf16.msra.mxu0 0
      %1477 = vmatprep.subr.bf16.mxu0 0
      %1478 = vmatpush1.bf16.msra.mxu0 0
      %1479 = vmatprep.subr.bf16.mxu0 0
      %1480 = vmatpush1.bf16.msra.mxu0 0
      %1481 = vmatprep.subr.bf16.mxu0 0
      %1482 = vmatpush1.bf16.msra.mxu0 0
      %1483 = vmatprep.subr.bf16.mxu0 0
      %1484 = vmatpush1.bf16.msra.mxu0 0
      %1485 = vmatprep.subr.bf16.mxu0 0
      %1486 = vmatpush1.bf16.msra.mxu0 0
      %1487 = vmatprep.subr.bf16.mxu0 0
      %1488 = vmatpush1.bf16.msra.mxu0 0
      %1489 = vmatprep.mubr.bf16.mxu0 0
      %1490 = vmatmul.mubr.bf16.gmra.mrb[0].mxu0 %v1404
      %v1491 = vpop.f32.mrb[0].mxu0
      %v1492 = vadd.f32 0.0, %v1491
      %v1493 = vpop.f32.mrb[0].mxu0
      %v1494 = vpop.f32.mrb[0].mxu0
      %v1495 = vadd.f32 0.0, %v1494
      %v1496 = vpop.f32.mrb[0].mxu0
      %1497 = vmatprep.mubr.bf16.mxu0 0
      %1498 = vmatmul.mubr.bf16.gmra.mrb[0].mxu0 %v1407
      %v1499 = vpop.f32.mrb[0].mxu0
      %v1500 = vadd.f32 0.0, %v1499
      %v1501 = vpop.f32.mrb[0].mxu0
      %v1502 = vpop.f32.mrb[0].mxu0
      %v1503 = vadd.f32 0.0, %v1502
      %v1504 = vpop.f32.mrb[0].mxu0
      %1505 = vmatprep.mubr.bf16.mxu0 0
      %1506 = vmatmul.mubr.bf16.gmra.mrb[0].mxu0 %v1410
      %v1507 = vpop.f32.mrb[0].mxu0
      %v1508 = vadd.f32 0.0, %v1507
      %v1509 = vpop.f32.mrb[0].mxu0
      %v1510 = vpop.f32.mrb[0].mxu0
      %v1511 = vadd.f32 0.0, %v1510
      %v1512 = vpop.f32.mrb[0].mxu0
      %1513 = vmatprep.mubr.bf16.mxu0 0
      %1514 = vmatmul.mubr.bf16.gmra.mrb[0].mxu0 %v1413
      %v1515 = vpop.f32.mrb[0].mxu0
      %v1516 = vadd.f32 0.0, %v1515
      %v1517 = vpop.f32.mrb[0].mxu0
      %v1518 = vpop.f32.mrb[0].mxu0
      %v1519 = vadd.f32 0.0, %v1518
      %v1520 = vpop.f32.mrb[0].mxu0
      %1521 = vmatprep.mubr.bf16.mxu0 0
      %1522 = vmatmul.mubr.bf16.gmra.mrb[0].mxu0 %v1416
      %v1523 = vpop.f32.mrb[0].mxu0
      %v1524 = vadd.f32 0.0, %v1523
      %v1525 = vpop.f32.mrb[0].mxu0
      %v1526 = vpop.f32.mrb[0].mxu0
      %v1527 = vadd.f32 0.0, %v1526
      %v1528 = vpop.f32.mrb[0].mxu0
      %1529 = vmatprep.mubr.bf16.mxu0 0
      %1530 = vmatmul.mubr.bf16.gmra.mrb[0].mxu0 %v1419
      %v1531 = vpop.f32.mrb[0].mxu0
      %v1532 = vadd.f32 0.0, %v1531
      %v1533 = vpop.f32.mrb[0].mxu0
      %v1534 = vpop.f32.mrb[0].mxu0
      %v1535 = vadd.f32 0.0, %v1534
      %v1536 = vpop.f32.mrb[0].mxu0
      %1537 = vmatprep.mubr.bf16.mxu0 0
      %1538 = vmatmul.mubr.bf16.gmra.mrb[0].mxu0 %v1422
      %v1539 = vpop.f32.mrb[0].mxu0
      %v1540 = vadd.f32 0.0, %v1539
      %v1541 = vpop.f32.mrb[0].mxu0
      %v1542 = vpop.f32.mrb[0].mxu0
      %v1543 = vadd.f32 0.0, %v1542
      %v1544 = vpop.f32.mrb[0].mxu0
      %1545 = vmatprep.mubr.bf16.mxu0 0
      %1546 = vmatmul.mubr.bf16.gmra.mrb[0].mxu0 %v1425
      %v1547 = vpop.f32.mrb[0].mxu0
      %v1548 = vadd.f32 0.0, %v1547
      %v1549 = vpop.f32.mrb[0].mxu0
      %v1550 = vpop.f32.mrb[0].mxu0
      %v1551 = vadd.f32 0.0, %v1550
      %v1552 = vpop.f32.mrb[0].mxu0
      %1553 = vmatprep.mubr.bf16.mxu0 0
      %1554 = vmatmul.mubr.bf16.gmra.mrb[0].mxu0 %v1428
      %v1555 = vpop.f32.mrb[0].mxu0
      %v1556 = vadd.f32 0.0, %v1555
      %v1557 = vpop.f32.mrb[0].mxu0
      %v1558 = vpop.f32.mrb[0].mxu0
      %v1559 = vadd.f32 0.0, %v1558
      %v1560 = vpop.f32.mrb[0].mxu0
      %1561 = vmatprep.mubr.bf16.mxu0 0
      %1562 = vmatmul.mubr.bf16.gmra.mrb[0].mxu0 %v1431
      %v1563 = vpop.f32.mrb[0].mxu0
      %v1564 = vadd.f32 0.0, %v1563
      %v1565 = vpop.f32.mrb[0].mxu0
      %v1566 = vpop.f32.mrb[0].mxu0
      %v1567 = vadd.f32 0.0, %v1566
      %v1568 = vpop.f32.mrb[0].mxu0
      %1569 = vmatprep.mubr.bf16.mxu0 0
      %1570 = vmatmul.mubr.bf16.gmra.mrb[0].mxu0 %v1434
      %v1571 = vpop.f32.mrb[0].mxu0
      %v1572 = vadd.f32 0.0, %v1571
      %v1573 = vpop.f32.mrb[0].mxu0
      %v1574 = vpop.f32.mrb[0].mxu0
      %v1575 = vadd.f32 0.0, %v1574
      %v1576 = vpop.f32.mrb[0].mxu0
      %1577 = vmatprep.mubr.bf16.mxu0 0
      %1578 = vmatmul.mubr.bf16.gmra.mrb[0].mxu0 %v1437
      %v1579 = vpop.f32.mrb[0].mxu0
      %v1580 = vadd.f32 0.0, %v1579
      %v1581 = vpop.f32.mrb[0].mxu0
      %v1582 = vpop.f32.mrb[0].mxu0
      %v1583 = vadd.f32 0.0, %v1582
      %v1584 = vpop.f32.mrb[0].mxu0
      %1585 = vmatprep.mubr.bf16.mxu0 0
      %1586 = vmatmul.mubr.bf16.gmra.mrb[0].mxu0 %v1440
      %v1587 = vpop.f32.mrb[0].mxu0
      %v1588 = vadd.f32 0.0, %v1587
      %v1589 = vpop.f32.mrb[0].mxu0
      %v1590 = vpop.f32.mrb[0].mxu0
      %v1591 = vadd.f32 0.0, %v1590
      %v1592 = vpop.f32.mrb[0].mxu0
      %1593 = vmatprep.mubr.bf16.mxu0 0
      %1594 = vmatmul.mubr.bf16.gmra.mrb[0].mxu0 %v1443
      %v1595 = vpop.f32.mrb[0].mxu0
      %v1596 = vadd.f32 0.0, %v1595
      %v1597 = vpop.f32.mrb[0].mxu0
      %v1598 = vpop.f32.mrb[0].mxu0
      %v1599 = vadd.f32 0.0, %v1598
      %v1600 = vpop.f32.mrb[0].mxu0
      %1601 = vmatprep.mubr.bf16.mxu0 0
      %1602 = vmatmul.mubr.bf16.gmra.mrb[0].mxu0 %v1446
      %v1603 = vpop.f32.mrb[0].mxu0
      %v1604 = vadd.f32 0.0, %v1603
      %v1605 = vpop.f32.mrb[0].mxu0
      %v1606 = vpop.f32.mrb[0].mxu0
      %v1607 = vadd.f32 0.0, %v1606
      %v1608 = vpop.f32.mrb[0].mxu0
      %1609 = vmatprep.mubr.bf16.mxu0 0
      %1610 = vmatmul.mubr.bf16.gmra.mrb[0].mxu0 %v1449
      %v1611 = vpop.f32.mrb[0].mxu0
      %v1612 = vadd.f32 0.0, %v1611
      %v1613 = vpop.f32.mrb[0].mxu0
      %v1614 = vpop.f32.mrb[0].mxu0
      %v1615 = vadd.f32 0.0, %v1614
      %v1616 = vpop.f32.mrb[0].mxu0
      %1617 = vmatprep.mubr.bf16.mxu0 0
      %1618 = vmatmul.mubr.bf16.gmra.mrb[0].mxu0 %v1452
      %v1619 = vpop.f32.mrb[0].mxu0
      %v1620 = vadd.f32 0.0, %v1619
      %v1621 = vpop.f32.mrb[0].mxu0
      %v1622 = vpop.f32.mrb[0].mxu0
      %v1623 = vadd.f32 0.0, %v1622
      %v1624 = vpop.f32.mrb[0].mxu0
      %1625 = vmatprep.mubr.bf16.mxu0 0
      %1626 = vmatmul.mubr.bf16.gmra.mrb[0].mxu0 %v1455
      %v1627 = vpop.f32.mrb[0].mxu0
      %v1628 = vadd.f32 0.0, %v1627
      %v1629 = vpop.f32.mrb[0].mxu0
      %v1630 = vpop.f32.mrb[0].mxu0
      %v1631 = vadd.f32 0.0, %v1630
      %v1632 = vpop.f32.mrb[0].mxu0
      %1633 = vdwg.mxu0
      %v1634 = vld [vmem:[#allocation2] sm:$0xff]
      %v1635 = vld [vmem:[#allocation2 + $0x8] sm:$0xff]
      %v1636 = vld [vmem:[#allocation2 + $0x10] sm:$0xff]
      %v1637 = vld [vmem:[#allocation2 + $0x18] sm:$0xff]
      %v1638 = vld [vmem:[#allocation2 + $0x20] sm:$0xff]
      %v1639 = vld [vmem:[#allocation2 + $0x28] sm:$0xff]
      %v1640 = vld [vmem:[#allocation2 + $0x30] sm:$0xff]
      %v1641 = vld [vmem:[#allocation2 + $0x38] sm:$0xff]
      %v1642 = vld [vmem:[#allocation2 + $0x40] sm:$0xff]
      %v1643 = vld [vmem:[#allocation2 + $0x48] sm:$0xff]
      %v1644 = vld [vmem:[#allocation2 + $0x50] sm:$0xff]
      %v1645 = vld [vmem:[#allocation2 + $0x58] sm:$0xff]
      %v1646 = vld [vmem:[#allocation2 + $0x60] sm:$0xff]
      %v1647 = vld [vmem:[#allocation2 + $0x68] sm:$0xff]
      %v1648 = vld [vmem:[#allocation2 + $0x70] sm:$0xff]
      %v1649 = vld [vmem:[#allocation2 + $0x78] sm:$0xff]
      %v1650 = vld [vmem:[#allocation2 + $0x80] sm:$0xff]
      %v1651 = vld [vmem:[#allocation2 + $0x88] sm:$0xff]
      %v1652 = vld [vmem:[#allocation2 + $0x90] sm:$0xff]
      %v1653 = vld [vmem:[#allocation2 + $0x98] sm:$0xff]
      %v1654 = vld [vmem:[#allocation2 + $0xa0] sm:$0xff]
      %v1655 = vld [vmem:[#allocation2 + $0xa8] sm:$0xff]
      %v1656 = vld [vmem:[#allocation2 + $0xb0] sm:$0xff]
      %v1657 = vld [vmem:[#allocation2 + $0xb8] sm:$0xff]
      %v1658 = vld [vmem:[#allocation2 + $0xc0] sm:$0xff]
      %v1659 = vld [vmem:[#allocation2 + $0xc8] sm:$0xff]
      %v1660 = vld [vmem:[#allocation2 + $0xd0] sm:$0xff]
      %v1661 = vld [vmem:[#allocation2 + $0xd8] sm:$0xff]
      %v1662 = vld [vmem:[#allocation2 + $0xe0] sm:$0xff]
      %v1663 = vld [vmem:[#allocation2 + $0xe8] sm:$0xff]
      %v1664 = vld [vmem:[#allocation2 + $0xf0] sm:$0xff]
      %v1665 = vld [vmem:[#allocation2 + $0xf8] sm:$0xff]
      %v1666 = vld [vmem:[#allocation2 + $0x100] sm:$0xff]
      %v1667 = vld [vmem:[#allocation2 + $0x108] sm:$0xff]
      %v1668 = vld [vmem:[#allocation2 + $0x110] sm:$0xff]
      %v1669 = vld [vmem:[#allocation2 + $0x118] sm:$0xff]
      %v1670 = vadd.f32 %v1634, %v1492
      %v1671 = vadd.f32 %v1635, %v1495
      %v1672 = vadd.f32 %v1636, %v1500
      %v1673 = vadd.f32 %v1637, %v1503
      %v1674 = vadd.f32 %v1638, %v1508
      %v1675 = vadd.f32 %v1639, %v1511
      %v1676 = vadd.f32 %v1640, %v1516
      %v1677 = vadd.f32 %v1641, %v1519
      %v1678 = vadd.f32 %v1642, %v1524
      %v1679 = vadd.f32 %v1643, %v1527
      %v1680 = vadd.f32 %v1644, %v1532
      %v1681 = vadd.f32 %v1645, %v1535
      %v1682 = vadd.f32 %v1646, %v1540
      %v1683 = vadd.f32 %v1647, %v1543
      %v1684 = vadd.f32 %v1648, %v1548
      %v1685 = vadd.f32 %v1649, %v1551
      %v1686 = vadd.f32 %v1650, %v1556
      %v1687 = vadd.f32 %v1651, %v1559
      %v1688 = vadd.f32 %v1652, %v1564
      %v1689 = vadd.f32 %v1653, %v1567
      %v1690 = vadd.f32 %v1654, %v1572
      %v1691 = vadd.f32 %v1655, %v1575
      %v1692 = vadd.f32 %v1656, %v1580
      %v1693 = vadd.f32 %v1657, %v1583
      %v1694 = vadd.f32 %v1658, %v1588
      %v1695 = vadd.f32 %v1659, %v1591
      %v1696 = vadd.f32 %v1660, %v1596
      %v1697 = vadd.f32 %v1661, %v1599
      %v1698 = vadd.f32 %v1662, %v1604
      %v1699 = vadd.f32 %v1663, %v1607
      %v1700 = vadd.f32 %v1664, %v1612
      %v1701 = vadd.f32 %v1665, %v1615
      %v1702 = vadd.f32 %v1666, %v1620
      %v1703 = vadd.f32 %v1667, %v1623
      %v1704 = vadd.f32 %v1668, %v1628
      %v1705 = vadd.f32 %v1669, %v1631
      %1706 = vst.msk [vmem:[#allocation2] sm:$0xff] %vm546, %v1670
      %1707 = vst.msk [vmem:[#allocation2 + $0x8] sm:$0xff] %vm546, %v1671
      %1708 = vst.msk [vmem:[#allocation2 + $0x10] sm:$0xff] %vm546, %v1672
      %1709 = vst.msk [vmem:[#allocation2 + $0x18] sm:$0xff] %vm546, %v1673
      %1710 = vst.msk [vmem:[#allocation2 + $0x20] sm:$0xff] %vm546, %v1674
      %1711 = vst.msk [vmem:[#allocation2 + $0x28] sm:$0xff] %vm546, %v1675
      %1712 = vst.msk [vmem:[#allocation2 + $0x30] sm:$0xff] %vm546, %v1676
      %1713 = vst.msk [vmem:[#allocation2 + $0x38] sm:$0xff] %vm546, %v1677
      %1714 = vst.msk [vmem:[#allocation2 + $0x40] sm:$0xff] %vm546, %v1678
      %1715 = vst.msk [vmem:[#allocation2 + $0x48] sm:$0xff] %vm546, %v1679
      %1716 = vst.msk [vmem:[#allocation2 + $0x50] sm:$0xff] %vm546, %v1680
      %1717 = vst.msk [vmem:[#allocation2 + $0x58] sm:$0xff] %vm546, %v1681
      %1718 = vst.msk [vmem:[#allocation2 + $0x60] sm:$0xff] %vm546, %v1682
      %1719 = vst.msk [vmem:[#allocation2 + $0x68] sm:$0xff] %vm546, %v1683
      %1720 = vst.msk [vmem:[#allocation2 + $0x70] sm:$0xff] %vm546, %v1684
      %1721 = vst.msk [vmem:[#allocation2 + $0x78] sm:$0xff] %vm546, %v1685
      %1722 = vst.msk [vmem:[#allocation2 + $0x80] sm:$0xff] %vm546, %v1686
      %1723 = vst.msk [vmem:[#allocation2 + $0x88] sm:$0xff] %vm546, %v1687
      %1724 = vst.msk [vmem:[#allocation2 + $0x90] sm:$0xff] %vm546, %v1688
      %1725 = vst.msk [vmem:[#allocation2 + $0x98] sm:$0xff] %vm546, %v1689
      %1726 = vst.msk [vmem:[#allocation2 + $0xa0] sm:$0xff] %vm546, %v1690
      %1727 = vst.msk [vmem:[#allocation2 + $0xa8] sm:$0xff] %vm546, %v1691
      %1728 = vst.msk [vmem:[#allocation2 + $0xb0] sm:$0xff] %vm546, %v1692
      %1729 = vst.msk [vmem:[#allocation2 + $0xb8] sm:$0xff] %vm546, %v1693
      %1730 = vst.msk [vmem:[#allocation2 + $0xc0] sm:$0xff] %vm546, %v1694
      %1731 = vst.msk [vmem:[#allocation2 + $0xc8] sm:$0xff] %vm546, %v1695
      %1732 = vst.msk [vmem:[#allocation2 + $0xd0] sm:$0xff] %vm546, %v1696
      %1733 = vst.msk [vmem:[#allocation2 + $0xd8] sm:$0xff] %vm546, %v1697
      %1734 = vst.msk [vmem:[#allocation2 + $0xe0] sm:$0xff] %vm546, %v1698
      %1735 = vst.msk [vmem:[#allocation2 + $0xe8] sm:$0xff] %vm546, %v1699
      %1736 = vst.msk [vmem:[#allocation2 + $0xf0] sm:$0xff] %vm546, %v1700
      %1737 = vst.msk [vmem:[#allocation2 + $0xf8] sm:$0xff] %vm546, %v1701
      %1738 = vst.msk [vmem:[#allocation2 + $0x100] sm:$0xff] %vm546, %v1702
      %1739 = vst.msk [vmem:[#allocation2 + $0x108] sm:$0xff] %vm546, %v1703
      %1740 = vst.msk [vmem:[#allocation2 + $0x110] sm:$0xff] %vm546, %v1704
      %1741 = vst.msk [vmem:[#allocation2 + $0x118] sm:$0xff] %vm546, %v1705
      %v1742 = vld [vmem:[%s165 + $0x8] sm:$0xe]
      %v1743 = vld [vmem:[%s165 + $0xc] sm:$0xf]
      %v1744 = vld [vmem:[%s165 + $0x10] sm:$0xf]
      %v1745 = vld [vmem:[%s165 + $0x14] sm:$0xf]
      %v1746 = vld [vmem:[%s165 + $0x18] sm:$0xf]
      %v1747 = vld [vmem:[%s165 + $0x1c] sm:$0xf]
      %v1748 = vld [vmem:[%s165 + $0x20] sm:$0xf]
      %v1749 = vld [vmem:[%s165 + $0x24] sm:$0xf]
      %v1750 = vld [vmem:[%s165 + $0x28] sm:$0xf]
      %v1751 = vld [vmem:[%s165 + $0x2c] sm:$0xf]
      %v1752 = vld [vmem:[%s165 + $0x30] sm:$0xf]
      %v1753 = vld [vmem:[%s165 + $0x34] sm:$0xf]
      %v1754 = vld [vmem:[%s165 + $0x38] sm:$0xf]
      %v1755 = vld [vmem:[%s165 + $0x3c] sm:$0xf]
      %v1756 = vld [vmem:[%s165 + $0x40] sm:$0xf]
      %v1757 = vld [vmem:[%s165 + $0x44] sm:$0xf]
      %v1758 = vld [vmem:[%s165 + $0x48] sm:$0xf]
      %v1759 = vld [vmem:[%s165 + $0x4c] sm:$0xf]
      %v1760 = vld [vmem:[%s165 + $0x50] sm:$0xf]
      %v1761 = vld [vmem:[%s165 + $0x54] sm:$0xf]
      %v1762 = vld [vmem:[%s165 + $0x58] sm:$0xf]
      %v1763 = vld [vmem:[%s165 + $0x5c] sm:$0xf]
      %v1764 = vld [vmem:[%s165 + $0x60] sm:$0xf]
      %v1765 = vld [vmem:[%s165 + $0x64] sm:$0xf]
      %v1766 = vld [vmem:[%s165 + $0x68] sm:$0xf]
      %v1767 = vld [vmem:[%s165 + $0x6c] sm:$0xf]
      %v1768 = vld [vmem:[%s165 + $0x70] sm:$0xf]
      %v1769 = vld [vmem:[%s165 + $0x74] sm:$0xf]
      %v1770 = vld [vmem:[%s165 + $0x78] sm:$0xf]
      %v1771 = vld [vmem:[%s165 + $0x7c] sm:$0xf]
      %v1772 = vld [vmem:[%s165 + $0x80] sm:$0xf]
      %v1773 = vld [vmem:[%s165 + $0x84] sm:$0xf]
      %v1774 = vld [vmem:[%s165 + $0x88] sm:$0xf]
      %v1775 = vld [vmem:[%s165 + $0x8c] sm:$0xf]
      %v1776 = vld [vmem:[%s165 + $0x90] sm:$0xf]
      %v1777 = vld [vmem:[%s165 + $0x94] sm:$0xf]
      %v1778 = vld [vmem:[%s165 + $0x98] sm:$0x1]
      %s1779 = scalar_lea.vmem %s1, 48
      %v1780 = vld [vmem:[%s1779] sm:$0xf]
      %v1781 = vld [vmem:[%s1779 + $0x4] sm:$0xf]
      %v1782 = vld [vmem:[%s1779 + $0x8] sm:$0xf]
      %v1783 = vld [vmem:[%s1779 + $0xc] sm:$0xf]
      %v1821 = vunpack.c.l.b16 %v1742
      %v1822 = vunpack.c.l.b16 %v1743
      %v1823 = vunpack.c.l.b16 %v1744
      %v1824 = vunpack.c.l.b16 %v1745
      %v1825 = vunpack.c.l.b16 %v1746
      %v1826 = vunpack.c.l.b16 %v1747
      %v1827 = vunpack.c.l.b16 %v1748
      %v1828 = vunpack.c.l.b16 %v1749
      %v1829 = vunpack.c.l.b16 %v1750
      %v1830 = vunpack.c.l.b16 %v1751
      %v1831 = vunpack.c.l.b16 %v1752
      %v1832 = vunpack.c.l.b16 %v1753
      %v1833 = vunpack.c.l.b16 %v1754
      %v1834 = vunpack.c.l.b16 %v1755
      %v1835 = vunpack.c.l.b16 %v1756
      %v1836 = vunpack.c.l.b16 %v1757
      %v1837 = vunpack.c.l.b16 %v1758
      %v1838 = vunpack.c.l.b16 %v1759
      %v1839 = vunpack.c.l.b16 %v1760
      %v1840 = vunpack.c.l.b16 %v1761
      %v1841 = vunpack.c.l.b16 %v1762
      %v1842 = vunpack.c.l.b16 %v1763
      %v1843 = vunpack.c.l.b16 %v1764
      %v1844 = vunpack.c.l.b16 %v1765
      %v1845 = vunpack.c.l.b16 %v1766
      %v1846 = vunpack.c.l.b16 %v1767
      %v1847 = vunpack.c.l.b16 %v1768
      %v1848 = vunpack.c.l.b16 %v1769
      %v1849 = vunpack.c.l.b16 %v1770
      %v1850 = vunpack.c.l.b16 %v1771
      %v1851 = vunpack.c.l.b16 %v1772
      %v1852 = vunpack.c.l.b16 %v1773
      %v1853 = vunpack.c.l.b16 %v1774
      %v1854 = vunpack.c.l.b16 %v1775
      %v1855 = vunpack.c.l.b16 %v1776
      %v1856 = vunpack.c.l.b16 %v1777
      %v1857 = vunpack.c.l.b16 %v1778
      %v1858 = vpack.c.b16 %v1822, %v1821
      %v1859 = vpack.c.b16 %v1824, %v1823
      %v1860 = vpack.c.b16 %v1826, %v1825
      %v1861 = vpack.c.b16 %v1828, %v1827
      %v1862 = vpack.c.b16 %v1830, %v1829
      %v1863 = vpack.c.b16 %v1832, %v1831
      %v1864 = vpack.c.b16 %v1834, %v1833
      %v1865 = vpack.c.b16 %v1836, %v1835
      %v1866 = vpack.c.b16 %v1838, %v1837
      %v1867 = vpack.c.b16 %v1840, %v1839
      %v1868 = vpack.c.b16 %v1842, %v1841
      %v1869 = vpack.c.b16 %v1844, %v1843
      %v1870 = vpack.c.b16 %v1846, %v1845
      %v1871 = vpack.c.b16 %v1848, %v1847
      %v1872 = vpack.c.b16 %v1850, %v1849
      %v1873 = vpack.c.b16 %v1852, %v1851
      %v1874 = vpack.c.b16 %v1854, %v1853
      %v1875 = vpack.c.b16 %v1856, %v1855
      %v1876 = vpack.c.b16 %v1857, %v1857
      %v1877 = vrot.slane %v1858, 1
      %v1878 = vrot.slane %v1859, 1
      %v1879 = vsel %vm1353, %v1877, %v1878
      %v1880 = vrot.slane %v1860, 1
      %v1881 = vsel %vm1353, %v1878, %v1880
      %v1882 = vrot.slane %v1861, 1
      %v1883 = vsel %vm1353, %v1880, %v1882
      %v1884 = vrot.slane %v1862, 1
      %v1885 = vsel %vm1353, %v1882, %v1884
      %v1886 = vrot.slane %v1863, 1
      %v1887 = vsel %vm1353, %v1884, %v1886
      %v1888 = vrot.slane %v1864, 1
      %v1889 = vsel %vm1353, %v1886, %v1888
      %v1890 = vrot.slane %v1865, 1
      %v1891 = vsel %vm1353, %v1888, %v1890
      %v1892 = vrot.slane %v1866, 1
      %v1893 = vsel %vm1353, %v1890, %v1892
      %v1894 = vrot.slane %v1867, 1
      %v1895 = vsel %vm1353, %v1892, %v1894
      %v1896 = vrot.slane %v1868, 1
      %v1897 = vsel %vm1353, %v1894, %v1896
      %v1898 = vrot.slane %v1869, 1
      %v1899 = vsel %vm1353, %v1896, %v1898
      %v1900 = vrot.slane %v1870, 1
      %v1901 = vsel %vm1353, %v1898, %v1900
      %v1902 = vrot.slane %v1871, 1
      %v1903 = vsel %vm1353, %v1900, %v1902
      %v1904 = vrot.slane %v1872, 1
      %v1905 = vsel %vm1353, %v1902, %v1904
      %v1906 = vrot.slane %v1873, 1
      %v1907 = vsel %vm1353, %v1904, %v1906
      %v1908 = vrot.slane %v1874, 1
      %v1909 = vsel %vm1353, %v1906, %v1908
      %v1910 = vrot.slane %v1875, 1
      %v1911 = vsel %vm1353, %v1908, %v1910
      %v1912 = vrot.slane %v1876, 1
      %v1913 = vsel %vm1353, %v1910, %v1912
      %v1918 = vunpack.c.l.b16 %v1780
      %v1919 = vunpack.c.l.b16 %v1781
      %v1920 = vunpack.c.l.b16 %v1782
      %v1921 = vunpack.c.l.b16 %v1783
      %v1922 = vpack.c.b16 %v1919, %v1918
      %v1923 = vpack.c.b16 %v1921, %v1920
      %v1927 = vsel %vm314, %v1879, 0
      %v1930 = vsel %vm314, %v1881, 0
      %v1933 = vsel %vm314, %v1883, 0
      %v1936 = vsel %vm314, %v1885, 0
      %v1939 = vsel %vm314, %v1887, 0
      %v1942 = vsel %vm314, %v1889, 0
      %v1945 = vsel %vm314, %v1891, 0
      %v1948 = vsel %vm314, %v1893, 0
      %v1951 = vsel %vm314, %v1895, 0
      %v1954 = vsel %vm314, %v1897, 0
      %v1957 = vsel %vm314, %v1899, 0
      %v1960 = vsel %vm314, %v1901, 0
      %v1963 = vsel %vm314, %v1903, 0
      %v1966 = vsel %vm314, %v1905, 0
      %v1969 = vsel %vm314, %v1907, 0
      %v1972 = vsel %vm314, %v1909, 0
      %v1975 = vsel %vm314, %v1911, 0
      %v1978 = vsel %vm314, %v1913, 0
      %1980 = vmatprep.subr.bf16.mxu0 0
      %1981 = vmatpush1.bf16.msra.mxu0 %v1922
      %1982 = vmatprep.subr.bf16.mxu0 0
      %1983 = vmatpush1.bf16.msra.mxu0 %v1923
      %1984 = vmatprep.subr.bf16.mxu0 0
      %1985 = vmatpush1.bf16.msra.mxu0 0
      %1986 = vmatprep.subr.bf16.mxu0 0
      %1987 = vmatpush1.bf16.msra.mxu0 0
      %1988 = vmatprep.subr.bf16.mxu0 0
      %1989 = vmatpush1.bf16.msra.mxu0 0
      %1990 = vmatprep.subr.bf16.mxu0 0
      %1991 = vmatpush1.bf16.msra.mxu0 0
      %1992 = vmatprep.subr.bf16.mxu0 0
      %1993 = vmatpush1.bf16.msra.mxu0 0
      %1994 = vmatprep.subr.bf16.mxu0 0
      %1995 = vmatpush1.bf16.msra.mxu0 0
      %1996 = vmatprep.subr.bf16.mxu0 0
      %1997 = vmatpush1.bf16.msra.mxu0 0
      %1998 = vmatprep.subr.bf16.mxu0 0
      %1999 = vmatpush1.bf16.msra.mxu0 0
      %2000 = vmatprep.subr.bf16.mxu0 0
      %2001 = vmatpush1.bf16.msra.mxu0 0
      %2002 = vmatprep.subr.bf16.mxu0 0
      %2003 = vmatpush1.bf16.msra.mxu0 0
      %2004 = vmatprep.subr.bf16.mxu0 0
      %2005 = vmatpush1.bf16.msra.mxu0 0
      %2006 = vmatprep.subr.bf16.mxu0 0
      %2007 = vmatpush1.bf16.msra.mxu0 0
      %2008 = vmatprep.subr.bf16.mxu0 0
      %2009 = vmatpush1.bf16.msra.mxu0 0
      %2010 = vmatprep.subr.bf16.mxu0 0
      %2011 = vmatpush1.bf16.msra.mxu0 0
      %2012 = vmatprep.mubr.bf16.mxu0 0
      %2013 = vmatmul.mubr.bf16.gmra.mrb[0].mxu0 %v1927
      %v2014 = vpop.f32.mrb[0].mxu0
      %v2015 = vadd.f32 0.0, %v2014
      %v2016 = vpop.f32.mrb[0].mxu0
      %v2017 = vpop.f32.mrb[0].mxu0
      %v2018 = vadd.f32 0.0, %v2017
      %v2019 = vpop.f32.mrb[0].mxu0
      %2020 = vmatprep.mubr.bf16.mxu0 0
      %2021 = vmatmul.mubr.bf16.gmra.mrb[0].mxu0 %v1930
      %v2022 = vpop.f32.mrb[0].mxu0
      %v2023 = vadd.f32 0.0, %v2022
      %v2024 = vpop.f32.mrb[0].mxu0
      %v2025 = vpop.f32.mrb[0].mxu0
      %v2026 = vadd.f32 0.0, %v2025
      %v2027 = vpop.f32.mrb[0].mxu0
      %2028 = vmatprep.mubr.bf16.mxu0 0
      %2029 = vmatmul.mubr.bf16.gmra.mrb[0].mxu0 %v1933
      %v2030 = vpop.f32.mrb[0].mxu0
      %v2031 = vadd.f32 0.0, %v2030
      %v2032 = vpop.f32.mrb[0].mxu0
      %v2033 = vpop.f32.mrb[0].mxu0
      %v2034 = vadd.f32 0.0, %v2033
      %v2035 = vpop.f32.mrb[0].mxu0
      %2036 = vmatprep.mubr.bf16.mxu0 0
      %2037 = vmatmul.mubr.bf16.gmra.mrb[0].mxu0 %v1936
      %v2038 = vpop.f32.mrb[0].mxu0
      %v2039 = vadd.f32 0.0, %v2038
      %v2040 = vpop.f32.mrb[0].mxu0
      %v2041 = vpop.f32.mrb[0].mxu0
      %v2042 = vadd.f32 0.0, %v2041
      %v2043 = vpop.f32.mrb[0].mxu0
      %2044 = vmatprep.mubr.bf16.mxu0 0
      %2045 = vmatmul.mubr.bf16.gmra.mrb[0].mxu0 %v1939
      %v2046 = vpop.f32.mrb[0].mxu0
      %v2047 = vadd.f32 0.0, %v2046
      %v2048 = vpop.f32.mrb[0].mxu0
      %v2049 = vpop.f32.mrb[0].mxu0
      %v2050 = vadd.f32 0.0, %v2049
      %v2051 = vpop.f32.mrb[0].mxu0
      %2052 = vmatprep.mubr.bf16.mxu0 0
      %2053 = vmatmul.mubr.bf16.gmra.mrb[0].mxu0 %v1942
      %v2054 = vpop.f32.mrb[0].mxu0
      %v2055 = vadd.f32 0.0, %v2054
      %v2056 = vpop.f32.mrb[0].mxu0
      %v2057 = vpop.f32.mrb[0].mxu0
      %v2058 = vadd.f32 0.0, %v2057
      %v2059 = vpop.f32.mrb[0].mxu0
      %2060 = vmatprep.mubr.bf16.mxu0 0
      %2061 = vmatmul.mubr.bf16.gmra.mrb[0].mxu0 %v1945
      %v2062 = vpop.f32.mrb[0].mxu0
      %v2063 = vadd.f32 0.0, %v2062
      %v2064 = vpop.f32.mrb[0].mxu0
      %v2065 = vpop.f32.mrb[0].mxu0
      %v2066 = vadd.f32 0.0, %v2065
      %v2067 = vpop.f32.mrb[0].mxu0
      %2068 = vmatprep.mubr.bf16.mxu0 0
      %2069 = vmatmul.mubr.bf16.gmra.mrb[0].mxu0 %v1948
      %v2070 = vpop.f32.mrb[0].mxu0
      %v2071 = vadd.f32 0.0, %v2070
      %v2072 = vpop.f32.mrb[0].mxu0
      %v2073 = vpop.f32.mrb[0].mxu0
      %v2074 = vadd.f32 0.0, %v2073
      %v2075 = vpop.f32.mrb[0].mxu0
      %2076 = vmatprep.mubr.bf16.mxu0 0
      %2077 = vmatmul.mubr.bf16.gmra.mrb[0].mxu0 %v1951
      %v2078 = vpop.f32.mrb[0].mxu0
      %v2079 = vadd.f32 0.0, %v2078
      %v2080 = vpop.f32.mrb[0].mxu0
      %v2081 = vpop.f32.mrb[0].mxu0
      %v2082 = vadd.f32 0.0, %v2081
      %v2083 = vpop.f32.mrb[0].mxu0
      %2084 = vmatprep.mubr.bf16.mxu0 0
      %2085 = vmatmul.mubr.bf16.gmra.mrb[0].mxu0 %v1954
      %v2086 = vpop.f32.mrb[0].mxu0
      %v2087 = vadd.f32 0.0, %v2086
      %v2088 = vpop.f32.mrb[0].mxu0
      %v2089 = vpop.f32.mrb[0].mxu0
      %v2090 = vadd.f32 0.0, %v2089
      %v2091 = vpop.f32.mrb[0].mxu0
      %2092 = vmatprep.mubr.bf16.mxu0 0
      %2093 = vmatmul.mubr.bf16.gmra.mrb[0].mxu0 %v1957
      %v2094 = vpop.f32.mrb[0].mxu0
      %v2095 = vadd.f32 0.0, %v2094
      %v2096 = vpop.f32.mrb[0].mxu0
      %v2097 = vpop.f32.mrb[0].mxu0
      %v2098 = vadd.f32 0.0, %v2097
      %v2099 = vpop.f32.mrb[0].mxu0
      %2100 = vmatprep.mubr.bf16.mxu0 0
      %2101 = vmatmul.mubr.bf16.gmra.mrb[0].mxu0 %v1960
      %v2102 = vpop.f32.mrb[0].mxu0
      %v2103 = vadd.f32 0.0, %v2102
      %v2104 = vpop.f32.mrb[0].mxu0
      %v2105 = vpop.f32.mrb[0].mxu0
      %v2106 = vadd.f32 0.0, %v2105
      %v2107 = vpop.f32.mrb[0].mxu0
      %2108 = vmatprep.mubr.bf16.mxu0 0
      %2109 = vmatmul.mubr.bf16.gmra.mrb[0].mxu0 %v1963
      %v2110 = vpop.f32.mrb[0].mxu0
      %v2111 = vadd.f32 0.0, %v2110
      %v2112 = vpop.f32.mrb[0].mxu0
      %v2113 = vpop.f32.mrb[0].mxu0
      %v2114 = vadd.f32 0.0, %v2113
      %v2115 = vpop.f32.mrb[0].mxu0
      %2116 = vmatprep.mubr.bf16.mxu0 0
      %2117 = vmatmul.mubr.bf16.gmra.mrb[0].mxu0 %v1966
      %v2118 = vpop.f32.mrb[0].mxu0
      %v2119 = vadd.f32 0.0, %v2118
      %v2120 = vpop.f32.mrb[0].mxu0
      %v2121 = vpop.f32.mrb[0].mxu0
      %v2122 = vadd.f32 0.0, %v2121
      %v2123 = vpop.f32.mrb[0].mxu0
      %2124 = vmatprep.mubr.bf16.mxu0 0
      %2125 = vmatmul.mubr.bf16.gmra.mrb[0].mxu0 %v1969
      %v2126 = vpop.f32.mrb[0].mxu0
      %v2127 = vadd.f32 0.0, %v2126
      %v2128 = vpop.f32.mrb[0].mxu0
      %v2129 = vpop.f32.mrb[0].mxu0
      %v2130 = vadd.f32 0.0, %v2129
      %v2131 = vpop.f32.mrb[0].mxu0
      %2132 = vmatprep.mubr.bf16.mxu0 0
      %2133 = vmatmul.mubr.bf16.gmra.mrb[0].mxu0 %v1972
      %v2134 = vpop.f32.mrb[0].mxu0
      %v2135 = vadd.f32 0.0, %v2134
      %v2136 = vpop.f32.mrb[0].mxu0
      %v2137 = vpop.f32.mrb[0].mxu0
      %v2138 = vadd.f32 0.0, %v2137
      %v2139 = vpop.f32.mrb[0].mxu0
      %2140 = vmatprep.mubr.bf16.mxu0 0
      %2141 = vmatmul.mubr.bf16.gmra.mrb[0].mxu0 %v1975
      %v2142 = vpop.f32.mrb[0].mxu0
      %v2143 = vadd.f32 0.0, %v2142
      %v2144 = vpop.f32.mrb[0].mxu0
      %v2145 = vpop.f32.mrb[0].mxu0
      %v2146 = vadd.f32 0.0, %v2145
      %v2147 = vpop.f32.mrb[0].mxu0
      %2148 = vmatprep.mubr.bf16.mxu0 0
      %2149 = vmatmul.mubr.bf16.gmra.mrb[0].mxu0 %v1978
      %v2150 = vpop.f32.mrb[0].mxu0
      %v2151 = vadd.f32 0.0, %v2150
      %v2152 = vpop.f32.mrb[0].mxu0
      %v2153 = vpop.f32.mrb[0].mxu0
      %v2154 = vadd.f32 0.0, %v2153
      %v2155 = vpop.f32.mrb[0].mxu0
      %2156 = vdwg.mxu0
      %v2157 = vld [vmem:[#allocation2] sm:$0xff]
      %v2158 = vld [vmem:[#allocation2 + $0x8] sm:$0xff]
      %v2159 = vld [vmem:[#allocation2 + $0x10] sm:$0xff]
      %v2160 = vld [vmem:[#allocation2 + $0x18] sm:$0xff]
      %v2161 = vld [vmem:[#allocation2 + $0x20] sm:$0xff]
      %v2162 = vld [vmem:[#allocation2 + $0x28] sm:$0xff]
      %v2163 = vld [vmem:[#allocation2 + $0x30] sm:$0xff]
      %v2164 = vld [vmem:[#allocation2 + $0x38] sm:$0xff]
      %v2165 = vld [vmem:[#allocation2 + $0x40] sm:$0xff]
      %v2166 = vld [vmem:[#allocation2 + $0x48] sm:$0xff]
      %v2167 = vld [vmem:[#allocation2 + $0x50] sm:$0xff]
      %v2168 = vld [vmem:[#allocation2 + $0x58] sm:$0xff]
      %v2169 = vld [vmem:[#allocation2 + $0x60] sm:$0xff]
      %v2170 = vld [vmem:[#allocation2 + $0x68] sm:$0xff]
      %v2171 = vld [vmem:[#allocation2 + $0x70] sm:$0xff]
      %v2172 = vld [vmem:[#allocation2 + $0x78] sm:$0xff]
      %v2173 = vld [vmem:[#allocation2 + $0x80] sm:$0xff]
      %v2174 = vld [vmem:[#allocation2 + $0x88] sm:$0xff]
      %v2175 = vld [vmem:[#allocation2 + $0x90] sm:$0xff]
      %v2176 = vld [vmem:[#allocation2 + $0x98] sm:$0xff]
      %v2177 = vld [vmem:[#allocation2 + $0xa0] sm:$0xff]
      %v2178 = vld [vmem:[#allocation2 + $0xa8] sm:$0xff]
      %v2179 = vld [vmem:[#allocation2 + $0xb0] sm:$0xff]
      %v2180 = vld [vmem:[#allocation2 + $0xb8] sm:$0xff]
      %v2181 = vld [vmem:[#allocation2 + $0xc0] sm:$0xff]
      %v2182 = vld [vmem:[#allocation2 + $0xc8] sm:$0xff]
      %v2183 = vld [vmem:[#allocation2 + $0xd0] sm:$0xff]
      %v2184 = vld [vmem:[#allocation2 + $0xd8] sm:$0xff]
      %v2185 = vld [vmem:[#allocation2 + $0xe0] sm:$0xff]
      %v2186 = vld [vmem:[#allocation2 + $0xe8] sm:$0xff]
      %v2187 = vld [vmem:[#allocation2 + $0xf0] sm:$0xff]
      %v2188 = vld [vmem:[#allocation2 + $0xf8] sm:$0xff]
      %v2189 = vld [vmem:[#allocation2 + $0x100] sm:$0xff]
      %v2190 = vld [vmem:[#allocation2 + $0x108] sm:$0xff]
      %v2191 = vld [vmem:[#allocation2 + $0x110] sm:$0xff]
      %v2192 = vld [vmem:[#allocation2 + $0x118] sm:$0xff]
      %v2193 = vadd.f32 %v2157, %v2015
      %v2194 = vadd.f32 %v2158, %v2018
      %v2195 = vadd.f32 %v2159, %v2023
      %v2196 = vadd.f32 %v2160, %v2026
      %v2197 = vadd.f32 %v2161, %v2031
      %v2198 = vadd.f32 %v2162, %v2034
      %v2199 = vadd.f32 %v2163, %v2039
      %v2200 = vadd.f32 %v2164, %v2042
      %v2201 = vadd.f32 %v2165, %v2047
      %v2202 = vadd.f32 %v2166, %v2050
      %v2203 = vadd.f32 %v2167, %v2055
      %v2204 = vadd.f32 %v2168, %v2058
      %v2205 = vadd.f32 %v2169, %v2063
      %v2206 = vadd.f32 %v2170, %v2066
      %v2207 = vadd.f32 %v2171, %v2071
      %v2208 = vadd.f32 %v2172, %v2074
      %v2209 = vadd.f32 %v2173, %v2079
      %v2210 = vadd.f32 %v2174, %v2082
      %v2211 = vadd.f32 %v2175, %v2087
      %v2212 = vadd.f32 %v2176, %v2090
      %v2213 = vadd.f32 %v2177, %v2095
      %v2214 = vadd.f32 %v2178, %v2098
      %v2215 = vadd.f32 %v2179, %v2103
      %v2216 = vadd.f32 %v2180, %v2106
      %v2217 = vadd.f32 %v2181, %v2111
      %v2218 = vadd.f32 %v2182, %v2114
      %v2219 = vadd.f32 %v2183, %v2119
      %v2220 = vadd.f32 %v2184, %v2122
      %v2221 = vadd.f32 %v2185, %v2127
      %v2222 = vadd.f32 %v2186, %v2130
      %v2223 = vadd.f32 %v2187, %v2135
      %v2224 = vadd.f32 %v2188, %v2138
      %v2225 = vadd.f32 %v2189, %v2143
      %v2226 = vadd.f32 %v2190, %v2146
      %v2227 = vadd.f32 %v2191, %v2151
      %v2228 = vadd.f32 %v2192, %v2154
      %2229 = vst.msk [vmem:[#allocation2] sm:$0xff] %vm546, %v2193
      %2230 = vst.msk [vmem:[#allocation2 + $0x8] sm:$0xff] %vm546, %v2194
      %2231 = vst.msk [vmem:[#allocation2 + $0x10] sm:$0xff] %vm546, %v2195
      %2232 = vst.msk [vmem:[#allocation2 + $0x18] sm:$0xff] %vm546, %v2196
      %2233 = vst.msk [vmem:[#allocation2 + $0x20] sm:$0xff] %vm546, %v2197
      %2234 = vst.msk [vmem:[#allocation2 + $0x28] sm:$0xff] %vm546, %v2198
      %2235 = vst.msk [vmem:[#allocation2 + $0x30] sm:$0xff] %vm546, %v2199
      %2236 = vst.msk [vmem:[#allocation2 + $0x38] sm:$0xff] %vm546, %v2200
      %2237 = vst.msk [vmem:[#allocation2 + $0x40] sm:$0xff] %vm546, %v2201
      %2238 = vst.msk [vmem:[#allocation2 + $0x48] sm:$0xff] %vm546, %v2202
      %2239 = vst.msk [vmem:[#allocation2 + $0x50] sm:$0xff] %vm546, %v2203
      %2240 = vst.msk [vmem:[#allocation2 + $0x58] sm:$0xff] %vm546, %v2204
      %2241 = vst.msk [vmem:[#allocation2 + $0x60] sm:$0xff] %vm546, %v2205
      %2242 = vst.msk [vmem:[#allocation2 + $0x68] sm:$0xff] %vm546, %v2206
      %2243 = vst.msk [vmem:[#allocation2 + $0x70] sm:$0xff] %vm546, %v2207
      %2244 = vst.msk [vmem:[#allocation2 + $0x78] sm:$0xff] %vm546, %v2208
      %2245 = vst.msk [vmem:[#allocation2 + $0x80] sm:$0xff] %vm546, %v2209
      %2246 = vst.msk [vmem:[#allocation2 + $0x88] sm:$0xff] %vm546, %v2210
      %2247 = vst.msk [vmem:[#allocation2 + $0x90] sm:$0xff] %vm546, %v2211
      %2248 = vst.msk [vmem:[#allocation2 + $0x98] sm:$0xff] %vm546, %v2212
      %2249 = vst.msk [vmem:[#allocation2 + $0xa0] sm:$0xff] %vm546, %v2213
      %2250 = vst.msk [vmem:[#allocation2 + $0xa8] sm:$0xff] %vm546, %v2214
      %2251 = vst.msk [vmem:[#allocation2 + $0xb0] sm:$0xff] %vm546, %v2215
      %2252 = vst.msk [vmem:[#allocation2 + $0xb8] sm:$0xff] %vm546, %v2216
      %2253 = vst.msk [vmem:[#allocation2 + $0xc0] sm:$0xff] %vm546, %v2217
      %2254 = vst.msk [vmem:[#allocation2 + $0xc8] sm:$0xff] %vm546, %v2218
      %2255 = vst.msk [vmem:[#allocation2 + $0xd0] sm:$0xff] %vm546, %v2219
      %2256 = vst.msk [vmem:[#allocation2 + $0xd8] sm:$0xff] %vm546, %v2220
      %2257 = vst.msk [vmem:[#allocation2 + $0xe0] sm:$0xff] %vm546, %v2221
      %2258 = vst.msk [vmem:[#allocation2 + $0xe8] sm:$0xff] %vm546, %v2222
      %2259 = vst.msk [vmem:[#allocation2 + $0xf0] sm:$0xff] %vm546, %v2223
      %2260 = vst.msk [vmem:[#allocation2 + $0xf8] sm:$0xff] %vm546, %v2224
      %2261 = vst.msk [vmem:[#allocation2 + $0x100] sm:$0xff] %vm546, %v2225
      %2262 = vst.msk [vmem:[#allocation2 + $0x108] sm:$0xff] %vm546, %v2226
      %2263 = vst.msk [vmem:[#allocation2 + $0x110] sm:$0xff] %vm546, %v2227
      %2264 = vst.msk [vmem:[#allocation2 + $0x118] sm:$0xff] %vm546, %v2228
      %v2265 = vld [vmem:[%s165 + $0x8] sm:$0xe]
      %v2266 = vld [vmem:[%s165 + $0xc] sm:$0xf]
      %v2267 = vld [vmem:[%s165 + $0x10] sm:$0xf]
      %v2268 = vld [vmem:[%s165 + $0x14] sm:$0xf]
      %v2269 = vld [vmem:[%s165 + $0x18] sm:$0xf]
      %v2270 = vld [vmem:[%s165 + $0x1c] sm:$0xf]
      %v2271 = vld [vmem:[%s165 + $0x20] sm:$0xf]
      %v2272 = vld [vmem:[%s165 + $0x24] sm:$0xf]
      %v2273 = vld [vmem:[%s165 + $0x28] sm:$0xf]
      %v2274 = vld [vmem:[%s165 + $0x2c] sm:$0xf]
      %v2275 = vld [vmem:[%s165 + $0x30] sm:$0xf]
      %v2276 = vld [vmem:[%s165 + $0x34] sm:$0xf]
      %v2277 = vld [vmem:[%s165 + $0x38] sm:$0xf]
      %v2278 = vld [vmem:[%s165 + $0x3c] sm:$0xf]
      %v2279 = vld [vmem:[%s165 + $0x40] sm:$0xf]
      %v2280 = vld [vmem:[%s165 + $0x44] sm:$0xf]
      %v2281 = vld [vmem:[%s165 + $0x48] sm:$0xf]
      %v2282 = vld [vmem:[%s165 + $0x4c] sm:$0xf]
      %v2283 = vld [vmem:[%s165 + $0x50] sm:$0xf]
      %v2284 = vld [vmem:[%s165 + $0x54] sm:$0xf]
      %v2285 = vld [vmem:[%s165 + $0x58] sm:$0xf]
      %v2286 = vld [vmem:[%s165 + $0x5c] sm:$0xf]
      %v2287 = vld [vmem:[%s165 + $0x60] sm:$0xf]
      %v2288 = vld [vmem:[%s165 + $0x64] sm:$0xf]
      %v2289 = vld [vmem:[%s165 + $0x68] sm:$0xf]
      %v2290 = vld [vmem:[%s165 + $0x6c] sm:$0xf]
      %v2291 = vld [vmem:[%s165 + $0x70] sm:$0xf]
      %v2292 = vld [vmem:[%s165 + $0x74] sm:$0xf]
      %v2293 = vld [vmem:[%s165 + $0x78] sm:$0xf]
      %v2294 = vld [vmem:[%s165 + $0x7c] sm:$0xf]
      %v2295 = vld [vmem:[%s165 + $0x80] sm:$0xf]
      %v2296 = vld [vmem:[%s165 + $0x84] sm:$0xf]
      %v2297 = vld [vmem:[%s165 + $0x88] sm:$0xf]
      %v2298 = vld [vmem:[%s165 + $0x8c] sm:$0xf]
      %v2299 = vld [vmem:[%s165 + $0x90] sm:$0xf]
      %v2300 = vld [vmem:[%s165 + $0x94] sm:$0xf]
      %v2301 = vld [vmem:[%s165 + $0x98] sm:$0x3]
      %s2302 = scalar_lea.vmem %s1, 64
      %v2303 = vld [vmem:[%s2302] sm:$0xf]
      %v2304 = vld [vmem:[%s2302 + $0x4] sm:$0xf]
      %v2305 = vld [vmem:[%s2302 + $0x8] sm:$0xf]
      %v2306 = vld [vmem:[%s2302 + $0xc] sm:$0xf]
      %v2344 = vunpack.c.l.b16 %v2265
      %v2345 = vunpack.c.l.b16 %v2266
      %v2346 = vunpack.c.l.b16 %v2267
      %v2347 = vunpack.c.l.b16 %v2268
      %v2348 = vunpack.c.l.b16 %v2269
      %v2349 = vunpack.c.l.b16 %v2270
      %v2350 = vunpack.c.l.b16 %v2271
      %v2351 = vunpack.c.l.b16 %v2272
      %v2352 = vunpack.c.l.b16 %v2273
      %v2353 = vunpack.c.l.b16 %v2274
      %v2354 = vunpack.c.l.b16 %v2275
      %v2355 = vunpack.c.l.b16 %v2276
      %v2356 = vunpack.c.l.b16 %v2277
      %v2357 = vunpack.c.l.b16 %v2278
      %v2358 = vunpack.c.l.b16 %v2279
      %v2359 = vunpack.c.l.b16 %v2280
      %v2360 = vunpack.c.l.b16 %v2281
      %v2361 = vunpack.c.l.b16 %v2282
      %v2362 = vunpack.c.l.b16 %v2283
      %v2363 = vunpack.c.l.b16 %v2284
      %v2364 = vunpack.c.l.b16 %v2285
      %v2365 = vunpack.c.l.b16 %v2286
      %v2366 = vunpack.c.l.b16 %v2287
      %v2367 = vunpack.c.l.b16 %v2288
      %v2368 = vunpack.c.l.b16 %v2289
      %v2369 = vunpack.c.l.b16 %v2290
      %v2370 = vunpack.c.l.b16 %v2291
      %v2371 = vunpack.c.l.b16 %v2292
      %v2372 = vunpack.c.l.b16 %v2293
      %v2373 = vunpack.c.l.b16 %v2294
      %v2374 = vunpack.c.l.b16 %v2295
      %v2375 = vunpack.c.l.b16 %v2296
      %v2376 = vunpack.c.l.b16 %v2297
      %v2377 = vunpack.c.l.b16 %v2298
      %v2378 = vunpack.c.l.b16 %v2299
      %v2379 = vunpack.c.l.b16 %v2300
      %v2380 = vunpack.c.l.b16 %v2301
      %v2381 = vpack.c.b16 %v2345, %v2344
      %v2382 = vpack.c.b16 %v2347, %v2346
      %v2383 = vpack.c.b16 %v2349, %v2348
      %v2384 = vpack.c.b16 %v2351, %v2350
      %v2385 = vpack.c.b16 %v2353, %v2352
      %v2386 = vpack.c.b16 %v2355, %v2354
      %v2387 = vpack.c.b16 %v2357, %v2356
      %v2388 = vpack.c.b16 %v2359, %v2358
      %v2389 = vpack.c.b16 %v2361, %v2360
      %v2390 = vpack.c.b16 %v2363, %v2362
      %v2391 = vpack.c.b16 %v2365, %v2364
      %v2392 = vpack.c.b16 %v2367, %v2366
      %v2393 = vpack.c.b16 %v2369, %v2368
      %v2394 = vpack.c.b16 %v2371, %v2370
      %v2395 = vpack.c.b16 %v2373, %v2372
      %v2396 = vpack.c.b16 %v2375, %v2374
      %v2397 = vpack.c.b16 %v2377, %v2376
      %v2398 = vpack.c.b16 %v2379, %v2378
      %v2399 = vpack.c.b16 %v2380, %v2380
      %vm2400 = vsmask.f32 6400
      %v2402 = vshrl.u32 %v2381, 16
      %v2404 = vrot.slane %v2402, 1
      %v2405 = vshll.u32 %v2381, 16
      %v2407 = vrot.slane %v2405, 2
      %v2408 = vor.u32 %v2404, %v2407
      %v2410 = vshrl.u32 %v2382, 16
      %v2412 = vrot.slane %v2410, 1
      %v2413 = vshll.u32 %v2382, 16
      %v2415 = vrot.slane %v2413, 2
      %v2416 = vor.u32 %v2412, %v2415
      %v2417 = vsel %vm2400, %v2408, %v2416
      %v2419 = vshrl.u32 %v2383, 16
      %v2421 = vrot.slane %v2419, 1
      %v2422 = vshll.u32 %v2383, 16
      %v2424 = vrot.slane %v2422, 2
      %v2425 = vor.u32 %v2421, %v2424
      %v2426 = vsel %vm2400, %v2416, %v2425
      %v2428 = vshrl.u32 %v2384, 16
      %v2430 = vrot.slane %v2428, 1
      %v2431 = vshll.u32 %v2384, 16
      %v2433 = vrot.slane %v2431, 2
      %v2434 = vor.u32 %v2430, %v2433
      %v2435 = vsel %vm2400, %v2425, %v2434
      %v2437 = vshrl.u32 %v2385, 16
      %v2439 = vrot.slane %v2437, 1
      %v2440 = vshll.u32 %v2385, 16
      %v2442 = vrot.slane %v2440, 2
      %v2443 = vor.u32 %v2439, %v2442
      %v2444 = vsel %vm2400, %v2434, %v2443
      %v2446 = vshrl.u32 %v2386, 16
      %v2448 = vrot.slane %v2446, 1
      %v2449 = vshll.u32 %v2386, 16
      %v2451 = vrot.slane %v2449, 2
      %v2452 = vor.u32 %v2448, %v2451
      %v2453 = vsel %vm2400, %v2443, %v2452
      %v2455 = vshrl.u32 %v2387, 16
      %v2457 = vrot.slane %v2455, 1
      %v2458 = vshll.u32 %v2387, 16
      %v2460 = vrot.slane %v2458, 2
      %v2461 = vor.u32 %v2457, %v2460
      %v2462 = vsel %vm2400, %v2452, %v2461
      %v2464 = vshrl.u32 %v2388, 16
      %v2466 = vrot.slane %v2464, 1
      %v2467 = vshll.u32 %v2388, 16
      %v2469 = vrot.slane %v2467, 2
      %v2470 = vor.u32 %v2466, %v2469
      %v2471 = vsel %vm2400, %v2461, %v2470
      %v2473 = vshrl.u32 %v2389, 16
      %v2475 = vrot.slane %v2473, 1
      %v2476 = vshll.u32 %v2389, 16
      %v2478 = vrot.slane %v2476, 2
      %v2479 = vor.u32 %v2475, %v2478
      %v2480 = vsel %vm2400, %v2470, %v2479
      %v2482 = vshrl.u32 %v2390, 16
      %v2484 = vrot.slane %v2482, 1
      %v2485 = vshll.u32 %v2390, 16
      %v2487 = vrot.slane %v2485, 2
      %v2488 = vor.u32 %v2484, %v2487
      %v2489 = vsel %vm2400, %v2479, %v2488
      %v2491 = vshrl.u32 %v2391, 16
      %v2493 = vrot.slane %v2491, 1
      %v2494 = vshll.u32 %v2391, 16
      %v2496 = vrot.slane %v2494, 2
      %v2497 = vor.u32 %v2493, %v2496
      %v2498 = vsel %vm2400, %v2488, %v2497
      %v2500 = vshrl.u32 %v2392, 16
      %v2502 = vrot.slane %v2500, 1
      %v2503 = vshll.u32 %v2392, 16
      %v2505 = vrot.slane %v2503, 2
      %v2506 = vor.u32 %v2502, %v2505
      %v2507 = vsel %vm2400, %v2497, %v2506
      %v2509 = vshrl.u32 %v2393, 16
      %v2511 = vrot.slane %v2509, 1
      %v2512 = vshll.u32 %v2393, 16
      %v2514 = vrot.slane %v2512, 2
      %v2515 = vor.u32 %v2511, %v2514
      %v2516 = vsel %vm2400, %v2506, %v2515
      %v2518 = vshrl.u32 %v2394, 16
      %v2520 = vrot.slane %v2518, 1
      %v2521 = vshll.u32 %v2394, 16
      %v2523 = vrot.slane %v2521, 2
      %v2524 = vor.u32 %v2520, %v2523
      %v2525 = vsel %vm2400, %v2515, %v2524
      %v2527 = vshrl.u32 %v2395, 16
      %v2529 = vrot.slane %v2527, 1
      %v2530 = vshll.u32 %v2395, 16
      %v2532 = vrot.slane %v2530, 2
      %v2533 = vor.u32 %v2529, %v2532
      %v2534 = vsel %vm2400, %v2524, %v2533
      %v2536 = vshrl.u32 %v2396, 16
      %v2538 = vrot.slane %v2536, 1
      %v2539 = vshll.u32 %v2396, 16
      %v2541 = vrot.slane %v2539, 2
      %v2542 = vor.u32 %v2538, %v2541
      %v2543 = vsel %vm2400, %v2533, %v2542
      %v2545 = vshrl.u32 %v2397, 16
      %v2547 = vrot.slane %v2545, 1
      %v2548 = vshll.u32 %v2397, 16
      %v2550 = vrot.slane %v2548, 2
      %v2551 = vor.u32 %v2547, %v2550
      %v2552 = vsel %vm2400, %v2542, %v2551
      %v2554 = vshrl.u32 %v2398, 16
      %v2556 = vrot.slane %v2554, 1
      %v2557 = vshll.u32 %v2398, 16
      %v2559 = vrot.slane %v2557, 2
      %v2560 = vor.u32 %v2556, %v2559
      %v2561 = vsel %vm2400, %v2551, %v2560
      %v2563 = vshrl.u32 %v2399, 16
      %v2565 = vrot.slane %v2563, 1
      %v2566 = vshll.u32 %v2399, 16
      %v2568 = vrot.slane %v2566, 2
      %v2569 = vor.u32 %v2565, %v2568
      %v2570 = vsel %vm2400, %v2560, %v2569
      %v2575 = vunpack.c.l.b16 %v2303
      %v2576 = vunpack.c.l.b16 %v2304
      %v2577 = vunpack.c.l.b16 %v2305
      %v2578 = vunpack.c.l.b16 %v2306
      %v2579 = vpack.c.b16 %v2576, %v2575
      %v2580 = vpack.c.b16 %v2578, %v2577
      %v2584 = vsel %vm314, %v2417, 0
      %v2587 = vsel %vm314, %v2426, 0
      %v2590 = vsel %vm314, %v2435, 0
      %v2593 = vsel %vm314, %v2444, 0
      %v2596 = vsel %vm314, %v2453, 0
      %v2599 = vsel %vm314, %v2462, 0
      %v2602 = vsel %vm314, %v2471, 0
      %v2605 = vsel %vm314, %v2480, 0
      %v2608 = vsel %vm314, %v2489, 0
      %v2611 = vsel %vm314, %v2498, 0
      %v2614 = vsel %vm314, %v2507, 0
      %v2617 = vsel %vm314, %v2516, 0
      %v2620 = vsel %vm314, %v2525, 0
      %v2623 = vsel %vm314, %v2534, 0
      %v2626 = vsel %vm314, %v2543, 0
      %v2629 = vsel %vm314, %v2552, 0
      %v2632 = vsel %vm314, %v2561, 0
      %v2635 = vsel %vm314, %v2570, 0
      %2637 = vmatprep.subr.bf16.mxu0 0
      %2638 = vmatpush1.bf16.msra.mxu0 %v2579
      %2639 = vmatprep.subr.bf16.mxu0 0
      %2640 = vmatpush1.bf16.msra.mxu0 %v2580
      %2641 = vmatprep.subr.bf16.mxu0 0
      %2642 = vmatpush1.bf16.msra.mxu0 0
      %2643 = vmatprep.subr.bf16.mxu0 0
      %2644 = vmatpush1.bf16.msra.mxu0 0
      %2645 = vmatprep.subr.bf16.mxu0 0
      %2646 = vmatpush1.bf16.msra.mxu0 0
      %2647 = vmatprep.subr.bf16.mxu0 0
      %2648 = vmatpush1.bf16.msra.mxu0 0
      %2649 = vmatprep.subr.bf16.mxu0 0
      %2650 = vmatpush1.bf16.msra.mxu0 0
      %2651 = vmatprep.subr.bf16.mxu0 0
      %2652 = vmatpush1.bf16.msra.mxu0 0
      %2653 = vmatprep.subr.bf16.mxu0 0
      %2654 = vmatpush1.bf16.msra.mxu0 0
      %2655 = vmatprep.subr.bf16.mxu0 0
      %2656 = vmatpush1.bf16.msra.mxu0 0
      %2657 = vmatprep.subr.bf16.mxu0 0
      %2658 = vmatpush1.bf16.msra.mxu0 0
      %2659 = vmatprep.subr.bf16.mxu0 0
      %2660 = vmatpush1.bf16.msra.mxu0 0
      %2661 = vmatprep.subr.bf16.mxu0 0
      %2662 = vmatpush1.bf16.msra.mxu0 0
      %2663 = vmatprep.subr.bf16.mxu0 0
      %2664 = vmatpush1.bf16.msra.mxu0 0
      %2665 = vmatprep.subr.bf16.mxu0 0
      %2666 = vmatpush1.bf16.msra.mxu0 0
      %2667 = vmatprep.subr.bf16.mxu0 0
      %2668 = vmatpush1.bf16.msra.mxu0 0
      %2669 = vmatprep.mubr.bf16.mxu0 0
      %2670 = vmatmul.mubr.bf16.gmra.mrb[0].mxu0 %v2584
      %v2671 = vpop.f32.mrb[0].mxu0
      %v2672 = vadd.f32 0.0, %v2671
      %v2673 = vpop.f32.mrb[0].mxu0
      %v2674 = vpop.f32.mrb[0].mxu0
      %v2675 = vadd.f32 0.0, %v2674
      %v2676 = vpop.f32.mrb[0].mxu0
      %2677 = vmatprep.mubr.bf16.mxu0 0
      %2678 = vmatmul.mubr.bf16.gmra.mrb[0].mxu0 %v2587
      %v2679 = vpop.f32.mrb[0].mxu0
      %v2680 = vadd.f32 0.0, %v2679
      %v2681 = vpop.f32.mrb[0].mxu0
      %v2682 = vpop.f32.mrb[0].mxu0
      %v2683 = vadd.f32 0.0, %v2682
      %v2684 = vpop.f32.mrb[0].mxu0
      %2685 = vmatprep.mubr.bf16.mxu0 0
      %2686 = vmatmul.mubr.bf16.gmra.mrb[0].mxu0 %v2590
      %v2687 = vpop.f32.mrb[0].mxu0
      %v2688 = vadd.f32 0.0, %v2687
      %v2689 = vpop.f32.mrb[0].mxu0
      %v2690 = vpop.f32.mrb[0].mxu0
      %v2691 = vadd.f32 0.0, %v2690
      %v2692 = vpop.f32.mrb[0].mxu0
      %2693 = vmatprep.mubr.bf16.mxu0 0
      %2694 = vmatmul.mubr.bf16.gmra.mrb[0].mxu0 %v2593
      %v2695 = vpop.f32.mrb[0].mxu0
      %v2696 = vadd.f32 0.0, %v2695
      %v2697 = vpop.f32.mrb[0].mxu0
      %v2698 = vpop.f32.mrb[0].mxu0
      %v2699 = vadd.f32 0.0, %v2698
      %v2700 = vpop.f32.mrb[0].mxu0
      %2701 = vmatprep.mubr.bf16.mxu0 0
      %2702 = vmatmul.mubr.bf16.gmra.mrb[0].mxu0 %v2596
      %v2703 = vpop.f32.mrb[0].mxu0
      %v2704 = vadd.f32 0.0, %v2703
      %v2705 = vpop.f32.mrb[0].mxu0
      %v2706 = vpop.f32.mrb[0].mxu0
      %v2707 = vadd.f32 0.0, %v2706
      %v2708 = vpop.f32.mrb[0].mxu0
      %2709 = vmatprep.mubr.bf16.mxu0 0
      %2710 = vmatmul.mubr.bf16.gmra.mrb[0].mxu0 %v2599
      %v2711 = vpop.f32.mrb[0].mxu0
      %v2712 = vadd.f32 0.0, %v2711
      %v2713 = vpop.f32.mrb[0].mxu0
      %v2714 = vpop.f32.mrb[0].mxu0
      %v2715 = vadd.f32 0.0, %v2714
      %v2716 = vpop.f32.mrb[0].mxu0
      %2717 = vmatprep.mubr.bf16.mxu0 0
      %2718 = vmatmul.mubr.bf16.gmra.mrb[0].mxu0 %v2602
      %v2719 = vpop.f32.mrb[0].mxu0
      %v2720 = vadd.f32 0.0, %v2719
      %v2721 = vpop.f32.mrb[0].mxu0
      %v2722 = vpop.f32.mrb[0].mxu0
      %v2723 = vadd.f32 0.0, %v2722
      %v2724 = vpop.f32.mrb[0].mxu0
      %2725 = vmatprep.mubr.bf16.mxu0 0
      %2726 = vmatmul.mubr.bf16.gmra.mrb[0].mxu0 %v2605
      %v2727 = vpop.f32.mrb[0].mxu0
      %v2728 = vadd.f32 0.0, %v2727
      %v2729 = vpop.f32.mrb[0].mxu0
      %v2730 = vpop.f32.mrb[0].mxu0
      %v2731 = vadd.f32 0.0, %v2730
      %v2732 = vpop.f32.mrb[0].mxu0
      %2733 = vmatprep.mubr.bf16.mxu0 0
      %2734 = vmatmul.mubr.bf16.gmra.mrb[0].mxu0 %v2608
      %v2735 = vpop.f32.mrb[0].mxu0
      %v2736 = vadd.f32 0.0, %v2735
      %v2737 = vpop.f32.mrb[0].mxu0
      %v2738 = vpop.f32.mrb[0].mxu0
      %v2739 = vadd.f32 0.0, %v2738
      %v2740 = vpop.f32.mrb[0].mxu0
      %2741 = vmatprep.mubr.bf16.mxu0 0
      %2742 = vmatmul.mubr.bf16.gmra.mrb[0].mxu0 %v2611
      %v2743 = vpop.f32.mrb[0].mxu0
      %v2744 = vadd.f32 0.0, %v2743
      %v2745 = vpop.f32.mrb[0].mxu0
      %v2746 = vpop.f32.mrb[0].mxu0
      %v2747 = vadd.f32 0.0, %v2746
      %v2748 = vpop.f32.mrb[0].mxu0
      %2749 = vmatprep.mubr.bf16.mxu0 0
      %2750 = vmatmul.mubr.bf16.gmra.mrb[0].mxu0 %v2614
      %v2751 = vpop.f32.mrb[0].mxu0
      %v2752 = vadd.f32 0.0, %v2751
      %v2753 = vpop.f32.mrb[0].mxu0
      %v2754 = vpop.f32.mrb[0].mxu0
      %v2755 = vadd.f32 0.0, %v2754
      %v2756 = vpop.f32.mrb[0].mxu0
      %2757 = vmatprep.mubr.bf16.mxu0 0
      %2758 = vmatmul.mubr.bf16.gmra.mrb[0].mxu0 %v2617
      %v2759 = vpop.f32.mrb[0].mxu0
      %v2760 = vadd.f32 0.0, %v2759
      %v2761 = vpop.f32.mrb[0].mxu0
      %v2762 = vpop.f32.mrb[0].mxu0
      %v2763 = vadd.f32 0.0, %v2762
      %v2764 = vpop.f32.mrb[0].mxu0
      %2765 = vmatprep.mubr.bf16.mxu0 0
      %2766 = vmatmul.mubr.bf16.gmra.mrb[0].mxu0 %v2620
      %v2767 = vpop.f32.mrb[0].mxu0
      %v2768 = vadd.f32 0.0, %v2767
      %v2769 = vpop.f32.mrb[0].mxu0
      %v2770 = vpop.f32.mrb[0].mxu0
      %v2771 = vadd.f32 0.0, %v2770
      %v2772 = vpop.f32.mrb[0].mxu0
      %2773 = vmatprep.mubr.bf16.mxu0 0
      %2774 = vmatmul.mubr.bf16.gmra.mrb[0].mxu0 %v2623
      %v2775 = vpop.f32.mrb[0].mxu0
      %v2776 = vadd.f32 0.0, %v2775
      %v2777 = vpop.f32.mrb[0].mxu0
      %v2778 = vpop.f32.mrb[0].mxu0
      %v2779 = vadd.f32 0.0, %v2778
      %v2780 = vpop.f32.mrb[0].mxu0
      %2781 = vmatprep.mubr.bf16.mxu0 0
      %2782 = vmatmul.mubr.bf16.gmra.mrb[0].mxu0 %v2626
      %v2783 = vpop.f32.mrb[0].mxu0
      %v2784 = vadd.f32 0.0, %v2783
      %v2785 = vpop.f32.mrb[0].mxu0
      %v2786 = vpop.f32.mrb[0].mxu0
      %v2787 = vadd.f32 0.0, %v2786
      %v2788 = vpop.f32.mrb[0].mxu0
      %2789 = vmatprep.mubr.bf16.mxu0 0
      %2790 = vmatmul.mubr.bf16.gmra.mrb[0].mxu0 %v2629
      %v2791 = vpop.f32.mrb[0].mxu0
      %v2792 = vadd.f32 0.0, %v2791
      %v2793 = vpop.f32.mrb[0].mxu0
      %v2794 = vpop.f32.mrb[0].mxu0
      %v2795 = vadd.f32 0.0, %v2794
      %v2796 = vpop.f32.mrb[0].mxu0
      %2797 = vmatprep.mubr.bf16.mxu0 0
      %2798 = vmatmul.mubr.bf16.gmra.mrb[0].mxu0 %v2632
      %v2799 = vpop.f32.mrb[0].mxu0
      %v2800 = vadd.f32 0.0, %v2799
      %v2801 = vpop.f32.mrb[0].mxu0
      %v2802 = vpop.f32.mrb[0].mxu0
      %v2803 = vadd.f32 0.0, %v2802
      %v2804 = vpop.f32.mrb[0].mxu0
      %2805 = vmatprep.mubr.bf16.mxu0 0
      %2806 = vmatmul.mubr.bf16.gmra.mrb[0].mxu0 %v2635
      %v2807 = vpop.f32.mrb[0].mxu0
      %v2808 = vadd.f32 0.0, %v2807
      %v2809 = vpop.f32.mrb[0].mxu0
      %v2810 = vpop.f32.mrb[0].mxu0
      %v2811 = vadd.f32 0.0, %v2810
      %v2812 = vpop.f32.mrb[0].mxu0
      %2813 = vdwg.mxu0
      %v2814 = vld [vmem:[#allocation2] sm:$0xff]
      %v2815 = vld [vmem:[#allocation2 + $0x8] sm:$0xff]
      %v2816 = vld [vmem:[#allocation2 + $0x10] sm:$0xff]
      %v2817 = vld [vmem:[#allocation2 + $0x18] sm:$0xff]
      %v2818 = vld [vmem:[#allocation2 + $0x20] sm:$0xff]
      %v2819 = vld [vmem:[#allocation2 + $0x28] sm:$0xff]
      %v2820 = vld [vmem:[#allocation2 + $0x30] sm:$0xff]
      %v2821 = vld [vmem:[#allocation2 + $0x38] sm:$0xff]
      %v2822 = vld [vmem:[#allocation2 + $0x40] sm:$0xff]
      %v2823 = vld [vmem:[#allocation2 + $0x48] sm:$0xff]
      %v2824 = vld [vmem:[#allocation2 + $0x50] sm:$0xff]
      %v2825 = vld [vmem:[#allocation2 + $0x58] sm:$0xff]
      %v2826 = vld [vmem:[#allocation2 + $0x60] sm:$0xff]
      %v2827 = vld [vmem:[#allocation2 + $0x68] sm:$0xff]
      %v2828 = vld [vmem:[#allocation2 + $0x70] sm:$0xff]
      %v2829 = vld [vmem:[#allocation2 + $0x78] sm:$0xff]
      %v2830 = vld [vmem:[#allocation2 + $0x80] sm:$0xff]
      %v2831 = vld [vmem:[#allocation2 + $0x88] sm:$0xff]
      %v2832 = vld [vmem:[#allocation2 + $0x90] sm:$0xff]
      %v2833 = vld [vmem:[#allocation2 + $0x98] sm:$0xff]
      %v2834 = vld [vmem:[#allocation2 + $0xa0] sm:$0xff]
      %v2835 = vld [vmem:[#allocation2 + $0xa8] sm:$0xff]
      %v2836 = vld [vmem:[#allocation2 + $0xb0] sm:$0xff]
      %v2837 = vld [vmem:[#allocation2 + $0xb8] sm:$0xff]
      %v2838 = vld [vmem:[#allocation2 + $0xc0] sm:$0xff]
      %v2839 = vld [vmem:[#allocation2 + $0xc8] sm:$0xff]
      %v2840 = vld [vmem:[#allocation2 + $0xd0] sm:$0xff]
      %v2841 = vld [vmem:[#allocation2 + $0xd8] sm:$0xff]
      %v2842 = vld [vmem:[#allocation2 + $0xe0] sm:$0xff]
      %v2843 = vld [vmem:[#allocation2 + $0xe8] sm:$0xff]
      %v2844 = vld [vmem:[#allocation2 + $0xf0] sm:$0xff]
      %v2845 = vld [vmem:[#allocation2 + $0xf8] sm:$0xff]
      %v2846 = vld [vmem:[#allocation2 + $0x100] sm:$0xff]
      %v2847 = vld [vmem:[#allocation2 + $0x108] sm:$0xff]
      %v2848 = vld [vmem:[#allocation2 + $0x110] sm:$0xff]
      %v2849 = vld [vmem:[#allocation2 + $0x118] sm:$0xff]
      %v2850 = vadd.f32 %v2814, %v2672
      %v2851 = vadd.f32 %v2815, %v2675
      %v2852 = vadd.f32 %v2816, %v2680
      %v2853 = vadd.f32 %v2817, %v2683
      %v2854 = vadd.f32 %v2818, %v2688
      %v2855 = vadd.f32 %v2819, %v2691
      %v2856 = vadd.f32 %v2820, %v2696
      %v2857 = vadd.f32 %v2821, %v2699
      %v2858 = vadd.f32 %v2822, %v2704
      %v2859 = vadd.f32 %v2823, %v2707
      %v2860 = vadd.f32 %v2824, %v2712
      %v2861 = vadd.f32 %v2825, %v2715
      %v2862 = vadd.f32 %v2826, %v2720
      %v2863 = vadd.f32 %v2827, %v2723
      %v2864 = vadd.f32 %v2828, %v2728
      %v2865 = vadd.f32 %v2829, %v2731
      %v2866 = vadd.f32 %v2830, %v2736
      %v2867 = vadd.f32 %v2831, %v2739
      %v2868 = vadd.f32 %v2832, %v2744
      %v2869 = vadd.f32 %v2833, %v2747
      %v2870 = vadd.f32 %v2834, %v2752
      %v2871 = vadd.f32 %v2835, %v2755
      %v2872 = vadd.f32 %v2836, %v2760
      %v2873 = vadd.f32 %v2837, %v2763
      %v2874 = vadd.f32 %v2838, %v2768
      %v2875 = vadd.f32 %v2839, %v2771
      %v2876 = vadd.f32 %v2840, %v2776
      %v2877 = vadd.f32 %v2841, %v2779
      %v2878 = vadd.f32 %v2842, %v2784
      %v2879 = vadd.f32 %v2843, %v2787
      %v2880 = vadd.f32 %v2844, %v2792
      %v2881 = vadd.f32 %v2845, %v2795
      %v2882 = vadd.f32 %v2846, %v2800
      %v2883 = vadd.f32 %v2847, %v2803
      %v2884 = vadd.f32 %v2848, %v2808
      %v2885 = vadd.f32 %v2849, %v2811
      %2886 = vst.msk [vmem:[#allocation2] sm:$0xff] %vm546, %v2850
      %2887 = vst.msk [vmem:[#allocation2 + $0x8] sm:$0xff] %vm546, %v2851
      %2888 = vst.msk [vmem:[#allocation2 + $0x10] sm:$0xff] %vm546, %v2852
      %2889 = vst.msk [vmem:[#allocation2 + $0x18] sm:$0xff] %vm546, %v2853
      %2890 = vst.msk [vmem:[#allocation2 + $0x20] sm:$0xff] %vm546, %v2854
      %2891 = vst.msk [vmem:[#allocation2 + $0x28] sm:$0xff] %vm546, %v2855
      %2892 = vst.msk [vmem:[#allocation2 + $0x30] sm:$0xff] %vm546, %v2856
      %2893 = vst.msk [vmem:[#allocation2 + $0x38] sm:$0xff] %vm546, %v2857
      %2894 = vst.msk [vmem:[#allocation2 + $0x40] sm:$0xff] %vm546, %v2858
      %2895 = vst.msk [vmem:[#allocation2 + $0x48] sm:$0xff] %vm546, %v2859
      %2896 = vst.msk [vmem:[#allocation2 + $0x50] sm:$0xff] %vm546, %v2860
      %2897 = vst.msk [vmem:[#allocation2 + $0x58] sm:$0xff] %vm546, %v2861
      %2898 = vst.msk [vmem:[#allocation2 + $0x60] sm:$0xff] %vm546, %v2862
      %2899 = vst.msk [vmem:[#allocation2 + $0x68] sm:$0xff] %vm546, %v2863
      %2900 = vst.msk [vmem:[#allocation2 + $0x70] sm:$0xff] %vm546, %v2864
      %2901 = vst.msk [vmem:[#allocation2 + $0x78] sm:$0xff] %vm546, %v2865
      %2902 = vst.msk [vmem:[#allocation2 + $0x80] sm:$0xff] %vm546, %v2866
      %2903 = vst.msk [vmem:[#allocation2 + $0x88] sm:$0xff] %vm546, %v2867
      %2904 = vst.msk [vmem:[#allocation2 + $0x90] sm:$0xff] %vm546, %v2868
      %2905 = vst.msk [vmem:[#allocation2 + $0x98] sm:$0xff] %vm546, %v2869
      %2906 = vst.msk [vmem:[#allocation2 + $0xa0] sm:$0xff] %vm546, %v2870
      %2907 = vst.msk [vmem:[#allocation2 + $0xa8] sm:$0xff] %vm546, %v2871
      %2908 = vst.msk [vmem:[#allocation2 + $0xb0] sm:$0xff] %vm546, %v2872
      %2909 = vst.msk [vmem:[#allocation2 + $0xb8] sm:$0xff] %vm546, %v2873
      %2910 = vst.msk [vmem:[#allocation2 + $0xc0] sm:$0xff] %vm546, %v2874
      %2911 = vst.msk [vmem:[#allocation2 + $0xc8] sm:$0xff] %vm546, %v2875
      %2912 = vst.msk [vmem:[#allocation2 + $0xd0] sm:$0xff] %vm546, %v2876
      %2913 = vst.msk [vmem:[#allocation2 + $0xd8] sm:$0xff] %vm546, %v2877
      %2914 = vst.msk [vmem:[#allocation2 + $0xe0] sm:$0xff] %vm546, %v2878
      %2915 = vst.msk [vmem:[#allocation2 + $0xe8] sm:$0xff] %vm546, %v2879
      %2916 = vst.msk [vmem:[#allocation2 + $0xf0] sm:$0xff] %vm546, %v2880
      %2917 = vst.msk [vmem:[#allocation2 + $0xf8] sm:$0xff] %vm546, %v2881
      %2918 = vst.msk [vmem:[#allocation2 + $0x100] sm:$0xff] %vm546, %v2882
      %2919 = vst.msk [vmem:[#allocation2 + $0x108] sm:$0xff] %vm546, %v2883
      %2920 = vst.msk [vmem:[#allocation2 + $0x110] sm:$0xff] %vm546, %v2884
      %2921 = vst.msk [vmem:[#allocation2 + $0x118] sm:$0xff] %vm546, %v2885
      %v2922 = vld [vmem:[%s165 + $0x8] sm:$0xc]
      %v2923 = vld [vmem:[%s165 + $0xc] sm:$0xf]
      %v2924 = vld [vmem:[%s165 + $0x10] sm:$0xf]
      %v2925 = vld [vmem:[%s165 + $0x14] sm:$0xf]
      %v2926 = vld [vmem:[%s165 + $0x18] sm:$0xf]
      %v2927 = vld [vmem:[%s165 + $0x1c] sm:$0xf]
      %v2928 = vld [vmem:[%s165 + $0x20] sm:$0xf]
      %v2929 = vld [vmem:[%s165 + $0x24] sm:$0xf]
      %v2930 = vld [vmem:[%s165 + $0x28] sm:$0xf]
      %v2931 = vld [vmem:[%s165 + $0x2c] sm:$0xf]
      %v2932 = vld [vmem:[%s165 + $0x30] sm:$0xf]
      %v2933 = vld [vmem:[%s165 + $0x34] sm:$0xf]
      %v2934 = vld [vmem:[%s165 + $0x38] sm:$0xf]
      %v2935 = vld [vmem:[%s165 + $0x3c] sm:$0xf]
      %v2936 = vld [vmem:[%s165 + $0x40] sm:$0xf]
      %v2937 = vld [vmem:[%s165 + $0x44] sm:$0xf]
      %v2938 = vld [vmem:[%s165 + $0x48] sm:$0xf]
      %v2939 = vld [vmem:[%s165 + $0x4c] sm:$0xf]
      %v2940 = vld [vmem:[%s165 + $0x50] sm:$0xf]
      %v2941 = vld [vmem:[%s165 + $0x54] sm:$0xf]
      %v2942 = vld [vmem:[%s165 + $0x58] sm:$0xf]
      %v2943 = vld [vmem:[%s165 + $0x5c] sm:$0xf]
      %v2944 = vld [vmem:[%s165 + $0x60] sm:$0xf]
      %v2945 = vld [vmem:[%s165 + $0x64] sm:$0xf]
      %v2946 = vld [vmem:[%s165 + $0x68] sm:$0xf]
      %v2947 = vld [vmem:[%s165 + $0x6c] sm:$0xf]
      %v2948 = vld [vmem:[%s165 + $0x70] sm:$0xf]
      %v2949 = vld [vmem:[%s165 + $0x74] sm:$0xf]
      %v2950 = vld [vmem:[%s165 + $0x78] sm:$0xf]
      %v2951 = vld [vmem:[%s165 + $0x7c] sm:$0xf]
      %v2952 = vld [vmem:[%s165 + $0x80] sm:$0xf]
      %v2953 = vld [vmem:[%s165 + $0x84] sm:$0xf]
      %v2954 = vld [vmem:[%s165 + $0x88] sm:$0xf]
      %v2955 = vld [vmem:[%s165 + $0x8c] sm:$0xf]
      %v2956 = vld [vmem:[%s165 + $0x90] sm:$0xf]
      %v2957 = vld [vmem:[%s165 + $0x94] sm:$0xf]
      %v2958 = vld [vmem:[%s165 + $0x98] sm:$0x3]
      %s2959 = scalar_lea.vmem %s1, 80
      %v2960 = vld [vmem:[%s2959] sm:$0xf]
      %v2961 = vld [vmem:[%s2959 + $0x4] sm:$0xf]
      %v2962 = vld [vmem:[%s2959 + $0x8] sm:$0xf]
      %v2963 = vld [vmem:[%s2959 + $0xc] sm:$0xf]
      %v3001 = vunpack.c.l.b16 %v2922
      %v3002 = vunpack.c.l.b16 %v2923
      %v3003 = vunpack.c.l.b16 %v2924
      %v3004 = vunpack.c.l.b16 %v2925
      %v3005 = vunpack.c.l.b16 %v2926
      %v3006 = vunpack.c.l.b16 %v2927
      %v3007 = vunpack.c.l.b16 %v2928
      %v3008 = vunpack.c.l.b16 %v2929
      %v3009 = vunpack.c.l.b16 %v2930
      %v3010 = vunpack.c.l.b16 %v2931
      %v3011 = vunpack.c.l.b16 %v2932
      %v3012 = vunpack.c.l.b16 %v2933
      %v3013 = vunpack.c.l.b16 %v2934
      %v3014 = vunpack.c.l.b16 %v2935
      %v3015 = vunpack.c.l.b16 %v2936
      %v3016 = vunpack.c.l.b16 %v2937
      %v3017 = vunpack.c.l.b16 %v2938
      %v3018 = vunpack.c.l.b16 %v2939
      %v3019 = vunpack.c.l.b16 %v2940
      %v3020 = vunpack.c.l.b16 %v2941
      %v3021 = vunpack.c.l.b16 %v2942
      %v3022 = vunpack.c.l.b16 %v2943
      %v3023 = vunpack.c.l.b16 %v2944
      %v3024 = vunpack.c.l.b16 %v2945
      %v3025 = vunpack.c.l.b16 %v2946
      %v3026 = vunpack.c.l.b16 %v2947
      %v3027 = vunpack.c.l.b16 %v2948
      %v3028 = vunpack.c.l.b16 %v2949
      %v3029 = vunpack.c.l.b16 %v2950
      %v3030 = vunpack.c.l.b16 %v2951
      %v3031 = vunpack.c.l.b16 %v2952
      %v3032 = vunpack.c.l.b16 %v2953
      %v3033 = vunpack.c.l.b16 %v2954
      %v3034 = vunpack.c.l.b16 %v2955
      %v3035 = vunpack.c.l.b16 %v2956
      %v3036 = vunpack.c.l.b16 %v2957
      %v3037 = vunpack.c.l.b16 %v2958
      %v3038 = vpack.c.b16 %v3002, %v3001
      %v3039 = vpack.c.b16 %v3004, %v3003
      %v3040 = vpack.c.b16 %v3006, %v3005
      %v3041 = vpack.c.b16 %v3008, %v3007
      %v3042 = vpack.c.b16 %v3010, %v3009
      %v3043 = vpack.c.b16 %v3012, %v3011
      %v3044 = vpack.c.b16 %v3014, %v3013
      %v3045 = vpack.c.b16 %v3016, %v3015
      %v3046 = vpack.c.b16 %v3018, %v3017
      %v3047 = vpack.c.b16 %v3020, %v3019
      %v3048 = vpack.c.b16 %v3022, %v3021
      %v3049 = vpack.c.b16 %v3024, %v3023
      %v3050 = vpack.c.b16 %v3026, %v3025
      %v3051 = vpack.c.b16 %v3028, %v3027
      %v3052 = vpack.c.b16 %v3030, %v3029
      %v3053 = vpack.c.b16 %v3032, %v3031
      %v3054 = vpack.c.b16 %v3034, %v3033
      %v3055 = vpack.c.b16 %v3036, %v3035
      %v3056 = vpack.c.b16 %v3037, %v3037
      %vm3057 = vcmask 1045504
      %v3058 = vrot.slane %v3038, 2
      %v3059 = vrot.slane %v3039, 2
      %v3060 = vsel %vm3057, %v3058, %v3059
      %v3061 = vrot.slane %v3040, 2
      %v3062 = vsel %vm3057, %v3059, %v3061
      %v3063 = vrot.slane %v3041, 2
      %v3064 = vsel %vm3057, %v3061, %v3063
      %v3065 = vrot.slane %v3042, 2
      %v3066 = vsel %vm3057, %v3063, %v3065
      %v3067 = vrot.slane %v3043, 2
      %v3068 = vsel %vm3057, %v3065, %v3067
      %v3069 = vrot.slane %v3044, 2
      %v3070 = vsel %vm3057, %v3067, %v3069
      %v3071 = vrot.slane %v3045, 2
      %v3072 = vsel %vm3057, %v3069, %v3071
      %v3073 = vrot.slane %v3046, 2
      %v3074 = vsel %vm3057, %v3071, %v3073
      %v3075 = vrot.slane %v3047, 2
      %v3076 = vsel %vm3057, %v3073, %v3075
      %v3077 = vrot.slane %v3048, 2
      %v3078 = vsel %vm3057, %v3075, %v3077
      %v3079 = vrot.slane %v3049, 2
      %v3080 = vsel %vm3057, %v3077, %v3079
      %v3081 = vrot.slane %v3050, 2
      %v3082 = vsel %vm3057, %v3079, %v3081
      %v3083 = vrot.slane %v3051, 2
      %v3084 = vsel %vm3057, %v3081, %v3083
      %v3085 = vrot.slane %v3052, 2
      %v3086 = vsel %vm3057, %v3083, %v3085
      %v3087 = vrot.slane %v3053, 2
      %v3088 = vsel %vm3057, %v3085, %v3087
      %v3089 = vrot.slane %v3054, 2
      %v3090 = vsel %vm3057, %v3087, %v3089
      %v3091 = vrot.slane %v3055, 2
      %v3092 = vsel %vm3057, %v3089, %v3091
      %v3093 = vrot.slane %v3056, 2
      %v3094 = vsel %vm3057, %v3091, %v3093
      %v3099 = vunpack.c.l.b16 %v2960
      %v3100 = vunpack.c.l.b16 %v2961
      %v3101 = vunpack.c.l.b16 %v2962
      %v3102 = vunpack.c.l.b16 %v2963
      %v3103 = vpack.c.b16 %v3100, %v3099
      %v3104 = vpack.c.b16 %v3102, %v3101
      %v3108 = vsel %vm314, %v3060, 0
      %v3111 = vsel %vm314, %v3062, 0
      %v3114 = vsel %vm314, %v3064, 0
      %v3117 = vsel %vm314, %v3066, 0
      %v3120 = vsel %vm314, %v3068, 0
      %v3123 = vsel %vm314, %v3070, 0
      %v3126 = vsel %vm314, %v3072, 0
      %v3129 = vsel %vm314, %v3074, 0
      %v3132 = vsel %vm314, %v3076, 0
      %v3135 = vsel %vm314, %v3078, 0
      %v3138 = vsel %vm314, %v3080, 0
      %v3141 = vsel %vm314, %v3082, 0
      %v3144 = vsel %vm314, %v3084, 0
      %v3147 = vsel %vm314, %v3086, 0
      %v3150 = vsel %vm314, %v3088, 0
      %v3153 = vsel %vm314, %v3090, 0
      %v3156 = vsel %vm314, %v3092, 0
      %v3159 = vsel %vm314, %v3094, 0
      %3161 = vmatprep.subr.bf16.mxu0 0
      %3162 = vmatpush1.bf16.msra.mxu0 %v3103
      %3163 = vmatprep.subr.bf16.mxu0 0
      %3164 = vmatpush1.bf16.msra.mxu0 %v3104
      %3165 = vmatprep.subr.bf16.mxu0 0
      %3166 = vmatpush1.bf16.msra.mxu0 0
      %3167 = vmatprep.subr.bf16.mxu0 0
      %3168 = vmatpush1.bf16.msra.mxu0 0
      %3169 = vmatprep.subr.bf16.mxu0 0
      %3170 = vmatpush1.bf16.msra.mxu0 0
      %3171 = vmatprep.subr.bf16.mxu0 0
      %3172 = vmatpush1.bf16.msra.mxu0 0
      %3173 = vmatprep.subr.bf16.mxu0 0
      %3174 = vmatpush1.bf16.msra.mxu0 0
      %3175 = vmatprep.subr.bf16.mxu0 0
      %3176 = vmatpush1.bf16.msra.mxu0 0
      %3177 = vmatprep.subr.bf16.mxu0 0
      %3178 = vmatpush1.bf16.msra.mxu0 0
      %3179 = vmatprep.subr.bf16.mxu0 0
      %3180 = vmatpush1.bf16.msra.mxu0 0
      %3181 = vmatprep.subr.bf16.mxu0 0
      %3182 = vmatpush1.bf16.msra.mxu0 0
      %3183 = vmatprep.subr.bf16.mxu0 0
      %3184 = vmatpush1.bf16.msra.mxu0 0
      %3185 = vmatprep.subr.bf16.mxu0 0
      %3186 = vmatpush1.bf16.msra.mxu0 0
      %3187 = vmatprep.subr.bf16.mxu0 0
      %3188 = vmatpush1.bf16.msra.mxu0 0
      %3189 = vmatprep.subr.bf16.mxu0 0
      %3190 = vmatpush1.bf16.msra.mxu0 0
      %3191 = vmatprep.subr.bf16.mxu0 0
      %3192 = vmatpush1.bf16.msra.mxu0 0
      %3193 = vmatprep.mubr.bf16.mxu0 0
      %3194 = vmatmul.mubr.bf16.gmra.mrb[0].mxu0 %v3108
      %v3195 = vpop.f32.mrb[0].mxu0
      %v3196 = vadd.f32 0.0, %v3195
      %v3197 = vpop.f32.mrb[0].mxu0
      %v3198 = vpop.f32.mrb[0].mxu0
      %v3199 = vadd.f32 0.0, %v3198
      %v3200 = vpop.f32.mrb[0].mxu0
      %3201 = vmatprep.mubr.bf16.mxu0 0
      %3202 = vmatmul.mubr.bf16.gmra.mrb[0].mxu0 %v3111
      %v3203 = vpop.f32.mrb[0].mxu0
      %v3204 = vadd.f32 0.0, %v3203
      %v3205 = vpop.f32.mrb[0].mxu0
      %v3206 = vpop.f32.mrb[0].mxu0
      %v3207 = vadd.f32 0.0, %v3206
      %v3208 = vpop.f32.mrb[0].mxu0
      %3209 = vmatprep.mubr.bf16.mxu0 0
      %3210 = vmatmul.mubr.bf16.gmra.mrb[0].mxu0 %v3114
      %v3211 = vpop.f32.mrb[0].mxu0
      %v3212 = vadd.f32 0.0, %v3211
      %v3213 = vpop.f32.mrb[0].mxu0
      %v3214 = vpop.f32.mrb[0].mxu0
      %v3215 = vadd.f32 0.0, %v3214
      %v3216 = vpop.f32.mrb[0].mxu0
      %3217 = vmatprep.mubr.bf16.mxu0 0
      %3218 = vmatmul.mubr.bf16.gmra.mrb[0].mxu0 %v3117
      %v3219 = vpop.f32.mrb[0].mxu0
      %v3220 = vadd.f32 0.0, %v3219
      %v3221 = vpop.f32.mrb[0].mxu0
      %v3222 = vpop.f32.mrb[0].mxu0
      %v3223 = vadd.f32 0.0, %v3222
      %v3224 = vpop.f32.mrb[0].mxu0
      %3225 = vmatprep.mubr.bf16.mxu0 0
      %3226 = vmatmul.mubr.bf16.gmra.mrb[0].mxu0 %v3120
      %v3227 = vpop.f32.mrb[0].mxu0
      %v3228 = vadd.f32 0.0, %v3227
      %v3229 = vpop.f32.mrb[0].mxu0
      %v3230 = vpop.f32.mrb[0].mxu0
      %v3231 = vadd.f32 0.0, %v3230
      %v3232 = vpop.f32.mrb[0].mxu0
      %3233 = vmatprep.mubr.bf16.mxu0 0
      %3234 = vmatmul.mubr.bf16.gmra.mrb[0].mxu0 %v3123
      %v3235 = vpop.f32.mrb[0].mxu0
      %v3236 = vadd.f32 0.0, %v3235
      %v3237 = vpop.f32.mrb[0].mxu0
      %v3238 = vpop.f32.mrb[0].mxu0
      %v3239 = vadd.f32 0.0, %v3238
      %v3240 = vpop.f32.mrb[0].mxu0
      %3241 = vmatprep.mubr.bf16.mxu0 0
      %3242 = vmatmul.mubr.bf16.gmra.mrb[0].mxu0 %v3126
      %v3243 = vpop.f32.mrb[0].mxu0
      %v3244 = vadd.f32 0.0, %v3243
      %v3245 = vpop.f32.mrb[0].mxu0
      %v3246 = vpop.f32.mrb[0].mxu0
      %v3247 = vadd.f32 0.0, %v3246
      %v3248 = vpop.f32.mrb[0].mxu0
      %3249 = vmatprep.mubr.bf16.mxu0 0
      %3250 = vmatmul.mubr.bf16.gmra.mrb[0].mxu0 %v3129
      %v3251 = vpop.f32.mrb[0].mxu0
      %v3252 = vadd.f32 0.0, %v3251
      %v3253 = vpop.f32.mrb[0].mxu0
      %v3254 = vpop.f32.mrb[0].mxu0
      %v3255 = vadd.f32 0.0, %v3254
      %v3256 = vpop.f32.mrb[0].mxu0
      %3257 = vmatprep.mubr.bf16.mxu0 0
      %3258 = vmatmul.mubr.bf16.gmra.mrb[0].mxu0 %v3132
      %v3259 = vpop.f32.mrb[0].mxu0
      %v3260 = vadd.f32 0.0, %v3259
      %v3261 = vpop.f32.mrb[0].mxu0
      %v3262 = vpop.f32.mrb[0].mxu0
      %v3263 = vadd.f32 0.0, %v3262
      %v3264 = vpop.f32.mrb[0].mxu0
      %3265 = vmatprep.mubr.bf16.mxu0 0
      %3266 = vmatmul.mubr.bf16.gmra.mrb[0].mxu0 %v3135
      %v3267 = vpop.f32.mrb[0].mxu0
      %v3268 = vadd.f32 0.0, %v3267
      %v3269 = vpop.f32.mrb[0].mxu0
      %v3270 = vpop.f32.mrb[0].mxu0
      %v3271 = vadd.f32 0.0, %v3270
      %v3272 = vpop.f32.mrb[0].mxu0
      %3273 = vmatprep.mubr.bf16.mxu0 0
      %3274 = vmatmul.mubr.bf16.gmra.mrb[0].mxu0 %v3138
      %v3275 = vpop.f32.mrb[0].mxu0
      %v3276 = vadd.f32 0.0, %v3275
      %v3277 = vpop.f32.mrb[0].mxu0
      %v3278 = vpop.f32.mrb[0].mxu0
      %v3279 = vadd.f32 0.0, %v3278
      %v3280 = vpop.f32.mrb[0].mxu0
      %3281 = vmatprep.mubr.bf16.mxu0 0
      %3282 = vmatmul.mubr.bf16.gmra.mrb[0].mxu0 %v3141
      %v3283 = vpop.f32.mrb[0].mxu0
      %v3284 = vadd.f32 0.0, %v3283
      %v3285 = vpop.f32.mrb[0].mxu0
      %v3286 = vpop.f32.mrb[0].mxu0
      %v3287 = vadd.f32 0.0, %v3286
      %v3288 = vpop.f32.mrb[0].mxu0
      %3289 = vmatprep.mubr.bf16.mxu0 0
      %3290 = vmatmul.mubr.bf16.gmra.mrb[0].mxu0 %v3144
      %v3291 = vpop.f32.mrb[0].mxu0
      %v3292 = vadd.f32 0.0, %v3291
      %v3293 = vpop.f32.mrb[0].mxu0
      %v3294 = vpop.f32.mrb[0].mxu0
      %v3295 = vadd.f32 0.0, %v3294
      %v3296 = vpop.f32.mrb[0].mxu0
      %3297 = vmatprep.mubr.bf16.mxu0 0
      %3298 = vmatmul.mubr.bf16.gmra.mrb[0].mxu0 %v3147
      %v3299 = vpop.f32.mrb[0].mxu0
      %v3300 = vadd.f32 0.0, %v3299
      %v3301 = vpop.f32.mrb[0].mxu0
      %v3302 = vpop.f32.mrb[0].mxu0
      %v3303 = vadd.f32 0.0, %v3302
      %v3304 = vpop.f32.mrb[0].mxu0
      %3305 = vmatprep.mubr.bf16.mxu0 0
      %3306 = vmatmul.mubr.bf16.gmra.mrb[0].mxu0 %v3150
      %v3307 = vpop.f32.mrb[0].mxu0
      %v3308 = vadd.f32 0.0, %v3307
      %v3309 = vpop.f32.mrb[0].mxu0
      %v3310 = vpop.f32.mrb[0].mxu0
      %v3311 = vadd.f32 0.0, %v3310
      %v3312 = vpop.f32.mrb[0].mxu0
      %3313 = vmatprep.mubr.bf16.mxu0 0
      %3314 = vmatmul.mubr.bf16.gmra.mrb[0].mxu0 %v3153
      %v3315 = vpop.f32.mrb[0].mxu0
      %v3316 = vadd.f32 0.0, %v3315
      %v3317 = vpop.f32.mrb[0].mxu0
      %v3318 = vpop.f32.mrb[0].mxu0
      %v3319 = vadd.f32 0.0, %v3318
      %v3320 = vpop.f32.mrb[0].mxu0
      %3321 = vmatprep.mubr.bf16.mxu0 0
      %3322 = vmatmul.mubr.bf16.gmra.mrb[0].mxu0 %v3156
      %v3323 = vpop.f32.mrb[0].mxu0
      %v3324 = vadd.f32 0.0, %v3323
      %v3325 = vpop.f32.mrb[0].mxu0
      %v3326 = vpop.f32.mrb[0].mxu0
      %v3327 = vadd.f32 0.0, %v3326
      %v3328 = vpop.f32.mrb[0].mxu0
      %3329 = vmatprep.mubr.bf16.mxu0 0
      %3330 = vmatmul.mubr.bf16.gmra.mrb[0].mxu0 %v3159
      %v3331 = vpop.f32.mrb[0].mxu0
      %v3332 = vadd.f32 0.0, %v3331
      %v3333 = vpop.f32.mrb[0].mxu0
      %v3334 = vpop.f32.mrb[0].mxu0
      %v3335 = vadd.f32 0.0, %v3334
      %v3336 = vpop.f32.mrb[0].mxu0
      %3337 = vdwg.mxu0
      %v3338 = vld [vmem:[#allocation2] sm:$0xff]
      %v3339 = vld [vmem:[#allocation2 + $0x8] sm:$0xff]
      %v3340 = vld [vmem:[#allocation2 + $0x10] sm:$0xff]
      %v3341 = vld [vmem:[#allocation2 + $0x18] sm:$0xff]
      %v3342 = vld [vmem:[#allocation2 + $0x20] sm:$0xff]
      %v3343 = vld [vmem:[#allocation2 + $0x28] sm:$0xff]
      %v3344 = vld [vmem:[#allocation2 + $0x30] sm:$0xff]
      %v3345 = vld [vmem:[#allocation2 + $0x38] sm:$0xff]
      %v3346 = vld [vmem:[#allocation2 + $0x40] sm:$0xff]
      %v3347 = vld [vmem:[#allocation2 + $0x48] sm:$0xff]
      %v3348 = vld [vmem:[#allocation2 + $0x50] sm:$0xff]
      %v3349 = vld [vmem:[#allocation2 + $0x58] sm:$0xff]
      %v3350 = vld [vmem:[#allocation2 + $0x60] sm:$0xff]
      %v3351 = vld [vmem:[#allocation2 + $0x68] sm:$0xff]
      %v3352 = vld [vmem:[#allocation2 + $0x70] sm:$0xff]
      %v3353 = vld [vmem:[#allocation2 + $0x78] sm:$0xff]
      %v3354 = vld [vmem:[#allocation2 + $0x80] sm:$0xff]
      %v3355 = vld [vmem:[#allocation2 + $0x88] sm:$0xff]
      %v3356 = vld [vmem:[#allocation2 + $0x90] sm:$0xff]
      %v3357 = vld [vmem:[#allocation2 + $0x98] sm:$0xff]
      %v3358 = vld [vmem:[#allocation2 + $0xa0] sm:$0xff]
      %v3359 = vld [vmem:[#allocation2 + $0xa8] sm:$0xff]
      %v3360 = vld [vmem:[#allocation2 + $0xb0] sm:$0xff]
      %v3361 = vld [vmem:[#allocation2 + $0xb8] sm:$0xff]
      %v3362 = vld [vmem:[#allocation2 + $0xc0] sm:$0xff]
      %v3363 = vld [vmem:[#allocation2 + $0xc8] sm:$0xff]
      %v3364 = vld [vmem:[#allocation2 + $0xd0] sm:$0xff]
      %v3365 = vld [vmem:[#allocation2 + $0xd8] sm:$0xff]
      %v3366 = vld [vmem:[#allocation2 + $0xe0] sm:$0xff]
      %v3367 = vld [vmem:[#allocation2 + $0xe8] sm:$0xff]
      %v3368 = vld [vmem:[#allocation2 + $0xf0] sm:$0xff]
      %v3369 = vld [vmem:[#allocation2 + $0xf8] sm:$0xff]
      %v3370 = vld [vmem:[#allocation2 + $0x100] sm:$0xff]
      %v3371 = vld [vmem:[#allocation2 + $0x108] sm:$0xff]
      %v3372 = vld [vmem:[#allocation2 + $0x110] sm:$0xff]
      %v3373 = vld [vmem:[#allocation2 + $0x118] sm:$0xff]
      %v3374 = vadd.f32 %v3338, %v3196
      %v3375 = vadd.f32 %v3339, %v3199
      %v3376 = vadd.f32 %v3340, %v3204
      %v3377 = vadd.f32 %v3341, %v3207
      %v3378 = vadd.f32 %v3342, %v3212
      %v3379 = vadd.f32 %v3343, %v3215
      %v3380 = vadd.f32 %v3344, %v3220
      %v3381 = vadd.f32 %v3345, %v3223
      %v3382 = vadd.f32 %v3346, %v3228
      %v3383 = vadd.f32 %v3347, %v3231
      %v3384 = vadd.f32 %v3348, %v3236
      %v3385 = vadd.f32 %v3349, %v3239
      %v3386 = vadd.f32 %v3350, %v3244
      %v3387 = vadd.f32 %v3351, %v3247
      %v3388 = vadd.f32 %v3352, %v3252
      %v3389 = vadd.f32 %v3353, %v3255
      %v3390 = vadd.f32 %v3354, %v3260
      %v3391 = vadd.f32 %v3355, %v3263
      %v3392 = vadd.f32 %v3356, %v3268
      %v3393 = vadd.f32 %v3357, %v3271
      %v3394 = vadd.f32 %v3358, %v3276
      %v3395 = vadd.f32 %v3359, %v3279
      %v3396 = vadd.f32 %v3360, %v3284
      %v3397 = vadd.f32 %v3361, %v3287
      %v3398 = vadd.f32 %v3362, %v3292
      %v3399 = vadd.f32 %v3363, %v3295
      %v3400 = vadd.f32 %v3364, %v3300
      %v3401 = vadd.f32 %v3365, %v3303
      %v3402 = vadd.f32 %v3366, %v3308
      %v3403 = vadd.f32 %v3367, %v3311
      %v3404 = vadd.f32 %v3368, %v3316
      %v3405 = vadd.f32 %v3369, %v3319
      %v3406 = vadd.f32 %v3370, %v3324
      %v3407 = vadd.f32 %v3371, %v3327
      %v3408 = vadd.f32 %v3372, %v3332
      %v3409 = vadd.f32 %v3373, %v3335
      %3410 = vst.msk [vmem:[#allocation2] sm:$0xff] %vm546, %v3374
      %3411 = vst.msk [vmem:[#allocation2 + $0x8] sm:$0xff] %vm546, %v3375
      %3412 = vst.msk [vmem:[#allocation2 + $0x10] sm:$0xff] %vm546, %v3376
      %3413 = vst.msk [vmem:[#allocation2 + $0x18] sm:$0xff] %vm546, %v3377
      %3414 = vst.msk [vmem:[#allocation2 + $0x20] sm:$0xff] %vm546, %v3378
      %3415 = vst.msk [vmem:[#allocation2 + $0x28] sm:$0xff] %vm546, %v3379
      %3416 = vst.msk [vmem:[#allocation2 + $0x30] sm:$0xff] %vm546, %v3380
      %3417 = vst.msk [vmem:[#allocation2 + $0x38] sm:$0xff] %vm546, %v3381
      %3418 = vst.msk [vmem:[#allocation2 + $0x40] sm:$0xff] %vm546, %v3382
      %3419 = vst.msk [vmem:[#allocation2 + $0x48] sm:$0xff] %vm546, %v3383
      %3420 = vst.msk [vmem:[#allocation2 + $0x50] sm:$0xff] %vm546, %v3384
      %3421 = vst.msk [vmem:[#allocation2 + $0x58] sm:$0xff] %vm546, %v3385
      %3422 = vst.msk [vmem:[#allocation2 + $0x60] sm:$0xff] %vm546, %v3386
      %3423 = vst.msk [vmem:[#allocation2 + $0x68] sm:$0xff] %vm546, %v3387
      %3424 = vst.msk [vmem:[#allocation2 + $0x70] sm:$0xff] %vm546, %v3388
      %3425 = vst.msk [vmem:[#allocation2 + $0x78] sm:$0xff] %vm546, %v3389
      %3426 = vst.msk [vmem:[#allocation2 + $0x80] sm:$0xff] %vm546, %v3390
      %3427 = vst.msk [vmem:[#allocation2 + $0x88] sm:$0xff] %vm546, %v3391
      %3428 = vst.msk [vmem:[#allocation2 + $0x90] sm:$0xff] %vm546, %v3392
      %3429 = vst.msk [vmem:[#allocation2 + $0x98] sm:$0xff] %vm546, %v3393
      %3430 = vst.msk [vmem:[#allocation2 + $0xa0] sm:$0xff] %vm546, %v3394
      %3431 = vst.msk [vmem:[#allocation2 + $0xa8] sm:$0xff] %vm546, %v3395
      %3432 = vst.msk [vmem:[#allocation2 + $0xb0] sm:$0xff] %vm546, %v3396
      %3433 = vst.msk [vmem:[#allocation2 + $0xb8] sm:$0xff] %vm546, %v3397
      %3434 = vst.msk [vmem:[#allocation2 + $0xc0] sm:$0xff] %vm546, %v3398
      %3435 = vst.msk [vmem:[#allocation2 + $0xc8] sm:$0xff] %vm546, %v3399
      %3436 = vst.msk [vmem:[#allocation2 + $0xd0] sm:$0xff] %vm546, %v3400
      %3437 = vst.msk [vmem:[#allocation2 + $0xd8] sm:$0xff] %vm546, %v3401
      %3438 = vst.msk [vmem:[#allocation2 + $0xe0] sm:$0xff] %vm546, %v3402
      %3439 = vst.msk [vmem:[#allocation2 + $0xe8] sm:$0xff] %vm546, %v3403
      %3440 = vst.msk [vmem:[#allocation2 + $0xf0] sm:$0xff] %vm546, %v3404
      %3441 = vst.msk [vmem:[#allocation2 + $0xf8] sm:$0xff] %vm546, %v3405
      %3442 = vst.msk [vmem:[#allocation2 + $0x100] sm:$0xff] %vm546, %v3406
      %3443 = vst.msk [vmem:[#allocation2 + $0x108] sm:$0xff] %vm546, %v3407
      %3444 = vst.msk [vmem:[#allocation2 + $0x110] sm:$0xff] %vm546, %v3408
      %3445 = vst.msk [vmem:[#allocation2 + $0x118] sm:$0xff] %vm546, %v3409
      %v3446 = vld [vmem:[%s165 + $0x10] sm:$0xc]
      %v3447 = vld [vmem:[%s165 + $0x14] sm:$0xf]
      %v3448 = vld [vmem:[%s165 + $0x18] sm:$0xf]
      %v3449 = vld [vmem:[%s165 + $0x1c] sm:$0xf]
      %v3450 = vld [vmem:[%s165 + $0x20] sm:$0xf]
      %v3451 = vld [vmem:[%s165 + $0x24] sm:$0xf]
      %v3452 = vld [vmem:[%s165 + $0x28] sm:$0xf]
      %v3453 = vld [vmem:[%s165 + $0x2c] sm:$0xf]
      %v3454 = vld [vmem:[%s165 + $0x30] sm:$0xf]
      %v3455 = vld [vmem:[%s165 + $0x34] sm:$0xf]
      %v3456 = vld [vmem:[%s165 + $0x38] sm:$0xf]
      %v3457 = vld [vmem:[%s165 + $0x3c] sm:$0xf]
      %v3458 = vld [vmem:[%s165 + $0x40] sm:$0xf]
      %v3459 = vld [vmem:[%s165 + $0x44] sm:$0xf]
      %v3460 = vld [vmem:[%s165 + $0x48] sm:$0xf]
      %v3461 = vld [vmem:[%s165 + $0x4c] sm:$0xf]
      %v3462 = vld [vmem:[%s165 + $0x50] sm:$0xf]
      %v3463 = vld [vmem:[%s165 + $0x54] sm:$0xf]
      %v3464 = vld [vmem:[%s165 + $0x58] sm:$0xf]
      %v3465 = vld [vmem:[%s165 + $0x5c] sm:$0xf]
      %v3466 = vld [vmem:[%s165 + $0x60] sm:$0xf]
      %v3467 = vld [vmem:[%s165 + $0x64] sm:$0xf]
      %v3468 = vld [vmem:[%s165 + $0x68] sm:$0xf]
      %v3469 = vld [vmem:[%s165 + $0x6c] sm:$0xf]
      %v3470 = vld [vmem:[%s165 + $0x70] sm:$0xf]
      %v3471 = vld [vmem:[%s165 + $0x74] sm:$0xf]
      %v3472 = vld [vmem:[%s165 + $0x78] sm:$0xf]
      %v3473 = vld [vmem:[%s165 + $0x7c] sm:$0xf]
      %v3474 = vld [vmem:[%s165 + $0x80] sm:$0xf]
      %v3475 = vld [vmem:[%s165 + $0x84] sm:$0xf]
      %v3476 = vld [vmem:[%s165 + $0x88] sm:$0xf]
      %v3477 = vld [vmem:[%s165 + $0x8c] sm:$0xf]
      %v3478 = vld [vmem:[%s165 + $0x90] sm:$0xf]
      %v3479 = vld [vmem:[%s165 + $0x94] sm:$0xf]
      %v3480 = vld [vmem:[%s165 + $0x98] sm:$0xf]
      %v3481 = vld [vmem:[%s165 + $0x9c] sm:$0xf]
      %v3482 = vld [vmem:[%s165 + $0xa0] sm:$0x3]
      %s3483 = scalar_lea.vmem %s1, 96
      %v3484 = vld [vmem:[%s3483] sm:$0xf]
      %v3485 = vld [vmem:[%s3483 + $0x4] sm:$0xf]
      %v3486 = vld [vmem:[%s3483 + $0x8] sm:$0xf]
      %v3487 = vld [vmem:[%s3483 + $0xc] sm:$0xf]
      %v3525 = vunpack.c.l.b16 %v3446
      %v3526 = vunpack.c.l.b16 %v3447
      %v3527 = vunpack.c.l.b16 %v3448
      %v3528 = vunpack.c.l.b16 %v3449
      %v3529 = vunpack.c.l.b16 %v3450
      %v3530 = vunpack.c.l.b16 %v3451
      %v3531 = vunpack.c.l.b16 %v3452
      %v3532 = vunpack.c.l.b16 %v3453
      %v3533 = vunpack.c.l.b16 %v3454
      %v3534 = vunpack.c.l.b16 %v3455
      %v3535 = vunpack.c.l.b16 %v3456
      %v3536 = vunpack.c.l.b16 %v3457
      %v3537 = vunpack.c.l.b16 %v3458
      %v3538 = vunpack.c.l.b16 %v3459
      %v3539 = vunpack.c.l.b16 %v3460
      %v3540 = vunpack.c.l.b16 %v3461
      %v3541 = vunpack.c.l.b16 %v3462
      %v3542 = vunpack.c.l.b16 %v3463
      %v3543 = vunpack.c.l.b16 %v3464
      %v3544 = vunpack.c.l.b16 %v3465
      %v3545 = vunpack.c.l.b16 %v3466
      %v3546 = vunpack.c.l.b16 %v3467
      %v3547 = vunpack.c.l.b16 %v3468
      %v3548 = vunpack.c.l.b16 %v3469
      %v3549 = vunpack.c.l.b16 %v3470
      %v3550 = vunpack.c.l.b16 %v3471
      %v3551 = vunpack.c.l.b16 %v3472
      %v3552 = vunpack.c.l.b16 %v3473
      %v3553 = vunpack.c.l.b16 %v3474
      %v3554 = vunpack.c.l.b16 %v3475
      %v3555 = vunpack.c.l.b16 %v3476
      %v3556 = vunpack.c.l.b16 %v3477
      %v3557 = vunpack.c.l.b16 %v3478
      %v3558 = vunpack.c.l.b16 %v3479
      %v3559 = vunpack.c.l.b16 %v3480
      %v3560 = vunpack.c.l.b16 %v3481
      %v3561 = vunpack.c.l.b16 %v3482
      %v3562 = vpack.c.b16 %v3526, %v3525
      %v3563 = vpack.c.b16 %v3528, %v3527
      %v3564 = vpack.c.b16 %v3530, %v3529
      %v3565 = vpack.c.b16 %v3532, %v3531
      %v3566 = vpack.c.b16 %v3534, %v3533
      %v3567 = vpack.c.b16 %v3536, %v3535
      %v3568 = vpack.c.b16 %v3538, %v3537
      %v3569 = vpack.c.b16 %v3540, %v3539
      %v3570 = vpack.c.b16 %v3542, %v3541
      %v3571 = vpack.c.b16 %v3544, %v3543
      %v3572 = vpack.c.b16 %v3546, %v3545
      %v3573 = vpack.c.b16 %v3548, %v3547
      %v3574 = vpack.c.b16 %v3550, %v3549
      %v3575 = vpack.c.b16 %v3552, %v3551
      %v3576 = vpack.c.b16 %v3554, %v3553
      %v3577 = vpack.c.b16 %v3556, %v3555
      %v3578 = vpack.c.b16 %v3558, %v3557
      %v3579 = vpack.c.b16 %v3560, %v3559
      %v3580 = vpack.c.b16 %v3561, %v3561
      %v3581 = vrot.slane %v3562, 2
      %v3582 = vrot.slane %v3563, 2
      %v3583 = vsel %vm3057, %v3581, %v3582
      %v3584 = vrot.slane %v3564, 2
      %v3585 = vsel %vm3057, %v3582, %v3584
      %v3586 = vrot.slane %v3565, 2
      %v3587 = vsel %vm3057, %v3584, %v3586
      %v3588 = vrot.slane %v3566, 2
      %v3589 = vsel %vm3057, %v3586, %v3588
      %v3590 = vrot.slane %v3567, 2
      %v3591 = vsel %vm3057, %v3588, %v3590
      %v3592 = vrot.slane %v3568, 2
      %v3593 = vsel %vm3057, %v3590, %v3592
      %v3594 = vrot.slane %v3569, 2
      %v3595 = vsel %vm3057, %v3592, %v3594
      %v3596 = vrot.slane %v3570, 2
      %v3597 = vsel %vm3057, %v3594, %v3596
      %v3598 = vrot.slane %v3571, 2
      %v3599 = vsel %vm3057, %v3596, %v3598
      %v3600 = vrot.slane %v3572, 2
      %v3601 = vsel %vm3057, %v3598, %v3600
      %v3602 = vrot.slane %v3573, 2
      %v3603 = vsel %vm3057, %v3600, %v3602
      %v3604 = vrot.slane %v3574, 2
      %v3605 = vsel %vm3057, %v3602, %v3604
      %v3606 = vrot.slane %v3575, 2
      %v3607 = vsel %vm3057, %v3604, %v3606
      %v3608 = vrot.slane %v3576, 2
      %v3609 = vsel %vm3057, %v3606, %v3608
      %v3610 = vrot.slane %v3577, 2
      %v3611 = vsel %vm3057, %v3608, %v3610
      %v3612 = vrot.slane %v3578, 2
      %v3613 = vsel %vm3057, %v3610, %v3612
      %v3614 = vrot.slane %v3579, 2
      %v3615 = vsel %vm3057, %v3612, %v3614
      %v3616 = vrot.slane %v3580, 2
      %v3617 = vsel %vm3057, %v3614, %v3616
      %v3622 = vunpack.c.l.b16 %v3484
      %v3623 = vunpack.c.l.b16 %v3485
      %v3624 = vunpack.c.l.b16 %v3486
      %v3625 = vunpack.c.l.b16 %v3487
      %v3626 = vpack.c.b16 %v3623, %v3622
      %v3627 = vpack.c.b16 %v3625, %v3624
      %v3631 = vsel %vm314, %v3583, 0
      %v3634 = vsel %vm314, %v3585, 0
      %v3637 = vsel %vm314, %v3587, 0
      %v3640 = vsel %vm314, %v3589, 0
      %v3643 = vsel %vm314, %v3591, 0
      %v3646 = vsel %vm314, %v3593, 0
      %v3649 = vsel %vm314, %v3595, 0
      %v3652 = vsel %vm314, %v3597, 0
      %v3655 = vsel %vm314, %v3599, 0
      %v3658 = vsel %vm314, %v3601, 0
      %v3661 = vsel %vm314, %v3603, 0
      %v3664 = vsel %vm314, %v3605, 0
      %v3667 = vsel %vm314, %v3607, 0
      %v3670 = vsel %vm314, %v3609, 0
      %v3673 = vsel %vm314, %v3611, 0
      %v3676 = vsel %vm314, %v3613, 0
      %v3679 = vsel %vm314, %v3615, 0
      %v3682 = vsel %vm314, %v3617, 0
      %3684 = vmatprep.subr.bf16.mxu0 0
      %3685 = vmatpush1.bf16.msra.mxu0 %v3626
      %3686 = vmatprep.subr.bf16.mxu0 0
      %3687 = vmatpush1.bf16.msra.mxu0 %v3627
      %3688 = vmatprep.subr.bf16.mxu0 0
      %3689 = vmatpush1.bf16.msra.mxu0 0
      %3690 = vmatprep.subr.bf16.mxu0 0
      %3691 = vmatpush1.bf16.msra.mxu0 0
      %3692 = vmatprep.subr.bf16.mxu0 0
      %3693 = vmatpush1.bf16.msra.mxu0 0
      %3694 = vmatprep.subr.bf16.mxu0 0
      %3695 = vmatpush1.bf16.msra.mxu0 0
      %3696 = vmatprep.subr.bf16.mxu0 0
      %3697 = vmatpush1.bf16.msra.mxu0 0
      %3698 = vmatprep.subr.bf16.mxu0 0
      %3699 = vmatpush1.bf16.msra.mxu0 0
      %3700 = vmatprep.subr.bf16.mxu0 0
      %3701 = vmatpush1.bf16.msra.mxu0 0
      %3702 = vmatprep.subr.bf16.mxu0 0
      %3703 = vmatpush1.bf16.msra.mxu0 0
      %3704 = vmatprep.subr.bf16.mxu0 0
      %3705 = vmatpush1.bf16.msra.mxu0 0
      %3706 = vmatprep.subr.bf16.mxu0 0
      %3707 = vmatpush1.bf16.msra.mxu0 0
      %3708 = vmatprep.subr.bf16.mxu0 0
      %3709 = vmatpush1.bf16.msra.mxu0 0
      %3710 = vmatprep.subr.bf16.mxu0 0
      %3711 = vmatpush1.bf16.msra.mxu0 0
      %3712 = vmatprep.subr.bf16.mxu0 0
      %3713 = vmatpush1.bf16.msra.mxu0 0
      %3714 = vmatprep.subr.bf16.mxu0 0
      %3715 = vmatpush1.bf16.msra.mxu0 0
      %3716 = vmatprep.mubr.bf16.mxu0 0
      %3717 = vmatmul.mubr.bf16.gmra.mrb[0].mxu0 %v3631
      %v3718 = vpop.f32.mrb[0].mxu0
      %v3719 = vadd.f32 0.0, %v3718
      %v3720 = vpop.f32.mrb[0].mxu0
      %v3721 = vpop.f32.mrb[0].mxu0
      %v3722 = vadd.f32 0.0, %v3721
      %v3723 = vpop.f32.mrb[0].mxu0
      %3724 = vmatprep.mubr.bf16.mxu0 0
      %3725 = vmatmul.mubr.bf16.gmra.mrb[0].mxu0 %v3634
      %v3726 = vpop.f32.mrb[0].mxu0
      %v3727 = vadd.f32 0.0, %v3726
      %v3728 = vpop.f32.mrb[0].mxu0
      %v3729 = vpop.f32.mrb[0].mxu0
      %v3730 = vadd.f32 0.0, %v3729
      %v3731 = vpop.f32.mrb[0].mxu0
      %3732 = vmatprep.mubr.bf16.mxu0 0
      %3733 = vmatmul.mubr.bf16.gmra.mrb[0].mxu0 %v3637
      %v3734 = vpop.f32.mrb[0].mxu0
      %v3735 = vadd.f32 0.0, %v3734
      %v3736 = vpop.f32.mrb[0].mxu0
      %v3737 = vpop.f32.mrb[0].mxu0
      %v3738 = vadd.f32 0.0, %v3737
      %v3739 = vpop.f32.mrb[0].mxu0
      %3740 = vmatprep.mubr.bf16.mxu0 0
      %3741 = vmatmul.mubr.bf16.gmra.mrb[0].mxu0 %v3640
      %v3742 = vpop.f32.mrb[0].mxu0
      %v3743 = vadd.f32 0.0, %v3742
      %v3744 = vpop.f32.mrb[0].mxu0
      %v3745 = vpop.f32.mrb[0].mxu0
      %v3746 = vadd.f32 0.0, %v3745
      %v3747 = vpop.f32.mrb[0].mxu0
      %3748 = vmatprep.mubr.bf16.mxu0 0
      %3749 = vmatmul.mubr.bf16.gmra.mrb[0].mxu0 %v3643
      %v3750 = vpop.f32.mrb[0].mxu0
      %v3751 = vadd.f32 0.0, %v3750
      %v3752 = vpop.f32.mrb[0].mxu0
      %v3753 = vpop.f32.mrb[0].mxu0
      %v3754 = vadd.f32 0.0, %v3753
      %v3755 = vpop.f32.mrb[0].mxu0
      %3756 = vmatprep.mubr.bf16.mxu0 0
      %3757 = vmatmul.mubr.bf16.gmra.mrb[0].mxu0 %v3646
      %v3758 = vpop.f32.mrb[0].mxu0
      %v3759 = vadd.f32 0.0, %v3758
      %v3760 = vpop.f32.mrb[0].mxu0
      %v3761 = vpop.f32.mrb[0].mxu0
      %v3762 = vadd.f32 0.0, %v3761
      %v3763 = vpop.f32.mrb[0].mxu0
      %3764 = vmatprep.mubr.bf16.mxu0 0
      %3765 = vmatmul.mubr.bf16.gmra.mrb[0].mxu0 %v3649
      %v3766 = vpop.f32.mrb[0].mxu0
      %v3767 = vadd.f32 0.0, %v3766
      %v3768 = vpop.f32.mrb[0].mxu0
      %v3769 = vpop.f32.mrb[0].mxu0
      %v3770 = vadd.f32 0.0, %v3769
      %v3771 = vpop.f32.mrb[0].mxu0
      %3772 = vmatprep.mubr.bf16.mxu0 0
      %3773 = vmatmul.mubr.bf16.gmra.mrb[0].mxu0 %v3652
      %v3774 = vpop.f32.mrb[0].mxu0
      %v3775 = vadd.f32 0.0, %v3774
      %v3776 = vpop.f32.mrb[0].mxu0
      %v3777 = vpop.f32.mrb[0].mxu0
      %v3778 = vadd.f32 0.0, %v3777
      %v3779 = vpop.f32.mrb[0].mxu0
      %3780 = vmatprep.mubr.bf16.mxu0 0
      %3781 = vmatmul.mubr.bf16.gmra.mrb[0].mxu0 %v3655
      %v3782 = vpop.f32.mrb[0].mxu0
      %v3783 = vadd.f32 0.0, %v3782
      %v3784 = vpop.f32.mrb[0].mxu0
      %v3785 = vpop.f32.mrb[0].mxu0
      %v3786 = vadd.f32 0.0, %v3785
      %v3787 = vpop.f32.mrb[0].mxu0
      %3788 = vmatprep.mubr.bf16.mxu0 0
      %3789 = vmatmul.mubr.bf16.gmra.mrb[0].mxu0 %v3658
      %v3790 = vpop.f32.mrb[0].mxu0
      %v3791 = vadd.f32 0.0, %v3790
      %v3792 = vpop.f32.mrb[0].mxu0
      %v3793 = vpop.f32.mrb[0].mxu0
      %v3794 = vadd.f32 0.0, %v3793
      %v3795 = vpop.f32.mrb[0].mxu0
      %3796 = vmatprep.mubr.bf16.mxu0 0
      %3797 = vmatmul.mubr.bf16.gmra.mrb[0].mxu0 %v3661
      %v3798 = vpop.f32.mrb[0].mxu0
      %v3799 = vadd.f32 0.0, %v3798
      %v3800 = vpop.f32.mrb[0].mxu0
      %v3801 = vpop.f32.mrb[0].mxu0
      %v3802 = vadd.f32 0.0, %v3801
      %v3803 = vpop.f32.mrb[0].mxu0
      %3804 = vmatprep.mubr.bf16.mxu0 0
      %3805 = vmatmul.mubr.bf16.gmra.mrb[0].mxu0 %v3664
      %v3806 = vpop.f32.mrb[0].mxu0
      %v3807 = vadd.f32 0.0, %v3806
      %v3808 = vpop.f32.mrb[0].mxu0
      %v3809 = vpop.f32.mrb[0].mxu0
      %v3810 = vadd.f32 0.0, %v3809
      %v3811 = vpop.f32.mrb[0].mxu0
      %3812 = vmatprep.mubr.bf16.mxu0 0
      %3813 = vmatmul.mubr.bf16.gmra.mrb[0].mxu0 %v3667
      %v3814 = vpop.f32.mrb[0].mxu0
      %v3815 = vadd.f32 0.0, %v3814
      %v3816 = vpop.f32.mrb[0].mxu0
      %v3817 = vpop.f32.mrb[0].mxu0
      %v3818 = vadd.f32 0.0, %v3817
      %v3819 = vpop.f32.mrb[0].mxu0
      %3820 = vmatprep.mubr.bf16.mxu0 0
      %3821 = vmatmul.mubr.bf16.gmra.mrb[0].mxu0 %v3670
      %v3822 = vpop.f32.mrb[0].mxu0
      %v3823 = vadd.f32 0.0, %v3822
      %v3824 = vpop.f32.mrb[0].mxu0
      %v3825 = vpop.f32.mrb[0].mxu0
      %v3826 = vadd.f32 0.0, %v3825
      %v3827 = vpop.f32.mrb[0].mxu0
      %3828 = vmatprep.mubr.bf16.mxu0 0
      %3829 = vmatmul.mubr.bf16.gmra.mrb[0].mxu0 %v3673
      %v3830 = vpop.f32.mrb[0].mxu0
      %v3831 = vadd.f32 0.0, %v3830
      %v3832 = vpop.f32.mrb[0].mxu0
      %v3833 = vpop.f32.mrb[0].mxu0
      %v3834 = vadd.f32 0.0, %v3833
      %v3835 = vpop.f32.mrb[0].mxu0
      %3836 = vmatprep.mubr.bf16.mxu0 0
      %3837 = vmatmul.mubr.bf16.gmra.mrb[0].mxu0 %v3676
      %v3838 = vpop.f32.mrb[0].mxu0
      %v3839 = vadd.f32 0.0, %v3838
      %v3840 = vpop.f32.mrb[0].mxu0
      %v3841 = vpop.f32.mrb[0].mxu0
      %v3842 = vadd.f32 0.0, %v3841
      %v3843 = vpop.f32.mrb[0].mxu0
      %3844 = vmatprep.mubr.bf16.mxu0 0
      %3845 = vmatmul.mubr.bf16.gmra.mrb[0].mxu0 %v3679
      %v3846 = vpop.f32.mrb[0].mxu0
      %v3847 = vadd.f32 0.0, %v3846
      %v3848 = vpop.f32.mrb[0].mxu0
      %v3849 = vpop.f32.mrb[0].mxu0
      %v3850 = vadd.f32 0.0, %v3849
      %v3851 = vpop.f32.mrb[0].mxu0
      %3852 = vmatprep.mubr.bf16.mxu0 0
      %3853 = vmatmul.mubr.bf16.gmra.mrb[0].mxu0 %v3682
      %v3854 = vpop.f32.mrb[0].mxu0
      %v3855 = vadd.f32 0.0, %v3854
      %v3856 = vpop.f32.mrb[0].mxu0
      %v3857 = vpop.f32.mrb[0].mxu0
      %v3858 = vadd.f32 0.0, %v3857
      %v3859 = vpop.f32.mrb[0].mxu0
      %3860 = vdwg.mxu0
      %v3861 = vld [vmem:[#allocation2] sm:$0xff]
      %v3862 = vld [vmem:[#allocation2 + $0x8] sm:$0xff]
      %v3863 = vld [vmem:[#allocation2 + $0x10] sm:$0xff]
      %v3864 = vld [vmem:[#allocation2 + $0x18] sm:$0xff]
      %v3865 = vld [vmem:[#allocation2 + $0x20] sm:$0xff]
      %v3866 = vld [vmem:[#allocation2 + $0x28] sm:$0xff]
      %v3867 = vld [vmem:[#allocation2 + $0x30] sm:$0xff]
      %v3868 = vld [vmem:[#allocation2 + $0x38] sm:$0xff]
      %v3869 = vld [vmem:[#allocation2 + $0x40] sm:$0xff]
      %v3870 = vld [vmem:[#allocation2 + $0x48] sm:$0xff]
      %v3871 = vld [vmem:[#allocation2 + $0x50] sm:$0xff]
      %v3872 = vld [vmem:[#allocation2 + $0x58] sm:$0xff]
      %v3873 = vld [vmem:[#allocation2 + $0x60] sm:$0xff]
      %v3874 = vld [vmem:[#allocation2 + $0x68] sm:$0xff]
      %v3875 = vld [vmem:[#allocation2 + $0x70] sm:$0xff]
      %v3876 = vld [vmem:[#allocation2 + $0x78] sm:$0xff]
      %v3877 = vld [vmem:[#allocation2 + $0x80] sm:$0xff]
      %v3878 = vld [vmem:[#allocation2 + $0x88] sm:$0xff]
      %v3879 = vld [vmem:[#allocation2 + $0x90] sm:$0xff]
      %v3880 = vld [vmem:[#allocation2 + $0x98] sm:$0xff]
      %v3881 = vld [vmem:[#allocation2 + $0xa0] sm:$0xff]
      %v3882 = vld [vmem:[#allocation2 + $0xa8] sm:$0xff]
      %v3883 = vld [vmem:[#allocation2 + $0xb0] sm:$0xff]
      %v3884 = vld [vmem:[#allocation2 + $0xb8] sm:$0xff]
      %v3885 = vld [vmem:[#allocation2 + $0xc0] sm:$0xff]
      %v3886 = vld [vmem:[#allocation2 + $0xc8] sm:$0xff]
      %v3887 = vld [vmem:[#allocation2 + $0xd0] sm:$0xff]
      %v3888 = vld [vmem:[#allocation2 + $0xd8] sm:$0xff]
      %v3889 = vld [vmem:[#allocation2 + $0xe0] sm:$0xff]
      %v3890 = vld [vmem:[#allocation2 + $0xe8] sm:$0xff]
      %v3891 = vld [vmem:[#allocation2 + $0xf0] sm:$0xff]
      %v3892 = vld [vmem:[#allocation2 + $0xf8] sm:$0xff]
      %v3893 = vld [vmem:[#allocation2 + $0x100] sm:$0xff]
      %v3894 = vld [vmem:[#allocation2 + $0x108] sm:$0xff]
      %v3895 = vld [vmem:[#allocation2 + $0x110] sm:$0xff]
      %v3896 = vld [vmem:[#allocation2 + $0x118] sm:$0xff]
      %v3897 = vadd.f32 %v3861, %v3719
      %v3898 = vadd.f32 %v3862, %v3722
      %v3899 = vadd.f32 %v3863, %v3727
      %v3900 = vadd.f32 %v3864, %v3730
      %v3901 = vadd.f32 %v3865, %v3735
      %v3902 = vadd.f32 %v3866, %v3738
      %v3903 = vadd.f32 %v3867, %v3743
      %v3904 = vadd.f32 %v3868, %v3746
      %v3905 = vadd.f32 %v3869, %v3751
      %v3906 = vadd.f32 %v3870, %v3754
      %v3907 = vadd.f32 %v3871, %v3759
      %v3908 = vadd.f32 %v3872, %v3762
      %v3909 = vadd.f32 %v3873, %v3767
      %v3910 = vadd.f32 %v3874, %v3770
      %v3911 = vadd.f32 %v3875, %v3775
      %v3912 = vadd.f32 %v3876, %v3778
      %v3913 = vadd.f32 %v3877, %v3783
      %v3914 = vadd.f32 %v3878, %v3786
      %v3915 = vadd.f32 %v3879, %v3791
      %v3916 = vadd.f32 %v3880, %v3794
      %v3917 = vadd.f32 %v3881, %v3799
      %v3918 = vadd.f32 %v3882, %v3802
      %v3919 = vadd.f32 %v3883, %v3807
      %v3920 = vadd.f32 %v3884, %v3810
      %v3921 = vadd.f32 %v3885, %v3815
      %v3922 = vadd.f32 %v3886, %v3818
      %v3923 = vadd.f32 %v3887, %v3823
      %v3924 = vadd.f32 %v3888, %v3826
      %v3925 = vadd.f32 %v3889, %v3831
      %v3926 = vadd.f32 %v3890, %v3834
      %v3927 = vadd.f32 %v3891, %v3839
      %v3928 = vadd.f32 %v3892, %v3842
      %v3929 = vadd.f32 %v3893, %v3847
      %v3930 = vadd.f32 %v3894, %v3850
      %v3931 = vadd.f32 %v3895, %v3855
      %v3932 = vadd.f32 %v3896, %v3858
      %3933 = vst.msk [vmem:[#allocation2] sm:$0xff] %vm546, %v3897
      %3934 = vst.msk [vmem:[#allocation2 + $0x8] sm:$0xff] %vm546, %v3898
      %3935 = vst.msk [vmem:[#allocation2 + $0x10] sm:$0xff] %vm546, %v3899
      %3936 = vst.msk [vmem:[#allocation2 + $0x18] sm:$0xff] %vm546, %v3900
      %3937 = vst.msk [vmem:[#allocation2 + $0x20] sm:$0xff] %vm546, %v3901
      %3938 = vst.msk [vmem:[#allocation2 + $0x28] sm:$0xff] %vm546, %v3902
      %3939 = vst.msk [vmem:[#allocation2 + $0x30] sm:$0xff] %vm546, %v3903
      %3940 = vst.msk [vmem:[#allocation2 + $0x38] sm:$0xff] %vm546, %v3904
      %3941 = vst.msk [vmem:[#allocation2 + $0x40] sm:$0xff] %vm546, %v3905
      %3942 = vst.msk [vmem:[#allocation2 + $0x48] sm:$0xff] %vm546, %v3906
      %3943 = vst.msk [vmem:[#allocation2 + $0x50] sm:$0xff] %vm546, %v3907
      %3944 = vst.msk [vmem:[#allocation2 + $0x58] sm:$0xff] %vm546, %v3908
      %3945 = vst.msk [vmem:[#allocation2 + $0x60] sm:$0xff] %vm546, %v3909
      %3946 = vst.msk [vmem:[#allocation2 + $0x68] sm:$0xff] %vm546, %v3910
      %3947 = vst.msk [vmem:[#allocation2 + $0x70] sm:$0xff] %vm546, %v3911
      %3948 = vst.msk [vmem:[#allocation2 + $0x78] sm:$0xff] %vm546, %v3912
      %3949 = vst.msk [vmem:[#allocation2 + $0x80] sm:$0xff] %vm546, %v3913
      %3950 = vst.msk [vmem:[#allocation2 + $0x88] sm:$0xff] %vm546, %v3914
      %3951 = vst.msk [vmem:[#allocation2 + $0x90] sm:$0xff] %vm546, %v3915
      %3952 = vst.msk [vmem:[#allocation2 + $0x98] sm:$0xff] %vm546, %v3916
      %3953 = vst.msk [vmem:[#allocation2 + $0xa0] sm:$0xff] %vm546, %v3917
      %3954 = vst.msk [vmem:[#allocation2 + $0xa8] sm:$0xff] %vm546, %v3918
      %3955 = vst.msk [vmem:[#allocation2 + $0xb0] sm:$0xff] %vm546, %v3919
      %3956 = vst.msk [vmem:[#allocation2 + $0xb8] sm:$0xff] %vm546, %v3920
      %3957 = vst.msk [vmem:[#allocation2 + $0xc0] sm:$0xff] %vm546, %v3921
      %3958 = vst.msk [vmem:[#allocation2 + $0xc8] sm:$0xff] %vm546, %v3922
      %3959 = vst.msk [vmem:[#allocation2 + $0xd0] sm:$0xff] %vm546, %v3923
      %3960 = vst.msk [vmem:[#allocation2 + $0xd8] sm:$0xff] %vm546, %v3924
      %3961 = vst.msk [vmem:[#allocation2 + $0xe0] sm:$0xff] %vm546, %v3925
      %3962 = vst.msk [vmem:[#allocation2 + $0xe8] sm:$0xff] %vm546, %v3926
      %3963 = vst.msk [vmem:[#allocation2 + $0xf0] sm:$0xff] %vm546, %v3927
      %3964 = vst.msk [vmem:[#allocation2 + $0xf8] sm:$0xff] %vm546, %v3928
      %3965 = vst.msk [vmem:[#allocation2 + $0x100] sm:$0xff] %vm546, %v3929
      %3966 = vst.msk [vmem:[#allocation2 + $0x108] sm:$0xff] %vm546, %v3930
      %3967 = vst.msk [vmem:[#allocation2 + $0x110] sm:$0xff] %vm546, %v3931
      %3968 = vst.msk [vmem:[#allocation2 + $0x118] sm:$0xff] %vm546, %v3932
      %v3969 = vld [vmem:[%s165 + $0x10] sm:$0xc]
      %v3970 = vld [vmem:[%s165 + $0x14] sm:$0xf]
      %v3971 = vld [vmem:[%s165 + $0x18] sm:$0xf]
      %v3972 = vld [vmem:[%s165 + $0x1c] sm:$0xf]
      %v3973 = vld [vmem:[%s165 + $0x20] sm:$0xf]
      %v3974 = vld [vmem:[%s165 + $0x24] sm:$0xf]
      %v3975 = vld [vmem:[%s165 + $0x28] sm:$0xf]
      %v3976 = vld [vmem:[%s165 + $0x2c] sm:$0xf]
      %v3977 = vld [vmem:[%s165 + $0x30] sm:$0xf]
      %v3978 = vld [vmem:[%s165 + $0x34] sm:$0xf]
      %v3979 = vld [vmem:[%s165 + $0x38] sm:$0xf]
      %v3980 = vld [vmem:[%s165 + $0x3c] sm:$0xf]
      %v3981 = vld [vmem:[%s165 + $0x40] sm:$0xf]
      %v3982 = vld [vmem:[%s165 + $0x44] sm:$0xf]
      %v3983 = vld [vmem:[%s165 + $0x48] sm:$0xf]
      %v3984 = vld [vmem:[%s165 + $0x4c] sm:$0xf]
      %v3985 = vld [vmem:[%s165 + $0x50] sm:$0xf]
      %v3986 = vld [vmem:[%s165 + $0x54] sm:$0xf]
      %v3987 = vld [vmem:[%s165 + $0x58] sm:$0xf]
      %v3988 = vld [vmem:[%s165 + $0x5c] sm:$0xf]
      %v3989 = vld [vmem:[%s165 + $0x60] sm:$0xf]
      %v3990 = vld [vmem:[%s165 + $0x64] sm:$0xf]
      %v3991 = vld [vmem:[%s165 + $0x68] sm:$0xf]
      %v3992 = vld [vmem:[%s165 + $0x6c] sm:$0xf]
      %v3993 = vld [vmem:[%s165 + $0x70] sm:$0xf]
      %v3994 = vld [vmem:[%s165 + $0x74] sm:$0xf]
      %v3995 = vld [vmem:[%s165 + $0x78] sm:$0xf]
      %v3996 = vld [vmem:[%s165 + $0x7c] sm:$0xf]
      %v3997 = vld [vmem:[%s165 + $0x80] sm:$0xf]
      %v3998 = vld [vmem:[%s165 + $0x84] sm:$0xf]
      %v3999 = vld [vmem:[%s165 + $0x88] sm:$0xf]
      %v4000 = vld [vmem:[%s165 + $0x8c] sm:$0xf]
      %v4001 = vld [vmem:[%s165 + $0x90] sm:$0xf]
      %v4002 = vld [vmem:[%s165 + $0x94] sm:$0xf]
      %v4003 = vld [vmem:[%s165 + $0x98] sm:$0xf]
      %v4004 = vld [vmem:[%s165 + $0x9c] sm:$0xf]
      %v4005 = vld [vmem:[%s165 + $0xa0] sm:$0x7]
      %s4006 = scalar_lea.vmem %s1, 112
      %v4007 = vld [vmem:[%s4006] sm:$0xf]
      %v4008 = vld [vmem:[%s4006 + $0x4] sm:$0xf]
      %v4009 = vld [vmem:[%s4006 + $0x8] sm:$0xf]
      %v4010 = vld [vmem:[%s4006 + $0xc] sm:$0xf]
      %v4048 = vunpack.c.l.b16 %v3969
      %v4049 = vunpack.c.l.b16 %v3970
      %v4050 = vunpack.c.l.b16 %v3971
      %v4051 = vunpack.c.l.b16 %v3972
      %v4052 = vunpack.c.l.b16 %v3973
      %v4053 = vunpack.c.l.b16 %v3974
      %v4054 = vunpack.c.l.b16 %v3975
      %v4055 = vunpack.c.l.b16 %v3976
      %v4056 = vunpack.c.l.b16 %v3977
      %v4057 = vunpack.c.l.b16 %v3978
      %v4058 = vunpack.c.l.b16 %v3979
      %v4059 = vunpack.c.l.b16 %v3980
      %v4060 = vunpack.c.l.b16 %v3981
      %v4061 = vunpack.c.l.b16 %v3982
      %v4062 = vunpack.c.l.b16 %v3983
      %v4063 = vunpack.c.l.b16 %v3984
      %v4064 = vunpack.c.l.b16 %v3985
      %v4065 = vunpack.c.l.b16 %v3986
      %v4066 = vunpack.c.l.b16 %v3987
      %v4067 = vunpack.c.l.b16 %v3988
      %v4068 = vunpack.c.l.b16 %v3989
      %v4069 = vunpack.c.l.b16 %v3990
      %v4070 = vunpack.c.l.b16 %v3991
      %v4071 = vunpack.c.l.b16 %v3992
      %v4072 = vunpack.c.l.b16 %v3993
      %v4073 = vunpack.c.l.b16 %v3994
      %v4074 = vunpack.c.l.b16 %v3995
      %v4075 = vunpack.c.l.b16 %v3996
      %v4076 = vunpack.c.l.b16 %v3997
      %v4077 = vunpack.c.l.b16 %v3998
      %v4078 = vunpack.c.l.b16 %v3999
      %v4079 = vunpack.c.l.b16 %v4000
      %v4080 = vunpack.c.l.b16 %v4001
      %v4081 = vunpack.c.l.b16 %v4002
      %v4082 = vunpack.c.l.b16 %v4003
      %v4083 = vunpack.c.l.b16 %v4004
      %v4084 = vunpack.c.l.b16 %v4005
      %v4085 = vpack.c.b16 %v4049, %v4048
      %v4086 = vpack.c.b16 %v4051, %v4050
      %v4087 = vpack.c.b16 %v4053, %v4052
      %v4088 = vpack.c.b16 %v4055, %v4054
      %v4089 = vpack.c.b16 %v4057, %v4056
      %v4090 = vpack.c.b16 %v4059, %v4058
      %v4091 = vpack.c.b16 %v4061, %v4060
      %v4092 = vpack.c.b16 %v4063, %v4062
      %v4093 = vpack.c.b16 %v4065, %v4064
      %v4094 = vpack.c.b16 %v4067, %v4066
      %v4095 = vpack.c.b16 %v4069, %v4068
      %v4096 = vpack.c.b16 %v4071, %v4070
      %v4097 = vpack.c.b16 %v4073, %v4072
      %v4098 = vpack.c.b16 %v4075, %v4074
      %v4099 = vpack.c.b16 %v4077, %v4076
      %v4100 = vpack.c.b16 %v4079, %v4078
      %v4101 = vpack.c.b16 %v4081, %v4080
      %v4102 = vpack.c.b16 %v4083, %v4082
      %v4103 = vpack.c.b16 %v4084, %v4084
      %vm4104 = vsmask.f32 5376
      %v4106 = vshrl.u32 %v4085, 16
      %v4108 = vrot.slane %v4106, 2
      %v4109 = vshll.u32 %v4085, 16
      %v4111 = vrot.slane %v4109, 3
      %v4112 = vor.u32 %v4108, %v4111
      %v4114 = vshrl.u32 %v4086, 16
      %v4116 = vrot.slane %v4114, 2
      %v4117 = vshll.u32 %v4086, 16
      %v4119 = vrot.slane %v4117, 3
      %v4120 = vor.u32 %v4116, %v4119
      %v4121 = vsel %vm4104, %v4112, %v4120
      %v4123 = vshrl.u32 %v4087, 16
      %v4125 = vrot.slane %v4123, 2
      %v4126 = vshll.u32 %v4087, 16
      %v4128 = vrot.slane %v4126, 3
      %v4129 = vor.u32 %v4125, %v4128
      %v4130 = vsel %vm4104, %v4120, %v4129
      %v4132 = vshrl.u32 %v4088, 16
      %v4134 = vrot.slane %v4132, 2
      %v4135 = vshll.u32 %v4088, 16
      %v4137 = vrot.slane %v4135, 3
      %v4138 = vor.u32 %v4134, %v4137
      %v4139 = vsel %vm4104, %v4129, %v4138
      %v4141 = vshrl.u32 %v4089, 16
      %v4143 = vrot.slane %v4141, 2
      %v4144 = vshll.u32 %v4089, 16
      %v4146 = vrot.slane %v4144, 3
      %v4147 = vor.u32 %v4143, %v4146
      %v4148 = vsel %vm4104, %v4138, %v4147
      %v4150 = vshrl.u32 %v4090, 16
      %v4152 = vrot.slane %v4150, 2
      %v4153 = vshll.u32 %v4090, 16
      %v4155 = vrot.slane %v4153, 3
      %v4156 = vor.u32 %v4152, %v4155
      %v4157 = vsel %vm4104, %v4147, %v4156
      %v4159 = vshrl.u32 %v4091, 16
      %v4161 = vrot.slane %v4159, 2
      %v4162 = vshll.u32 %v4091, 16
      %v4164 = vrot.slane %v4162, 3
      %v4165 = vor.u32 %v4161, %v4164
      %v4166 = vsel %vm4104, %v4156, %v4165
      %v4168 = vshrl.u32 %v4092, 16
      %v4170 = vrot.slane %v4168, 2
      %v4171 = vshll.u32 %v4092, 16
      %v4173 = vrot.slane %v4171, 3
      %v4174 = vor.u32 %v4170, %v4173
      %v4175 = vsel %vm4104, %v4165, %v4174
      %v4177 = vshrl.u32 %v4093, 16
      %v4179 = vrot.slane %v4177, 2
      %v4180 = vshll.u32 %v4093, 16
      %v4182 = vrot.slane %v4180, 3
      %v4183 = vor.u32 %v4179, %v4182
      %v4184 = vsel %vm4104, %v4174, %v4183
      %v4186 = vshrl.u32 %v4094, 16
      %v4188 = vrot.slane %v4186, 2
      %v4189 = vshll.u32 %v4094, 16
      %v4191 = vrot.slane %v4189, 3
      %v4192 = vor.u32 %v4188, %v4191
      %v4193 = vsel %vm4104, %v4183, %v4192
      %v4195 = vshrl.u32 %v4095, 16
      %v4197 = vrot.slane %v4195, 2
      %v4198 = vshll.u32 %v4095, 16
      %v4200 = vrot.slane %v4198, 3
      %v4201 = vor.u32 %v4197, %v4200
      %v4202 = vsel %vm4104, %v4192, %v4201
      %v4204 = vshrl.u32 %v4096, 16
      %v4206 = vrot.slane %v4204, 2
      %v4207 = vshll.u32 %v4096, 16
      %v4209 = vrot.slane %v4207, 3
      %v4210 = vor.u32 %v4206, %v4209
      %v4211 = vsel %vm4104, %v4201, %v4210
      %v4213 = vshrl.u32 %v4097, 16
      %v4215 = vrot.slane %v4213, 2
      %v4216 = vshll.u32 %v4097, 16
      %v4218 = vrot.slane %v4216, 3
      %v4219 = vor.u32 %v4215, %v4218
      %v4220 = vsel %vm4104, %v4210, %v4219
      %v4222 = vshrl.u32 %v4098, 16
      %v4224 = vrot.slane %v4222, 2
      %v4225 = vshll.u32 %v4098, 16
      %v4227 = vrot.slane %v4225, 3
      %v4228 = vor.u32 %v4224, %v4227
      %v4229 = vsel %vm4104, %v4219, %v4228
      %v4231 = vshrl.u32 %v4099, 16
      %v4233 = vrot.slane %v4231, 2
      %v4234 = vshll.u32 %v4099, 16
      %v4236 = vrot.slane %v4234, 3
      %v4237 = vor.u32 %v4233, %v4236
      %v4238 = vsel %vm4104, %v4228, %v4237
      %v4240 = vshrl.u32 %v4100, 16
      %v4242 = vrot.slane %v4240, 2
      %v4243 = vshll.u32 %v4100, 16
      %v4245 = vrot.slane %v4243, 3
      %v4246 = vor.u32 %v4242, %v4245
      %v4247 = vsel %vm4104, %v4237, %v4246
      %v4249 = vshrl.u32 %v4101, 16
      %v4251 = vrot.slane %v4249, 2
      %v4252 = vshll.u32 %v4101, 16
      %v4254 = vrot.slane %v4252, 3
      %v4255 = vor.u32 %v4251, %v4254
      %v4256 = vsel %vm4104, %v4246, %v4255
      %v4258 = vshrl.u32 %v4102, 16
      %v4260 = vrot.slane %v4258, 2
      %v4261 = vshll.u32 %v4102, 16
      %v4263 = vrot.slane %v4261, 3
      %v4264 = vor.u32 %v4260, %v4263
      %v4265 = vsel %vm4104, %v4255, %v4264
      %v4267 = vshrl.u32 %v4103, 16
      %v4269 = vrot.slane %v4267, 2
      %v4270 = vshll.u32 %v4103, 16
      %v4272 = vrot.slane %v4270, 3
      %v4273 = vor.u32 %v4269, %v4272
      %v4274 = vsel %vm4104, %v4264, %v4273
      %v4279 = vunpack.c.l.b16 %v4007
      %v4280 = vunpack.c.l.b16 %v4008
      %v4281 = vunpack.c.l.b16 %v4009
      %v4282 = vunpack.c.l.b16 %v4010
      %v4283 = vpack.c.b16 %v4280, %v4279
      %v4284 = vpack.c.b16 %v4282, %v4281
      %v4288 = vsel %vm314, %v4121, 0
      %v4291 = vsel %vm314, %v4130, 0
      %v4294 = vsel %vm314, %v4139, 0
      %v4297 = vsel %vm314, %v4148, 0
      %v4300 = vsel %vm314, %v4157, 0
      %v4303 = vsel %vm314, %v4166, 0
      %v4306 = vsel %vm314, %v4175, 0
      %v4309 = vsel %vm314, %v4184, 0
      %v4312 = vsel %vm314, %v4193, 0
      %v4315 = vsel %vm314, %v4202, 0
      %v4318 = vsel %vm314, %v4211, 0
      %v4321 = vsel %vm314, %v4220, 0
      %v4324 = vsel %vm314, %v4229, 0
      %v4327 = vsel %vm314, %v4238, 0
      %v4330 = vsel %vm314, %v4247, 0
      %v4333 = vsel %vm314, %v4256, 0
      %v4336 = vsel %vm314, %v4265, 0
      %v4339 = vsel %vm314, %v4274, 0
      %4341 = vmatprep.subr.bf16.mxu0 0
      %4342 = vmatpush1.bf16.msra.mxu0 %v4283
      %4343 = vmatprep.subr.bf16.mxu0 0
      %4344 = vmatpush1.bf16.msra.mxu0 %v4284
      %4345 = vmatprep.subr.bf16.mxu0 0
      %4346 = vmatpush1.bf16.msra.mxu0 0
      %4347 = vmatprep.subr.bf16.mxu0 0
      %4348 = vmatpush1.bf16.msra.mxu0 0
      %4349 = vmatprep.subr.bf16.mxu0 0
      %4350 = vmatpush1.bf16.msra.mxu0 0
      %4351 = vmatprep.subr.bf16.mxu0 0
      %4352 = vmatpush1.bf16.msra.mxu0 0
      %4353 = vmatprep.subr.bf16.mxu0 0
      %4354 = vmatpush1.bf16.msra.mxu0 0
      %4355 = vmatprep.subr.bf16.mxu0 0
      %4356 = vmatpush1.bf16.msra.mxu0 0
      %4357 = vmatprep.subr.bf16.mxu0 0
      %4358 = vmatpush1.bf16.msra.mxu0 0
      %4359 = vmatprep.subr.bf16.mxu0 0
      %4360 = vmatpush1.bf16.msra.mxu0 0
      %4361 = vmatprep.subr.bf16.mxu0 0
      %4362 = vmatpush1.bf16.msra.mxu0 0
      %4363 = vmatprep.subr.bf16.mxu0 0
      %4364 = vmatpush1.bf16.msra.mxu0 0
      %4365 = vmatprep.subr.bf16.mxu0 0
      %4366 = vmatpush1.bf16.msra.mxu0 0
      %4367 = vmatprep.subr.bf16.mxu0 0
      %4368 = vmatpush1.bf16.msra.mxu0 0
      %4369 = vmatprep.subr.bf16.mxu0 0
      %4370 = vmatpush1.bf16.msra.mxu0 0
      %4371 = vmatprep.subr.bf16.mxu0 0
      %4372 = vmatpush1.bf16.msra.mxu0 0
      %4373 = vmatprep.mubr.bf16.mxu0 0
      %4374 = vmatmul.mubr.bf16.gmra.mrb[0].mxu0 %v4288
      %v4375 = vpop.f32.mrb[0].mxu0
      %v4376 = vadd.f32 0.0, %v4375
      %v4377 = vpop.f32.mrb[0].mxu0
      %v4378 = vpop.f32.mrb[0].mxu0
      %v4379 = vadd.f32 0.0, %v4378
      %v4380 = vpop.f32.mrb[0].mxu0
      %4381 = vmatprep.mubr.bf16.mxu0 0
      %4382 = vmatmul.mubr.bf16.gmra.mrb[0].mxu0 %v4291
      %v4383 = vpop.f32.mrb[0].mxu0
      %v4384 = vadd.f32 0.0, %v4383
      %v4385 = vpop.f32.mrb[0].mxu0
      %v4386 = vpop.f32.mrb[0].mxu0
      %v4387 = vadd.f32 0.0, %v4386
      %v4388 = vpop.f32.mrb[0].mxu0
      %4389 = vmatprep.mubr.bf16.mxu0 0
      %4390 = vmatmul.mubr.bf16.gmra.mrb[0].mxu0 %v4294
      %v4391 = vpop.f32.mrb[0].mxu0
      %v4392 = vadd.f32 0.0, %v4391
      %v4393 = vpop.f32.mrb[0].mxu0
      %v4394 = vpop.f32.mrb[0].mxu0
      %v4395 = vadd.f32 0.0, %v4394
      %v4396 = vpop.f32.mrb[0].mxu0
      %4397 = vmatprep.mubr.bf16.mxu0 0
      %4398 = vmatmul.mubr.bf16.gmra.mrb[0].mxu0 %v4297
      %v4399 = vpop.f32.mrb[0].mxu0
      %v4400 = vadd.f32 0.0, %v4399
      %v4401 = vpop.f32.mrb[0].mxu0
      %v4402 = vpop.f32.mrb[0].mxu0
      %v4403 = vadd.f32 0.0, %v4402
      %v4404 = vpop.f32.mrb[0].mxu0
      %4405 = vmatprep.mubr.bf16.mxu0 0
      %4406 = vmatmul.mubr.bf16.gmra.mrb[0].mxu0 %v4300
      %v4407 = vpop.f32.mrb[0].mxu0
      %v4408 = vadd.f32 0.0, %v4407
      %v4409 = vpop.f32.mrb[0].mxu0
      %v4410 = vpop.f32.mrb[0].mxu0
      %v4411 = vadd.f32 0.0, %v4410
      %v4412 = vpop.f32.mrb[0].mxu0
      %4413 = vmatprep.mubr.bf16.mxu0 0
      %4414 = vmatmul.mubr.bf16.gmra.mrb[0].mxu0 %v4303
      %v4415 = vpop.f32.mrb[0].mxu0
      %v4416 = vadd.f32 0.0, %v4415
      %v4417 = vpop.f32.mrb[0].mxu0
      %v4418 = vpop.f32.mrb[0].mxu0
      %v4419 = vadd.f32 0.0, %v4418
      %v4420 = vpop.f32.mrb[0].mxu0
      %4421 = vmatprep.mubr.bf16.mxu0 0
      %4422 = vmatmul.mubr.bf16.gmra.mrb[0].mxu0 %v4306
      %v4423 = vpop.f32.mrb[0].mxu0
      %v4424 = vadd.f32 0.0, %v4423
      %v4425 = vpop.f32.mrb[0].mxu0
      %v4426 = vpop.f32.mrb[0].mxu0
      %v4427 = vadd.f32 0.0, %v4426
      %v4428 = vpop.f32.mrb[0].mxu0
      %4429 = vmatprep.mubr.bf16.mxu0 0
      %4430 = vmatmul.mubr.bf16.gmra.mrb[0].mxu0 %v4309
      %v4431 = vpop.f32.mrb[0].mxu0
      %v4432 = vadd.f32 0.0, %v4431
      %v4433 = vpop.f32.mrb[0].mxu0
      %v4434 = vpop.f32.mrb[0].mxu0
      %v4435 = vadd.f32 0.0, %v4434
      %v4436 = vpop.f32.mrb[0].mxu0
      %4437 = vmatprep.mubr.bf16.mxu0 0
      %4438 = vmatmul.mubr.bf16.gmra.mrb[0].mxu0 %v4312
      %v4439 = vpop.f32.mrb[0].mxu0
      %v4440 = vadd.f32 0.0, %v4439
      %v4441 = vpop.f32.mrb[0].mxu0
      %v4442 = vpop.f32.mrb[0].mxu0
      %v4443 = vadd.f32 0.0, %v4442
      %v4444 = vpop.f32.mrb[0].mxu0
      %4445 = vmatprep.mubr.bf16.mxu0 0
      %4446 = vmatmul.mubr.bf16.gmra.mrb[0].mxu0 %v4315
      %v4447 = vpop.f32.mrb[0].mxu0
      %v4448 = vadd.f32 0.0, %v4447
      %v4449 = vpop.f32.mrb[0].mxu0
      %v4450 = vpop.f32.mrb[0].mxu0
      %v4451 = vadd.f32 0.0, %v4450
      %v4452 = vpop.f32.mrb[0].mxu0
      %4453 = vmatprep.mubr.bf16.mxu0 0
      %4454 = vmatmul.mubr.bf16.gmra.mrb[0].mxu0 %v4318
      %v4455 = vpop.f32.mrb[0].mxu0
      %v4456 = vadd.f32 0.0, %v4455
      %v4457 = vpop.f32.mrb[0].mxu0
      %v4458 = vpop.f32.mrb[0].mxu0
      %v4459 = vadd.f32 0.0, %v4458
      %v4460 = vpop.f32.mrb[0].mxu0
      %4461 = vmatprep.mubr.bf16.mxu0 0
      %4462 = vmatmul.mubr.bf16.gmra.mrb[0].mxu0 %v4321
      %v4463 = vpop.f32.mrb[0].mxu0
      %v4464 = vadd.f32 0.0, %v4463
      %v4465 = vpop.f32.mrb[0].mxu0
      %v4466 = vpop.f32.mrb[0].mxu0
      %v4467 = vadd.f32 0.0, %v4466
      %v4468 = vpop.f32.mrb[0].mxu0
      %4469 = vmatprep.mubr.bf16.mxu0 0
      %4470 = vmatmul.mubr.bf16.gmra.mrb[0].mxu0 %v4324
      %v4471 = vpop.f32.mrb[0].mxu0
      %v4472 = vadd.f32 0.0, %v4471
      %v4473 = vpop.f32.mrb[0].mxu0
      %v4474 = vpop.f32.mrb[0].mxu0
      %v4475 = vadd.f32 0.0, %v4474
      %v4476 = vpop.f32.mrb[0].mxu0
      %4477 = vmatprep.mubr.bf16.mxu0 0
      %4478 = vmatmul.mubr.bf16.gmra.mrb[0].mxu0 %v4327
      %v4479 = vpop.f32.mrb[0].mxu0
      %v4480 = vadd.f32 0.0, %v4479
      %v4481 = vpop.f32.mrb[0].mxu0
      %v4482 = vpop.f32.mrb[0].mxu0
      %v4483 = vadd.f32 0.0, %v4482
      %v4484 = vpop.f32.mrb[0].mxu0
      %4485 = vmatprep.mubr.bf16.mxu0 0
      %4486 = vmatmul.mubr.bf16.gmra.mrb[0].mxu0 %v4330
      %v4487 = vpop.f32.mrb[0].mxu0
      %v4488 = vadd.f32 0.0, %v4487
      %v4489 = vpop.f32.mrb[0].mxu0
      %v4490 = vpop.f32.mrb[0].mxu0
      %v4491 = vadd.f32 0.0, %v4490
      %v4492 = vpop.f32.mrb[0].mxu0
      %4493 = vmatprep.mubr.bf16.mxu0 0
      %4494 = vmatmul.mubr.bf16.gmra.mrb[0].mxu0 %v4333
      %v4495 = vpop.f32.mrb[0].mxu0
      %v4496 = vadd.f32 0.0, %v4495
      %v4497 = vpop.f32.mrb[0].mxu0
      %v4498 = vpop.f32.mrb[0].mxu0
      %v4499 = vadd.f32 0.0, %v4498
      %v4500 = vpop.f32.mrb[0].mxu0
      %4501 = vmatprep.mubr.bf16.mxu0 0
      %4502 = vmatmul.mubr.bf16.gmra.mrb[0].mxu0 %v4336
      %v4503 = vpop.f32.mrb[0].mxu0
      %v4504 = vadd.f32 0.0, %v4503
      %v4505 = vpop.f32.mrb[0].mxu0
      %v4506 = vpop.f32.mrb[0].mxu0
      %v4507 = vadd.f32 0.0, %v4506
      %v4508 = vpop.f32.mrb[0].mxu0
      %4509 = vmatprep.mubr.bf16.mxu0 0
      %4510 = vmatmul.mubr.bf16.gmra.mrb[0].mxu0 %v4339
      %v4511 = vpop.f32.mrb[0].mxu0
      %v4512 = vadd.f32 0.0, %v4511
      %v4513 = vpop.f32.mrb[0].mxu0
      %v4514 = vpop.f32.mrb[0].mxu0
      %v4515 = vadd.f32 0.0, %v4514
      %v4516 = vpop.f32.mrb[0].mxu0
      %4517 = vdwg.mxu0
      %v4518 = vld [vmem:[#allocation2] sm:$0xff]
      %v4519 = vld [vmem:[#allocation2 + $0x8] sm:$0xff]
      %v4520 = vld [vmem:[#allocation2 + $0x10] sm:$0xff]
      %v4521 = vld [vmem:[#allocation2 + $0x18] sm:$0xff]
      %v4522 = vld [vmem:[#allocation2 + $0x20] sm:$0xff]
      %v4523 = vld [vmem:[#allocation2 + $0x28] sm:$0xff]
      %v4524 = vld [vmem:[#allocation2 + $0x30] sm:$0xff]
      %v4525 = vld [vmem:[#allocation2 + $0x38] sm:$0xff]
      %v4526 = vld [vmem:[#allocation2 + $0x40] sm:$0xff]
      %v4527 = vld [vmem:[#allocation2 + $0x48] sm:$0xff]
      %v4528 = vld [vmem:[#allocation2 + $0x50] sm:$0xff]
      %v4529 = vld [vmem:[#allocation2 + $0x58] sm:$0xff]
      %v4530 = vld [vmem:[#allocation2 + $0x60] sm:$0xff]
      %v4531 = vld [vmem:[#allocation2 + $0x68] sm:$0xff]
      %v4532 = vld [vmem:[#allocation2 + $0x70] sm:$0xff]
      %v4533 = vld [vmem:[#allocation2 + $0x78] sm:$0xff]
      %v4534 = vld [vmem:[#allocation2 + $0x80] sm:$0xff]
      %v4535 = vld [vmem:[#allocation2 + $0x88] sm:$0xff]
      %v4536 = vld [vmem:[#allocation2 + $0x90] sm:$0xff]
      %v4537 = vld [vmem:[#allocation2 + $0x98] sm:$0xff]
      %v4538 = vld [vmem:[#allocation2 + $0xa0] sm:$0xff]
      %v4539 = vld [vmem:[#allocation2 + $0xa8] sm:$0xff]
      %v4540 = vld [vmem:[#allocation2 + $0xb0] sm:$0xff]
      %v4541 = vld [vmem:[#allocation2 + $0xb8] sm:$0xff]
      %v4542 = vld [vmem:[#allocation2 + $0xc0] sm:$0xff]
      %v4543 = vld [vmem:[#allocation2 + $0xc8] sm:$0xff]
      %v4544 = vld [vmem:[#allocation2 + $0xd0] sm:$0xff]
      %v4545 = vld [vmem:[#allocation2 + $0xd8] sm:$0xff]
      %v4546 = vld [vmem:[#allocation2 + $0xe0] sm:$0xff]
      %v4547 = vld [vmem:[#allocation2 + $0xe8] sm:$0xff]
      %v4548 = vld [vmem:[#allocation2 + $0xf0] sm:$0xff]
      %v4549 = vld [vmem:[#allocation2 + $0xf8] sm:$0xff]
      %v4550 = vld [vmem:[#allocation2 + $0x100] sm:$0xff]
      %v4551 = vld [vmem:[#allocation2 + $0x108] sm:$0xff]
      %v4552 = vld [vmem:[#allocation2 + $0x110] sm:$0xff]
      %v4553 = vld [vmem:[#allocation2 + $0x118] sm:$0xff]
      %v4554 = vadd.f32 %v4518, %v4376
      %v4555 = vadd.f32 %v4519, %v4379
      %v4556 = vadd.f32 %v4520, %v4384
      %v4557 = vadd.f32 %v4521, %v4387
      %v4558 = vadd.f32 %v4522, %v4392
      %v4559 = vadd.f32 %v4523, %v4395
      %v4560 = vadd.f32 %v4524, %v4400
      %v4561 = vadd.f32 %v4525, %v4403
      %v4562 = vadd.f32 %v4526, %v4408
      %v4563 = vadd.f32 %v4527, %v4411
      %v4564 = vadd.f32 %v4528, %v4416
      %v4565 = vadd.f32 %v4529, %v4419
      %v4566 = vadd.f32 %v4530, %v4424
      %v4567 = vadd.f32 %v4531, %v4427
      %v4568 = vadd.f32 %v4532, %v4432
      %v4569 = vadd.f32 %v4533, %v4435
      %v4570 = vadd.f32 %v4534, %v4440
      %v4571 = vadd.f32 %v4535, %v4443
      %v4572 = vadd.f32 %v4536, %v4448
      %v4573 = vadd.f32 %v4537, %v4451
      %v4574 = vadd.f32 %v4538, %v4456
      %v4575 = vadd.f32 %v4539, %v4459
      %v4576 = vadd.f32 %v4540, %v4464
      %v4577 = vadd.f32 %v4541, %v4467
      %v4578 = vadd.f32 %v4542, %v4472
      %v4579 = vadd.f32 %v4543, %v4475
      %v4580 = vadd.f32 %v4544, %v4480
      %v4581 = vadd.f32 %v4545, %v4483
      %v4582 = vadd.f32 %v4546, %v4488
      %v4583 = vadd.f32 %v4547, %v4491
      %v4584 = vadd.f32 %v4548, %v4496
      %v4585 = vadd.f32 %v4549, %v4499
      %v4586 = vadd.f32 %v4550, %v4504
      %v4587 = vadd.f32 %v4551, %v4507
      %v4588 = vadd.f32 %v4552, %v4512
      %v4589 = vadd.f32 %v4553, %v4515
      %4590 = vst.msk [vmem:[#allocation2] sm:$0xff] %vm546, %v4554
      %4591 = vst.msk [vmem:[#allocation2 + $0x8] sm:$0xff] %vm546, %v4555
      %4592 = vst.msk [vmem:[#allocation2 + $0x10] sm:$0xff] %vm546, %v4556
      %4593 = vst.msk [vmem:[#allocation2 + $0x18] sm:$0xff] %vm546, %v4557
      %4594 = vst.msk [vmem:[#allocation2 + $0x20] sm:$0xff] %vm546, %v4558
      %4595 = vst.msk [vmem:[#allocation2 + $0x28] sm:$0xff] %vm546, %v4559
      %4596 = vst.msk [vmem:[#allocation2 + $0x30] sm:$0xff] %vm546, %v4560
      %4597 = vst.msk [vmem:[#allocation2 + $0x38] sm:$0xff] %vm546, %v4561
      %4598 = vst.msk [vmem:[#allocation2 + $0x40] sm:$0xff] %vm546, %v4562
      %4599 = vst.msk [vmem:[#allocation2 + $0x48] sm:$0xff] %vm546, %v4563
      %4600 = vst.msk [vmem:[#allocation2 + $0x50] sm:$0xff] %vm546, %v4564
      %4601 = vst.msk [vmem:[#allocation2 + $0x58] sm:$0xff] %vm546, %v4565
      %4602 = vst.msk [vmem:[#allocation2 + $0x60] sm:$0xff] %vm546, %v4566
      %4603 = vst.msk [vmem:[#allocation2 + $0x68] sm:$0xff] %vm546, %v4567
      %4604 = vst.msk [vmem:[#allocation2 + $0x70] sm:$0xff] %vm546, %v4568
      %4605 = vst.msk [vmem:[#allocation2 + $0x78] sm:$0xff] %vm546, %v4569
      %4606 = vst.msk [vmem:[#allocation2 + $0x80] sm:$0xff] %vm546, %v4570
      %4607 = vst.msk [vmem:[#allocation2 + $0x88] sm:$0xff] %vm546, %v4571
      %4608 = vst.msk [vmem:[#allocation2 + $0x90] sm:$0xff] %vm546, %v4572
      %4609 = vst.msk [vmem:[#allocation2 + $0x98] sm:$0xff] %vm546, %v4573
      %4610 = vst.msk [vmem:[#allocation2 + $0xa0] sm:$0xff] %vm546, %v4574
      %4611 = vst.msk [vmem:[#allocation2 + $0xa8] sm:$0xff] %vm546, %v4575
      %4612 = vst.msk [vmem:[#allocation2 + $0xb0] sm:$0xff] %vm546, %v4576
      %4613 = vst.msk [vmem:[#allocation2 + $0xb8] sm:$0xff] %vm546, %v4577
      %4614 = vst.msk [vmem:[#allocation2 + $0xc0] sm:$0xff] %vm546, %v4578
      %4615 = vst.msk [vmem:[#allocation2 + $0xc8] sm:$0xff] %vm546, %v4579
      %4616 = vst.msk [vmem:[#allocation2 + $0xd0] sm:$0xff] %vm546, %v4580
      %4617 = vst.msk [vmem:[#allocation2 + $0xd8] sm:$0xff] %vm546, %v4581
      %4618 = vst.msk [vmem:[#allocation2 + $0xe0] sm:$0xff] %vm546, %v4582
      %4619 = vst.msk [vmem:[#allocation2 + $0xe8] sm:$0xff] %vm546, %v4583
      %4620 = vst.msk [vmem:[#allocation2 + $0xf0] sm:$0xff] %vm546, %v4584
      %4621 = vst.msk [vmem:[#allocation2 + $0xf8] sm:$0xff] %vm546, %v4585
      %4622 = vst.msk [vmem:[#allocation2 + $0x100] sm:$0xff] %vm546, %v4586
      %4623 = vst.msk [vmem:[#allocation2 + $0x108] sm:$0xff] %vm546, %v4587
      %4624 = vst.msk [vmem:[#allocation2 + $0x110] sm:$0xff] %vm546, %v4588
      %4625 = vst.msk [vmem:[#allocation2 + $0x118] sm:$0xff] %vm546, %v4589
      %v4626 = vld [vmem:[%s165 + $0x10] sm:$0x8]
      %v4627 = vld [vmem:[%s165 + $0x14] sm:$0xf]
      %v4628 = vld [vmem:[%s165 + $0x18] sm:$0xf]
      %v4629 = vld [vmem:[%s165 + $0x1c] sm:$0xf]
      %v4630 = vld [vmem:[%s165 + $0x20] sm:$0xf]
      %v4631 = vld [vmem:[%s165 + $0x24] sm:$0xf]
      %v4632 = vld [vmem:[%s165 + $0x28] sm:$0xf]
      %v4633 = vld [vmem:[%s165 + $0x2c] sm:$0xf]
      %v4634 = vld [vmem:[%s165 + $0x30] sm:$0xf]
      %v4635 = vld [vmem:[%s165 + $0x34] sm:$0xf]
      %v4636 = vld [vmem:[%s165 + $0x38] sm:$0xf]
      %v4637 = vld [vmem:[%s165 + $0x3c] sm:$0xf]
      %v4638 = vld [vmem:[%s165 + $0x40] sm:$0xf]
      %v4639 = vld [vmem:[%s165 + $0x44] sm:$0xf]
      %v4640 = vld [vmem:[%s165 + $0x48] sm:$0xf]
      %v4641 = vld [vmem:[%s165 + $0x4c] sm:$0xf]
      %v4642 = vld [vmem:[%s165 + $0x50] sm:$0xf]
      %v4643 = vld [vmem:[%s165 + $0x54] sm:$0xf]
      %v4644 = vld [vmem:[%s165 + $0x58] sm:$0xf]
      %v4645 = vld [vmem:[%s165 + $0x5c] sm:$0xf]
      %v4646 = vld [vmem:[%s165 + $0x60] sm:$0xf]
      %v4647 = vld [vmem:[%s165 + $0x64] sm:$0xf]
      %v4648 = vld [vmem:[%s165 + $0x68] sm:$0xf]
      %v4649 = vld [vmem:[%s165 + $0x6c] sm:$0xf]
      %v4650 = vld [vmem:[%s165 + $0x70] sm:$0xf]
      %v4651 = vld [vmem:[%s165 + $0x74] sm:$0xf]
      %v4652 = vld [vmem:[%s165 + $0x78] sm:$0xf]
      %v4653 = vld [vmem:[%s165 + $0x7c] sm:$0xf]
      %v4654 = vld [vmem:[%s165 + $0x80] sm:$0xf]
      %v4655 = vld [vmem:[%s165 + $0x84] sm:$0xf]
      %v4656 = vld [vmem:[%s165 + $0x88] sm:$0xf]
      %v4657 = vld [vmem:[%s165 + $0x8c] sm:$0xf]
      %v4658 = vld [vmem:[%s165 + $0x90] sm:$0xf]
      %v4659 = vld [vmem:[%s165 + $0x94] sm:$0xf]
      %v4660 = vld [vmem:[%s165 + $0x98] sm:$0xf]
      %v4661 = vld [vmem:[%s165 + $0x9c] sm:$0xf]
      %v4662 = vld [vmem:[%s165 + $0xa0] sm:$0x7]
      %s4663 = scalar_lea.vmem %s1, 128
      %v4664 = vld [vmem:[%s4663] sm:$0xf]
      %v4665 = vld [vmem:[%s4663 + $0x4] sm:$0xf]
      %v4666 = vld [vmem:[%s4663 + $0x8] sm:$0xf]
      %v4667 = vld [vmem:[%s4663 + $0xc] sm:$0xf]
      %v4705 = vunpack.c.l.b16 %v4626
      %v4706 = vunpack.c.l.b16 %v4627
      %v4707 = vunpack.c.l.b16 %v4628
      %v4708 = vunpack.c.l.b16 %v4629
      %v4709 = vunpack.c.l.b16 %v4630
      %v4710 = vunpack.c.l.b16 %v4631
      %v4711 = vunpack.c.l.b16 %v4632
      %v4712 = vunpack.c.l.b16 %v4633
      %v4713 = vunpack.c.l.b16 %v4634
      %v4714 = vunpack.c.l.b16 %v4635
      %v4715 = vunpack.c.l.b16 %v4636
      %v4716 = vunpack.c.l.b16 %v4637
      %v4717 = vunpack.c.l.b16 %v4638
      %v4718 = vunpack.c.l.b16 %v4639
      %v4719 = vunpack.c.l.b16 %v4640
      %v4720 = vunpack.c.l.b16 %v4641
      %v4721 = vunpack.c.l.b16 %v4642
      %v4722 = vunpack.c.l.b16 %v4643
      %v4723 = vunpack.c.l.b16 %v4644
      %v4724 = vunpack.c.l.b16 %v4645
      %v4725 = vunpack.c.l.b16 %v4646
      %v4726 = vunpack.c.l.b16 %v4647
      %v4727 = vunpack.c.l.b16 %v4648
      %v4728 = vunpack.c.l.b16 %v4649
      %v4729 = vunpack.c.l.b16 %v4650
      %v4730 = vunpack.c.l.b16 %v4651
      %v4731 = vunpack.c.l.b16 %v4652
      %v4732 = vunpack.c.l.b16 %v4653
      %v4733 = vunpack.c.l.b16 %v4654
      %v4734 = vunpack.c.l.b16 %v4655
      %v4735 = vunpack.c.l.b16 %v4656
      %v4736 = vunpack.c.l.b16 %v4657
      %v4737 = vunpack.c.l.b16 %v4658
      %v4738 = vunpack.c.l.b16 %v4659
      %v4739 = vunpack.c.l.b16 %v4660
      %v4740 = vunpack.c.l.b16 %v4661
      %v4741 = vunpack.c.l.b16 %v4662
      %v4742 = vpack.c.b16 %v4706, %v4705
      %v4743 = vpack.c.b16 %v4708, %v4707
      %v4744 = vpack.c.b16 %v4710, %v4709
      %v4745 = vpack.c.b16 %v4712, %v4711
      %v4746 = vpack.c.b16 %v4714, %v4713
      %v4747 = vpack.c.b16 %v4716, %v4715
      %v4748 = vpack.c.b16 %v4718, %v4717
      %v4749 = vpack.c.b16 %v4720, %v4719
      %v4750 = vpack.c.b16 %v4722, %v4721
      %v4751 = vpack.c.b16 %v4724, %v4723
      %v4752 = vpack.c.b16 %v4726, %v4725
      %v4753 = vpack.c.b16 %v4728, %v4727
      %v4754 = vpack.c.b16 %v4730, %v4729
      %v4755 = vpack.c.b16 %v4732, %v4731
      %v4756 = vpack.c.b16 %v4734, %v4733
      %v4757 = vpack.c.b16 %v4736, %v4735
      %v4758 = vpack.c.b16 %v4738, %v4737
      %v4759 = vpack.c.b16 %v4740, %v4739
      %v4760 = vpack.c.b16 %v4741, %v4741
      %vm4761 = vcmask 1044480
      %v4762 = vrot.slane %v4742, 3
      %v4763 = vrot.slane %v4743, 3
      %v4764 = vsel %vm4761, %v4762, %v4763
      %v4765 = vrot.slane %v4744, 3
      %v4766 = vsel %vm4761, %v4763, %v4765
      %v4767 = vrot.slane %v4745, 3
      %v4768 = vsel %vm4761, %v4765, %v4767
      %v4769 = vrot.slane %v4746, 3
      %v4770 = vsel %vm4761, %v4767, %v4769
      %v4771 = vrot.slane %v4747, 3
      %v4772 = vsel %vm4761, %v4769, %v4771
      %v4773 = vrot.slane %v4748, 3
      %v4774 = vsel %vm4761, %v4771, %v4773
      %v4775 = vrot.slane %v4749, 3
      %v4776 = vsel %vm4761, %v4773, %v4775
      %v4777 = vrot.slane %v4750, 3
      %v4778 = vsel %vm4761, %v4775, %v4777
      %v4779 = vrot.slane %v4751, 3
      %v4780 = vsel %vm4761, %v4777, %v4779
      %v4781 = vrot.slane %v4752, 3
      %v4782 = vsel %vm4761, %v4779, %v4781
      %v4783 = vrot.slane %v4753, 3
      %v4784 = vsel %vm4761, %v4781, %v4783
      %v4785 = vrot.slane %v4754, 3
      %v4786 = vsel %vm4761, %v4783, %v4785
      %v4787 = vrot.slane %v4755, 3
      %v4788 = vsel %vm4761, %v4785, %v4787
      %v4789 = vrot.slane %v4756, 3
      %v4790 = vsel %vm4761, %v4787, %v4789
      %v4791 = vrot.slane %v4757, 3
      %v4792 = vsel %vm4761, %v4789, %v4791
      %v4793 = vrot.slane %v4758, 3
      %v4794 = vsel %vm4761, %v4791, %v4793
      %v4795 = vrot.slane %v4759, 3
      %v4796 = vsel %vm4761, %v4793, %v4795
      %v4797 = vrot.slane %v4760, 3
      %v4798 = vsel %vm4761, %v4795, %v4797
      %v4803 = vunpack.c.l.b16 %v4664
      %v4804 = vunpack.c.l.b16 %v4665
      %v4805 = vunpack.c.l.b16 %v4666
      %v4806 = vunpack.c.l.b16 %v4667
      %v4807 = vpack.c.b16 %v4804, %v4803
      %v4808 = vpack.c.b16 %v4806, %v4805
      %v4812 = vsel %vm314, %v4764, 0
      %v4815 = vsel %vm314, %v4766, 0
      %v4818 = vsel %vm314, %v4768, 0
      %v4821 = vsel %vm314, %v4770, 0
      %v4824 = vsel %vm314, %v4772, 0
      %v4827 = vsel %vm314, %v4774, 0
      %v4830 = vsel %vm314, %v4776, 0
      %v4833 = vsel %vm314, %v4778, 0
      %v4836 = vsel %vm314, %v4780, 0
      %v4839 = vsel %vm314, %v4782, 0
      %v4842 = vsel %vm314, %v4784, 0
      %v4845 = vsel %vm314, %v4786, 0
      %v4848 = vsel %vm314, %v4788, 0
      %v4851 = vsel %vm314, %v4790, 0
      %v4854 = vsel %vm314, %v4792, 0
      %v4857 = vsel %vm314, %v4794, 0
      %v4860 = vsel %vm314, %v4796, 0
      %v4863 = vsel %vm314, %v4798, 0
      %4865 = vmatprep.subr.bf16.mxu0 0
      %4866 = vmatpush1.bf16.msra.mxu0 %v4807
      %4867 = vmatprep.subr.bf16.mxu0 0
      %4868 = vmatpush1.bf16.msra.mxu0 %v4808
      %4869 = vmatprep.subr.bf16.mxu0 0
      %4870 = vmatpush1.bf16.msra.mxu0 0
      %4871 = vmatprep.subr.bf16.mxu0 0
      %4872 = vmatpush1.bf16.msra.mxu0 0
      %4873 = vmatprep.subr.bf16.mxu0 0
      %4874 = vmatpush1.bf16.msra.mxu0 0
      %4875 = vmatprep.subr.bf16.mxu0 0
      %4876 = vmatpush1.bf16.msra.mxu0 0
      %4877 = vmatprep.subr.bf16.mxu0 0
      %4878 = vmatpush1.bf16.msra.mxu0 0
      %4879 = vmatprep.subr.bf16.mxu0 0
      %4880 = vmatpush1.bf16.msra.mxu0 0
      %4881 = vmatprep.subr.bf16.mxu0 0
      %4882 = vmatpush1.bf16.msra.mxu0 0
      %4883 = vmatprep.subr.bf16.mxu0 0
      %4884 = vmatpush1.bf16.msra.mxu0 0
      %4885 = vmatprep.subr.bf16.mxu0 0
      %4886 = vmatpush1.bf16.msra.mxu0 0
      %4887 = vmatprep.subr.bf16.mxu0 0
      %4888 = vmatpush1.bf16.msra.mxu0 0
      %4889 = vmatprep.subr.bf16.mxu0 0
      %4890 = vmatpush1.bf16.msra.mxu0 0
      %4891 = vmatprep.subr.bf16.mxu0 0
      %4892 = vmatpush1.bf16.msra.mxu0 0
      %4893 = vmatprep.subr.bf16.mxu0 0
      %4894 = vmatpush1.bf16.msra.mxu0 0
      %4895 = vmatprep.subr.bf16.mxu0 0
      %4896 = vmatpush1.bf16.msra.mxu0 0
      %4897 = vmatprep.mubr.bf16.mxu0 0
      %4898 = vmatmul.mubr.bf16.gmra.mrb[0].mxu0 %v4812
      %v4899 = vpop.f32.mrb[0].mxu0
      %v4900 = vadd.f32 0.0, %v4899
      %v4901 = vpop.f32.mrb[0].mxu0
      %v4902 = vpop.f32.mrb[0].mxu0
      %v4903 = vadd.f32 0.0, %v4902
      %v4904 = vpop.f32.mrb[0].mxu0
      %4905 = vmatprep.mubr.bf16.mxu0 0
      %4906 = vmatmul.mubr.bf16.gmra.mrb[0].mxu0 %v4815
      %v4907 = vpop.f32.mrb[0].mxu0
      %v4908 = vadd.f32 0.0, %v4907
      %v4909 = vpop.f32.mrb[0].mxu0
      %v4910 = vpop.f32.mrb[0].mxu0
      %v4911 = vadd.f32 0.0, %v4910
      %v4912 = vpop.f32.mrb[0].mxu0
      %4913 = vmatprep.mubr.bf16.mxu0 0
      %4914 = vmatmul.mubr.bf16.gmra.mrb[0].mxu0 %v4818
      %v4915 = vpop.f32.mrb[0].mxu0
      %v4916 = vadd.f32 0.0, %v4915
      %v4917 = vpop.f32.mrb[0].mxu0
      %v4918 = vpop.f32.mrb[0].mxu0
      %v4919 = vadd.f32 0.0, %v4918
      %v4920 = vpop.f32.mrb[0].mxu0
      %4921 = vmatprep.mubr.bf16.mxu0 0
      %4922 = vmatmul.mubr.bf16.gmra.mrb[0].mxu0 %v4821
      %v4923 = vpop.f32.mrb[0].mxu0
      %v4924 = vadd.f32 0.0, %v4923
      %v4925 = vpop.f32.mrb[0].mxu0
      %v4926 = vpop.f32.mrb[0].mxu0
      %v4927 = vadd.f32 0.0, %v4926
      %v4928 = vpop.f32.mrb[0].mxu0
      %4929 = vmatprep.mubr.bf16.mxu0 0
      %4930 = vmatmul.mubr.bf16.gmra.mrb[0].mxu0 %v4824
      %v4931 = vpop.f32.mrb[0].mxu0
      %v4932 = vadd.f32 0.0, %v4931
      %v4933 = vpop.f32.mrb[0].mxu0
      %v4934 = vpop.f32.mrb[0].mxu0
      %v4935 = vadd.f32 0.0, %v4934
      %v4936 = vpop.f32.mrb[0].mxu0
      %4937 = vmatprep.mubr.bf16.mxu0 0
      %4938 = vmatmul.mubr.bf16.gmra.mrb[0].mxu0 %v4827
      %v4939 = vpop.f32.mrb[0].mxu0
      %v4940 = vadd.f32 0.0, %v4939
      %v4941 = vpop.f32.mrb[0].mxu0
      %v4942 = vpop.f32.mrb[0].mxu0
      %v4943 = vadd.f32 0.0, %v4942
      %v4944 = vpop.f32.mrb[0].mxu0
      %4945 = vmatprep.mubr.bf16.mxu0 0
      %4946 = vmatmul.mubr.bf16.gmra.mrb[0].mxu0 %v4830
      %v4947 = vpop.f32.mrb[0].mxu0
      %v4948 = vadd.f32 0.0, %v4947
      %v4949 = vpop.f32.mrb[0].mxu0
      %v4950 = vpop.f32.mrb[0].mxu0
      %v4951 = vadd.f32 0.0, %v4950
      %v4952 = vpop.f32.mrb[0].mxu0
      %4953 = vmatprep.mubr.bf16.mxu0 0
      %4954 = vmatmul.mubr.bf16.gmra.mrb[0].mxu0 %v4833
      %v4955 = vpop.f32.mrb[0].mxu0
      %v4956 = vadd.f32 0.0, %v4955
      %v4957 = vpop.f32.mrb[0].mxu0
      %v4958 = vpop.f32.mrb[0].mxu0
      %v4959 = vadd.f32 0.0, %v4958
      %v4960 = vpop.f32.mrb[0].mxu0
      %4961 = vmatprep.mubr.bf16.mxu0 0
      %4962 = vmatmul.mubr.bf16.gmra.mrb[0].mxu0 %v4836
      %v4963 = vpop.f32.mrb[0].mxu0
      %v4964 = vadd.f32 0.0, %v4963
      %v4965 = vpop.f32.mrb[0].mxu0
      %v4966 = vpop.f32.mrb[0].mxu0
      %v4967 = vadd.f32 0.0, %v4966
      %v4968 = vpop.f32.mrb[0].mxu0
      %4969 = vmatprep.mubr.bf16.mxu0 0
      %4970 = vmatmul.mubr.bf16.gmra.mrb[0].mxu0 %v4839
      %v4971 = vpop.f32.mrb[0].mxu0
      %v4972 = vadd.f32 0.0, %v4971
      %v4973 = vpop.f32.mrb[0].mxu0
      %v4974 = vpop.f32.mrb[0].mxu0
      %v4975 = vadd.f32 0.0, %v4974
      %v4976 = vpop.f32.mrb[0].mxu0
      %4977 = vmatprep.mubr.bf16.mxu0 0
      %4978 = vmatmul.mubr.bf16.gmra.mrb[0].mxu0 %v4842
      %v4979 = vpop.f32.mrb[0].mxu0
      %v4980 = vadd.f32 0.0, %v4979
      %v4981 = vpop.f32.mrb[0].mxu0
      %v4982 = vpop.f32.mrb[0].mxu0
      %v4983 = vadd.f32 0.0, %v4982
      %v4984 = vpop.f32.mrb[0].mxu0
      %4985 = vmatprep.mubr.bf16.mxu0 0
      %4986 = vmatmul.mubr.bf16.gmra.mrb[0].mxu0 %v4845
      %v4987 = vpop.f32.mrb[0].mxu0
      %v4988 = vadd.f32 0.0, %v4987
      %v4989 = vpop.f32.mrb[0].mxu0
      %v4990 = vpop.f32.mrb[0].mxu0
      %v4991 = vadd.f32 0.0, %v4990
      %v4992 = vpop.f32.mrb[0].mxu0
      %4993 = vmatprep.mubr.bf16.mxu0 0
      %4994 = vmatmul.mubr.bf16.gmra.mrb[0].mxu0 %v4848
      %v4995 = vpop.f32.mrb[0].mxu0
      %v4996 = vadd.f32 0.0, %v4995
      %v4997 = vpop.f32.mrb[0].mxu0
      %v4998 = vpop.f32.mrb[0].mxu0
      %v4999 = vadd.f32 0.0, %v4998
      %v5000 = vpop.f32.mrb[0].mxu0
      %5001 = vmatprep.mubr.bf16.mxu0 0
      %5002 = vmatmul.mubr.bf16.gmra.mrb[0].mxu0 %v4851
      %v5003 = vpop.f32.mrb[0].mxu0
      %v5004 = vadd.f32 0.0, %v5003
      %v5005 = vpop.f32.mrb[0].mxu0
      %v5006 = vpop.f32.mrb[0].mxu0
      %v5007 = vadd.f32 0.0, %v5006
      %v5008 = vpop.f32.mrb[0].mxu0
      %5009 = vmatprep.mubr.bf16.mxu0 0
      %5010 = vmatmul.mubr.bf16.gmra.mrb[0].mxu0 %v4854
      %v5011 = vpop.f32.mrb[0].mxu0
      %v5012 = vadd.f32 0.0, %v5011
      %v5013 = vpop.f32.mrb[0].mxu0
      %v5014 = vpop.f32.mrb[0].mxu0
      %v5015 = vadd.f32 0.0, %v5014
      %v5016 = vpop.f32.mrb[0].mxu0
      %5017 = vmatprep.mubr.bf16.mxu0 0
      %5018 = vmatmul.mubr.bf16.gmra.mrb[0].mxu0 %v4857
      %v5019 = vpop.f32.mrb[0].mxu0
      %v5020 = vadd.f32 0.0, %v5019
      %v5021 = vpop.f32.mrb[0].mxu0
      %v5022 = vpop.f32.mrb[0].mxu0
      %v5023 = vadd.f32 0.0, %v5022
      %v5024 = vpop.f32.mrb[0].mxu0
      %5025 = vmatprep.mubr.bf16.mxu0 0
      %5026 = vmatmul.mubr.bf16.gmra.mrb[0].mxu0 %v4860
      %v5027 = vpop.f32.mrb[0].mxu0
      %v5028 = vadd.f32 0.0, %v5027
      %v5029 = vpop.f32.mrb[0].mxu0
      %v5030 = vpop.f32.mrb[0].mxu0
      %v5031 = vadd.f32 0.0, %v5030
      %v5032 = vpop.f32.mrb[0].mxu0
      %5033 = vmatprep.mubr.bf16.mxu0 0
      %5034 = vmatmul.mubr.bf16.gmra.mrb[0].mxu0 %v4863
      %v5035 = vpop.f32.mrb[0].mxu0
      %v5036 = vadd.f32 0.0, %v5035
      %v5037 = vpop.f32.mrb[0].mxu0
      %v5038 = vpop.f32.mrb[0].mxu0
      %v5039 = vadd.f32 0.0, %v5038
      %v5040 = vpop.f32.mrb[0].mxu0
      %5041 = vdwg.mxu0
      %v5042 = vld [vmem:[#allocation2] sm:$0xff]
      %v5043 = vld [vmem:[#allocation2 + $0x8] sm:$0xff]
      %v5044 = vld [vmem:[#allocation2 + $0x10] sm:$0xff]
      %v5045 = vld [vmem:[#allocation2 + $0x18] sm:$0xff]
      %v5046 = vld [vmem:[#allocation2 + $0x20] sm:$0xff]
      %v5047 = vld [vmem:[#allocation2 + $0x28] sm:$0xff]
      %v5048 = vld [vmem:[#allocation2 + $0x30] sm:$0xff]
      %v5049 = vld [vmem:[#allocation2 + $0x38] sm:$0xff]
      %v5050 = vld [vmem:[#allocation2 + $0x40] sm:$0xff]
      %v5051 = vld [vmem:[#allocation2 + $0x48] sm:$0xff]
      %v5052 = vld [vmem:[#allocation2 + $0x50] sm:$0xff]
      %v5053 = vld [vmem:[#allocation2 + $0x58] sm:$0xff]
      %v5054 = vld [vmem:[#allocation2 + $0x60] sm:$0xff]
      %v5055 = vld [vmem:[#allocation2 + $0x68] sm:$0xff]
      %v5056 = vld [vmem:[#allocation2 + $0x70] sm:$0xff]
      %v5057 = vld [vmem:[#allocation2 + $0x78] sm:$0xff]
      %v5058 = vld [vmem:[#allocation2 + $0x80] sm:$0xff]
      %v5059 = vld [vmem:[#allocation2 + $0x88] sm:$0xff]
      %v5060 = vld [vmem:[#allocation2 + $0x90] sm:$0xff]
      %v5061 = vld [vmem:[#allocation2 + $0x98] sm:$0xff]
      %v5062 = vld [vmem:[#allocation2 + $0xa0] sm:$0xff]
      %v5063 = vld [vmem:[#allocation2 + $0xa8] sm:$0xff]
      %v5064 = vld [vmem:[#allocation2 + $0xb0] sm:$0xff]
      %v5065 = vld [vmem:[#allocation2 + $0xb8] sm:$0xff]
      %v5066 = vld [vmem:[#allocation2 + $0xc0] sm:$0xff]
      %v5067 = vld [vmem:[#allocation2 + $0xc8] sm:$0xff]
      %v5068 = vld [vmem:[#allocation2 + $0xd0] sm:$0xff]
      %v5069 = vld [vmem:[#allocation2 + $0xd8] sm:$0xff]
      %v5070 = vld [vmem:[#allocation2 + $0xe0] sm:$0xff]
      %v5071 = vld [vmem:[#allocation2 + $0xe8] sm:$0xff]
      %v5072 = vld [vmem:[#allocation2 + $0xf0] sm:$0xff]
      %v5073 = vld [vmem:[#allocation2 + $0xf8] sm:$0xff]
      %v5074 = vld [vmem:[#allocation2 + $0x100] sm:$0xff]
      %v5075 = vld [vmem:[#allocation2 + $0x108] sm:$0xff]
      %v5076 = vld [vmem:[#allocation2 + $0x110] sm:$0xff]
      %v5077 = vld [vmem:[#allocation2 + $0x118] sm:$0xff]
      %v5078 = vadd.f32 %v5042, %v4900
      %v5079 = vadd.f32 %v5043, %v4903
      %v5080 = vadd.f32 %v5044, %v4908
      %v5081 = vadd.f32 %v5045, %v4911
      %v5082 = vadd.f32 %v5046, %v4916
      %v5083 = vadd.f32 %v5047, %v4919
      %v5084 = vadd.f32 %v5048, %v4924
      %v5085 = vadd.f32 %v5049, %v4927
      %v5086 = vadd.f32 %v5050, %v4932
      %v5087 = vadd.f32 %v5051, %v4935
      %v5088 = vadd.f32 %v5052, %v4940
      %v5089 = vadd.f32 %v5053, %v4943
      %v5090 = vadd.f32 %v5054, %v4948
      %v5091 = vadd.f32 %v5055, %v4951
      %v5092 = vadd.f32 %v5056, %v4956
      %v5093 = vadd.f32 %v5057, %v4959
      %v5094 = vadd.f32 %v5058, %v4964
      %v5095 = vadd.f32 %v5059, %v4967
      %v5096 = vadd.f32 %v5060, %v4972
      %v5097 = vadd.f32 %v5061, %v4975
      %v5098 = vadd.f32 %v5062, %v4980
      %v5099 = vadd.f32 %v5063, %v4983
      %v5100 = vadd.f32 %v5064, %v4988
      %v5101 = vadd.f32 %v5065, %v4991
      %v5102 = vadd.f32 %v5066, %v4996
      %v5103 = vadd.f32 %v5067, %v4999
      %v5104 = vadd.f32 %v5068, %v5004
      %v5105 = vadd.f32 %v5069, %v5007
      %v5106 = vadd.f32 %v5070, %v5012
      %v5107 = vadd.f32 %v5071, %v5015
      %v5108 = vadd.f32 %v5072, %v5020
      %v5109 = vadd.f32 %v5073, %v5023
      %v5110 = vadd.f32 %v5074, %v5028
      %v5111 = vadd.f32 %v5075, %v5031
      %v5112 = vadd.f32 %v5076, %v5036
      %v5113 = vadd.f32 %v5077, %v5039
      %5114 = vst.msk [vmem:[#allocation2] sm:$0xff] %vm546, %v5078
      %5115 = vst.msk [vmem:[#allocation2 + $0x8] sm:$0xff] %vm546, %v5079
      %5116 = vst.msk [vmem:[#allocation2 + $0x10] sm:$0xff] %vm546, %v5080
      %5117 = vst.msk [vmem:[#allocation2 + $0x18] sm:$0xff] %vm546, %v5081
      %5118 = vst.msk [vmem:[#allocation2 + $0x20] sm:$0xff] %vm546, %v5082
      %5119 = vst.msk [vmem:[#allocation2 + $0x28] sm:$0xff] %vm546, %v5083
      %5120 = vst.msk [vmem:[#allocation2 + $0x30] sm:$0xff] %vm546, %v5084
      %5121 = vst.msk [vmem:[#allocation2 + $0x38] sm:$0xff] %vm546, %v5085
      %5122 = vst.msk [vmem:[#allocation2 + $0x40] sm:$0xff] %vm546, %v5086
      %5123 = vst.msk [vmem:[#allocation2 + $0x48] sm:$0xff] %vm546, %v5087
      %5124 = vst.msk [vmem:[#allocation2 + $0x50] sm:$0xff] %vm546, %v5088
      %5125 = vst.msk [vmem:[#allocation2 + $0x58] sm:$0xff] %vm546, %v5089
      %5126 = vst.msk [vmem:[#allocation2 + $0x60] sm:$0xff] %vm546, %v5090
      %5127 = vst.msk [vmem:[#allocation2 + $0x68] sm:$0xff] %vm546, %v5091
      %5128 = vst.msk [vmem:[#allocation2 + $0x70] sm:$0xff] %vm546, %v5092
      %5129 = vst.msk [vmem:[#allocation2 + $0x78] sm:$0xff] %vm546, %v5093
      %5130 = vst.msk [vmem:[#allocation2 + $0x80] sm:$0xff] %vm546, %v5094
      %5131 = vst.msk [vmem:[#allocation2 + $0x88] sm:$0xff] %vm546, %v5095
      %5132 = vst.msk [vmem:[#allocation2 + $0x90] sm:$0xff] %vm546, %v5096
      %5133 = vst.msk [vmem:[#allocation2 + $0x98] sm:$0xff] %vm546, %v5097
      %5134 = vst.msk [vmem:[#allocation2 + $0xa0] sm:$0xff] %vm546, %v5098
      %5135 = vst.msk [vmem:[#allocation2 + $0xa8] sm:$0xff] %vm546, %v5099
      %5136 = vst.msk [vmem:[#allocation2 + $0xb0] sm:$0xff] %vm546, %v5100
      %5137 = vst.msk [vmem:[#allocation2 + $0xb8] sm:$0xff] %vm546, %v5101
      %5138 = vst.msk [vmem:[#allocation2 + $0xc0] sm:$0xff] %vm546, %v5102
      %5139 = vst.msk [vmem:[#allocation2 + $0xc8] sm:$0xff] %vm546, %v5103
      %5140 = vst.msk [vmem:[#allocation2 + $0xd0] sm:$0xff] %vm546, %v5104
      %5141 = vst.msk [vmem:[#allocation2 + $0xd8] sm:$0xff] %vm546, %v5105
      %5142 = vst.msk [vmem:[#allocation2 + $0xe0] sm:$0xff] %vm546, %v5106
      %5143 = vst.msk [vmem:[#allocation2 + $0xe8] sm:$0xff] %vm546, %v5107
      %5144 = vst.msk [vmem:[#allocation2 + $0xf0] sm:$0xff] %vm546, %v5108
      %5145 = vst.msk [vmem:[#allocation2 + $0xf8] sm:$0xff] %vm546, %v5109
      %5146 = vst.msk [vmem:[#allocation2 + $0x100] sm:$0xff] %vm546, %v5110
      %5147 = vst.msk [vmem:[#allocation2 + $0x108] sm:$0xff] %vm546, %v5111
      %5148 = vst.msk [vmem:[#allocation2 + $0x110] sm:$0xff] %vm546, %v5112
      %5149 = vst.msk [vmem:[#allocation2 + $0x118] sm:$0xff] %vm546, %v5113
      %v5150 = vld [vmem:[%s2] sm:$0x1]
      loop: start=0, step=1, limit=8
      $region33: #{custom_cnn_forward.6} parent=31 // loop_pre_header
        _
      $region34: #{custom_cnn_forward.6} parent=31 // loop_header
        %s5152 = sphi 0, %s5156
        %p5153 = scmp.ge.s32.totalorder %s5152, 8
      $region35: #{custom_cnn_forward.6} parent=31 // loop_header_branch
        %5155 = sbr.rel (%p5153) target = $region39
      $region36: #{custom_cnn_forward.6} parent=31 // loop_body
        %s5157 = smul.u32 %s5152, 36
        %s5158 = scalar_lea.vmem [#allocation2], %s5157
        %v5159 = vld [vmem:[%s5158] sm:$0xff]
        %v5160 = vld [vmem:[%s5158 + $0x8] sm:$0xff]
        %s5161 = sadd.s32 %s5157, 18
        %s5162 = scalar_lea.vmem [#allocation2], %s5161
        %v5163 = vld [vmem:[%s5162] sm:$0xff]
        %v5164 = vld [vmem:[%s5162 + $0x8] sm:$0xff]
        %v5165 = vmax.f32 %v5159, %v5163
        %v5166 = vmax.f32 %v5160, %v5164
        %5167 = vst.msk [vmem:[#allocation3] sm:$0xff] %vm546, %v5165
        %5168 = vst.msk [vmem:[#allocation3 + $0x8] sm:$0xff] %vm546, %v5166
        %v5169 = vld [vmem:[#allocation3] ss:$2 sm:$0xff]
        %s5170 = scalar_lea.vmem [#allocation3], 1
        %v5171 = vld [vmem:[%s5170] ss:$2 sm:$0xff]
        %v5172 = vmax.f32 %v5169, %v5171
        %v5174 = vlaneseq
        %v5175 = vshrl.u32 %v5174, 7
        %v5176 = vsub.s32 0, %v5175
        %v5177 = vrot.slane %v5150, %v5176
        %v5179 = vadd.f32 %v5172, %v5177
        %v5180 = vmax.f32 %v5179, 0.0
        %v5181 = vpack.c.bf16 %v5180, %v5180
        %s5182 = smul.addr %s5152, 4
        %s5183 = scalar_lea.vmem %s170, %s5182
        %vm5184 = vcmask 519168
        %5185 = vst.msk [vmem:[%s5183] sm:$0xf] %vm5184, %v5181
      $region37: #{custom_cnn_forward.6} parent=31 // loop_footer
        %s5156 = sadd.s32 1, %s5152
      $region38: #{custom_cnn_forward.6} parent=31 // loop_footer_branch
        %5151 = sbr.rel target = $region34
      $region39: #{custom_cnn_forward.6} parent=31 // loop_exit
        _
      %p5186 = scmp.lt.s32.totalorder %s14, 1
      %s5187 = scalar_select %p5186, %s14, 1
      %s5188 = smul.addr %s5187, 8
      %s5189 = smul.addr %s5188, 4
      %s5190 = scalar_lea.vmem %s3, %s5189
      // Predicated region
      $region40: #{custom_cnn_forward.6} parent=31 // pred_check
        %p5191 = pneg %p100
      $region41: #{custom_cnn_forward.6} parent=31 // pred_check_branch
        %5193 = sbr.rel (%p5191) target = $region43
      $region42: #{custom_cnn_forward.6} parent=31 // pred_region
        _
      $region43: #{custom_cnn_forward.6} parent=31 // pred_fallthru
        _
    $region32: #{custom_cnn_forward.6} parent=5 // pred_fallthru
      _
    %p5194 = scmp.le.s32.totalorder 2, %s9
    // Predicated region
    $region44: #{custom_cnn_forward.6} parent=5 // pred_check
      %p5195 = pneg %p5194
    $region45: #{custom_cnn_forward.6} parent=5 // pred_check_branch
      %5197 = sbr.rel (%p5195) target = $region47
    $region46: #{custom_cnn_forward.6} parent=5 // pred_region
      %s5198 = ssub.s32 %s9, 2
      // Predicated region
      $region48: #{custom_cnn_forward.6} parent=46 // pred_check
        %p5199 = pneg %p106
      $region49: #{custom_cnn_forward.6} parent=46 // pred_check_branch
        %5201 = sbr.rel (%p5199) target = $region51
      $region50: #{custom_cnn_forward.6} parent=46 // pred_region
        %p5202 = scmp.lt.s32.totalorder %s15, 1
        %s5203 = scalar_select %p5202, %s15, 1
        %s5204 = smul.addr %s5203, 8
        %s5205 = smul.addr %s5204, 4
        %s5206 = scalar_lea.vmem %s3, %s5205
      $region51: #{custom_cnn_forward.6} parent=46 // pred_fallthru
        _
    $region47: #{custom_cnn_forward.6} parent=5 // pred_fallthru
      _
  $region6: #{custom_cnn_forward.6} parent=0 // loop_footer
    %s13 = sadd.s32 1, %s9
  $region7: #{custom_cnn_forward.6} parent=0 // loop_footer_branch
    %8 = sbr.rel target = $region3
  $region8: #{custom_cnn_forward.6} parent=0 // loop_exit
    _

</llo_original>
